<compile_context>
chip_gen: v6e
topology: v6e:2x2x1
jax: 0.10.0
libtpu: 0.0.40
codegen_flags: <defaults>
</compile_context>

<pallas_src>
import functools

import jax
import jax.numpy as jnp
from jax.experimental import pallas as pl
from jax.experimental.pallas import tpu as pltpu


_BN_EPS = 1e-5
_IMAGENET_MEAN = jnp.array([0.485, 0.456, 0.406], jnp.float32)
_IMAGENET_STD = jnp.array([0.229, 0.224, 0.225], jnp.float32)


# ----------------------- fused matmul + epilogue kernel ----------------------

def _fused_mm_kernel(a_ref, b_ref, s_ref, c_ref, o_ref, acc_ref, *, relu):
    @pl.when(pl.program_id(2) == 0)
    def _():
        acc_ref[...] = jnp.zeros_like(acc_ref)

    acc_ref[...] += jnp.dot(a_ref[...], b_ref[...],
                            preferred_element_type=jnp.float32)

    @pl.when(pl.program_id(2) == pl.num_programs(2) - 1)
    def _():
        y = acc_ref[...] * s_ref[...] + c_ref[...]
        if relu:
            y = jnp.maximum(y, 0.0)
        o_ref[...] = y.astype(o_ref.dtype)


def _fused_mm_res_kernel(a_ref, b_ref, s_ref, c_ref, r_ref, o_ref, acc_ref, *,
                         relu):
    @pl.when(pl.program_id(2) == 0)
    def _():
        acc_ref[...] = jnp.zeros_like(acc_ref)

    acc_ref[...] += jnp.dot(a_ref[...], b_ref[...],
                            preferred_element_type=jnp.float32)

    @pl.when(pl.program_id(2) == pl.num_programs(2) - 1)
    def _():
        y = acc_ref[...] * s_ref[...] + c_ref[...] + r_ref[...].astype(jnp.float32)
        if relu:
            y = jnp.maximum(y, 0.0)
        o_ref[...] = y.astype(o_ref.dtype)


def _pick_tk(k, max_tk=2048):
    """Pick a K tile that divides K exactly (no ragged K -> no garbage acc)."""
    if k <= max_tk:
        return k
    t = (max_tk // 128) * 128
    while t >= 128:
        if k % t == 0:
            return t
        t -= 128
    return k  # fall back to a single (large) K block


def fused_matmul(a, b, scale, bias, residual=None, relu=False,
                 out_dtype=jnp.bfloat16):
    """(M,K) @ (K,Np) -> per-column scale/bias (+residual) (+ReLU) -> (M,Np).

    a, b, residual: bf16; scale/bias: f32 of shape (1, Np); f32 accumulation.
    Np must be a multiple of 128 (lane-dense stores).
    """
    M, K = a.shape
    K2, Np = b.shape
    assert K == K2 and Np % 128 == 0
    tm = M if M <= 256 else 256
    tn = 256 if Np % 256 == 0 else 128
    tk = _pick_tk(K)
    nm = pl.cdiv(M, tm)          # ragged last M tile handled by Pallas masking
    nn = Np // tn
    nk = pl.cdiv(K, tk)          # exact by construction of _pick_tk

    in_specs = [
        pl.BlockSpec((tm, tk), lambda i, j, k: (i, k)),
        pl.BlockSpec((tk, tn), lambda i, j, k: (k, j)),
        pl.BlockSpec((1, tn), lambda i, j, k: (0, j)),
        pl.BlockSpec((1, tn), lambda i, j, k: (0, j)),
    ]
    args = [a, b, scale, bias]
    if residual is not None:
        in_specs.append(pl.BlockSpec((tm, tn), lambda i, j, k: (i, j)))
        args.append(residual)
        kern = functools.partial(_fused_mm_res_kernel, relu=relu)
    else:
        kern = functools.partial(_fused_mm_kernel, relu=relu)

    return pl.pallas_call(
        kern,
        out_shape=jax.ShapeDtypeStruct((M, Np), out_dtype),
        grid=(nm, nn, nk),
        in_specs=in_specs,
        out_specs=pl.BlockSpec((tm, tn), lambda i, j, k: (i, j)),
        scratch_shapes=[pltpu.VMEM((tm, tn), jnp.float32)],
        compiler_params=pltpu.CompilerParams(
            dimension_semantics=("parallel", "parallel", "arbitrary")),
    )(*args)


# ----------------------------- conv wrappers ---------------------------------

def conv1x1(x, wmat, scale, bias, stride=1, relu=False, residual=None):
    """1x1 conv as a direct matmul on NHWC (no im2col)."""
    if stride > 1:
        x = x[:, ::stride, ::stride, :]
    N, H, W, C = x.shape
    a = x.reshape(N * H * W, C)
    r = None
    if residual is not None:
        r = residual.reshape(N * H * W, residual.shape[-1])
    y = fused_matmul(a, wmat, scale, bias, residual=r, relu=relu)
    return y.reshape(N, H, W, wmat.shape[1])


def _im2col(x, kh, kw, stride, pad):
    # TODO(synk): replace with an implicit-GEMM Pallas kernel (manual DMA of
    # shifted windows) to avoid materializing the kh*kw-inflated patch matrix.
    N, H, W, C = x.shape
    xp = jnp.pad(x, ((0, 0), (pad, pad), (pad, pad), (0, 0)))
    Ho = (H + 2 * pad - kh) // stride + 1
    Wo = (W + 2 * pad - kw) // stride + 1
    cols = []
    for i in range(kh):
        for j in range(kw):
            cols.append(xp[:, i:i + stride * Ho:stride,
                           j:j + stride * Wo:stride, :])
    patches = jnp.concatenate(cols, axis=-1)             # bf16, (N,Ho,Wo,kh*kw*C)
    return patches.reshape(N * Ho * Wo, kh * kw * C), Ho, Wo


def conv_kxk(x, wmat, kh, kw, stride, pad, scale, bias, relu, residual=None):
    patches, Ho, Wo = _im2col(x, kh, kw, stride, pad)
    r = None
    if residual is not None:
        r = residual.reshape(-1, residual.shape[-1])
    y = fused_matmul(patches, wmat, scale, bias, residual=r, relu=relu)
    return y.reshape(x.shape[0], Ho, Wo, wmat.shape[1])


# ----------------------------- pooling ---------------------------------------

def maxpool_3x3_s2_p1(x):
    """3x3 / stride-2 / pad-1 max pool as a fused jnp.maximum tree (one pass).

    TODO(synk): in-kernel Pallas variant with strided window max per tile.
    """
    N, H, W, C = x.shape
    xp = jnp.pad(x, ((0, 0), (1, 1), (1, 1), (0, 0)),
                 constant_values=-jnp.inf)
    Ho = (H + 2 - 3) // 2 + 1
    Wo = (W + 2 - 3) // 2 + 1
    y = None
    for i in range(3):
        for j in range(3):
            win = xp[:, i:i + 2 * Ho:2, j:j + 2 * Wo:2, :]
            y = win if y is None else jnp.maximum(y, win)
    return y


def _avgpool_kernel(x_ref, o_ref):
    o_ref[...] = jnp.mean(x_ref[...].astype(jnp.float32), axis=1, keepdims=True)


def global_avgpool(x):
    N, H, W, C = x.shape
    x2 = x.reshape(N, H * W, C)
    y = pl.pallas_call(
        _avgpool_kernel,
        out_shape=jax.ShapeDtypeStruct((N, 1, C), jnp.float32),
        grid=(N,),
        in_specs=[pl.BlockSpec((1, H * W, C), lambda n: (n, 0, 0))],
        out_specs=pl.BlockSpec((1, 1, C), lambda n: (n, 0, 0)),
        compiler_params=pltpu.CompilerParams(dimension_semantics=("parallel",)),
    )(x2)
    return y.reshape(N, C)


# ----------------------------- parameters ------------------------------------

class _ParamGen:
    def __init__(self, seed):
        self._key = jax.random.PRNGKey(seed)
        self._n = 0

    def next_key(self):
        self._n += 1
        return jax.random.fold_in(self._key, self._n)


def _conv_init(pg, cin, cout, k):
    fan_in = cin * k * k
    std = (2.0 / fan_in) ** 0.5
    return std * jax.random.normal(pg.next_key(), (cout, cin, k, k), jnp.float32)


def _bn_init(pg, c):
    return {
        "gamma": jnp.ones((c,), jnp.float32),
        "beta": jnp.zeros((c,), jnp.float32),
        "mean": 0.01 * jax.random.normal(pg.next_key(), (c,), jnp.float32),
        "var": jnp.ones((c,), jnp.float32),
    }


def _bottleneck_init(pg, cin, cmid, cout, stride):
    p = {
        "conv1": _conv_init(pg, cin, cmid, 1), "bn1": _bn_init(pg, cmid),
        "conv2": _conv_init(pg, cmid, cmid, 3), "bn2": _bn_init(pg, cmid),
        "conv3": _conv_init(pg, cmid, cout, 1), "bn3": _bn_init(pg, cout),
        "stride": stride,
    }
    if stride != 1 or cin != cout:
        p["down_conv"] = _conv_init(pg, cin, cout, 1)
        p["down_bn"] = _bn_init(pg, cout)
    return p


def make_params(seed=0, width=8, num_classes=1000):
    """ResNet-50 topology ([3,4,6,3] bottlenecks), deterministic weights."""
    pg = _ParamGen(seed)
    params = {"conv1": _conv_init(pg, 3, width, 7), "bn1": _bn_init(pg, width)}
    inplanes = width
    layers = []
    for stage, (blocks, stride) in enumerate(zip((3, 4, 6, 3), (1, 2, 2, 2))):
        cmid = width * (2 ** stage)
        cout = cmid * 4
        blocks_p = []
        for b in range(blocks):
            s = stride if b == 0 else 1
            blocks_p.append(_bottleneck_init(pg, inplanes, cmid, cout, s))
            inplanes = cout
        layers.append(blocks_p)
    params["layers"] = layers
    params["fc_w"] = (1.0 / inplanes ** 0.5) * jax.random.normal(
        pg.next_key(), (inplanes, num_classes), jnp.float32)
    params["fc_b"] = jnp.zeros((num_classes,), jnp.float32)
    return params


# --------------------- fold BN + repack to TPU-friendly form -----------------

def _pad128(c):
    return ((c + 127) // 128) * 128


def _fold_bn(bn):
    scale = bn["gamma"] / jnp.sqrt(bn["var"] + _BN_EPS)
    bias = bn["beta"] - bn["mean"] * scale
    return scale, bias


def _pack_conv(w, cin_p, cout_p):
    """PyTorch (Cout,Cin,kh,kw) -> zero-padded (kh*kw*cin_p, cout_p) bf16."""
    cout, cin, kh, kw = w.shape
    wt = jnp.transpose(w, (2, 3, 1, 0))                     # (kh, kw, Cin, Cout)
    wp = jnp.zeros((kh, kw, cin_p, cout_p), jnp.float32)
    wp = wp.at[:, :, :cin, :cout].set(wt)
    return wp.reshape(kh * kw * cin_p, cout_p).astype(jnp.bfloat16)


def _pad_vec(v, n, fill):
    out = jnp.full((1, n), fill, jnp.float32)
    return out.at[0, :v.shape[0]].set(v.astype(jnp.float32))


def prepare_params(params, num_classes=1000):
    prep = {"num_classes": num_classes}
    width = params["conv1"].shape[0]
    wp = _pad128(width)
    s, b = _fold_bn(params["bn1"])
    prep["stem_w"] = _pack_conv(params["conv1"], 3, wp)     # image keeps 3 ch
    prep["stem_s"] = _pad_vec(s, wp, 1.0)
    prep["stem_b"] = _pad_vec(b, wp, 0.0)

    layers = []
    for stage in params["layers"]:
        blocks = []
        for p in stage:
            cmid, cin = p["conv1"].shape[0], p["conv1"].shape[1]
            cout = p["conv3"].shape[0]
            cin_p, cmid_p, cout_p = _pad128(cin), _pad128(cmid), _pad128(cout)
            s1, b1 = _fold_bn(p["bn1"])
            s2, b2 = _fold_bn(p["bn2"])
            s3, b3 = _fold_bn(p["bn3"])
            blk = {
                "stride": p["stride"],
                "w1": _pack_conv(p["conv1"], cin_p, cmid_p),
                "s1": _pad_vec(s1, cmid_p, 1.0), "b1": _pad_vec(b1, cmid_p, 0.0),
                "w2": _pack_conv(p["conv2"], cmid_p, cmid_p),
                "s2": _pad_vec(s2, cmid_p, 1.0), "b2": _pad_vec(b2, cmid_p, 0.0),
                "w3": _pack_conv(p["conv3"], cmid_p, cout_p),
                "s3": _pad_vec(s3, cout_p, 1.0), "b3": _pad_vec(b3, cout_p, 0.0),
            }
            if "down_conv" in p:
                sd, bd = _fold_bn(p["down_bn"])
                blk["wd"] = _pack_conv(p["down_conv"], cin_p, cout_p)
                blk["sd"] = _pad_vec(sd, cout_p, 1.0)
                blk["bd"] = _pad_vec(bd, cout_p, 0.0)
            blocks.append(blk)
        layers.append(blocks)
    prep["layers"] = layers

    inpl = params["fc_w"].shape[0]
    inpl_p, nc_p = _pad128(inpl), _pad128(num_classes)
    fcw = jnp.zeros((inpl_p, nc_p), jnp.float32)
    fcw = fcw.at[:inpl, :num_classes].set(params["fc_w"])
    prep["fc_w"] = fcw.astype(jnp.bfloat16)
    prep["fc_s"] = jnp.ones((1, nc_p), jnp.float32)
    prep["fc_b"] = _pad_vec(params["fc_b"], nc_p, 0.0)
    return prep


# ----------------------------- forward pass ----------------------------------

def bottleneck_forward(x, blk):
    out = conv1x1(x, blk["w1"], blk["s1"], blk["b1"], stride=1, relu=True)
    out = conv_kxk(out, blk["w2"], 3, 3, blk["stride"], 1,
                   blk["s2"], blk["b2"], relu=True)
    if "wd" in blk:
        identity = conv1x1(x, blk["wd"], blk["sd"], blk["bd"],
                           stride=blk["stride"], relu=False)
    else:
        identity = x
    # conv3 + BN3 + residual add + ReLU fully fused into one matmul epilogue.
    return conv1x1(out, blk["w3"], blk["s3"], blk["b3"], stride=1, relu=True,
                   residual=identity)


def defense_fastat_forward(prep, x_nchw):
    # PyTorch module convention: NCHW float image in [0, 1].
    x = jnp.transpose(x_nchw, (0, 2, 3, 1)).astype(jnp.float32)      # -> NHWC
    # ImageNet normalization of the (tiny, 3-channel) input, fused by XLA with
    # the bf16 cast / im2col padding of the stem conv -- no extra HBM pass.
    x = ((x - _IMAGENET_MEAN) * (1.0 / _IMAGENET_STD)).astype(jnp.bfloat16)
    # Stem: 7x7/2 conv fused with BN + ReLU, then 3x3/2 max pool.
    x = conv_kxk(x, prep["stem_w"], 7, 7, 2, 3,
                 prep["stem_s"], prep["stem_b"], relu=True)
    x = maxpool_3x3_s2_p1(x)
    # Four bottleneck stages.
    for stage in prep["layers"]:
        for blk in stage:
            x = bottleneck_forward(x, blk)
    # Head: global average pool -> FC (bias fused into the matmul epilogue).
    feat = global_avgpool(x).astype(jnp.bfloat16)
    logits = fused_matmul(feat, prep["fc_w"], prep["fc_s"], prep["fc_b"],
                          relu=False, out_dtype=jnp.float32)
    return logits[:, :prep["num_classes"]]


# ----------------------------- main -------------------------------------------

if __name__ == "__main__":
    params = make_params(seed=0, width=8, num_classes=1000)
    prep = prepare_params(params, num_classes=1000)
    key = jax.random.PRNGKey(0)
    x = jax.random.uniform(key, (2, 3, 32, 32), jnp.float32)          # NCHW
    fwd = jax.jit(lambda inp: defense_fastat_forward(prep, inp))
    logits = jax.block_until_ready(fwd(x))
    assert logits.shape == (2, 1000), logits.shape
    assert bool(jnp.all(jnp.isfinite(logits)))
    print("KERNEL_OK")
</pallas_src>

<mosaic_0001>
module attributes {stable_mosaic.version = 11 : i64} {
  func.func @_fused_mm_kernel(%arg0: i32, %arg1: i32, %arg2: i32, %arg3: memref<256x147xbf16, #tpu.memory_space<vmem>>, %arg4: memref<147x128xbf16, #tpu.memory_space<vmem>>, %arg5: memref<1x128xf32, #tpu.memory_space<vmem>>, %arg6: memref<1x128xf32, #tpu.memory_space<vmem>>, %arg7: memref<256x128xbf16, #tpu.memory_space<vmem>>, %arg8: memref<256x128xf32, #tpu.memory_space<vmem>>) attributes {dimension_semantics = [#tpu.dimension_semantics<parallel>, #tpu.dimension_semantics<parallel>, #tpu.dimension_semantics<arbitrary>], iteration_bounds = array<i64: 2, 1, 1>, scalar_prefetch = 0 : i64, scratch_operands = 1 : i64, tpu.core_type = #tpu.core_type<tc>, window_params = [{transform_indices = @transform_0, window_bounds = array<i64: 256, 147>}, {transform_indices = @transform_1, window_bounds = array<i64: 147, 128>}, {transform_indices = @transform_2, window_bounds = array<i64: 1, 128>}, {transform_indices = @transform_3, window_bounds = array<i64: 1, 128>}, {transform_indices = @transform_4, window_bounds = array<i64: 256, 128>}]} {
    %c0_i32 = arith.constant 0 : i32
    %0 = arith.cmpi eq, %arg2, %c0_i32 : i32
    %1 = arith.extui %0 : i1 to i32
    %c0_i32_0 = arith.constant 0 : i32
    %2 = arith.cmpi ne, %1, %c0_i32_0 : i32
    scf.if %2 {
      %cst_10 = arith.constant 0.000000e+00 : f32
      %12 = vector.broadcast %cst_10 : f32 to vector<256x128xf32>
      %c0_11 = arith.constant 0 : index
      %c0_12 = arith.constant 0 : index
      %13 = vector.load %arg8[%c0_11, %c0_12] : memref<256x128xf32, #tpu.memory_space<vmem>>, vector<256x128xf32>
      tpu.vector_store %arg8[%c0_11, %c0_12], %12 {strides = array<i32>} : memref<256x128xf32, #tpu.memory_space<vmem>>, vector<256x128xf32>,
    } else {
    }
    %c0 = arith.constant 0 : index
    %c0_1 = arith.constant 0 : index
    %3 = vector.load %arg8[%c0, %c0_1] : memref<256x128xf32, #tpu.memory_space<vmem>>, vector<256x128xf32>
    %c0_2 = arith.constant 0 : index
    %c0_3 = arith.constant 0 : index
    %4 = vector.load %arg3[%c0_2, %c0_3] : memref<256x147xbf16, #tpu.memory_space<vmem>>, vector<256x147xbf16>
    %c0_4 = arith.constant 0 : index
    %c0_5 = arith.constant 0 : index
    %5 = vector.load %arg4[%c0_4, %c0_5] : memref<147x128xbf16, #tpu.memory_space<vmem>>, vector<147x128xbf16>
    %cst = arith.constant dense<0.000000e+00> : vector<256x128xf32>
    %6 = tpu.matmul %4, %5, %cst {dimension_numbers = #tpu.dot_dimension_numbers<[1], [0], [0], [1], [0, 0, 1, 1], [], []>} : vector<256x147xbf16>, vector<147x128xbf16>, vector<256x128xf32> -> vector<256x128xf32>
    %7 = arith.addf %3, %6 : vector<256x128xf32>
    %c0_6 = arith.constant 0 : index
    %c0_7 = arith.constant 0 : index
    %8 = vector.load %arg8[%c0_6, %c0_7] : memref<256x128xf32, #tpu.memory_space<vmem>>, vector<256x128xf32>
    tpu.vector_store %arg8[%c0_6, %c0_7], %7 {strides = array<i32>} : memref<256x128xf32, #tpu.memory_space<vmem>>, vector<256x128xf32>,
    %c0_i32_8 = arith.constant 0 : i32
    %9 = arith.cmpi eq, %arg2, %c0_i32_8 : i32
    %10 = arith.extui %9 : i1 to i32
    %c0_i32_9 = arith.constant 0 : i32
    %11 = arith.cmpi ne, %10, %c0_i32_9 : i32
    scf.if %11 {
      %c0_10 = arith.constant 0 : index
      %c0_11 = arith.constant 0 : index
      %12 = vector.load %arg8[%c0_10, %c0_11] : memref<256x128xf32, #tpu.memory_space<vmem>>, vector<256x128xf32>
      %c0_12 = arith.constant 0 : index
      %c0_13 = arith.constant 0 : index
      %13 = vector.load %arg5[%c0_12, %c0_13] : memref<1x128xf32, #tpu.memory_space<vmem>>, vector<1x128xf32>
      %14 = vector.broadcast %13 : vector<1x128xf32> to vector<256x128xf32>
      %15 = arith.mulf %12, %14 : vector<256x128xf32>
      %c0_14 = arith.constant 0 : index
      %c0_15 = arith.constant 0 : index
      %16 = vector.load %arg6[%c0_14, %c0_15] : memref<1x128xf32, #tpu.memory_space<vmem>>, vector<1x128xf32>
      %17 = vector.broadcast %16 : vector<1x128xf32> to vector<256x128xf32>
      %18 = arith.addf %15, %17 : vector<256x128xf32>
      %cst_16 = arith.constant 0.000000e+00 : f32
      %19 = vector.broadcast %cst_16 : f32 to vector<256x128xf32>
      %20 = arith.maximumf %18, %19 : vector<256x128xf32>
      %21 = arith.truncf %20 : vector<256x128xf32> to vector<256x128xbf16>
      %c0_17 = arith.constant 0 : index
      %c0_18 = arith.constant 0 : index
      %22 = vector.load %arg7[%c0_17, %c0_18] : memref<256x128xbf16, #tpu.memory_space<vmem>>, vector<256x128xbf16>
      tpu.vector_store %arg7[%c0_17, %c0_18], %21 {strides = array<i32>} : memref<256x128xbf16, #tpu.memory_space<vmem>>, vector<256x128xbf16>,
    } else {
    }
    return
  }
  func.func @transform_0(%arg0: i32, %arg1: i32, %arg2: i32) -> (i32, i32) {
    %c0_i32 = arith.constant 0 : i32
    return %arg0, %arg2 : i32, i32
  }
  func.func @transform_1(%arg0: i32, %arg1: i32, %arg2: i32) -> (i32, i32) {
    %c0_i32 = arith.constant 0 : i32
    return %arg2, %arg1 : i32, i32
  }
  func.func @transform_2(%arg0: i32, %arg1: i32, %arg2: i32) -> (i32, i32) {
    %c0_i32 = arith.constant 0 : i32
    %c0_i32_0 = arith.constant 0 : i32
    return %c0_i32, %arg1 : i32, i32
  }
  func.func @transform_3(%arg0: i32, %arg1: i32, %arg2: i32) -> (i32, i32) {
    %c0_i32 = arith.constant 0 : i32
    %c0_i32_0 = arith.constant 0 : i32
    return %c0_i32, %arg1 : i32, i32
  }
  func.func @transform_4(%arg0: i32, %arg1: i32, %arg2: i32) -> (i32, i32) {
    %c0_i32 = arith.constant 0 : i32
    return %arg0, %arg1 : i32, i32
  }
}

module attributes {stable_mosaic.version = 11 : i64} {
  func.func @_fused_mm_kernel(%arg0: i32, %arg1: i32, %arg2: i32, %arg3: memref<128x128xbf16, #tpu.memory_space<vmem>>, %arg4: memref<128x128xbf16, #tpu.memory_space<vmem>>, %arg5: memref<1x128xf32, #tpu.memory_space<vmem>>, %arg6: memref<1x128xf32, #tpu.memory_space<vmem>>, %arg7: memref<128x128xbf16, #tpu.memory_space<vmem>>, %arg8: memref<128x128xf32, #tpu.memory_space<vmem>>) attributes {dimension_semantics = [#tpu.dimension_semantics<parallel>, #tpu.dimension_semantics<parallel>, #tpu.dimension_semantics<arbitrary>], iteration_bounds = array<i64: 1, 1, 1>, scalar_prefetch = 0 : i64, scratch_operands = 1 : i64, tpu.core_type = #tpu.core_type<tc>, window_params = [{transform_indices = @transform_0, window_bounds = array<i64: 128, 128>}, {transform_indices = @transform_1, window_bounds = array<i64: 128, 128>}, {transform_indices = @transform_2, window_bounds = array<i64: 1, 128>}, {transform_indices = @transform_3, window_bounds = array<i64: 1, 128>}, {transform_indices = @transform_4, window_bounds = array<i64: 128, 128>}]} {
    %c0_i32 = arith.constant 0 : i32
    %0 = arith.cmpi eq, %arg2, %c0_i32 : i32
    %1 = arith.extui %0 : i1 to i32
    %c0_i32_0 = arith.constant 0 : i32
    %2 = arith.cmpi ne, %1, %c0_i32_0 : i32
    scf.if %2 {
      %cst_10 = arith.constant 0.000000e+00 : f32
      %12 = vector.broadcast %cst_10 : f32 to vector<128x128xf32>
      %c0_11 = arith.constant 0 : index
      %c0_12 = arith.constant 0 : index
      %13 = vector.load %arg8[%c0_11, %c0_12] : memref<128x128xf32, #tpu.memory_space<vmem>>, vector<128x128xf32>
      tpu.vector_store %arg8[%c0_11, %c0_12], %12 {strides = array<i32>} : memref<128x128xf32, #tpu.memory_space<vmem>>, vector<128x128xf32>,
    } else {
    }
    %c0 = arith.constant 0 : index
    %c0_1 = arith.constant 0 : index
    %3 = vector.load %arg8[%c0, %c0_1] : memref<128x128xf32, #tpu.memory_space<vmem>>, vector<128x128xf32>
    %c0_2 = arith.constant 0 : index
    %c0_3 = arith.constant 0 : index
    %4 = vector.load %arg3[%c0_2, %c0_3] : memref<128x128xbf16, #tpu.memory_space<vmem>>, vector<128x128xbf16>
    %c0_4 = arith.constant 0 : index
    %c0_5 = arith.constant 0 : index
    %5 = vector.load %arg4[%c0_4, %c0_5] : memref<128x128xbf16, #tpu.memory_space<vmem>>, vector<128x128xbf16>
    %cst = arith.constant dense<0.000000e+00> : vector<128x128xf32>
    %6 = tpu.matmul %4, %5, %cst {dimension_numbers = #tpu.dot_dimension_numbers<[1], [0], [0], [1], [0, 0, 1, 1], [], []>} : vector<128x128xbf16>, vector<128x128xbf16>, vector<128x128xf32> -> vector<128x128xf32>
    %7 = arith.addf %3, %6 : vector<128x128xf32>
    %c0_6 = arith.constant 0 : index
    %c0_7 = arith.constant 0 : index
    %8 = vector.load %arg8[%c0_6, %c0_7] : memref<128x128xf32, #tpu.memory_space<vmem>>, vector<128x128xf32>
    tpu.vector_store %arg8[%c0_6, %c0_7], %7 {strides = array<i32>} : memref<128x128xf32, #tpu.memory_space<vmem>>, vector<128x128xf32>,
    %c0_i32_8 = arith.constant 0 : i32
    %9 = arith.cmpi eq, %arg2, %c0_i32_8 : i32
    %10 = arith.extui %9 : i1 to i32
    %c0_i32_9 = arith.constant 0 : i32
    %11 = arith.cmpi ne, %10, %c0_i32_9 : i32
    scf.if %11 {
      %c0_10 = arith.constant 0 : index
      %c0_11 = arith.constant 0 : index
      %12 = vector.load %arg8[%c0_10, %c0_11] : memref<128x128xf32, #tpu.memory_space<vmem>>, vector<128x128xf32>
      %c0_12 = arith.constant 0 : index
      %c0_13 = arith.constant 0 : index
      %13 = vector.load %arg5[%c0_12, %c0_13] : memref<1x128xf32, #tpu.memory_space<vmem>>, vector<1x128xf32>
      %14 = vector.broadcast %13 : vector<1x128xf32> to vector<128x128xf32>
      %15 = arith.mulf %12, %14 : vector<128x128xf32>
      %c0_14 = arith.constant 0 : index
      %c0_15 = arith.constant 0 : index
      %16 = vector.load %arg6[%c0_14, %c0_15] : memref<1x128xf32, #tpu.memory_space<vmem>>, vector<1x128xf32>
      %17 = vector.broadcast %16 : vector<1x128xf32> to vector<128x128xf32>
      %18 = arith.addf %15, %17 : vector<128x128xf32>
      %cst_16 = arith.constant 0.000000e+00 : f32
      %19 = vector.broadcast %cst_16 : f32 to vector<128x128xf32>
      %20 = arith.maximumf %18, %19 : vector<128x128xf32>
      %21 = arith.truncf %20 : vector<128x128xf32> to vector<128x128xbf16>
      %c0_17 = arith.constant 0 : index
      %c0_18 = arith.constant 0 : index
      %22 = vector.load %arg7[%c0_17, %c0_18] : memref<128x128xbf16, #tpu.memory_space<vmem>>, vector<128x128xbf16>
      tpu.vector_store %arg7[%c0_17, %c0_18], %21 {strides = array<i32>} : memref<128x128xbf16, #tpu.memory_space<vmem>>, vector<128x128xbf16>,
    } else {
    }
    return
  }
  func.func @transform_0(%arg0: i32, %arg1: i32, %arg2: i32) -> (i32, i32) {
    %c0_i32 = arith.constant 0 : i32
    return %arg0, %arg2 : i32, i32
  }
  func.func @transform_1(%arg0: i32, %arg1: i32, %arg2: i32) -> (i32, i32) {
    %c0_i32 = arith.constant 0 : i32
    return %arg2, %arg1 : i32, i32
  }
  func.func @transform_2(%arg0: i32, %arg1: i32, %arg2: i32) -> (i32, i32) {
    %c0_i32 = arith.constant 0 : i32
    %c0_i32_0 = arith.constant 0 : i32
    return %c0_i32, %arg1 : i32, i32
  }
  func.func @transform_3(%arg0: i32, %arg1: i32, %arg2: i32) -> (i32, i32) {
    %c0_i32 = arith.constant 0 : i32
    %c0_i32_0 = arith.constant 0 : i32
    return %c0_i32, %arg1 : i32, i32
  }
  func.func @transform_4(%arg0: i32, %arg1: i32, %arg2: i32) -> (i32, i32) {
    %c0_i32 = arith.constant 0 : i32
    return %arg0, %arg1 : i32, i32
  }
}

module attributes {stable_mosaic.version = 11 : i64} {
  func.func @_fused_mm_kernel(%arg0: i32, %arg1: i32, %arg2: i32, %arg3: memref<128x128xbf16, #tpu.memory_space<vmem>>, %arg4: memref<128x128xbf16, #tpu.memory_space<vmem>>, %arg5: memref<1x128xf32, #tpu.memory_space<vmem>>, %arg6: memref<1x128xf32, #tpu.memory_space<vmem>>, %arg7: memref<128x128xbf16, #tpu.memory_space<vmem>>, %arg8: memref<128x128xf32, #tpu.memory_space<vmem>>) attributes {dimension_semantics = [#tpu.dimension_semantics<parallel>, #tpu.dimension_semantics<parallel>, #tpu.dimension_semantics<arbitrary>], iteration_bounds = array<i64: 1, 1, 1>, scalar_prefetch = 0 : i64, scratch_operands = 1 : i64, tpu.core_type = #tpu.core_type<tc>, window_params = [{transform_indices = @transform_0, window_bounds = array<i64: 128, 128>}, {transform_indices = @transform_1, window_bounds = array<i64: 128, 128>}, {transform_indices = @transform_2, window_bounds = array<i64: 1, 128>}, {transform_indices = @transform_3, window_bounds = array<i64: 1, 128>}, {transform_indices = @transform_4, window_bounds = array<i64: 128, 128>}]} {
    %c0_i32 = arith.constant 0 : i32
    %0 = arith.cmpi eq, %arg2, %c0_i32 : i32
    %1 = arith.extui %0 : i1 to i32
    %c0_i32_0 = arith.constant 0 : i32
    %2 = arith.cmpi ne, %1, %c0_i32_0 : i32
    scf.if %2 {
      %cst_10 = arith.constant 0.000000e+00 : f32
      %12 = vector.broadcast %cst_10 : f32 to vector<128x128xf32>
      %c0_11 = arith.constant 0 : index
      %c0_12 = arith.constant 0 : index
      %13 = vector.load %arg8[%c0_11, %c0_12] : memref<128x128xf32, #tpu.memory_space<vmem>>, vector<128x128xf32>
      tpu.vector_store %arg8[%c0_11, %c0_12], %12 {strides = array<i32>} : memref<128x128xf32, #tpu.memory_space<vmem>>, vector<128x128xf32>,
    } else {
    }
    %c0 = arith.constant 0 : index
    %c0_1 = arith.constant 0 : index
    %3 = vector.load %arg8[%c0, %c0_1] : memref<128x128xf32, #tpu.memory_space<vmem>>, vector<128x128xf32>
    %c0_2 = arith.constant 0 : index
    %c0_3 = arith.constant 0 : index
    %4 = vector.load %arg3[%c0_2, %c0_3] : memref<128x128xbf16, #tpu.memory_space<vmem>>, vector<128x128xbf16>
    %c0_4 = arith.constant 0 : index
    %c0_5 = arith.constant 0 : index
    %5 = vector.load %arg4[%c0_4, %c0_5] : memref<128x128xbf16, #tpu.memory_space<vmem>>, vector<128x128xbf16>
    %cst = arith.constant dense<0.000000e+00> : vector<128x128xf32>
    %6 = tpu.matmul %4, %5, %cst {dimension_numbers = #tpu.dot_dimension_numbers<[1], [0], [0], [1], [0, 0, 1, 1], [], []>} : vector<128x128xbf16>, vector<128x128xbf16>, vector<128x128xf32> -> vector<128x128xf32>
    %7 = arith.addf %3, %6 : vector<128x128xf32>
    %c0_6 = arith.constant 0 : index
    %c0_7 = arith.constant 0 : index
    %8 = vector.load %arg8[%c0_6, %c0_7] : memref<128x128xf32, #tpu.memory_space<vmem>>, vector<128x128xf32>
    tpu.vector_store %arg8[%c0_6, %c0_7], %7 {strides = array<i32>} : memref<128x128xf32, #tpu.memory_space<vmem>>, vector<128x128xf32>,
    %c0_i32_8 = arith.constant 0 : i32
    %9 = arith.cmpi eq, %arg2, %c0_i32_8 : i32
    %10 = arith.extui %9 : i1 to i32
    %c0_i32_9 = arith.constant 0 : i32
    %11 = arith.cmpi ne, %10, %c0_i32_9 : i32
    scf.if %11 {
      %c0_10 = arith.constant 0 : index
      %c0_11 = arith.constant 0 : index
      %12 = vector.load %arg8[%c0_10, %c0_11] : memref<128x128xf32, #tpu.memory_space<vmem>>, vector<128x128xf32>
      %c0_12 = arith.constant 0 : index
      %c0_13 = arith.constant 0 : index
      %13 = vector.load %arg5[%c0_12, %c0_13] : memref<1x128xf32, #tpu.memory_space<vmem>>, vector<1x128xf32>
      %14 = vector.broadcast %13 : vector<1x128xf32> to vector<128x128xf32>
      %15 = arith.mulf %12, %14 : vector<128x128xf32>
      %c0_14 = arith.constant 0 : index
      %c0_15 = arith.constant 0 : index
      %16 = vector.load %arg6[%c0_14, %c0_15] : memref<1x128xf32, #tpu.memory_space<vmem>>, vector<1x128xf32>
      %17 = vector.broadcast %16 : vector<1x128xf32> to vector<128x128xf32>
      %18 = arith.addf %15, %17 : vector<128x128xf32>
      %19 = arith.truncf %18 : vector<128x128xf32> to vector<128x128xbf16>
      %c0_16 = arith.constant 0 : index
      %c0_17 = arith.constant 0 : index
      %20 = vector.load %arg7[%c0_16, %c0_17] : memref<128x128xbf16, #tpu.memory_space<vmem>>, vector<128x128xbf16>
      tpu.vector_store %arg7[%c0_16, %c0_17], %19 {strides = array<i32>} : memref<128x128xbf16, #tpu.memory_space<vmem>>, vector<128x128xbf16>,
    } else {
    }
    return
  }
  func.func @transform_0(%arg0: i32, %arg1: i32, %arg2: i32) -> (i32, i32) {
    %c0_i32 = arith.constant 0 : i32
    return %arg0, %arg2 : i32, i32
  }
  func.func @transform_1(%arg0: i32, %arg1: i32, %arg2: i32) -> (i32, i32) {
    %c0_i32 = arith.constant 0 : i32
    return %arg2, %arg1 : i32, i32
  }
  func.func @transform_2(%arg0: i32, %arg1: i32, %arg2: i32) -> (i32, i32) {
    %c0_i32 = arith.constant 0 : i32
    %c0_i32_0 = arith.constant 0 : i32
    return %c0_i32, %arg1 : i32, i32
  }
  func.func @transform_3(%arg0: i32, %arg1: i32, %arg2: i32) -> (i32, i32) {
    %c0_i32 = arith.constant 0 : i32
    %c0_i32_0 = arith.constant 0 : i32
    return %c0_i32, %arg1 : i32, i32
  }
  func.func @transform_4(%arg0: i32, %arg1: i32, %arg2: i32) -> (i32, i32) {
    %c0_i32 = arith.constant 0 : i32
    return %arg0, %arg1 : i32, i32
  }
}

module attributes {stable_mosaic.version = 11 : i64} {
  func.func @_fused_mm_kernel(%arg0: i32, %arg1: i32, %arg2: i32, %arg3: memref<128x1152xbf16, #tpu.memory_space<vmem>>, %arg4: memref<1152x128xbf16, #tpu.memory_space<vmem>>, %arg5: memref<1x128xf32, #tpu.memory_space<vmem>>, %arg6: memref<1x128xf32, #tpu.memory_space<vmem>>, %arg7: memref<128x128xbf16, #tpu.memory_space<vmem>>, %arg8: memref<128x128xf32, #tpu.memory_space<vmem>>) attributes {dimension_semantics = [#tpu.dimension_semantics<parallel>, #tpu.dimension_semantics<parallel>, #tpu.dimension_semantics<arbitrary>], iteration_bounds = array<i64: 1, 1, 1>, scalar_prefetch = 0 : i64, scratch_operands = 1 : i64, tpu.core_type = #tpu.core_type<tc>, window_params = [{transform_indices = @transform_0, window_bounds = array<i64: 128, 1152>}, {transform_indices = @transform_1, window_bounds = array<i64: 1152, 128>}, {transform_indices = @transform_2, window_bounds = array<i64: 1, 128>}, {transform_indices = @transform_3, window_bounds = array<i64: 1, 128>}, {transform_indices = @transform_4, window_bounds = array<i64: 128, 128>}]} {
    %c0_i32 = arith.constant 0 : i32
    %0 = arith.cmpi eq, %arg2, %c0_i32 : i32
    %1 = arith.extui %0 : i1 to i32
    %c0_i32_0 = arith.constant 0 : i32
    %2 = arith.cmpi ne, %1, %c0_i32_0 : i32
    scf.if %2 {
      %cst_10 = arith.constant 0.000000e+00 : f32
      %12 = vector.broadcast %cst_10 : f32 to vector<128x128xf32>
      %c0_11 = arith.constant 0 : index
      %c0_12 = arith.constant 0 : index
      %13 = vector.load %arg8[%c0_11, %c0_12] : memref<128x128xf32, #tpu.memory_space<vmem>>, vector<128x128xf32>
      tpu.vector_store %arg8[%c0_11, %c0_12], %12 {strides = array<i32>} : memref<128x128xf32, #tpu.memory_space<vmem>>, vector<128x128xf32>,
    } else {
    }
    %c0 = arith.constant 0 : index
    %c0_1 = arith.constant 0 : index
    %3 = vector.load %arg8[%c0, %c0_1] : memref<128x128xf32, #tpu.memory_space<vmem>>, vector<128x128xf32>
    %c0_2 = arith.constant 0 : index
    %c0_3 = arith.constant 0 : index
    %4 = vector.load %arg3[%c0_2, %c0_3] : memref<128x1152xbf16, #tpu.memory_space<vmem>>, vector<128x1152xbf16>
    %c0_4 = arith.constant 0 : index
    %c0_5 = arith.constant 0 : index
    %5 = vector.load %arg4[%c0_4, %c0_5] : memref<1152x128xbf16, #tpu.memory_space<vmem>>, vector<1152x128xbf16>
    %cst = arith.constant dense<0.000000e+00> : vector<128x128xf32>
    %6 = tpu.matmul %4, %5, %cst {dimension_numbers = #tpu.dot_dimension_numbers<[1], [0], [0], [1], [0, 0, 1, 1], [], []>} : vector<128x1152xbf16>, vector<1152x128xbf16>, vector<128x128xf32> -> vector<128x128xf32>
    %7 = arith.addf %3, %6 : vector<128x128xf32>
    %c0_6 = arith.constant 0 : index
    %c0_7 = arith.constant 0 : index
    %8 = vector.load %arg8[%c0_6, %c0_7] : memref<128x128xf32, #tpu.memory_space<vmem>>, vector<128x128xf32>
    tpu.vector_store %arg8[%c0_6, %c0_7], %7 {strides = array<i32>} : memref<128x128xf32, #tpu.memory_space<vmem>>, vector<128x128xf32>,
    %c0_i32_8 = arith.constant 0 : i32
    %9 = arith.cmpi eq, %arg2, %c0_i32_8 : i32
    %10 = arith.extui %9 : i1 to i32
    %c0_i32_9 = arith.constant 0 : i32
    %11 = arith.cmpi ne, %10, %c0_i32_9 : i32
    scf.if %11 {
      %c0_10 = arith.constant 0 : index
      %c0_11 = arith.constant 0 : index
      %12 = vector.load %arg8[%c0_10, %c0_11] : memref<128x128xf32, #tpu.memory_space<vmem>>, vector<128x128xf32>
      %c0_12 = arith.constant 0 : index
      %c0_13 = arith.constant 0 : index
      %13 = vector.load %arg5[%c0_12, %c0_13] : memref<1x128xf32, #tpu.memory_space<vmem>>, vector<1x128xf32>
      %14 = vector.broadcast %13 : vector<1x128xf32> to vector<128x128xf32>
      %15 = arith.mulf %12, %14 : vector<128x128xf32>
      %c0_14 = arith.constant 0 : index
      %c0_15 = arith.constant 0 : index
      %16 = vector.load %arg6[%c0_14, %c0_15] : memref<1x128xf32, #tpu.memory_space<vmem>>, vector<1x128xf32>
      %17 = vector.broadcast %16 : vector<1x128xf32> to vector<128x128xf32>
      %18 = arith.addf %15, %17 : vector<128x128xf32>
      %cst_16 = arith.constant 0.000000e+00 : f32
      %19 = vector.broadcast %cst_16 : f32 to vector<128x128xf32>
      %20 = arith.maximumf %18, %19 : vector<128x128xf32>
      %21 = arith.truncf %20 : vector<128x128xf32> to vector<128x128xbf16>
      %c0_17 = arith.constant 0 : index
      %c0_18 = arith.constant 0 : index
      %22 = vector.load %arg7[%c0_17, %c0_18] : memref<128x128xbf16, #tpu.memory_space<vmem>>, vector<128x128xbf16>
      tpu.vector_store %arg7[%c0_17, %c0_18], %21 {strides = array<i32>} : memref<128x128xbf16, #tpu.memory_space<vmem>>, vector<128x128xbf16>,
    } else {
    }
    return
  }
  func.func @transform_0(%arg0: i32, %arg1: i32, %arg2: i32) -> (i32, i32) {
    %c0_i32 = arith.constant 0 : i32
    return %arg0, %arg2 : i32, i32
  }
  func.func @transform_1(%arg0: i32, %arg1: i32, %arg2: i32) -> (i32, i32) {
    %c0_i32 = arith.constant 0 : i32
    return %arg2, %arg1 : i32, i32
  }
  func.func @transform_2(%arg0: i32, %arg1: i32, %arg2: i32) -> (i32, i32) {
    %c0_i32 = arith.constant 0 : i32
    %c0_i32_0 = arith.constant 0 : i32
    return %c0_i32, %arg1 : i32, i32
  }
  func.func @transform_3(%arg0: i32, %arg1: i32, %arg2: i32) -> (i32, i32) {
    %c0_i32 = arith.constant 0 : i32
    %c0_i32_0 = arith.constant 0 : i32
    return %c0_i32, %arg1 : i32, i32
  }
  func.func @transform_4(%arg0: i32, %arg1: i32, %arg2: i32) -> (i32, i32) {
    %c0_i32 = arith.constant 0 : i32
    return %arg0, %arg1 : i32, i32
  }
}

module attributes {stable_mosaic.version = 11 : i64} {
  func.func @_fused_mm_res_kernel(%arg0: i32, %arg1: i32, %arg2: i32, %arg3: memref<128x128xbf16, #tpu.memory_space<vmem>>, %arg4: memref<128x128xbf16, #tpu.memory_space<vmem>>, %arg5: memref<1x128xf32, #tpu.memory_space<vmem>>, %arg6: memref<1x128xf32, #tpu.memory_space<vmem>>, %arg7: memref<128x128xbf16, #tpu.memory_space<vmem>>, %arg8: memref<128x128xbf16, #tpu.memory_space<vmem>>, %arg9: memref<128x128xf32, #tpu.memory_space<vmem>>) attributes {dimension_semantics = [#tpu.dimension_semantics<parallel>, #tpu.dimension_semantics<parallel>, #tpu.dimension_semantics<arbitrary>], iteration_bounds = array<i64: 1, 1, 1>, scalar_prefetch = 0 : i64, scratch_operands = 1 : i64, tpu.core_type = #tpu.core_type<tc>, window_params = [{transform_indices = @transform_0, window_bounds = array<i64: 128, 128>}, {transform_indices = @transform_1, window_bounds = array<i64: 128, 128>}, {transform_indices = @transform_2, window_bounds = array<i64: 1, 128>}, {transform_indices = @transform_3, window_bounds = array<i64: 1, 128>}, {transform_indices = @transform_4, window_bounds = array<i64: 128, 128>}, {transform_indices = @transform_5, window_bounds = array<i64: 128, 128>}]} {
    %c0_i32 = arith.constant 0 : i32
    %0 = arith.cmpi eq, %arg2, %c0_i32 : i32
    %1 = arith.extui %0 : i1 to i32
    %c0_i32_0 = arith.constant 0 : i32
    %2 = arith.cmpi ne, %1, %c0_i32_0 : i32
    scf.if %2 {
      %cst_10 = arith.constant 0.000000e+00 : f32
      %12 = vector.broadcast %cst_10 : f32 to vector<128x128xf32>
      %c0_11 = arith.constant 0 : index
      %c0_12 = arith.constant 0 : index
      %13 = vector.load %arg9[%c0_11, %c0_12] : memref<128x128xf32, #tpu.memory_space<vmem>>, vector<128x128xf32>
      tpu.vector_store %arg9[%c0_11, %c0_12], %12 {strides = array<i32>} : memref<128x128xf32, #tpu.memory_space<vmem>>, vector<128x128xf32>,
    } else {
    }
    %c0 = arith.constant 0 : index
    %c0_1 = arith.constant 0 : index
    %3 = vector.load %arg9[%c0, %c0_1] : memref<128x128xf32, #tpu.memory_space<vmem>>, vector<128x128xf32>
    %c0_2 = arith.constant 0 : index
    %c0_3 = arith.constant 0 : index
    %4 = vector.load %arg3[%c0_2, %c0_3] : memref<128x128xbf16, #tpu.memory_space<vmem>>, vector<128x128xbf16>
    %c0_4 = arith.constant 0 : index
    %c0_5 = arith.constant 0 : index
    %5 = vector.load %arg4[%c0_4, %c0_5] : memref<128x128xbf16, #tpu.memory_space<vmem>>, vector<128x128xbf16>
    %cst = arith.constant dense<0.000000e+00> : vector<128x128xf32>
    %6 = tpu.matmul %4, %5, %cst {dimension_numbers = #tpu.dot_dimension_numbers<[1], [0], [0], [1], [0, 0, 1, 1], [], []>} : vector<128x128xbf16>, vector<128x128xbf16>, vector<128x128xf32> -> vector<128x128xf32>
    %7 = arith.addf %3, %6 : vector<128x128xf32>
    %c0_6 = arith.constant 0 : index
    %c0_7 = arith.constant 0 : index
    %8 = vector.load %arg9[%c0_6, %c0_7] : memref<128x128xf32, #tpu.memory_space<vmem>>, vector<128x128xf32>
    tpu.vector_store %arg9[%c0_6, %c0_7], %7 {strides = array<i32>} : memref<128x128xf32, #tpu.memory_space<vmem>>, vector<128x128xf32>,
    %c0_i32_8 = arith.constant 0 : i32
    %9 = arith.cmpi eq, %arg2, %c0_i32_8 : i32
    %10 = arith.extui %9 : i1 to i32
    %c0_i32_9 = arith.constant 0 : i32
    %11 = arith.cmpi ne, %10, %c0_i32_9 : i32
    scf.if %11 {
      %c0_10 = arith.constant 0 : index
      %c0_11 = arith.constant 0 : index
      %12 = vector.load %arg9[%c0_10, %c0_11] : memref<128x128xf32, #tpu.memory_space<vmem>>, vector<128x128xf32>
      %c0_12 = arith.constant 0 : index
      %c0_13 = arith.constant 0 : index
      %13 = vector.load %arg5[%c0_12, %c0_13] : memref<1x128xf32, #tpu.memory_space<vmem>>, vector<1x128xf32>
      %14 = vector.broadcast %13 : vector<1x128xf32> to vector<128x128xf32>
      %15 = arith.mulf %12, %14 : vector<128x128xf32>
      %c0_14 = arith.constant 0 : index
      %c0_15 = arith.constant 0 : index
      %16 = vector.load %arg6[%c0_14, %c0_15] : memref<1x128xf32, #tpu.memory_space<vmem>>, vector<1x128xf32>
      %17 = vector.broadcast %16 : vector<1x128xf32> to vector<128x128xf32>
      %18 = arith.addf %15, %17 : vector<128x128xf32>
      %c0_16 = arith.constant 0 : index
      %c0_17 = arith.constant 0 : index
      %19 = vector.load %arg7[%c0_16, %c0_17] : memref<128x128xbf16, #tpu.memory_space<vmem>>, vector<128x128xbf16>
      %20 = arith.extf %19 : vector<128x128xbf16> to vector<128x128xf32>
      %21 = arith.addf %18, %20 : vector<128x128xf32>
      %cst_18 = arith.constant 0.000000e+00 : f32
      %22 = vector.broadcast %cst_18 : f32 to vector<128x128xf32>
      %23 = arith.maximumf %21, %22 : vector<128x128xf32>
      %24 = arith.truncf %23 : vector<128x128xf32> to vector<128x128xbf16>
      %c0_19 = arith.constant 0 : index
      %c0_20 = arith.constant 0 : index
      %25 = vector.load %arg8[%c0_19, %c0_20] : memref<128x128xbf16, #tpu.memory_space<vmem>>, vector<128x128xbf16>
      tpu.vector_store %arg8[%c0_19, %c0_20], %24 {strides = array<i32>} : memref<128x128xbf16, #tpu.memory_space<vmem>>, vector<128x128xbf16>,
    } else {
    }
    return
  }
  func.func @transform_0(%arg0: i32, %arg1: i32, %arg2: i32) -> (i32, i32) {
    %c0_i32 = arith.constant 0 : i32
    return %arg0, %arg2 : i32, i32
  }
  func.func @transform_1(%arg0: i32, %arg1: i32, %arg2: i32) -> (i32, i32) {
    %c0_i32 = arith.constant 0 : i32
    return %arg2, %arg1 : i32, i32
  }
  func.func @transform_2(%arg0: i32, %arg1: i32, %arg2: i32) -> (i32, i32) {
    %c0_i32 = arith.constant 0 : i32
    %c0_i32_0 = arith.constant 0 : i32
    return %c0_i32, %arg1 : i32, i32
  }
  func.func @transform_3(%arg0: i32, %arg1: i32, %arg2: i32) -> (i32, i32) {
    %c0_i32 = arith.constant 0 : i32
    %c0_i32_0 = arith.constant 0 : i32
    return %c0_i32, %arg1 : i32, i32
  }
  func.func @transform_4(%arg0: i32, %arg1: i32, %arg2: i32) -> (i32, i32) {
    %c0_i32 = arith.constant 0 : i32
    return %arg0, %arg1 : i32, i32
  }
  func.func @transform_5(%arg0: i32, %arg1: i32, %arg2: i32) -> (i32, i32) {
    %c0_i32 = arith.constant 0 : i32
    return %arg0, %arg1 : i32, i32
  }
}

module attributes {stable_mosaic.version = 11 : i64} {
  func.func @_fused_mm_kernel(%arg0: i32, %arg1: i32, %arg2: i32, %arg3: memref<32x1152xbf16, #tpu.memory_space<vmem>>, %arg4: memref<1152x128xbf16, #tpu.memory_space<vmem>>, %arg5: memref<1x128xf32, #tpu.memory_space<vmem>>, %arg6: memref<1x128xf32, #tpu.memory_space<vmem>>, %arg7: memref<32x128xbf16, #tpu.memory_space<vmem>>, %arg8: memref<32x128xf32, #tpu.memory_space<vmem>>) attributes {dimension_semantics = [#tpu.dimension_semantics<parallel>, #tpu.dimension_semantics<parallel>, #tpu.dimension_semantics<arbitrary>], iteration_bounds = array<i64: 1, 1, 1>, scalar_prefetch = 0 : i64, scratch_operands = 1 : i64, tpu.core_type = #tpu.core_type<tc>, window_params = [{transform_indices = @transform_0, window_bounds = array<i64: 32, 1152>}, {transform_indices = @transform_1, window_bounds = array<i64: 1152, 128>}, {transform_indices = @transform_2, window_bounds = array<i64: 1, 128>}, {transform_indices = @transform_3, window_bounds = array<i64: 1, 128>}, {transform_indices = @transform_4, window_bounds = array<i64: 32, 128>}]} {
    %c0_i32 = arith.constant 0 : i32
    %0 = arith.cmpi eq, %arg2, %c0_i32 : i32
    %1 = arith.extui %0 : i1 to i32
    %c0_i32_0 = arith.constant 0 : i32
    %2 = arith.cmpi ne, %1, %c0_i32_0 : i32
    scf.if %2 {
      %cst_10 = arith.constant 0.000000e+00 : f32
      %12 = vector.broadcast %cst_10 : f32 to vector<32x128xf32>
      %c0_11 = arith.constant 0 : index
      %c0_12 = arith.constant 0 : index
      %13 = vector.load %arg8[%c0_11, %c0_12] : memref<32x128xf32, #tpu.memory_space<vmem>>, vector<32x128xf32>
      tpu.vector_store %arg8[%c0_11, %c0_12], %12 {strides = array<i32>} : memref<32x128xf32, #tpu.memory_space<vmem>>, vector<32x128xf32>,
    } else {
    }
    %c0 = arith.constant 0 : index
    %c0_1 = arith.constant 0 : index
    %3 = vector.load %arg8[%c0, %c0_1] : memref<32x128xf32, #tpu.memory_space<vmem>>, vector<32x128xf32>
    %c0_2 = arith.constant 0 : index
    %c0_3 = arith.constant 0 : index
    %4 = vector.load %arg3[%c0_2, %c0_3] : memref<32x1152xbf16, #tpu.memory_space<vmem>>, vector<32x1152xbf16>
    %c0_4 = arith.constant 0 : index
    %c0_5 = arith.constant 0 : index
    %5 = vector.load %arg4[%c0_4, %c0_5] : memref<1152x128xbf16, #tpu.memory_space<vmem>>, vector<1152x128xbf16>
    %cst = arith.constant dense<0.000000e+00> : vector<32x128xf32>
    %6 = tpu.matmul %4, %5, %cst {dimension_numbers = #tpu.dot_dimension_numbers<[1], [0], [0], [1], [0, 0, 1, 1], [], []>} : vector<32x1152xbf16>, vector<1152x128xbf16>, vector<32x128xf32> -> vector<32x128xf32>
    %7 = arith.addf %3, %6 : vector<32x128xf32>
    %c0_6 = arith.constant 0 : index
    %c0_7 = arith.constant 0 : index
    %8 = vector.load %arg8[%c0_6, %c0_7] : memref<32x128xf32, #tpu.memory_space<vmem>>, vector<32x128xf32>
    tpu.vector_store %arg8[%c0_6, %c0_7], %7 {strides = array<i32>} : memref<32x128xf32, #tpu.memory_space<vmem>>, vector<32x128xf32>,
    %c0_i32_8 = arith.constant 0 : i32
    %9 = arith.cmpi eq, %arg2, %c0_i32_8 : i32
    %10 = arith.extui %9 : i1 to i32
    %c0_i32_9 = arith.constant 0 : i32
    %11 = arith.cmpi ne, %10, %c0_i32_9 : i32
    scf.if %11 {
      %c0_10 = arith.constant 0 : index
      %c0_11 = arith.constant 0 : index
      %12 = vector.load %arg8[%c0_10, %c0_11] : memref<32x128xf32, #tpu.memory_space<vmem>>, vector<32x128xf32>
      %c0_12 = arith.constant 0 : index
      %c0_13 = arith.constant 0 : index
      %13 = vector.load %arg5[%c0_12, %c0_13] : memref<1x128xf32, #tpu.memory_space<vmem>>, vector<1x128xf32>
      %14 = vector.broadcast %13 : vector<1x128xf32> to vector<32x128xf32>
      %15 = arith.mulf %12, %14 : vector<32x128xf32>
      %c0_14 = arith.constant 0 : index
      %c0_15 = arith.constant 0 : index
      %16 = vector.load %arg6[%c0_14, %c0_15] : memref<1x128xf32, #tpu.memory_space<vmem>>, vector<1x128xf32>
      %17 = vector.broadcast %16 : vector<1x128xf32> to vector<32x128xf32>
      %18 = arith.addf %15, %17 : vector<32x128xf32>
      %cst_16 = arith.constant 0.000000e+00 : f32
      %19 = vector.broadcast %cst_16 : f32 to vector<32x128xf32>
      %20 = arith.maximumf %18, %19 : vector<32x128xf32>
      %21 = arith.truncf %20 : vector<32x128xf32> to vector<32x128xbf16>
      %c0_17 = arith.constant 0 : index
      %c0_18 = arith.constant 0 : index
      %22 = vector.load %arg7[%c0_17, %c0_18] : memref<32x128xbf16, #tpu.memory_space<vmem>>, vector<32x128xbf16>
      tpu.vector_store %arg7[%c0_17, %c0_18], %21 {strides = array<i32>} : memref<32x128xbf16, #tpu.memory_space<vmem>>, vector<32x128xbf16>,
    } else {
    }
    return
  }
  func.func @transform_0(%arg0: i32, %arg1: i32, %arg2: i32) -> (i32, i32) {
    %c0_i32 = arith.constant 0 : i32
    return %arg0, %arg2 : i32, i32
  }
  func.func @transform_1(%arg0: i32, %arg1: i32, %arg2: i32) -> (i32, i32) {
    %c0_i32 = arith.constant 0 : i32
    return %arg2, %arg1 : i32, i32
  }
  func.func @transform_2(%arg0: i32, %arg1: i32, %arg2: i32) -> (i32, i32) {
    %c0_i32 = arith.constant 0 : i32
    %c0_i32_0 = arith.constant 0 : i32
    return %c0_i32, %arg1 : i32, i32
  }
  func.func @transform_3(%arg0: i32, %arg1: i32, %arg2: i32) -> (i32, i32) {
    %c0_i32 = arith.constant 0 : i32
    %c0_i32_0 = arith.constant 0 : i32
    return %c0_i32, %arg1 : i32, i32
  }
  func.func @transform_4(%arg0: i32, %arg1: i32, %arg2: i32) -> (i32, i32) {
    %c0_i32 = arith.constant 0 : i32
    return %arg0, %arg1 : i32, i32
  }
}

module attributes {stable_mosaic.version = 11 : i64} {
  func.func @_fused_mm_kernel(%arg0: i32, %arg1: i32, %arg2: i32, %arg3: memref<32x128xbf16, #tpu.memory_space<vmem>>, %arg4: memref<128x128xbf16, #tpu.memory_space<vmem>>, %arg5: memref<1x128xf32, #tpu.memory_space<vmem>>, %arg6: memref<1x128xf32, #tpu.memory_space<vmem>>, %arg7: memref<32x128xbf16, #tpu.memory_space<vmem>>, %arg8: memref<32x128xf32, #tpu.memory_space<vmem>>) attributes {dimension_semantics = [#tpu.dimension_semantics<parallel>, #tpu.dimension_semantics<parallel>, #tpu.dimension_semantics<arbitrary>], iteration_bounds = array<i64: 1, 1, 1>, scalar_prefetch = 0 : i64, scratch_operands = 1 : i64, tpu.core_type = #tpu.core_type<tc>, window_params = [{transform_indices = @transform_0, window_bounds = array<i64: 32, 128>}, {transform_indices = @transform_1, window_bounds = array<i64: 128, 128>}, {transform_indices = @transform_2, window_bounds = array<i64: 1, 128>}, {transform_indices = @transform_3, window_bounds = array<i64: 1, 128>}, {transform_indices = @transform_4, window_bounds = array<i64: 32, 128>}]} {
    %c0_i32 = arith.constant 0 : i32
    %0 = arith.cmpi eq, %arg2, %c0_i32 : i32
    %1 = arith.extui %0 : i1 to i32
    %c0_i32_0 = arith.constant 0 : i32
    %2 = arith.cmpi ne, %1, %c0_i32_0 : i32
    scf.if %2 {
      %cst_10 = arith.constant 0.000000e+00 : f32
      %12 = vector.broadcast %cst_10 : f32 to vector<32x128xf32>
      %c0_11 = arith.constant 0 : index
      %c0_12 = arith.constant 0 : index
      %13 = vector.load %arg8[%c0_11, %c0_12] : memref<32x128xf32, #tpu.memory_space<vmem>>, vector<32x128xf32>
      tpu.vector_store %arg8[%c0_11, %c0_12], %12 {strides = array<i32>} : memref<32x128xf32, #tpu.memory_space<vmem>>, vector<32x128xf32>,
    } else {
    }
    %c0 = arith.constant 0 : index
    %c0_1 = arith.constant 0 : index
    %3 = vector.load %arg8[%c0, %c0_1] : memref<32x128xf32, #tpu.memory_space<vmem>>, vector<32x128xf32>
    %c0_2 = arith.constant 0 : index
    %c0_3 = arith.constant 0 : index
    %4 = vector.load %arg3[%c0_2, %c0_3] : memref<32x128xbf16, #tpu.memory_space<vmem>>, vector<32x128xbf16>
    %c0_4 = arith.constant 0 : index
    %c0_5 = arith.constant 0 : index
    %5 = vector.load %arg4[%c0_4, %c0_5] : memref<128x128xbf16, #tpu.memory_space<vmem>>, vector<128x128xbf16>
    %cst = arith.constant dense<0.000000e+00> : vector<32x128xf32>
    %6 = tpu.matmul %4, %5, %cst {dimension_numbers = #tpu.dot_dimension_numbers<[1], [0], [0], [1], [0, 0, 1, 1], [], []>} : vector<32x128xbf16>, vector<128x128xbf16>, vector<32x128xf32> -> vector<32x128xf32>
    %7 = arith.addf %3, %6 : vector<32x128xf32>
    %c0_6 = arith.constant 0 : index
    %c0_7 = arith.constant 0 : index
    %8 = vector.load %arg8[%c0_6, %c0_7] : memref<32x128xf32, #tpu.memory_space<vmem>>, vector<32x128xf32>
    tpu.vector_store %arg8[%c0_6, %c0_7], %7 {strides = array<i32>} : memref<32x128xf32, #tpu.memory_space<vmem>>, vector<32x128xf32>,
    %c0_i32_8 = arith.constant 0 : i32
    %9 = arith.cmpi eq, %arg2, %c0_i32_8 : i32
    %10 = arith.extui %9 : i1 to i32
    %c0_i32_9 = arith.constant 0 : i32
    %11 = arith.cmpi ne, %10, %c0_i32_9 : i32
    scf.if %11 {
      %c0_10 = arith.constant 0 : index
      %c0_11 = arith.constant 0 : index
      %12 = vector.load %arg8[%c0_10, %c0_11] : memref<32x128xf32, #tpu.memory_space<vmem>>, vector<32x128xf32>
      %c0_12 = arith.constant 0 : index
      %c0_13 = arith.constant 0 : index
      %13 = vector.load %arg5[%c0_12, %c0_13] : memref<1x128xf32, #tpu.memory_space<vmem>>, vector<1x128xf32>
      %14 = vector.broadcast %13 : vector<1x128xf32> to vector<32x128xf32>
      %15 = arith.mulf %12, %14 : vector<32x128xf32>
      %c0_14 = arith.constant 0 : index
      %c0_15 = arith.constant 0 : index
      %16 = vector.load %arg6[%c0_14, %c0_15] : memref<1x128xf32, #tpu.memory_space<vmem>>, vector<1x128xf32>
      %17 = vector.broadcast %16 : vector<1x128xf32> to vector<32x128xf32>
      %18 = arith.addf %15, %17 : vector<32x128xf32>
      %19 = arith.truncf %18 : vector<32x128xf32> to vector<32x128xbf16>
      %c0_16 = arith.constant 0 : index
      %c0_17 = arith.constant 0 : index
      %20 = vector.load %arg7[%c0_16, %c0_17] : memref<32x128xbf16, #tpu.memory_space<vmem>>, vector<32x128xbf16>
      tpu.vector_store %arg7[%c0_16, %c0_17], %19 {strides = array<i32>} : memref<32x128xbf16, #tpu.memory_space<vmem>>, vector<32x128xbf16>,
    } else {
    }
    return
  }
  func.func @transform_0(%arg0: i32, %arg1: i32, %arg2: i32) -> (i32, i32) {
    %c0_i32 = arith.constant 0 : i32
    return %arg0, %arg2 : i32, i32
  }
  func.func @transform_1(%arg0: i32, %arg1: i32, %arg2: i32) -> (i32, i32) {
    %c0_i32 = arith.constant 0 : i32
    return %arg2, %arg1 : i32, i32
  }
  func.func @transform_2(%arg0: i32, %arg1: i32, %arg2: i32) -> (i32, i32) {
    %c0_i32 = arith.constant 0 : i32
    %c0_i32_0 = arith.constant 0 : i32
    return %c0_i32, %arg1 : i32, i32
  }
  func.func @transform_3(%arg0: i32, %arg1: i32, %arg2: i32) -> (i32, i32) {
    %c0_i32 = arith.constant 0 : i32
    %c0_i32_0 = arith.constant 0 : i32
    return %c0_i32, %arg1 : i32, i32
  }
  func.func @transform_4(%arg0: i32, %arg1: i32, %arg2: i32) -> (i32, i32) {
    %c0_i32 = arith.constant 0 : i32
    return %arg0, %arg1 : i32, i32
  }
}

module attributes {stable_mosaic.version = 11 : i64} {
  func.func @_fused_mm_kernel(%arg0: i32, %arg1: i32, %arg2: i32, %arg3: memref<32x128xbf16, #tpu.memory_space<vmem>>, %arg4: memref<128x128xbf16, #tpu.memory_space<vmem>>, %arg5: memref<1x128xf32, #tpu.memory_space<vmem>>, %arg6: memref<1x128xf32, #tpu.memory_space<vmem>>, %arg7: memref<32x128xbf16, #tpu.memory_space<vmem>>, %arg8: memref<32x128xf32, #tpu.memory_space<vmem>>) attributes {dimension_semantics = [#tpu.dimension_semantics<parallel>, #tpu.dimension_semantics<parallel>, #tpu.dimension_semantics<arbitrary>], iteration_bounds = array<i64: 1, 1, 1>, scalar_prefetch = 0 : i64, scratch_operands = 1 : i64, tpu.core_type = #tpu.core_type<tc>, window_params = [{transform_indices = @transform_0, window_bounds = array<i64: 32, 128>}, {transform_indices = @transform_1, window_bounds = array<i64: 128, 128>}, {transform_indices = @transform_2, window_bounds = array<i64: 1, 128>}, {transform_indices = @transform_3, window_bounds = array<i64: 1, 128>}, {transform_indices = @transform_4, window_bounds = array<i64: 32, 128>}]} {
    %c0_i32 = arith.constant 0 : i32
    %0 = arith.cmpi eq, %arg2, %c0_i32 : i32
    %1 = arith.extui %0 : i1 to i32
    %c0_i32_0 = arith.constant 0 : i32
    %2 = arith.cmpi ne, %1, %c0_i32_0 : i32
    scf.if %2 {
      %cst_10 = arith.constant 0.000000e+00 : f32
      %12 = vector.broadcast %cst_10 : f32 to vector<32x128xf32>
      %c0_11 = arith.constant 0 : index
      %c0_12 = arith.constant 0 : index
      %13 = vector.load %arg8[%c0_11, %c0_12] : memref<32x128xf32, #tpu.memory_space<vmem>>, vector<32x128xf32>
      tpu.vector_store %arg8[%c0_11, %c0_12], %12 {strides = array<i32>} : memref<32x128xf32, #tpu.memory_space<vmem>>, vector<32x128xf32>,
    } else {
    }
    %c0 = arith.constant 0 : index
    %c0_1 = arith.constant 0 : index
    %3 = vector.load %arg8[%c0, %c0_1] : memref<32x128xf32, #tpu.memory_space<vmem>>, vector<32x128xf32>
    %c0_2 = arith.constant 0 : index
    %c0_3 = arith.constant 0 : index
    %4 = vector.load %arg3[%c0_2, %c0_3] : memref<32x128xbf16, #tpu.memory_space<vmem>>, vector<32x128xbf16>
    %c0_4 = arith.constant 0 : index
    %c0_5 = arith.constant 0 : index
    %5 = vector.load %arg4[%c0_4, %c0_5] : memref<128x128xbf16, #tpu.memory_space<vmem>>, vector<128x128xbf16>
    %cst = arith.constant dense<0.000000e+00> : vector<32x128xf32>
    %6 = tpu.matmul %4, %5, %cst {dimension_numbers = #tpu.dot_dimension_numbers<[1], [0], [0], [1], [0, 0, 1, 1], [], []>} : vector<32x128xbf16>, vector<128x128xbf16>, vector<32x128xf32> -> vector<32x128xf32>
    %7 = arith.addf %3, %6 : vector<32x128xf32>
    %c0_6 = arith.constant 0 : index
    %c0_7 = arith.constant 0 : index
    %8 = vector.load %arg8[%c0_6, %c0_7] : memref<32x128xf32, #tpu.memory_space<vmem>>, vector<32x128xf32>
    tpu.vector_store %arg8[%c0_6, %c0_7], %7 {strides = array<i32>} : memref<32x128xf32, #tpu.memory_space<vmem>>, vector<32x128xf32>,
    %c0_i32_8 = arith.constant 0 : i32
    %9 = arith.cmpi eq, %arg2, %c0_i32_8 : i32
    %10 = arith.extui %9 : i1 to i32
    %c0_i32_9 = arith.constant 0 : i32
    %11 = arith.cmpi ne, %10, %c0_i32_9 : i32
    scf.if %11 {
      %c0_10 = arith.constant 0 : index
      %c0_11 = arith.constant 0 : index
      %12 = vector.load %arg8[%c0_10, %c0_11] : memref<32x128xf32, #tpu.memory_space<vmem>>, vector<32x128xf32>
      %c0_12 = arith.constant 0 : index
      %c0_13 = arith.constant 0 : index
      %13 = vector.load %arg5[%c0_12, %c0_13] : memref<1x128xf32, #tpu.memory_space<vmem>>, vector<1x128xf32>
      %14 = vector.broadcast %13 : vector<1x128xf32> to vector<32x128xf32>
      %15 = arith.mulf %12, %14 : vector<32x128xf32>
      %c0_14 = arith.constant 0 : index
      %c0_15 = arith.constant 0 : index
      %16 = vector.load %arg6[%c0_14, %c0_15] : memref<1x128xf32, #tpu.memory_space<vmem>>, vector<1x128xf32>
      %17 = vector.broadcast %16 : vector<1x128xf32> to vector<32x128xf32>
      %18 = arith.addf %15, %17 : vector<32x128xf32>
      %cst_16 = arith.constant 0.000000e+00 : f32
      %19 = vector.broadcast %cst_16 : f32 to vector<32x128xf32>
      %20 = arith.maximumf %18, %19 : vector<32x128xf32>
      %21 = arith.truncf %20 : vector<32x128xf32> to vector<32x128xbf16>
      %c0_17 = arith.constant 0 : index
      %c0_18 = arith.constant 0 : index
      %22 = vector.load %arg7[%c0_17, %c0_18] : memref<32x128xbf16, #tpu.memory_space<vmem>>, vector<32x128xbf16>
      tpu.vector_store %arg7[%c0_17, %c0_18], %21 {strides = array<i32>} : memref<32x128xbf16, #tpu.memory_space<vmem>>, vector<32x128xbf16>,
    } else {
    }
    return
  }
  func.func @transform_0(%arg0: i32, %arg1: i32, %arg2: i32) -> (i32, i32) {
    %c0_i32 = arith.constant 0 : i32
    return %arg0, %arg2 : i32, i32
  }
  func.func @transform_1(%arg0: i32, %arg1: i32, %arg2: i32) -> (i32, i32) {
    %c0_i32 = arith.constant 0 : i32
    return %arg2, %arg1 : i32, i32
  }
  func.func @transform_2(%arg0: i32, %arg1: i32, %arg2: i32) -> (i32, i32) {
    %c0_i32 = arith.constant 0 : i32
    %c0_i32_0 = arith.constant 0 : i32
    return %c0_i32, %arg1 : i32, i32
  }
  func.func @transform_3(%arg0: i32, %arg1: i32, %arg2: i32) -> (i32, i32) {
    %c0_i32 = arith.constant 0 : i32
    %c0_i32_0 = arith.constant 0 : i32
    return %c0_i32, %arg1 : i32, i32
  }
  func.func @transform_4(%arg0: i32, %arg1: i32, %arg2: i32) -> (i32, i32) {
    %c0_i32 = arith.constant 0 : i32
    return %arg0, %arg1 : i32, i32
  }
}

module attributes {stable_mosaic.version = 11 : i64} {
  func.func @_fused_mm_res_kernel(%arg0: i32, %arg1: i32, %arg2: i32, %arg3: memref<32x128xbf16, #tpu.memory_space<vmem>>, %arg4: memref<128x128xbf16, #tpu.memory_space<vmem>>, %arg5: memref<1x128xf32, #tpu.memory_space<vmem>>, %arg6: memref<1x128xf32, #tpu.memory_space<vmem>>, %arg7: memref<32x128xbf16, #tpu.memory_space<vmem>>, %arg8: memref<32x128xbf16, #tpu.memory_space<vmem>>, %arg9: memref<32x128xf32, #tpu.memory_space<vmem>>) attributes {dimension_semantics = [#tpu.dimension_semantics<parallel>, #tpu.dimension_semantics<parallel>, #tpu.dimension_semantics<arbitrary>], iteration_bounds = array<i64: 1, 1, 1>, scalar_prefetch = 0 : i64, scratch_operands = 1 : i64, tpu.core_type = #tpu.core_type<tc>, window_params = [{transform_indices = @transform_0, window_bounds = array<i64: 32, 128>}, {transform_indices = @transform_1, window_bounds = array<i64: 128, 128>}, {transform_indices = @transform_2, window_bounds = array<i64: 1, 128>}, {transform_indices = @transform_3, window_bounds = array<i64: 1, 128>}, {transform_indices = @transform_4, window_bounds = array<i64: 32, 128>}, {transform_indices = @transform_5, window_bounds = array<i64: 32, 128>}]} {
    %c0_i32 = arith.constant 0 : i32
    %0 = arith.cmpi eq, %arg2, %c0_i32 : i32
    %1 = arith.extui %0 : i1 to i32
    %c0_i32_0 = arith.constant 0 : i32
    %2 = arith.cmpi ne, %1, %c0_i32_0 : i32
    scf.if %2 {
      %cst_10 = arith.constant 0.000000e+00 : f32
      %12 = vector.broadcast %cst_10 : f32 to vector<32x128xf32>
      %c0_11 = arith.constant 0 : index
      %c0_12 = arith.constant 0 : index
      %13 = vector.load %arg9[%c0_11, %c0_12] : memref<32x128xf32, #tpu.memory_space<vmem>>, vector<32x128xf32>
      tpu.vector_store %arg9[%c0_11, %c0_12], %12 {strides = array<i32>} : memref<32x128xf32, #tpu.memory_space<vmem>>, vector<32x128xf32>,
    } else {
    }
    %c0 = arith.constant 0 : index
    %c0_1 = arith.constant 0 : index
    %3 = vector.load %arg9[%c0, %c0_1] : memref<32x128xf32, #tpu.memory_space<vmem>>, vector<32x128xf32>
    %c0_2 = arith.constant 0 : index
    %c0_3 = arith.constant 0 : index
    %4 = vector.load %arg3[%c0_2, %c0_3] : memref<32x128xbf16, #tpu.memory_space<vmem>>, vector<32x128xbf16>
    %c0_4 = arith.constant 0 : index
    %c0_5 = arith.constant 0 : index
    %5 = vector.load %arg4[%c0_4, %c0_5] : memref<128x128xbf16, #tpu.memory_space<vmem>>, vector<128x128xbf16>
    %cst = arith.constant dense<0.000000e+00> : vector<32x128xf32>
    %6 = tpu.matmul %4, %5, %cst {dimension_numbers = #tpu.dot_dimension_numbers<[1], [0], [0], [1], [0, 0, 1, 1], [], []>} : vector<32x128xbf16>, vector<128x128xbf16>, vector<32x128xf32> -> vector<32x128xf32>
    %7 = arith.addf %3, %6 : vector<32x128xf32>
    %c0_6 = arith.constant 0 : index
    %c0_7 = arith.constant 0 : index
    %8 = vector.load %arg9[%c0_6, %c0_7] : memref<32x128xf32, #tpu.memory_space<vmem>>, vector<32x128xf32>
    tpu.vector_store %arg9[%c0_6, %c0_7], %7 {strides = array<i32>} : memref<32x128xf32, #tpu.memory_space<vmem>>, vector<32x128xf32>,
    %c0_i32_8 = arith.constant 0 : i32
    %9 = arith.cmpi eq, %arg2, %c0_i32_8 : i32
    %10 = arith.extui %9 : i1 to i32
    %c0_i32_9 = arith.constant 0 : i32
    %11 = arith.cmpi ne, %10, %c0_i32_9 : i32
    scf.if %11 {
      %c0_10 = arith.constant 0 : index
      %c0_11 = arith.constant 0 : index
      %12 = vector.load %arg9[%c0_10, %c0_11] : memref<32x128xf32, #tpu.memory_space<vmem>>, vector<32x128xf32>
      %c0_12 = arith.constant 0 : index
      %c0_13 = arith.constant 0 : index
      %13 = vector.load %arg5[%c0_12, %c0_13] : memref<1x128xf32, #tpu.memory_space<vmem>>, vector<1x128xf32>
      %14 = vector.broadcast %13 : vector<1x128xf32> to vector<32x128xf32>
      %15 = arith.mulf %12, %14 : vector<32x128xf32>
      %c0_14 = arith.constant 0 : index
      %c0_15 = arith.constant 0 : index
      %16 = vector.load %arg6[%c0_14, %c0_15] : memref<1x128xf32, #tpu.memory_space<vmem>>, vector<1x128xf32>
      %17 = vector.broadcast %16 : vector<1x128xf32> to vector<32x128xf32>
      %18 = arith.addf %15, %17 : vector<32x128xf32>
      %c0_16 = arith.constant 0 : index
      %c0_17 = arith.constant 0 : index
      %19 = vector.load %arg7[%c0_16, %c0_17] : memref<32x128xbf16, #tpu.memory_space<vmem>>, vector<32x128xbf16>
      %20 = arith.extf %19 : vector<32x128xbf16> to vector<32x128xf32>
      %21 = arith.addf %18, %20 : vector<32x128xf32>
      %cst_18 = arith.constant 0.000000e+00 : f32
      %22 = vector.broadcast %cst_18 : f32 to vector<32x128xf32>
      %23 = arith.maximumf %21, %22 : vector<32x128xf32>
      %24 = arith.truncf %23 : vector<32x128xf32> to vector<32x128xbf16>
      %c0_19 = arith.constant 0 : index
      %c0_20 = arith.constant 0 : index
      %25 = vector.load %arg8[%c0_19, %c0_20] : memref<32x128xbf16, #tpu.memory_space<vmem>>, vector<32x128xbf16>
      tpu.vector_store %arg8[%c0_19, %c0_20], %24 {strides = array<i32>} : memref<32x128xbf16, #tpu.memory_space<vmem>>, vector<32x128xbf16>,
    } else {
    }
    return
  }
  func.func @transform_0(%arg0: i32, %arg1: i32, %arg2: i32) -> (i32, i32) {
    %c0_i32 = arith.constant 0 : i32
    return %arg0, %arg2 : i32, i32
  }
  func.func @transform_1(%arg0: i32, %arg1: i32, %arg2: i32) -> (i32, i32) {
    %c0_i32 = arith.constant 0 : i32
    return %arg2, %arg1 : i32, i32
  }
  func.func @transform_2(%arg0: i32, %arg1: i32, %arg2: i32) -> (i32, i32) {
    %c0_i32 = arith.constant 0 : i32
    %c0_i32_0 = arith.constant 0 : i32
    return %c0_i32, %arg1 : i32, i32
  }
  func.func @transform_3(%arg0: i32, %arg1: i32, %arg2: i32) -> (i32, i32) {
    %c0_i32 = arith.constant 0 : i32
    %c0_i32_0 = arith.constant 0 : i32
    return %c0_i32, %arg1 : i32, i32
  }
  func.func @transform_4(%arg0: i32, %arg1: i32, %arg2: i32) -> (i32, i32) {
    %c0_i32 = arith.constant 0 : i32
    return %arg0, %arg1 : i32, i32
  }
  func.func @transform_5(%arg0: i32, %arg1: i32, %arg2: i32) -> (i32, i32) {
    %c0_i32 = arith.constant 0 : i32
    return %arg0, %arg1 : i32, i32
  }
}

module attributes {stable_mosaic.version = 11 : i64} {
  func.func @_fused_mm_kernel(%arg0: i32, %arg1: i32, %arg2: i32, %arg3: memref<8x1152xbf16, #tpu.memory_space<vmem>>, %arg4: memref<1152x128xbf16, #tpu.memory_space<vmem>>, %arg5: memref<1x128xf32, #tpu.memory_space<vmem>>, %arg6: memref<1x128xf32, #tpu.memory_space<vmem>>, %arg7: memref<8x128xbf16, #tpu.memory_space<vmem>>, %arg8: memref<8x128xf32, #tpu.memory_space<vmem>>) attributes {dimension_semantics = [#tpu.dimension_semantics<parallel>, #tpu.dimension_semantics<parallel>, #tpu.dimension_semantics<arbitrary>], iteration_bounds = array<i64: 1, 1, 1>, scalar_prefetch = 0 : i64, scratch_operands = 1 : i64, tpu.core_type = #tpu.core_type<tc>, window_params = [{transform_indices = @transform_0, window_bounds = array<i64: 8, 1152>}, {transform_indices = @transform_1, window_bounds = array<i64: 1152, 128>}, {transform_indices = @transform_2, window_bounds = array<i64: 1, 128>}, {transform_indices = @transform_3, window_bounds = array<i64: 1, 128>}, {transform_indices = @transform_4, window_bounds = array<i64: 8, 128>}]} {
    %c0_i32 = arith.constant 0 : i32
    %0 = arith.cmpi eq, %arg2, %c0_i32 : i32
    %1 = arith.extui %0 : i1 to i32
    %c0_i32_0 = arith.constant 0 : i32
    %2 = arith.cmpi ne, %1, %c0_i32_0 : i32
    scf.if %2 {
      %cst_10 = arith.constant 0.000000e+00 : f32
      %12 = vector.broadcast %cst_10 : f32 to vector<8x128xf32>
      %c0_11 = arith.constant 0 : index
      %c0_12 = arith.constant 0 : index
      %13 = vector.load %arg8[%c0_11, %c0_12] : memref<8x128xf32, #tpu.memory_space<vmem>>, vector<8x128xf32>
      tpu.vector_store %arg8[%c0_11, %c0_12], %12 {strides = array<i32>} : memref<8x128xf32, #tpu.memory_space<vmem>>, vector<8x128xf32>,
    } else {
    }
    %c0 = arith.constant 0 : index
    %c0_1 = arith.constant 0 : index
    %3 = vector.load %arg8[%c0, %c0_1] : memref<8x128xf32, #tpu.memory_space<vmem>>, vector<8x128xf32>
    %c0_2 = arith.constant 0 : index
    %c0_3 = arith.constant 0 : index
    %4 = vector.load %arg3[%c0_2, %c0_3] : memref<8x1152xbf16, #tpu.memory_space<vmem>>, vector<8x1152xbf16>
    %c0_4 = arith.constant 0 : index
    %c0_5 = arith.constant 0 : index
    %5 = vector.load %arg4[%c0_4, %c0_5] : memref<1152x128xbf16, #tpu.memory_space<vmem>>, vector<1152x128xbf16>
    %cst = arith.constant dense<0.000000e+00> : vector<8x128xf32>
    %6 = tpu.matmul %4, %5, %cst {dimension_numbers = #tpu.dot_dimension_numbers<[1], [0], [0], [1], [0, 0, 1, 1], [], []>} : vector<8x1152xbf16>, vector<1152x128xbf16>, vector<8x128xf32> -> vector<8x128xf32>
    %7 = arith.addf %3, %6 : vector<8x128xf32>
    %c0_6 = arith.constant 0 : index
    %c0_7 = arith.constant 0 : index
    %8 = vector.load %arg8[%c0_6, %c0_7] : memref<8x128xf32, #tpu.memory_space<vmem>>, vector<8x128xf32>
    tpu.vector_store %arg8[%c0_6, %c0_7], %7 {strides = array<i32>} : memref<8x128xf32, #tpu.memory_space<vmem>>, vector<8x128xf32>,
    %c0_i32_8 = arith.constant 0 : i32
    %9 = arith.cmpi eq, %arg2, %c0_i32_8 : i32
    %10 = arith.extui %9 : i1 to i32
    %c0_i32_9 = arith.constant 0 : i32
    %11 = arith.cmpi ne, %10, %c0_i32_9 : i32
    scf.if %11 {
      %c0_10 = arith.constant 0 : index
      %c0_11 = arith.constant 0 : index
      %12 = vector.load %arg8[%c0_10, %c0_11] : memref<8x128xf32, #tpu.memory_space<vmem>>, vector<8x128xf32>
      %c0_12 = arith.constant 0 : index
      %c0_13 = arith.constant 0 : index
      %13 = vector.load %arg5[%c0_12, %c0_13] : memref<1x128xf32, #tpu.memory_space<vmem>>, vector<1x128xf32>
      %14 = vector.broadcast %13 : vector<1x128xf32> to vector<8x128xf32>
      %15 = arith.mulf %12, %14 : vector<8x128xf32>
      %c0_14 = arith.constant 0 : index
      %c0_15 = arith.constant 0 : index
      %16 = vector.load %arg6[%c0_14, %c0_15] : memref<1x128xf32, #tpu.memory_space<vmem>>, vector<1x128xf32>
      %17 = vector.broadcast %16 : vector<1x128xf32> to vector<8x128xf32>
      %18 = arith.addf %15, %17 : vector<8x128xf32>
      %cst_16 = arith.constant 0.000000e+00 : f32
      %19 = vector.broadcast %cst_16 : f32 to vector<8x128xf32>
      %20 = arith.maximumf %18, %19 : vector<8x128xf32>
      %21 = arith.truncf %20 : vector<8x128xf32> to vector<8x128xbf16>
      %c0_17 = arith.constant 0 : index
      %c0_18 = arith.constant 0 : index
      %22 = vector.load %arg7[%c0_17, %c0_18] : memref<8x128xbf16, #tpu.memory_space<vmem>>, vector<8x128xbf16>
      tpu.vector_store %arg7[%c0_17, %c0_18], %21 {strides = array<i32>} : memref<8x128xbf16, #tpu.memory_space<vmem>>, vector<8x128xbf16>,
    } else {
    }
    return
  }
  func.func @transform_0(%arg0: i32, %arg1: i32, %arg2: i32) -> (i32, i32) {
    %c0_i32 = arith.constant 0 : i32
    return %arg0, %arg2 : i32, i32
  }
  func.func @transform_1(%arg0: i32, %arg1: i32, %arg2: i32) -> (i32, i32) {
    %c0_i32 = arith.constant 0 : i32
    return %arg2, %arg1 : i32, i32
  }
  func.func @transform_2(%arg0: i32, %arg1: i32, %arg2: i32) -> (i32, i32) {
    %c0_i32 = arith.constant 0 : i32
    %c0_i32_0 = arith.constant 0 : i32
    return %c0_i32, %arg1 : i32, i32
  }
  func.func @transform_3(%arg0: i32, %arg1: i32, %arg2: i32) -> (i32, i32) {
    %c0_i32 = arith.constant 0 : i32
    %c0_i32_0 = arith.constant 0 : i32
    return %c0_i32, %arg1 : i32, i32
  }
  func.func @transform_4(%arg0: i32, %arg1: i32, %arg2: i32) -> (i32, i32) {
    %c0_i32 = arith.constant 0 : i32
    return %arg0, %arg1 : i32, i32
  }
}

module attributes {stable_mosaic.version = 11 : i64} {
  func.func @_fused_mm_res_kernel(%arg0: i32, %arg1: i32, %arg2: i32, %arg3: memref<8x128xbf16, #tpu.memory_space<vmem>>, %arg4: memref<128x128xbf16, #tpu.memory_space<vmem>>, %arg5: memref<1x128xf32, #tpu.memory_space<vmem>>, %arg6: memref<1x128xf32, #tpu.memory_space<vmem>>, %arg7: memref<8x128xbf16, #tpu.memory_space<vmem>>, %arg8: memref<8x128xbf16, #tpu.memory_space<vmem>>, %arg9: memref<8x128xf32, #tpu.memory_space<vmem>>) attributes {dimension_semantics = [#tpu.dimension_semantics<parallel>, #tpu.dimension_semantics<parallel>, #tpu.dimension_semantics<arbitrary>], iteration_bounds = array<i64: 1, 1, 1>, scalar_prefetch = 0 : i64, scratch_operands = 1 : i64, tpu.core_type = #tpu.core_type<tc>, window_params = [{transform_indices = @transform_0, window_bounds = array<i64: 8, 128>}, {transform_indices = @transform_1, window_bounds = array<i64: 128, 128>}, {transform_indices = @transform_2, window_bounds = array<i64: 1, 128>}, {transform_indices = @transform_3, window_bounds = array<i64: 1, 128>}, {transform_indices = @transform_4, window_bounds = array<i64: 8, 128>}, {transform_indices = @transform_5, window_bounds = array<i64: 8, 128>}]} {
    %c0_i32 = arith.constant 0 : i32
    %0 = arith.cmpi eq, %arg2, %c0_i32 : i32
    %1 = arith.extui %0 : i1 to i32
    %c0_i32_0 = arith.constant 0 : i32
    %2 = arith.cmpi ne, %1, %c0_i32_0 : i32
    scf.if %2 {
      %cst_10 = arith.constant 0.000000e+00 : f32
      %12 = vector.broadcast %cst_10 : f32 to vector<8x128xf32>
      %c0_11 = arith.constant 0 : index
      %c0_12 = arith.constant 0 : index
      %13 = vector.load %arg9[%c0_11, %c0_12] : memref<8x128xf32, #tpu.memory_space<vmem>>, vector<8x128xf32>
      tpu.vector_store %arg9[%c0_11, %c0_12], %12 {strides = array<i32>} : memref<8x128xf32, #tpu.memory_space<vmem>>, vector<8x128xf32>,
    } else {
    }
    %c0 = arith.constant 0 : index
    %c0_1 = arith.constant 0 : index
    %3 = vector.load %arg9[%c0, %c0_1] : memref<8x128xf32, #tpu.memory_space<vmem>>, vector<8x128xf32>
    %c0_2 = arith.constant 0 : index
    %c0_3 = arith.constant 0 : index
    %4 = vector.load %arg3[%c0_2, %c0_3] : memref<8x128xbf16, #tpu.memory_space<vmem>>, vector<8x128xbf16>
    %c0_4 = arith.constant 0 : index
    %c0_5 = arith.constant 0 : index
    %5 = vector.load %arg4[%c0_4, %c0_5] : memref<128x128xbf16, #tpu.memory_space<vmem>>, vector<128x128xbf16>
    %cst = arith.constant dense<0.000000e+00> : vector<8x128xf32>
    %6 = tpu.matmul %4, %5, %cst {dimension_numbers = #tpu.dot_dimension_numbers<[1], [0], [0], [1], [0, 0, 1, 1], [], []>} : vector<8x128xbf16>, vector<128x128xbf16>, vector<8x128xf32> -> vector<8x128xf32>
    %7 = arith.addf %3, %6 : vector<8x128xf32>
    %c0_6 = arith.constant 0 : index
    %c0_7 = arith.constant 0 : index
    %8 = vector.load %arg9[%c0_6, %c0_7] : memref<8x128xf32, #tpu.memory_space<vmem>>, vector<8x128xf32>
    tpu.vector_store %arg9[%c0_6, %c0_7], %7 {strides = array<i32>} : memref<8x128xf32, #tpu.memory_space<vmem>>, vector<8x128xf32>,
    %c0_i32_8 = arith.constant 0 : i32
    %9 = arith.cmpi eq, %arg2, %c0_i32_8 : i32
    %10 = arith.extui %9 : i1 to i32
    %c0_i32_9 = arith.constant 0 : i32
    %11 = arith.cmpi ne, %10, %c0_i32_9 : i32
    scf.if %11 {
      %c0_10 = arith.constant 0 : index
      %c0_11 = arith.constant 0 : index
      %12 = vector.load %arg9[%c0_10, %c0_11] : memref<8x128xf32, #tpu.memory_space<vmem>>, vector<8x128xf32>
      %c0_12 = arith.constant 0 : index
      %c0_13 = arith.constant 0 : index
      %13 = vector.load %arg5[%c0_12, %c0_13] : memref<1x128xf32, #tpu.memory_space<vmem>>, vector<1x128xf32>
      %14 = vector.broadcast %13 : vector<1x128xf32> to vector<8x128xf32>
      %15 = arith.mulf %12, %14 : vector<8x128xf32>
      %c0_14 = arith.constant 0 : index
      %c0_15 = arith.constant 0 : index
      %16 = vector.load %arg6[%c0_14, %c0_15] : memref<1x128xf32, #tpu.memory_space<vmem>>, vector<1x128xf32>
      %17 = vector.broadcast %16 : vector<1x128xf32> to vector<8x128xf32>
      %18 = arith.addf %15, %17 : vector<8x128xf32>
      %c0_16 = arith.constant 0 : index
      %c0_17 = arith.constant 0 : index
      %19 = vector.load %arg7[%c0_16, %c0_17] : memref<8x128xbf16, #tpu.memory_space<vmem>>, vector<8x128xbf16>
      %20 = arith.extf %19 : vector<8x128xbf16> to vector<8x128xf32>
      %21 = arith.addf %18, %20 : vector<8x128xf32>
      %cst_18 = arith.constant 0.000000e+00 : f32
      %22 = vector.broadcast %cst_18 : f32 to vector<8x128xf32>
      %23 = arith.maximumf %21, %22 : vector<8x128xf32>
      %24 = arith.truncf %23 : vector<8x128xf32> to vector<8x128xbf16>
      %c0_19 = arith.constant 0 : index
      %c0_20 = arith.constant 0 : index
      %25 = vector.load %arg8[%c0_19, %c0_20] : memref<8x128xbf16, #tpu.memory_space<vmem>>, vector<8x128xbf16>
      tpu.vector_store %arg8[%c0_19, %c0_20], %24 {strides = array<i32>} : memref<8x128xbf16, #tpu.memory_space<vmem>>, vector<8x128xbf16>,
    } else {
    }
    return
  }
  func.func @transform_0(%arg0: i32, %arg1: i32, %arg2: i32) -> (i32, i32) {
    %c0_i32 = arith.constant 0 : i32
    return %arg0, %arg2 : i32, i32
  }
  func.func @transform_1(%arg0: i32, %arg1: i32, %arg2: i32) -> (i32, i32) {
    %c0_i32 = arith.constant 0 : i32
    return %arg2, %arg1 : i32, i32
  }
  func.func @transform_2(%arg0: i32, %arg1: i32, %arg2: i32) -> (i32, i32) {
    %c0_i32 = arith.constant 0 : i32
    %c0_i32_0 = arith.constant 0 : i32
    return %c0_i32, %arg1 : i32, i32
  }
  func.func @transform_3(%arg0: i32, %arg1: i32, %arg2: i32) -> (i32, i32) {
    %c0_i32 = arith.constant 0 : i32
    %c0_i32_0 = arith.constant 0 : i32
    return %c0_i32, %arg1 : i32, i32
  }
  func.func @transform_4(%arg0: i32, %arg1: i32, %arg2: i32) -> (i32, i32) {
    %c0_i32 = arith.constant 0 : i32
    return %arg0, %arg1 : i32, i32
  }
  func.func @transform_5(%arg0: i32, %arg1: i32, %arg2: i32) -> (i32, i32) {
    %c0_i32 = arith.constant 0 : i32
    return %arg0, %arg1 : i32, i32
  }
}

module attributes {stable_mosaic.version = 11 : i64} {
  func.func @_fused_mm_kernel(%arg0: i32, %arg1: i32, %arg2: i32, %arg3: memref<8x128xbf16, #tpu.memory_space<vmem>>, %arg4: memref<128x128xbf16, #tpu.memory_space<vmem>>, %arg5: memref<1x128xf32, #tpu.memory_space<vmem>>, %arg6: memref<1x128xf32, #tpu.memory_space<vmem>>, %arg7: memref<8x128xbf16, #tpu.memory_space<vmem>>, %arg8: memref<8x128xf32, #tpu.memory_space<vmem>>) attributes {dimension_semantics = [#tpu.dimension_semantics<parallel>, #tpu.dimension_semantics<parallel>, #tpu.dimension_semantics<arbitrary>], iteration_bounds = array<i64: 1, 1, 1>, scalar_prefetch = 0 : i64, scratch_operands = 1 : i64, tpu.core_type = #tpu.core_type<tc>, window_params = [{transform_indices = @transform_0, window_bounds = array<i64: 8, 128>}, {transform_indices = @transform_1, window_bounds = array<i64: 128, 128>}, {transform_indices = @transform_2, window_bounds = array<i64: 1, 128>}, {transform_indices = @transform_3, window_bounds = array<i64: 1, 128>}, {transform_indices = @transform_4, window_bounds = array<i64: 8, 128>}]} {
    %c0_i32 = arith.constant 0 : i32
    %0 = arith.cmpi eq, %arg2, %c0_i32 : i32
    %1 = arith.extui %0 : i1 to i32
    %c0_i32_0 = arith.constant 0 : i32
    %2 = arith.cmpi ne, %1, %c0_i32_0 : i32
    scf.if %2 {
      %cst_10 = arith.constant 0.000000e+00 : f32
      %12 = vector.broadcast %cst_10 : f32 to vector<8x128xf32>
      %c0_11 = arith.constant 0 : index
      %c0_12 = arith.constant 0 : index
      %13 = vector.load %arg8[%c0_11, %c0_12] : memref<8x128xf32, #tpu.memory_space<vmem>>, vector<8x128xf32>
      tpu.vector_store %arg8[%c0_11, %c0_12], %12 {strides = array<i32>} : memref<8x128xf32, #tpu.memory_space<vmem>>, vector<8x128xf32>,
    } else {
    }
    %c0 = arith.constant 0 : index
    %c0_1 = arith.constant 0 : index
    %3 = vector.load %arg8[%c0, %c0_1] : memref<8x128xf32, #tpu.memory_space<vmem>>, vector<8x128xf32>
    %c0_2 = arith.constant 0 : index
    %c0_3 = arith.constant 0 : index
    %4 = vector.load %arg3[%c0_2, %c0_3] : memref<8x128xbf16, #tpu.memory_space<vmem>>, vector<8x128xbf16>
    %c0_4 = arith.constant 0 : index
    %c0_5 = arith.constant 0 : index
    %5 = vector.load %arg4[%c0_4, %c0_5] : memref<128x128xbf16, #tpu.memory_space<vmem>>, vector<128x128xbf16>
    %cst = arith.constant dense<0.000000e+00> : vector<8x128xf32>
    %6 = tpu.matmul %4, %5, %cst {dimension_numbers = #tpu.dot_dimension_numbers<[1], [0], [0], [1], [0, 0, 1, 1], [], []>} : vector<8x128xbf16>, vector<128x128xbf16>, vector<8x128xf32> -> vector<8x128xf32>
    %7 = arith.addf %3, %6 : vector<8x128xf32>
    %c0_6 = arith.constant 0 : index
    %c0_7 = arith.constant 0 : index
    %8 = vector.load %arg8[%c0_6, %c0_7] : memref<8x128xf32, #tpu.memory_space<vmem>>, vector<8x128xf32>
    tpu.vector_store %arg8[%c0_6, %c0_7], %7 {strides = array<i32>} : memref<8x128xf32, #tpu.memory_space<vmem>>, vector<8x128xf32>,
    %c0_i32_8 = arith.constant 0 : i32
    %9 = arith.cmpi eq, %arg2, %c0_i32_8 : i32
    %10 = arith.extui %9 : i1 to i32
    %c0_i32_9 = arith.constant 0 : i32
    %11 = arith.cmpi ne, %10, %c0_i32_9 : i32
    scf.if %11 {
      %c0_10 = arith.constant 0 : index
      %c0_11 = arith.constant 0 : index
      %12 = vector.load %arg8[%c0_10, %c0_11] : memref<8x128xf32, #tpu.memory_space<vmem>>, vector<8x128xf32>
      %c0_12 = arith.constant 0 : index
      %c0_13 = arith.constant 0 : index
      %13 = vector.load %arg5[%c0_12, %c0_13] : memref<1x128xf32, #tpu.memory_space<vmem>>, vector<1x128xf32>
      %14 = vector.broadcast %13 : vector<1x128xf32> to vector<8x128xf32>
      %15 = arith.mulf %12, %14 : vector<8x128xf32>
      %c0_14 = arith.constant 0 : index
      %c0_15 = arith.constant 0 : index
      %16 = vector.load %arg6[%c0_14, %c0_15] : memref<1x128xf32, #tpu.memory_space<vmem>>, vector<1x128xf32>
      %17 = vector.broadcast %16 : vector<1x128xf32> to vector<8x128xf32>
      %18 = arith.addf %15, %17 : vector<8x128xf32>
      %19 = arith.truncf %18 : vector<8x128xf32> to vector<8x128xbf16>
      %c0_16 = arith.constant 0 : index
      %c0_17 = arith.constant 0 : index
      %20 = vector.load %arg7[%c0_16, %c0_17] : memref<8x128xbf16, #tpu.memory_space<vmem>>, vector<8x128xbf16>
      tpu.vector_store %arg7[%c0_16, %c0_17], %19 {strides = array<i32>} : memref<8x128xbf16, #tpu.memory_space<vmem>>, vector<8x128xbf16>,
    } else {
    }
    return
  }
  func.func @transform_0(%arg0: i32, %arg1: i32, %arg2: i32) -> (i32, i32) {
    %c0_i32 = arith.constant 0 : i32
    return %arg0, %arg2 : i32, i32
  }
  func.func @transform_1(%arg0: i32, %arg1: i32, %arg2: i32) -> (i32, i32) {
    %c0_i32 = arith.constant 0 : i32
    return %arg2, %arg1 : i32, i32
  }
  func.func @transform_2(%arg0: i32, %arg1: i32, %arg2: i32) -> (i32, i32) {
    %c0_i32 = arith.constant 0 : i32
    %c0_i32_0 = arith.constant 0 : i32
    return %c0_i32, %arg1 : i32, i32
  }
  func.func @transform_3(%arg0: i32, %arg1: i32, %arg2: i32) -> (i32, i32) {
    %c0_i32 = arith.constant 0 : i32
    %c0_i32_0 = arith.constant 0 : i32
    return %c0_i32, %arg1 : i32, i32
  }
  func.func @transform_4(%arg0: i32, %arg1: i32, %arg2: i32) -> (i32, i32) {
    %c0_i32 = arith.constant 0 : i32
    return %arg0, %arg1 : i32, i32
  }
}

module attributes {stable_mosaic.version = 11 : i64} {
  func.func @_fused_mm_kernel(%arg0: i32, %arg1: i32, %arg2: i32, %arg3: memref<8x128xbf16, #tpu.memory_space<vmem>>, %arg4: memref<128x128xbf16, #tpu.memory_space<vmem>>, %arg5: memref<1x128xf32, #tpu.memory_space<vmem>>, %arg6: memref<1x128xf32, #tpu.memory_space<vmem>>, %arg7: memref<8x128xbf16, #tpu.memory_space<vmem>>, %arg8: memref<8x128xf32, #tpu.memory_space<vmem>>) attributes {dimension_semantics = [#tpu.dimension_semantics<parallel>, #tpu.dimension_semantics<parallel>, #tpu.dimension_semantics<arbitrary>], iteration_bounds = array<i64: 1, 1, 1>, scalar_prefetch = 0 : i64, scratch_operands = 1 : i64, tpu.core_type = #tpu.core_type<tc>, window_params = [{transform_indices = @transform_0, window_bounds = array<i64: 8, 128>}, {transform_indices = @transform_1, window_bounds = array<i64: 128, 128>}, {transform_indices = @transform_2, window_bounds = array<i64: 1, 128>}, {transform_indices = @transform_3, window_bounds = array<i64: 1, 128>}, {transform_indices = @transform_4, window_bounds = array<i64: 8, 128>}]} {
    %c0_i32 = arith.constant 0 : i32
    %0 = arith.cmpi eq, %arg2, %c0_i32 : i32
    %1 = arith.extui %0 : i1 to i32
    %c0_i32_0 = arith.constant 0 : i32
    %2 = arith.cmpi ne, %1, %c0_i32_0 : i32
    scf.if %2 {
      %cst_10 = arith.constant 0.000000e+00 : f32
      %12 = vector.broadcast %cst_10 : f32 to vector<8x128xf32>
      %c0_11 = arith.constant 0 : index
      %c0_12 = arith.constant 0 : index
      %13 = vector.load %arg8[%c0_11, %c0_12] : memref<8x128xf32, #tpu.memory_space<vmem>>, vector<8x128xf32>
      tpu.vector_store %arg8[%c0_11, %c0_12], %12 {strides = array<i32>} : memref<8x128xf32, #tpu.memory_space<vmem>>, vector<8x128xf32>,
    } else {
    }
    %c0 = arith.constant 0 : index
    %c0_1 = arith.constant 0 : index
    %3 = vector.load %arg8[%c0, %c0_1] : memref<8x128xf32, #tpu.memory_space<vmem>>, vector<8x128xf32>
    %c0_2 = arith.constant 0 : index
    %c0_3 = arith.constant 0 : index
    %4 = vector.load %arg3[%c0_2, %c0_3] : memref<8x128xbf16, #tpu.memory_space<vmem>>, vector<8x128xbf16>
    %c0_4 = arith.constant 0 : index
    %c0_5 = arith.constant 0 : index
    %5 = vector.load %arg4[%c0_4, %c0_5] : memref<128x128xbf16, #tpu.memory_space<vmem>>, vector<128x128xbf16>
    %cst = arith.constant dense<0.000000e+00> : vector<8x128xf32>
    %6 = tpu.matmul %4, %5, %cst {dimension_numbers = #tpu.dot_dimension_numbers<[1], [0], [0], [1], [0, 0, 1, 1], [], []>} : vector<8x128xbf16>, vector<128x128xbf16>, vector<8x128xf32> -> vector<8x128xf32>
    %7 = arith.addf %3, %6 : vector<8x128xf32>
    %c0_6 = arith.constant 0 : index
    %c0_7 = arith.constant 0 : index
    %8 = vector.load %arg8[%c0_6, %c0_7] : memref<8x128xf32, #tpu.memory_space<vmem>>, vector<8x128xf32>
    tpu.vector_store %arg8[%c0_6, %c0_7], %7 {strides = array<i32>} : memref<8x128xf32, #tpu.memory_space<vmem>>, vector<8x128xf32>,
    %c0_i32_8 = arith.constant 0 : i32
    %9 = arith.cmpi eq, %arg2, %c0_i32_8 : i32
    %10 = arith.extui %9 : i1 to i32
    %c0_i32_9 = arith.constant 0 : i32
    %11 = arith.cmpi ne, %10, %c0_i32_9 : i32
    scf.if %11 {
      %c0_10 = arith.constant 0 : index
      %c0_11 = arith.constant 0 : index
      %12 = vector.load %arg8[%c0_10, %c0_11] : memref<8x128xf32, #tpu.memory_space<vmem>>, vector<8x128xf32>
      %c0_12 = arith.constant 0 : index
      %c0_13 = arith.constant 0 : index
      %13 = vector.load %arg5[%c0_12, %c0_13] : memref<1x128xf32, #tpu.memory_space<vmem>>, vector<1x128xf32>
      %14 = vector.broadcast %13 : vector<1x128xf32> to vector<8x128xf32>
      %15 = arith.mulf %12, %14 : vector<8x128xf32>
      %c0_14 = arith.constant 0 : index
      %c0_15 = arith.constant 0 : index
      %16 = vector.load %arg6[%c0_14, %c0_15] : memref<1x128xf32, #tpu.memory_space<vmem>>, vector<1x128xf32>
      %17 = vector.broadcast %16 : vector<1x128xf32> to vector<8x128xf32>
      %18 = arith.addf %15, %17 : vector<8x128xf32>
      %cst_16 = arith.constant 0.000000e+00 : f32
      %19 = vector.broadcast %cst_16 : f32 to vector<8x128xf32>
      %20 = arith.maximumf %18, %19 : vector<8x128xf32>
      %21 = arith.truncf %20 : vector<8x128xf32> to vector<8x128xbf16>
      %c0_17 = arith.constant 0 : index
      %c0_18 = arith.constant 0 : index
      %22 = vector.load %arg7[%c0_17, %c0_18] : memref<8x128xbf16, #tpu.memory_space<vmem>>, vector<8x128xbf16>
      tpu.vector_store %arg7[%c0_17, %c0_18], %21 {strides = array<i32>} : memref<8x128xbf16, #tpu.memory_space<vmem>>, vector<8x128xbf16>,
    } else {
    }
    return
  }
  func.func @transform_0(%arg0: i32, %arg1: i32, %arg2: i32) -> (i32, i32) {
    %c0_i32 = arith.constant 0 : i32
    return %arg0, %arg2 : i32, i32
  }
  func.func @transform_1(%arg0: i32, %arg1: i32, %arg2: i32) -> (i32, i32) {
    %c0_i32 = arith.constant 0 : i32
    return %arg2, %arg1 : i32, i32
  }
  func.func @transform_2(%arg0: i32, %arg1: i32, %arg2: i32) -> (i32, i32) {
    %c0_i32 = arith.constant 0 : i32
    %c0_i32_0 = arith.constant 0 : i32
    return %c0_i32, %arg1 : i32, i32
  }
  func.func @transform_3(%arg0: i32, %arg1: i32, %arg2: i32) -> (i32, i32) {
    %c0_i32 = arith.constant 0 : i32
    %c0_i32_0 = arith.constant 0 : i32
    return %c0_i32, %arg1 : i32, i32
  }
  func.func @transform_4(%arg0: i32, %arg1: i32, %arg2: i32) -> (i32, i32) {
    %c0_i32 = arith.constant 0 : i32
    return %arg0, %arg1 : i32, i32
  }
}

module attributes {stable_mosaic.version = 11 : i64} {
  func.func @_fused_mm_kernel(%arg0: i32, %arg1: i32, %arg2: i32, %arg3: memref<2x1152xbf16, #tpu.memory_space<vmem>>, %arg4: memref<1152x128xbf16, #tpu.memory_space<vmem>>, %arg5: memref<1x128xf32, #tpu.memory_space<vmem>>, %arg6: memref<1x128xf32, #tpu.memory_space<vmem>>, %arg7: memref<2x128xbf16, #tpu.memory_space<vmem>>, %arg8: memref<2x128xf32, #tpu.memory_space<vmem>>) attributes {dimension_semantics = [#tpu.dimension_semantics<parallel>, #tpu.dimension_semantics<parallel>, #tpu.dimension_semantics<arbitrary>], iteration_bounds = array<i64: 1, 1, 1>, scalar_prefetch = 0 : i64, scratch_operands = 1 : i64, tpu.core_type = #tpu.core_type<tc>, window_params = [{transform_indices = @transform_0, window_bounds = array<i64: 2, 1152>}, {transform_indices = @transform_1, window_bounds = array<i64: 1152, 128>}, {transform_indices = @transform_2, window_bounds = array<i64: 1, 128>}, {transform_indices = @transform_3, window_bounds = array<i64: 1, 128>}, {transform_indices = @transform_4, window_bounds = array<i64: 2, 128>}]} {
    %c0_i32 = arith.constant 0 : i32
    %0 = arith.cmpi eq, %arg2, %c0_i32 : i32
    %1 = arith.extui %0 : i1 to i32
    %c0_i32_0 = arith.constant 0 : i32
    %2 = arith.cmpi ne, %1, %c0_i32_0 : i32
    scf.if %2 {
      %cst_10 = arith.constant 0.000000e+00 : f32
      %12 = vector.broadcast %cst_10 : f32 to vector<2x128xf32>
      %c0_11 = arith.constant 0 : index
      %c0_12 = arith.constant 0 : index
      %13 = vector.load %arg8[%c0_11, %c0_12] : memref<2x128xf32, #tpu.memory_space<vmem>>, vector<2x128xf32>
      tpu.vector_store %arg8[%c0_11, %c0_12], %12 {strides = array<i32>} : memref<2x128xf32, #tpu.memory_space<vmem>>, vector<2x128xf32>,
    } else {
    }
    %c0 = arith.constant 0 : index
    %c0_1 = arith.constant 0 : index
    %3 = vector.load %arg8[%c0, %c0_1] : memref<2x128xf32, #tpu.memory_space<vmem>>, vector<2x128xf32>
    %c0_2 = arith.constant 0 : index
    %c0_3 = arith.constant 0 : index
    %4 = vector.load %arg3[%c0_2, %c0_3] : memref<2x1152xbf16, #tpu.memory_space<vmem>>, vector<2x1152xbf16>
    %c0_4 = arith.constant 0 : index
    %c0_5 = arith.constant 0 : index
    %5 = vector.load %arg4[%c0_4, %c0_5] : memref<1152x128xbf16, #tpu.memory_space<vmem>>, vector<1152x128xbf16>
    %cst = arith.constant dense<0.000000e+00> : vector<2x128xf32>
    %6 = tpu.matmul %4, %5, %cst {dimension_numbers = #tpu.dot_dimension_numbers<[1], [0], [0], [1], [0, 0, 1, 1], [], []>} : vector<2x1152xbf16>, vector<1152x128xbf16>, vector<2x128xf32> -> vector<2x128xf32>
    %7 = arith.addf %3, %6 : vector<2x128xf32>
    %c0_6 = arith.constant 0 : index
    %c0_7 = arith.constant 0 : index
    %8 = vector.load %arg8[%c0_6, %c0_7] : memref<2x128xf32, #tpu.memory_space<vmem>>, vector<2x128xf32>
    tpu.vector_store %arg8[%c0_6, %c0_7], %7 {strides = array<i32>} : memref<2x128xf32, #tpu.memory_space<vmem>>, vector<2x128xf32>,
    %c0_i32_8 = arith.constant 0 : i32
    %9 = arith.cmpi eq, %arg2, %c0_i32_8 : i32
    %10 = arith.extui %9 : i1 to i32
    %c0_i32_9 = arith.constant 0 : i32
    %11 = arith.cmpi ne, %10, %c0_i32_9 : i32
    scf.if %11 {
      %c0_10 = arith.constant 0 : index
      %c0_11 = arith.constant 0 : index
      %12 = vector.load %arg8[%c0_10, %c0_11] : memref<2x128xf32, #tpu.memory_space<vmem>>, vector<2x128xf32>
      %c0_12 = arith.constant 0 : index
      %c0_13 = arith.constant 0 : index
      %13 = vector.load %arg5[%c0_12, %c0_13] : memref<1x128xf32, #tpu.memory_space<vmem>>, vector<1x128xf32>
      %14 = vector.broadcast %13 : vector<1x128xf32> to vector<2x128xf32>
      %15 = arith.mulf %12, %14 : vector<2x128xf32>
      %c0_14 = arith.constant 0 : index
      %c0_15 = arith.constant 0 : index
      %16 = vector.load %arg6[%c0_14, %c0_15] : memref<1x128xf32, #tpu.memory_space<vmem>>, vector<1x128xf32>
      %17 = vector.broadcast %16 : vector<1x128xf32> to vector<2x128xf32>
      %18 = arith.addf %15, %17 : vector<2x128xf32>
      %cst_16 = arith.constant 0.000000e+00 : f32
      %19 = vector.broadcast %cst_16 : f32 to vector<2x128xf32>
      %20 = arith.maximumf %18, %19 : vector<2x128xf32>
      %21 = arith.truncf %20 : vector<2x128xf32> to vector<2x128xbf16>
      %c0_17 = arith.constant 0 : index
      %c0_18 = arith.constant 0 : index
      %22 = vector.load %arg7[%c0_17, %c0_18] : memref<2x128xbf16, #tpu.memory_space<vmem>>, vector<2x128xbf16>
      tpu.vector_store %arg7[%c0_17, %c0_18], %21 {strides = array<i32>} : memref<2x128xbf16, #tpu.memory_space<vmem>>, vector<2x128xbf16>,
    } else {
    }
    return
  }
  func.func @transform_0(%arg0: i32, %arg1: i32, %arg2: i32) -> (i32, i32) {
    %c0_i32 = arith.constant 0 : i32
    return %arg0, %arg2 : i32, i32
  }
  func.func @transform_1(%arg0: i32, %arg1: i32, %arg2: i32) -> (i32, i32) {
    %c0_i32 = arith.constant 0 : i32
    return %arg2, %arg1 : i32, i32
  }
  func.func @transform_2(%arg0: i32, %arg1: i32, %arg2: i32) -> (i32, i32) {
    %c0_i32 = arith.constant 0 : i32
    %c0_i32_0 = arith.constant 0 : i32
    return %c0_i32, %arg1 : i32, i32
  }
  func.func @transform_3(%arg0: i32, %arg1: i32, %arg2: i32) -> (i32, i32) {
    %c0_i32 = arith.constant 0 : i32
    %c0_i32_0 = arith.constant 0 : i32
    return %c0_i32, %arg1 : i32, i32
  }
  func.func @transform_4(%arg0: i32, %arg1: i32, %arg2: i32) -> (i32, i32) {
    %c0_i32 = arith.constant 0 : i32
    return %arg0, %arg1 : i32, i32
  }
}

module attributes {stable_mosaic.version = 11 : i64} {
  func.func @_fused_mm_kernel(%arg0: i32, %arg1: i32, %arg2: i32, %arg3: memref<2x256xbf16, #tpu.memory_space<vmem>>, %arg4: memref<256x128xbf16, #tpu.memory_space<vmem>>, %arg5: memref<1x128xf32, #tpu.memory_space<vmem>>, %arg6: memref<1x128xf32, #tpu.memory_space<vmem>>, %arg7: memref<2x128xbf16, #tpu.memory_space<vmem>>, %arg8: memref<2x128xf32, #tpu.memory_space<vmem>>) attributes {dimension_semantics = [#tpu.dimension_semantics<parallel>, #tpu.dimension_semantics<parallel>, #tpu.dimension_semantics<arbitrary>], iteration_bounds = array<i64: 1, 1, 1>, scalar_prefetch = 0 : i64, scratch_operands = 1 : i64, tpu.core_type = #tpu.core_type<tc>, window_params = [{transform_indices = @transform_0, window_bounds = array<i64: 2, 256>}, {transform_indices = @transform_1, window_bounds = array<i64: 256, 128>}, {transform_indices = @transform_2, window_bounds = array<i64: 1, 128>}, {transform_indices = @transform_3, window_bounds = array<i64: 1, 128>}, {transform_indices = @transform_4, window_bounds = array<i64: 2, 128>}]} {
    %c0_i32 = arith.constant 0 : i32
    %0 = arith.cmpi eq, %arg2, %c0_i32 : i32
    %1 = arith.extui %0 : i1 to i32
    %c0_i32_0 = arith.constant 0 : i32
    %2 = arith.cmpi ne, %1, %c0_i32_0 : i32
    scf.if %2 {
      %cst_10 = arith.constant 0.000000e+00 : f32
      %12 = vector.broadcast %cst_10 : f32 to vector<2x128xf32>
      %c0_11 = arith.constant 0 : index
      %c0_12 = arith.constant 0 : index
      %13 = vector.load %arg8[%c0_11, %c0_12] : memref<2x128xf32, #tpu.memory_space<vmem>>, vector<2x128xf32>
      tpu.vector_store %arg8[%c0_11, %c0_12], %12 {strides = array<i32>} : memref<2x128xf32, #tpu.memory_space<vmem>>, vector<2x128xf32>,
    } else {
    }
    %c0 = arith.constant 0 : index
    %c0_1 = arith.constant 0 : index
    %3 = vector.load %arg8[%c0, %c0_1] : memref<2x128xf32, #tpu.memory_space<vmem>>, vector<2x128xf32>
    %c0_2 = arith.constant 0 : index
    %c0_3 = arith.constant 0 : index
    %4 = vector.load %arg3[%c0_2, %c0_3] : memref<2x256xbf16, #tpu.memory_space<vmem>>, vector<2x256xbf16>
    %c0_4 = arith.constant 0 : index
    %c0_5 = arith.constant 0 : index
    %5 = vector.load %arg4[%c0_4, %c0_5] : memref<256x128xbf16, #tpu.memory_space<vmem>>, vector<256x128xbf16>
    %cst = arith.constant dense<0.000000e+00> : vector<2x128xf32>
    %6 = tpu.matmul %4, %5, %cst {dimension_numbers = #tpu.dot_dimension_numbers<[1], [0], [0], [1], [0, 0, 1, 1], [], []>} : vector<2x256xbf16>, vector<256x128xbf16>, vector<2x128xf32> -> vector<2x128xf32>
    %7 = arith.addf %3, %6 : vector<2x128xf32>
    %c0_6 = arith.constant 0 : index
    %c0_7 = arith.constant 0 : index
    %8 = vector.load %arg8[%c0_6, %c0_7] : memref<2x128xf32, #tpu.memory_space<vmem>>, vector<2x128xf32>
    tpu.vector_store %arg8[%c0_6, %c0_7], %7 {strides = array<i32>} : memref<2x128xf32, #tpu.memory_space<vmem>>, vector<2x128xf32>,
    %c0_i32_8 = arith.constant 0 : i32
    %9 = arith.cmpi eq, %arg2, %c0_i32_8 : i32
    %10 = arith.extui %9 : i1 to i32
    %c0_i32_9 = arith.constant 0 : i32
    %11 = arith.cmpi ne, %10, %c0_i32_9 : i32
    scf.if %11 {
      %c0_10 = arith.constant 0 : index
      %c0_11 = arith.constant 0 : index
      %12 = vector.load %arg8[%c0_10, %c0_11] : memref<2x128xf32, #tpu.memory_space<vmem>>, vector<2x128xf32>
      %c0_12 = arith.constant 0 : index
      %c0_13 = arith.constant 0 : index
      %13 = vector.load %arg5[%c0_12, %c0_13] : memref<1x128xf32, #tpu.memory_space<vmem>>, vector<1x128xf32>
      %14 = vector.broadcast %13 : vector<1x128xf32> to vector<2x128xf32>
      %15 = arith.mulf %12, %14 : vector<2x128xf32>
      %c0_14 = arith.constant 0 : index
      %c0_15 = arith.constant 0 : index
      %16 = vector.load %arg6[%c0_14, %c0_15] : memref<1x128xf32, #tpu.memory_space<vmem>>, vector<1x128xf32>
      %17 = vector.broadcast %16 : vector<1x128xf32> to vector<2x128xf32>
      %18 = arith.addf %15, %17 : vector<2x128xf32>
      %cst_16 = arith.constant 0.000000e+00 : f32
      %19 = vector.broadcast %cst_16 : f32 to vector<2x128xf32>
      %20 = arith.maximumf %18, %19 : vector<2x128xf32>
      %21 = arith.truncf %20 : vector<2x128xf32> to vector<2x128xbf16>
      %c0_17 = arith.constant 0 : index
      %c0_18 = arith.constant 0 : index
      %22 = vector.load %arg7[%c0_17, %c0_18] : memref<2x128xbf16, #tpu.memory_space<vmem>>, vector<2x128xbf16>
      tpu.vector_store %arg7[%c0_17, %c0_18], %21 {strides = array<i32>} : memref<2x128xbf16, #tpu.memory_space<vmem>>, vector<2x128xbf16>,
    } else {
    }
    return
  }
  func.func @transform_0(%arg0: i32, %arg1: i32, %arg2: i32) -> (i32, i32) {
    %c0_i32 = arith.constant 0 : i32
    return %arg0, %arg2 : i32, i32
  }
  func.func @transform_1(%arg0: i32, %arg1: i32, %arg2: i32) -> (i32, i32) {
    %c0_i32 = arith.constant 0 : i32
    return %arg2, %arg1 : i32, i32
  }
  func.func @transform_2(%arg0: i32, %arg1: i32, %arg2: i32) -> (i32, i32) {
    %c0_i32 = arith.constant 0 : i32
    %c0_i32_0 = arith.constant 0 : i32
    return %c0_i32, %arg1 : i32, i32
  }
  func.func @transform_3(%arg0: i32, %arg1: i32, %arg2: i32) -> (i32, i32) {
    %c0_i32 = arith.constant 0 : i32
    %c0_i32_0 = arith.constant 0 : i32
    return %c0_i32, %arg1 : i32, i32
  }
  func.func @transform_4(%arg0: i32, %arg1: i32, %arg2: i32) -> (i32, i32) {
    %c0_i32 = arith.constant 0 : i32
    return %arg0, %arg1 : i32, i32
  }
}

module attributes {stable_mosaic.version = 11 : i64} {
  func.func @_fused_mm_res_kernel(%arg0: i32, %arg1: i32, %arg2: i32, %arg3: memref<2x128xbf16, #tpu.memory_space<vmem>>, %arg4: memref<128x256xbf16, #tpu.memory_space<vmem>>, %arg5: memref<1x256xf32, #tpu.memory_space<vmem>>, %arg6: memref<1x256xf32, #tpu.memory_space<vmem>>, %arg7: memref<2x256xbf16, #tpu.memory_space<vmem>>, %arg8: memref<2x256xbf16, #tpu.memory_space<vmem>>, %arg9: memref<2x256xf32, #tpu.memory_space<vmem>>) attributes {dimension_semantics = [#tpu.dimension_semantics<parallel>, #tpu.dimension_semantics<parallel>, #tpu.dimension_semantics<arbitrary>], iteration_bounds = array<i64: 1, 1, 1>, scalar_prefetch = 0 : i64, scratch_operands = 1 : i64, tpu.core_type = #tpu.core_type<tc>, window_params = [{transform_indices = @transform_0, window_bounds = array<i64: 2, 128>}, {transform_indices = @transform_1, window_bounds = array<i64: 128, 256>}, {transform_indices = @transform_2, window_bounds = array<i64: 1, 256>}, {transform_indices = @transform_3, window_bounds = array<i64: 1, 256>}, {transform_indices = @transform_4, window_bounds = array<i64: 2, 256>}, {transform_indices = @transform_5, window_bounds = array<i64: 2, 256>}]} {
    %c0_i32 = arith.constant 0 : i32
    %0 = arith.cmpi eq, %arg2, %c0_i32 : i32
    %1 = arith.extui %0 : i1 to i32
    %c0_i32_0 = arith.constant 0 : i32
    %2 = arith.cmpi ne, %1, %c0_i32_0 : i32
    scf.if %2 {
      %cst_10 = arith.constant 0.000000e+00 : f32
      %12 = vector.broadcast %cst_10 : f32 to vector<2x256xf32>
      %c0_11 = arith.constant 0 : index
      %c0_12 = arith.constant 0 : index
      %13 = vector.load %arg9[%c0_11, %c0_12] : memref<2x256xf32, #tpu.memory_space<vmem>>, vector<2x256xf32>
      tpu.vector_store %arg9[%c0_11, %c0_12], %12 {strides = array<i32>} : memref<2x256xf32, #tpu.memory_space<vmem>>, vector<2x256xf32>,
    } else {
    }
    %c0 = arith.constant 0 : index
    %c0_1 = arith.constant 0 : index
    %3 = vector.load %arg9[%c0, %c0_1] : memref<2x256xf32, #tpu.memory_space<vmem>>, vector<2x256xf32>
    %c0_2 = arith.constant 0 : index
    %c0_3 = arith.constant 0 : index
    %4 = vector.load %arg3[%c0_2, %c0_3] : memref<2x128xbf16, #tpu.memory_space<vmem>>, vector<2x128xbf16>
    %c0_4 = arith.constant 0 : index
    %c0_5 = arith.constant 0 : index
    %5 = vector.load %arg4[%c0_4, %c0_5] : memref<128x256xbf16, #tpu.memory_space<vmem>>, vector<128x256xbf16>
    %cst = arith.constant dense<0.000000e+00> : vector<2x256xf32>
    %6 = tpu.matmul %4, %5, %cst {dimension_numbers = #tpu.dot_dimension_numbers<[1], [0], [0], [1], [0, 0, 1, 1], [], []>} : vector<2x128xbf16>, vector<128x256xbf16>, vector<2x256xf32> -> vector<2x256xf32>
    %7 = arith.addf %3, %6 : vector<2x256xf32>
    %c0_6 = arith.constant 0 : index
    %c0_7 = arith.constant 0 : index
    %8 = vector.load %arg9[%c0_6, %c0_7] : memref<2x256xf32, #tpu.memory_space<vmem>>, vector<2x256xf32>
    tpu.vector_store %arg9[%c0_6, %c0_7], %7 {strides = array<i32>} : memref<2x256xf32, #tpu.memory_space<vmem>>, vector<2x256xf32>,
    %c0_i32_8 = arith.constant 0 : i32
    %9 = arith.cmpi eq, %arg2, %c0_i32_8 : i32
    %10 = arith.extui %9 : i1 to i32
    %c0_i32_9 = arith.constant 0 : i32
    %11 = arith.cmpi ne, %10, %c0_i32_9 : i32
    scf.if %11 {
      %c0_10 = arith.constant 0 : index
      %c0_11 = arith.constant 0 : index
      %12 = vector.load %arg9[%c0_10, %c0_11] : memref<2x256xf32, #tpu.memory_space<vmem>>, vector<2x256xf32>
      %c0_12 = arith.constant 0 : index
      %c0_13 = arith.constant 0 : index
      %13 = vector.load %arg5[%c0_12, %c0_13] : memref<1x256xf32, #tpu.memory_space<vmem>>, vector<1x256xf32>
      %14 = vector.broadcast %13 : vector<1x256xf32> to vector<2x256xf32>
      %15 = arith.mulf %12, %14 : vector<2x256xf32>
      %c0_14 = arith.constant 0 : index
      %c0_15 = arith.constant 0 : index
      %16 = vector.load %arg6[%c0_14, %c0_15] : memref<1x256xf32, #tpu.memory_space<vmem>>, vector<1x256xf32>
      %17 = vector.broadcast %16 : vector<1x256xf32> to vector<2x256xf32>
      %18 = arith.addf %15, %17 : vector<2x256xf32>
      %c0_16 = arith.constant 0 : index
      %c0_17 = arith.constant 0 : index
      %19 = vector.load %arg7[%c0_16, %c0_17] : memref<2x256xbf16, #tpu.memory_space<vmem>>, vector<2x256xbf16>
      %20 = arith.extf %19 : vector<2x256xbf16> to vector<2x256xf32>
      %21 = arith.addf %18, %20 : vector<2x256xf32>
      %cst_18 = arith.constant 0.000000e+00 : f32
      %22 = vector.broadcast %cst_18 : f32 to vector<2x256xf32>
      %23 = arith.maximumf %21, %22 : vector<2x256xf32>
      %24 = arith.truncf %23 : vector<2x256xf32> to vector<2x256xbf16>
      %c0_19 = arith.constant 0 : index
      %c0_20 = arith.constant 0 : index
      %25 = vector.load %arg8[%c0_19, %c0_20] : memref<2x256xbf16, #tpu.memory_space<vmem>>, vector<2x256xbf16>
      tpu.vector_store %arg8[%c0_19, %c0_20], %24 {strides = array<i32>} : memref<2x256xbf16, #tpu.memory_space<vmem>>, vector<2x256xbf16>,
    } else {
    }
    return
  }
  func.func @transform_0(%arg0: i32, %arg1: i32, %arg2: i32) -> (i32, i32) {
    %c0_i32 = arith.constant 0 : i32
    return %arg0, %arg2 : i32, i32
  }
  func.func @transform_1(%arg0: i32, %arg1: i32, %arg2: i32) -> (i32, i32) {
    %c0_i32 = arith.constant 0 : i32
    return %arg2, %arg1 : i32, i32
  }
  func.func @transform_2(%arg0: i32, %arg1: i32, %arg2: i32) -> (i32, i32) {
    %c0_i32 = arith.constant 0 : i32
    %c0_i32_0 = arith.constant 0 : i32
    return %c0_i32, %arg1 : i32, i32
  }
  func.func @transform_3(%arg0: i32, %arg1: i32, %arg2: i32) -> (i32, i32) {
    %c0_i32 = arith.constant 0 : i32
    %c0_i32_0 = arith.constant 0 : i32
    return %c0_i32, %arg1 : i32, i32
  }
  func.func @transform_4(%arg0: i32, %arg1: i32, %arg2: i32) -> (i32, i32) {
    %c0_i32 = arith.constant 0 : i32
    return %arg0, %arg1 : i32, i32
  }
  func.func @transform_5(%arg0: i32, %arg1: i32, %arg2: i32) -> (i32, i32) {
    %c0_i32 = arith.constant 0 : i32
    return %arg0, %arg1 : i32, i32
  }
}

module attributes {stable_mosaic.version = 11 : i64} {
  func.func @_fused_mm_kernel(%arg0: i32, %arg1: i32, %arg2: i32, %arg3: memref<2x128xbf16, #tpu.memory_space<vmem>>, %arg4: memref<128x256xbf16, #tpu.memory_space<vmem>>, %arg5: memref<1x256xf32, #tpu.memory_space<vmem>>, %arg6: memref<1x256xf32, #tpu.memory_space<vmem>>, %arg7: memref<2x256xbf16, #tpu.memory_space<vmem>>, %arg8: memref<2x256xf32, #tpu.memory_space<vmem>>) attributes {dimension_semantics = [#tpu.dimension_semantics<parallel>, #tpu.dimension_semantics<parallel>, #tpu.dimension_semantics<arbitrary>], iteration_bounds = array<i64: 1, 1, 1>, scalar_prefetch = 0 : i64, scratch_operands = 1 : i64, tpu.core_type = #tpu.core_type<tc>, window_params = [{transform_indices = @transform_0, window_bounds = array<i64: 2, 128>}, {transform_indices = @transform_1, window_bounds = array<i64: 128, 256>}, {transform_indices = @transform_2, window_bounds = array<i64: 1, 256>}, {transform_indices = @transform_3, window_bounds = array<i64: 1, 256>}, {transform_indices = @transform_4, window_bounds = array<i64: 2, 256>}]} {
    %c0_i32 = arith.constant 0 : i32
    %0 = arith.cmpi eq, %arg2, %c0_i32 : i32
    %1 = arith.extui %0 : i1 to i32
    %c0_i32_0 = arith.constant 0 : i32
    %2 = arith.cmpi ne, %1, %c0_i32_0 : i32
    scf.if %2 {
      %cst_10 = arith.constant 0.000000e+00 : f32
      %12 = vector.broadcast %cst_10 : f32 to vector<2x256xf32>
      %c0_11 = arith.constant 0 : index
      %c0_12 = arith.constant 0 : index
      %13 = vector.load %arg8[%c0_11, %c0_12] : memref<2x256xf32, #tpu.memory_space<vmem>>, vector<2x256xf32>
      tpu.vector_store %arg8[%c0_11, %c0_12], %12 {strides = array<i32>} : memref<2x256xf32, #tpu.memory_space<vmem>>, vector<2x256xf32>,
    } else {
    }
    %c0 = arith.constant 0 : index
    %c0_1 = arith.constant 0 : index
    %3 = vector.load %arg8[%c0, %c0_1] : memref<2x256xf32, #tpu.memory_space<vmem>>, vector<2x256xf32>
    %c0_2 = arith.constant 0 : index
    %c0_3 = arith.constant 0 : index
    %4 = vector.load %arg3[%c0_2, %c0_3] : memref<2x128xbf16, #tpu.memory_space<vmem>>, vector<2x128xbf16>
    %c0_4 = arith.constant 0 : index
    %c0_5 = arith.constant 0 : index
    %5 = vector.load %arg4[%c0_4, %c0_5] : memref<128x256xbf16, #tpu.memory_space<vmem>>, vector<128x256xbf16>
    %cst = arith.constant dense<0.000000e+00> : vector<2x256xf32>
    %6 = tpu.matmul %4, %5, %cst {dimension_numbers = #tpu.dot_dimension_numbers<[1], [0], [0], [1], [0, 0, 1, 1], [], []>} : vector<2x128xbf16>, vector<128x256xbf16>, vector<2x256xf32> -> vector<2x256xf32>
    %7 = arith.addf %3, %6 : vector<2x256xf32>
    %c0_6 = arith.constant 0 : index
    %c0_7 = arith.constant 0 : index
    %8 = vector.load %arg8[%c0_6, %c0_7] : memref<2x256xf32, #tpu.memory_space<vmem>>, vector<2x256xf32>
    tpu.vector_store %arg8[%c0_6, %c0_7], %7 {strides = array<i32>} : memref<2x256xf32, #tpu.memory_space<vmem>>, vector<2x256xf32>,
    %c0_i32_8 = arith.constant 0 : i32
    %9 = arith.cmpi eq, %arg2, %c0_i32_8 : i32
    %10 = arith.extui %9 : i1 to i32
    %c0_i32_9 = arith.constant 0 : i32
    %11 = arith.cmpi ne, %10, %c0_i32_9 : i32
    scf.if %11 {
      %c0_10 = arith.constant 0 : index
      %c0_11 = arith.constant 0 : index
      %12 = vector.load %arg8[%c0_10, %c0_11] : memref<2x256xf32, #tpu.memory_space<vmem>>, vector<2x256xf32>
      %c0_12 = arith.constant 0 : index
      %c0_13 = arith.constant 0 : index
      %13 = vector.load %arg5[%c0_12, %c0_13] : memref<1x256xf32, #tpu.memory_space<vmem>>, vector<1x256xf32>
      %14 = vector.broadcast %13 : vector<1x256xf32> to vector<2x256xf32>
      %15 = arith.mulf %12, %14 : vector<2x256xf32>
      %c0_14 = arith.constant 0 : index
      %c0_15 = arith.constant 0 : index
      %16 = vector.load %arg6[%c0_14, %c0_15] : memref<1x256xf32, #tpu.memory_space<vmem>>, vector<1x256xf32>
      %17 = vector.broadcast %16 : vector<1x256xf32> to vector<2x256xf32>
      %18 = arith.addf %15, %17 : vector<2x256xf32>
      %19 = arith.truncf %18 : vector<2x256xf32> to vector<2x256xbf16>
      %c0_16 = arith.constant 0 : index
      %c0_17 = arith.constant 0 : index
      %20 = vector.load %arg7[%c0_16, %c0_17] : memref<2x256xbf16, #tpu.memory_space<vmem>>, vector<2x256xbf16>
      tpu.vector_store %arg7[%c0_16, %c0_17], %19 {strides = array<i32>} : memref<2x256xbf16, #tpu.memory_space<vmem>>, vector<2x256xbf16>,
    } else {
    }
    return
  }
  func.func @transform_0(%arg0: i32, %arg1: i32, %arg2: i32) -> (i32, i32) {
    %c0_i32 = arith.constant 0 : i32
    return %arg0, %arg2 : i32, i32
  }
  func.func @transform_1(%arg0: i32, %arg1: i32, %arg2: i32) -> (i32, i32) {
    %c0_i32 = arith.constant 0 : i32
    return %arg2, %arg1 : i32, i32
  }
  func.func @transform_2(%arg0: i32, %arg1: i32, %arg2: i32) -> (i32, i32) {
    %c0_i32 = arith.constant 0 : i32
    %c0_i32_0 = arith.constant 0 : i32
    return %c0_i32, %arg1 : i32, i32
  }
  func.func @transform_3(%arg0: i32, %arg1: i32, %arg2: i32) -> (i32, i32) {
    %c0_i32 = arith.constant 0 : i32
    %c0_i32_0 = arith.constant 0 : i32
    return %c0_i32, %arg1 : i32, i32
  }
  func.func @transform_4(%arg0: i32, %arg1: i32, %arg2: i32) -> (i32, i32) {
    %c0_i32 = arith.constant 0 : i32
    return %arg0, %arg1 : i32, i32
  }
}

module attributes {stable_mosaic.version = 11 : i64} {
  func.func @_avgpool_kernel(%arg0: i32, %arg1: memref<1x1x256xbf16, #tpu.memory_space<vmem>>, %arg2: memref<1x1x256xf32, #tpu.memory_space<vmem>>) attributes {dimension_semantics = [#tpu.dimension_semantics<parallel>], iteration_bounds = array<i64: 2>, scalar_prefetch = 0 : i64, scratch_operands = 0 : i64, tpu.core_type = #tpu.core_type<tc>, window_params = [{transform_indices = @transform_0, window_bounds = array<i64: 1, 1, 256>}, {transform_indices = @transform_1, window_bounds = array<i64: 1, 1, 256>}]} {
    %c0 = arith.constant 0 : index
    %c0_0 = arith.constant 0 : index
    %c0_1 = arith.constant 0 : index
    %0 = vector.load %arg1[%c0, %c0_0, %c0_1] : memref<1x1x256xbf16, #tpu.memory_space<vmem>>, vector<1x1x256xbf16>
    %1 = arith.extf %0 : vector<1x1x256xbf16> to vector<1x1x256xf32>
    %cst = arith.constant dense<0.000000e+00> : vector<1x256xf32>
    %2 = vector.multi_reduction <add>, %1, %cst [1] : vector<1x1x256xf32> to vector<1x256xf32>
    %3 = vector.shape_cast %2 : vector<1x256xf32> to vector<1x1x256xf32>
    %cst_2 = arith.constant 1.000000e+00 : f32
    %4 = vector.broadcast %cst_2 : f32 to vector<1x1x256xf32>
    %5 = arith.divf %3, %4 : vector<1x1x256xf32>
    %c0_3 = arith.constant 0 : index
    %c0_4 = arith.constant 0 : index
    %c0_5 = arith.constant 0 : index
    %6 = vector.load %arg2[%c0_3, %c0_4, %c0_5] : memref<1x1x256xf32, #tpu.memory_space<vmem>>, vector<1x1x256xf32>
    tpu.vector_store %arg2[%c0_3, %c0_4, %c0_5], %5 {strides = array<i32>} : memref<1x1x256xf32, #tpu.memory_space<vmem>>, vector<1x1x256xf32>,
    return
  }
  func.func @transform_0(%arg0: i32) -> (i32, i32, i32) {
    %c0_i32 = arith.constant 0 : i32
    %c0_i32_0 = arith.constant 0 : i32
    %c0_i32_1 = arith.constant 0 : i32
    return %arg0, %c0_i32, %c0_i32_0 : i32, i32, i32
  }
  func.func @transform_1(%arg0: i32) -> (i32, i32, i32) {
    %c0_i32 = arith.constant 0 : i32
    %c0_i32_0 = arith.constant 0 : i32
    %c0_i32_1 = arith.constant 0 : i32
    return %arg0, %c0_i32, %c0_i32_0 : i32, i32, i32
  }
}

module attributes {stable_mosaic.version = 11 : i64} {
  func.func @_fused_mm_kernel(%arg0: i32, %arg1: i32, %arg2: i32, %arg3: memref<2x256xbf16, #tpu.memory_space<vmem>>, %arg4: memref<256x256xbf16, #tpu.memory_space<vmem>>, %arg5: memref<1x256xf32, #tpu.memory_space<vmem>>, %arg6: memref<1x256xf32, #tpu.memory_space<vmem>>, %arg7: memref<2x256xf32, #tpu.memory_space<vmem>>, %arg8: memref<2x256xf32, #tpu.memory_space<vmem>>) attributes {dimension_semantics = [#tpu.dimension_semantics<parallel>, #tpu.dimension_semantics<parallel>, #tpu.dimension_semantics<arbitrary>], iteration_bounds = array<i64: 1, 4, 1>, scalar_prefetch = 0 : i64, scratch_operands = 1 : i64, tpu.core_type = #tpu.core_type<tc>, window_params = [{transform_indices = @transform_0, window_bounds = array<i64: 2, 256>}, {transform_indices = @transform_1, window_bounds = array<i64: 256, 256>}, {transform_indices = @transform_2, window_bounds = array<i64: 1, 256>}, {transform_indices = @transform_3, window_bounds = array<i64: 1, 256>}, {transform_indices = @transform_4, window_bounds = array<i64: 2, 256>}]} {
    %c0_i32 = arith.constant 0 : i32
    %0 = arith.cmpi eq, %arg2, %c0_i32 : i32
    %1 = arith.extui %0 : i1 to i32
    %c0_i32_0 = arith.constant 0 : i32
    %2 = arith.cmpi ne, %1, %c0_i32_0 : i32
    scf.if %2 {
      %cst_10 = arith.constant 0.000000e+00 : f32
      %12 = vector.broadcast %cst_10 : f32 to vector<2x256xf32>
      %c0_11 = arith.constant 0 : index
      %c0_12 = arith.constant 0 : index
      %13 = vector.load %arg8[%c0_11, %c0_12] : memref<2x256xf32, #tpu.memory_space<vmem>>, vector<2x256xf32>
      tpu.vector_store %arg8[%c0_11, %c0_12], %12 {strides = array<i32>} : memref<2x256xf32, #tpu.memory_space<vmem>>, vector<2x256xf32>,
    } else {
    }
    %c0 = arith.constant 0 : index
    %c0_1 = arith.constant 0 : index
    %3 = vector.load %arg8[%c0, %c0_1] : memref<2x256xf32, #tpu.memory_space<vmem>>, vector<2x256xf32>
    %c0_2 = arith.constant 0 : index
    %c0_3 = arith.constant 0 : index
    %4 = vector.load %arg3[%c0_2, %c0_3] : memref<2x256xbf16, #tpu.memory_space<vmem>>, vector<2x256xbf16>
    %c0_4 = arith.constant 0 : index
    %c0_5 = arith.constant 0 : index
    %5 = vector.load %arg4[%c0_4, %c0_5] : memref<256x256xbf16, #tpu.memory_space<vmem>>, vector<256x256xbf16>
    %cst = arith.constant dense<0.000000e+00> : vector<2x256xf32>
    %6 = tpu.matmul %4, %5, %cst {dimension_numbers = #tpu.dot_dimension_numbers<[1], [0], [0], [1], [0, 0, 1, 1], [], []>} : vector<2x256xbf16>, vector<256x256xbf16>, vector<2x256xf32> -> vector<2x256xf32>
    %7 = arith.addf %3, %6 : vector<2x256xf32>
    %c0_6 = arith.constant 0 : index
    %c0_7 = arith.constant 0 : index
    %8 = vector.load %arg8[%c0_6, %c0_7] : memref<2x256xf32, #tpu.memory_space<vmem>>, vector<2x256xf32>
    tpu.vector_store %arg8[%c0_6, %c0_7], %7 {strides = array<i32>} : memref<2x256xf32, #tpu.memory_space<vmem>>, vector<2x256xf32>,
    %c0_i32_8 = arith.constant 0 : i32
    %9 = arith.cmpi eq, %arg2, %c0_i32_8 : i32
    %10 = arith.extui %9 : i1 to i32
    %c0_i32_9 = arith.constant 0 : i32
    %11 = arith.cmpi ne, %10, %c0_i32_9 : i32
    scf.if %11 {
      %c0_10 = arith.constant 0 : index
      %c0_11 = arith.constant 0 : index
      %12 = vector.load %arg8[%c0_10, %c0_11] : memref<2x256xf32, #tpu.memory_space<vmem>>, vector<2x256xf32>
      %c0_12 = arith.constant 0 : index
      %c0_13 = arith.constant 0 : index
      %13 = vector.load %arg5[%c0_12, %c0_13] : memref<1x256xf32, #tpu.memory_space<vmem>>, vector<1x256xf32>
      %14 = vector.broadcast %13 : vector<1x256xf32> to vector<2x256xf32>
      %15 = arith.mulf %12, %14 : vector<2x256xf32>
      %c0_14 = arith.constant 0 : index
      %c0_15 = arith.constant 0 : index
      %16 = vector.load %arg6[%c0_14, %c0_15] : memref<1x256xf32, #tpu.memory_space<vmem>>, vector<1x256xf32>
      %17 = vector.broadcast %16 : vector<1x256xf32> to vector<2x256xf32>
      %18 = arith.addf %15, %17 : vector<2x256xf32>
      %c0_16 = arith.constant 0 : index
      %c0_17 = arith.constant 0 : index
      %19 = vector.load %arg7[%c0_16, %c0_17] : memref<2x256xf32, #tpu.memory_space<vmem>>, vector<2x256xf32>
      tpu.vector_store %arg7[%c0_16, %c0_17], %18 {strides = array<i32>} : memref<2x256xf32, #tpu.memory_space<vmem>>, vector<2x256xf32>,
    } else {
    }
    return
  }
  func.func @transform_0(%arg0: i32, %arg1: i32, %arg2: i32) -> (i32, i32) {
    %c0_i32 = arith.constant 0 : i32
    return %arg0, %arg2 : i32, i32
  }
  func.func @transform_1(%arg0: i32, %arg1: i32, %arg2: i32) -> (i32, i32) {
    %c0_i32 = arith.constant 0 : i32
    return %arg2, %arg1 : i32, i32
  }
  func.func @transform_2(%arg0: i32, %arg1: i32, %arg2: i32) -> (i32, i32) {
    %c0_i32 = arith.constant 0 : i32
    %c0_i32_0 = arith.constant 0 : i32
    return %c0_i32, %arg1 : i32, i32
  }
  func.func @transform_3(%arg0: i32, %arg1: i32, %arg2: i32) -> (i32, i32) {
    %c0_i32 = arith.constant 0 : i32
    %c0_i32_0 = arith.constant 0 : i32
    return %c0_i32, %arg1 : i32, i32
  }
  func.func @transform_4(%arg0: i32, %arg1: i32, %arg2: i32) -> (i32, i32) {
    %c0_i32 = arith.constant 0 : i32
    return %arg0, %arg1 : i32, i32
  }
}

</mosaic_0001>

<llo_original>
// kernel: _lambda_.55
$region0: #{_lambda_.55}
  #allocation0 [shape = 'u32[]', space=smem, size = 0x4, offset = 0x4, fixed_abs, tag = 'smem constant byte address 0x4 - core index']
  #allocation1 [shape = 'u32[144,128]{1,0:T(1,128)}', space=vmem, size = 0x12000, scoped, tag = 'internal scratch']
  #allocation2 [shape = 'f32[256,128]{1,0:T(8,128)}', space=vmem, size = 0x20000, scoped, tag = 'scratch operand']
  %s0 = inlined_call_operand.vmem [shape: bf16[512,147], index: 0, kind: input, shape index: {}]
  %s1 = inlined_call_operand.vmem [shape: bf16[147,128], index: 1, kind: input, shape index: {}]
  %s2 = inlined_call_operand.vmem [shape: f32[1,128], index: 2, kind: input, shape index: {}]
  %s3 = inlined_call_operand.vmem [shape: f32[1,128], index: 3, kind: input, shape index: {}]
  %s4 = inlined_call_operand.vmem [shape: bf16[512,128], index: 4, kind: output, shape index: {}]
  %s5 = sld [smem:[#allocation0]]
  $region57: #{_lambda_.55} parent=0
    _
  %s7 = ssub.s32 1, %s5
  %s8 = scalar_select 0, %s7, %s5
  loop: start=0, step=1, limit=4
  $region2: #{_lambda_.55} parent=0 // loop_pre_header
    _
  $region3: #{_lambda_.55} parent=0 // loop_header
    %s10 = sphi 0, %s14
    %p11 = scmp.ge.s32.totalorder %s10, 4
    %s17 = sphi 0, %s36
    %s18 = sphi 0, %s32
    %s19 = sphi 0, %s28
    %s20 = sphi 0, %s17
    %s21 = sphi 0, %s18
    %s22 = sphi 0, %s19
    %s23 = sphi 0, %s20
    %s24 = sphi 0, %s21
    %s25 = sphi 0, %s22
    %s41 = sphi 0, %s43
    %s44 = sphi 0, %s41
    %s45 = sphi 0, %s44
    %s61 = sphi 0, %s45
    %s69 = sphi 0, %s71
    %s72 = sphi 0, %s69
    %s73 = sphi 0, %s72
    %s89 = sphi 0, %s73
    %s95 = sphi 0, %s97
    %s98 = sphi 0, %s95
    %s99 = sphi 0, %s98
    %s115 = sphi 0, %s99
    %s121 = sphi 0, %s123
    %s124 = sphi 0, %s121
    %s125 = sphi 0, %s124
    %s141 = sphi 0, %s125
    %s149 = sphi 0, %s151
    %s152 = sphi 0, %s149
    %s153 = sphi 0, %s152
    %s169 = sphi 0, %s153
  $region4: #{_lambda_.55} parent=0 // loop_header_branch
    %13 = sbr.rel (%p11) target = $region8
  $region5: #{_lambda_.55} parent=0 // loop_body
    %s15 = ssub.s32 %s10, 1
    %s16 = ssub.s32 %s10, 2
    %s26 = sadd.s32 1, %s19
    %p27 = scmp.ge.s32.totalorder %s26, 1
    %s28 = scalar_select %p27, 0, %s26
    %s29 = sadd.s32 1, %s18
    %s30 = scalar_select %p27, %s29, %s18
    %p31 = scmp.ge.s32.totalorder %s30, 1
    %s32 = scalar_select %p31, 0, %s30
    %s33 = sadd.s32 1, %s17
    %s34 = scalar_select %p31, %s33, %s17
    %p35 = scmp.ge.s32.totalorder %s34, 2
    %s36 = scalar_select %p35, 0, %s34
    %s37 = ssub.s32 %s17, %s36
    %s38 = ssub.s32 %s19, %s28
    %s39 = sor.u32 %s37, %s38
    %p40 = scmp.eq.s32.totalorder %s39, 0
    %s42 = sadd.s32 %s41, 1
    %s43 = scalar_select %p40, %s41, %s42
    %p46 = pneg %p40
    %p47 = scmp.eq.s32.totalorder %s10, 1
    %p48 = por %p46, %p47
    %p49 = scmp.ne.s32.totalorder %s41, %s44
    %p50 = scmp.eq.s32.totalorder %s10, 0
    %p51 = por %p49, %p50
    %p52 = scmp.ne.s32.totalorder %s41, %s44
    %p53 = scmp.eq.s32.totalorder %s15, 1
    %p54 = por %p52, %p53
    %p55 = scmp.ne.s32.totalorder %s44, %s45
    %p56 = scmp.eq.s32.totalorder %s15, 0
    %p57 = por %p55, %p56
    %p58 = scmp.ne.s32.totalorder %s44, %s45
    %p59 = scmp.eq.s32.totalorder %s16, 1
    %p60 = por %p58, %p59
    %p62 = scmp.ne.s32.totalorder %s45, %s61
    %p63 = scmp.eq.s32.totalorder %s16, 0
    %p64 = por %p62, %p63
    %s65 = ssub.s32 %s19, %s28
    %s66 = ssub.s32 %s18, %s32
    %s67 = sor.u32 %s65, %s66
    %p68 = scmp.eq.s32.totalorder %s67, 0
    %s70 = sadd.s32 %s69, 1
    %s71 = scalar_select %p68, %s69, %s70
    %p74 = pneg %p68
    %p75 = scmp.eq.s32.totalorder %s10, 1
    %p76 = por %p74, %p75
    %p77 = scmp.ne.s32.totalorder %s69, %s72
    %p78 = scmp.eq.s32.totalorder %s10, 0
    %p79 = por %p77, %p78
    %p80 = scmp.ne.s32.totalorder %s69, %s72
    %p81 = scmp.eq.s32.totalorder %s15, 1
    %p82 = por %p80, %p81
    %p83 = scmp.ne.s32.totalorder %s72, %s73
    %p84 = scmp.eq.s32.totalorder %s15, 0
    %p85 = por %p83, %p84
    %p86 = scmp.ne.s32.totalorder %s72, %s73
    %p87 = scmp.eq.s32.totalorder %s16, 1
    %p88 = por %p86, %p87
    %p90 = scmp.ne.s32.totalorder %s73, %s89
    %p91 = scmp.eq.s32.totalorder %s16, 0
    %p92 = por %p90, %p91
    %s93 = ssub.s32 %s18, %s32
    %p94 = scmp.eq.s32.totalorder %s93, 0
    %s96 = sadd.s32 %s95, 1
    %s97 = scalar_select %p94, %s95, %s96
    %p100 = pneg %p94
    %p101 = scmp.eq.s32.totalorder %s10, 1
    %p102 = por %p100, %p101
    %p103 = scmp.ne.s32.totalorder %s95, %s98
    %p104 = scmp.eq.s32.totalorder %s10, 0
    %p105 = por %p103, %p104
    %p106 = scmp.ne.s32.totalorder %s95, %s98
    %p107 = scmp.eq.s32.totalorder %s15, 1
    %p108 = por %p106, %p107
    %p109 = scmp.ne.s32.totalorder %s98, %s99
    %p110 = scmp.eq.s32.totalorder %s15, 0
    %p111 = por %p109, %p110
    %p112 = scmp.ne.s32.totalorder %s98, %s99
    %p113 = scmp.eq.s32.totalorder %s16, 1
    %p114 = por %p112, %p113
    %p116 = scmp.ne.s32.totalorder %s99, %s115
    %p117 = scmp.eq.s32.totalorder %s16, 0
    %p118 = por %p116, %p117
    %s119 = ssub.s32 %s18, %s32
    %p120 = scmp.eq.s32.totalorder %s119, 0
    %s122 = sadd.s32 %s121, 1
    %s123 = scalar_select %p120, %s121, %s122
    %p126 = pneg %p120
    %p127 = scmp.eq.s32.totalorder %s10, 1
    %p128 = por %p126, %p127
    %p129 = scmp.ne.s32.totalorder %s121, %s124
    %p130 = scmp.eq.s32.totalorder %s10, 0
    %p131 = por %p129, %p130
    %p132 = scmp.ne.s32.totalorder %s121, %s124
    %p133 = scmp.eq.s32.totalorder %s15, 1
    %p134 = por %p132, %p133
    %p135 = scmp.ne.s32.totalorder %s124, %s125
    %p136 = scmp.eq.s32.totalorder %s15, 0
    %p137 = por %p135, %p136
    %p138 = scmp.ne.s32.totalorder %s124, %s125
    %p139 = scmp.eq.s32.totalorder %s16, 1
    %p140 = por %p138, %p139
    %p142 = scmp.ne.s32.totalorder %s125, %s141
    %p143 = scmp.eq.s32.totalorder %s16, 0
    %p144 = por %p142, %p143
    %s145 = ssub.s32 %s17, %s36
    %s146 = ssub.s32 %s18, %s32
    %s147 = sor.u32 %s145, %s146
    %p148 = scmp.eq.s32.totalorder %s147, 0
    %s150 = sadd.s32 %s149, 1
    %s151 = scalar_select %p148, %s149, %s150
    %p154 = pneg %p148
    %p155 = scmp.eq.s32.totalorder %s10, 1
    %p156 = por %p154, %p155
    %p157 = scmp.ne.s32.totalorder %s149, %s152
    %p158 = scmp.eq.s32.totalorder %s10, 0
    %p159 = por %p157, %p158
    %p160 = scmp.ne.s32.totalorder %s149, %s152
    %p161 = scmp.eq.s32.totalorder %s15, 1
    %p162 = por %p160, %p161
    %p163 = scmp.ne.s32.totalorder %s152, %s153
    %p164 = scmp.eq.s32.totalorder %s15, 0
    %p165 = por %p163, %p164
    %p166 = scmp.ne.s32.totalorder %s152, %s153
    %p167 = scmp.eq.s32.totalorder %s16, 1
    %p168 = por %p166, %p167
    %p170 = scmp.ne.s32.totalorder %s153, %s169
    %p171 = scmp.eq.s32.totalorder %s16, 0
    %p172 = por %p170, %p171
    %p173 = scmp.le.s32.totalorder 1, %s10
    %p174 = scmp.lt.s32.totalorder %s10, 3
    %p175 = pnand %p173, %p174
    %p176 = pneg %p175
    // Predicated region
    $region9: #{_lambda_.55} parent=5 // pred_check
      _
    $region10: #{_lambda_.55} parent=5 // pred_check_branch
      %178 = sbr.rel (%p175) target = $region12
    $region11: #{_lambda_.55} parent=5 // pred_region
      %s179 = ssub.s32 %s10, 1
      // Predicated region
      $region13: #{_lambda_.55} parent=11 // pred_check
        %p180 = pneg %p85
      $region14: #{_lambda_.55} parent=11 // pred_check_branch
        %182 = sbr.rel (%p180) target = $region16
      $region15: #{_lambda_.55} parent=11 // pred_region
        %s183 = smul.u32 19, %s22
        %p184 = scmp.lt.s32.totalorder %s183, 18
        %s185 = scalar_select %p184, %s183, 18
        %p186 = scmp.lt.s32.totalorder %s21, 0
        %s187 = scalar_select %p186, %s21, 0
        %s188 = sadd.s32 %s187, %s185
        %s189 = smul.addr %s188, 4
        %s190 = scalar_lea.vmem %s1, %s189
        %s191 = smul.u32 19, %s22
      $region16: #{_lambda_.55} parent=11 // pred_fallthru
        _
      // Predicated region
      $region17: #{_lambda_.55} parent=11 // pred_check
        %p192 = pneg %p111
      $region18: #{_lambda_.55} parent=11 // pred_check_branch
        %194 = sbr.rel (%p192) target = $region20
      $region19: #{_lambda_.55} parent=11 // pred_region
        %p195 = scmp.lt.s32.totalorder %s21, 0
        %s196 = scalar_select %p195, %s21, 0
        %s197 = scalar_lea.vmem %s2, %s196
      $region20: #{_lambda_.55} parent=11 // pred_fallthru
        _
      // Predicated region
      $region21: #{_lambda_.55} parent=11 // pred_check
        %p198 = pneg %p137
      $region22: #{_lambda_.55} parent=11 // pred_check_branch
        %200 = sbr.rel (%p198) target = $region24
      $region23: #{_lambda_.55} parent=11 // pred_region
        %p201 = scmp.lt.s32.totalorder %s21, 0
        %s202 = scalar_select %p201, %s21, 0
        %s203 = scalar_lea.vmem %s3, %s202
      $region24: #{_lambda_.55} parent=11 // pred_fallthru
        _
    $region12: #{_lambda_.55} parent=5 // pred_fallthru
      _
    %p204 = scmp.lt.s32.totalorder %s10, 2
    // Predicated region
    $region25: #{_lambda_.55} parent=5 // pred_check
      %p205 = pneg %p204
    $region26: #{_lambda_.55} parent=5 // pred_check_branch
      %207 = sbr.rel (%p205) target = $region28
    $region27: #{_lambda_.55} parent=5 // pred_region
      // Predicated region
      $region29: #{_lambda_.55} parent=27 // pred_check
        %p208 = pneg %p51
      $region30: #{_lambda_.55} parent=27 // pred_check_branch
        %210 = sbr.rel (%p208) target = $region32
      $region31: #{_lambda_.55} parent=27 // pred_region
        %s211 = smul.u32 32, %s17
        %s212 = smul.u32 2, %s19
        %p213 = scmp.lt.s32.totalorder %s211, 63
        %s214 = scalar_select %p213, %s211, 63
        %p215 = scmp.lt.s32.totalorder %s212, 1
        %s216 = scalar_select %p215, %s212, 1
        %s217 = smul.addr %s214, 2
        %s218 = sadd.s32 %s216, %s217
        %s219 = smul.addr %s218, 4
        %s220 = scalar_lea.vmem %s0, %s219
        %s221 = smul.u32 32, %s17
        %s222 = smul.u32 2, %s19
      $region32: #{_lambda_.55} parent=27 // pred_fallthru
        _
    $region28: #{_lambda_.55} parent=5 // pred_fallthru
      _
    %p223 = scmp.le.s32.totalorder 1, %s10
    %p224 = scmp.lt.s32.totalorder %s10, 3
    %p225 = pnand %p223, %p224
    %p226 = pneg %p225
    // Predicated region
    $region33: #{_lambda_.55} parent=5 // pred_check
      _
    $region34: #{_lambda_.55} parent=5 // pred_check_branch
      %228 = sbr.rel (%p225) target = $region36
    $region35: #{_lambda_.55} parent=5 // pred_region
      %s229 = ssub.s32 %s10, 1
      %s230 = smul.u32 32, %s20
      %s231 = smul.u32 2, %s22
      %p232 = scmp.lt.s32.totalorder %s230, 63
      %s233 = scalar_select %p232, %s230, 63
      %p234 = scmp.lt.s32.totalorder %s231, 1
      %s235 = scalar_select %p234, %s231, 1
      %s236 = smul.addr %s233, 2
      %s237 = sadd.s32 %s235, %s236
      %s238 = smul.addr %s237, 4
      %s239 = scalar_lea.vmem %s0, %s238
      %p240 = pneg %p57
      %p241 = pneg %p54
      %s242 = smul.u32 19, %s22
      %p243 = scmp.lt.s32.totalorder %s242, 18
      %s244 = scalar_select %p243, %s242, 18
      %p245 = scmp.lt.s32.totalorder %s21, 0
      %s246 = scalar_select %p245, %s21, 0
      %s247 = sadd.s32 %s246, %s244
      %s248 = smul.addr %s247, 4
      %s249 = scalar_lea.vmem %s1, %s248
      %p250 = pneg %p85
      %p251 = pneg %p82
      %p252 = scmp.lt.s32.totalorder %s21, 0
      %s253 = scalar_select %p252, %s21, 0
      %s254 = scalar_lea.vmem %s2, %s253
      %p255 = pneg %p111
      %p256 = pneg %p108
      %p257 = scmp.lt.s32.totalorder %s21, 0
      %s258 = scalar_select %p257, %s21, 0
      %s259 = scalar_lea.vmem %s3, %s258
      %p260 = pneg %p137
      %p261 = pneg %p134
      %p262 = pneg %p165
      %p263 = pneg %p162
      %s264 = smul.u32 32, %s20
      %p265 = scmp.lt.s32.totalorder %s264, 63
      %s266 = scalar_select %p265, %s264, 63
      %p267 = scmp.lt.s32.totalorder %s21, 0
      %s268 = scalar_select %p267, %s21, 0
      %s269 = sadd.s32 %s268, %s266
      %s270 = smul.addr %s269, 4
      %s271 = scalar_lea.vmem %s4, %s270
      %s272 = smul.u32 32, %s20
      %s273 = smul.u32 2, %s22
      %p274 = scmp.lt.s32.totalorder %s272, 63
      %s275 = scalar_select %p274, %s272, 63
      %p276 = scmp.lt.s32.totalorder %s273, 1
      %s277 = scalar_select %p276, %s273, 1
      %s278 = smul.addr %s275, 2
      %s279 = sadd.s32 %s277, %s278
      %s280 = smul.addr %s279, 4
      %s281 = scalar_lea.vmem %s0, %s280
      %s282 = smul.u32 32, %s20
      %s283 = smul.u32 2, %s22
      %s284 = smul.u32 19, %s22
      %p285 = scmp.lt.s32.totalorder %s284, 18
      %s286 = scalar_select %p285, %s284, 18
      %p287 = scmp.lt.s32.totalorder %s21, 0
      %s288 = scalar_select %p287, %s21, 0
      %s289 = sadd.s32 %s288, %s286
      %s290 = smul.addr %s289, 4
      %s291 = scalar_lea.vmem %s1, %s290
      %s292 = smul.u32 19, %s22
      %p293 = scmp.lt.s32.totalorder %s21, 0
      %s294 = scalar_select %p293, %s21, 0
      %s295 = scalar_lea.vmem %s2, %s294
      %p296 = scmp.lt.s32.totalorder %s21, 0
      %s297 = scalar_select %p296, %s21, 0
      %s298 = scalar_lea.vmem %s3, %s297
      %s299 = smul.u32 32, %s20
      %p300 = scmp.lt.s32.totalorder %s299, 63
      %s301 = scalar_select %p300, %s299, 63
      %p302 = scmp.lt.s32.totalorder %s21, 0
      %s303 = scalar_select %p302, %s21, 0
      %s304 = sadd.s32 %s303, %s301
      %s305 = smul.addr %s304, 4
      %s306 = scalar_lea.vmem %s4, %s305
      %s307 = smul.u32 32, %s20
      %p309 = scmp.eq.s32.totalorder %s22, 0
      // Predicated region
      $region37: #{_lambda_.55} parent=35 // pred_check
        %p310 = pneg %p309
      $region38: #{_lambda_.55} parent=35 // pred_check_branch
        %312 = sbr.rel (%p310) target = $region40
      $region39: #{_lambda_.55} parent=35 // pred_region
        %313 = vst [vmem:[#allocation2] sm:$0xff] 0.0
        %314 = vst [vmem:[#allocation2 + $0x8] sm:$0xff] 0.0
        %315 = vst [vmem:[#allocation2 + $0x10] sm:$0xff] 0.0
        %316 = vst [vmem:[#allocation2 + $0x18] sm:$0xff] 0.0
        %317 = vst [vmem:[#allocation2 + $0x20] sm:$0xff] 0.0
        %318 = vst [vmem:[#allocation2 + $0x28] sm:$0xff] 0.0
        %319 = vst [vmem:[#allocation2 + $0x30] sm:$0xff] 0.0
        %320 = vst [vmem:[#allocation2 + $0x38] sm:$0xff] 0.0
        %321 = vst [vmem:[#allocation2 + $0x40] sm:$0xff] 0.0
        %322 = vst [vmem:[#allocation2 + $0x48] sm:$0xff] 0.0
        %323 = vst [vmem:[#allocation2 + $0x50] sm:$0xff] 0.0
        %324 = vst [vmem:[#allocation2 + $0x58] sm:$0xff] 0.0
        %325 = vst [vmem:[#allocation2 + $0x60] sm:$0xff] 0.0
        %326 = vst [vmem:[#allocation2 + $0x68] sm:$0xff] 0.0
        %327 = vst [vmem:[#allocation2 + $0x70] sm:$0xff] 0.0
        %328 = vst [vmem:[#allocation2 + $0x78] sm:$0xff] 0.0
        %329 = vst [vmem:[#allocation2 + $0x80] sm:$0xff] 0.0
        %330 = vst [vmem:[#allocation2 + $0x88] sm:$0xff] 0.0
        %331 = vst [vmem:[#allocation2 + $0x90] sm:$0xff] 0.0
        %332 = vst [vmem:[#allocation2 + $0x98] sm:$0xff] 0.0
        %333 = vst [vmem:[#allocation2 + $0xa0] sm:$0xff] 0.0
        %334 = vst [vmem:[#allocation2 + $0xa8] sm:$0xff] 0.0
        %335 = vst [vmem:[#allocation2 + $0xb0] sm:$0xff] 0.0
        %336 = vst [vmem:[#allocation2 + $0xb8] sm:$0xff] 0.0
        %337 = vst [vmem:[#allocation2 + $0xc0] sm:$0xff] 0.0
        %338 = vst [vmem:[#allocation2 + $0xc8] sm:$0xff] 0.0
        %339 = vst [vmem:[#allocation2 + $0xd0] sm:$0xff] 0.0
        %340 = vst [vmem:[#allocation2 + $0xd8] sm:$0xff] 0.0
        %341 = vst [vmem:[#allocation2 + $0xe0] sm:$0xff] 0.0
        %342 = vst [vmem:[#allocation2 + $0xe8] sm:$0xff] 0.0
        %343 = vst [vmem:[#allocation2 + $0xf0] sm:$0xff] 0.0
        %344 = vst [vmem:[#allocation2 + $0xf8] sm:$0xff] 0.0
      $region40: #{_lambda_.55} parent=35 // pred_fallthru
        _
      %v345 = vld [vmem:[#allocation2] sm:$0xff]
      %v346 = vld [vmem:[#allocation2 + $0x8] sm:$0xff]
      %v347 = vld [vmem:[#allocation2 + $0x10] sm:$0xff]
      %v348 = vld [vmem:[#allocation2 + $0x18] sm:$0xff]
      %v349 = vld [vmem:[#allocation2 + $0x20] sm:$0xff]
      %v350 = vld [vmem:[#allocation2 + $0x28] sm:$0xff]
      %v351 = vld [vmem:[#allocation2 + $0x30] sm:$0xff]
      %v352 = vld [vmem:[#allocation2 + $0x38] sm:$0xff]
      %v353 = vld [vmem:[#allocation2 + $0x40] sm:$0xff]
      %v354 = vld [vmem:[#allocation2 + $0x48] sm:$0xff]
      %v355 = vld [vmem:[#allocation2 + $0x50] sm:$0xff]
      %v356 = vld [vmem:[#allocation2 + $0x58] sm:$0xff]
      %v357 = vld [vmem:[#allocation2 + $0x60] sm:$0xff]
      %v358 = vld [vmem:[#allocation2 + $0x68] sm:$0xff]
      %v359 = vld [vmem:[#allocation2 + $0x70] sm:$0xff]
      %v360 = vld [vmem:[#allocation2 + $0x78] sm:$0xff]
      %v361 = vld [vmem:[#allocation2 + $0x80] sm:$0xff]
      %v362 = vld [vmem:[#allocation2 + $0x88] sm:$0xff]
      %v363 = vld [vmem:[#allocation2 + $0x90] sm:$0xff]
      %v364 = vld [vmem:[#allocation2 + $0x98] sm:$0xff]
      %v365 = vld [vmem:[#allocation2 + $0xa0] sm:$0xff]
      %v366 = vld [vmem:[#allocation2 + $0xa8] sm:$0xff]
      %v367 = vld [vmem:[#allocation2 + $0xb0] sm:$0xff]
      %v368 = vld [vmem:[#allocation2 + $0xb8] sm:$0xff]
      %v369 = vld [vmem:[#allocation2 + $0xc0] sm:$0xff]
      %v370 = vld [vmem:[#allocation2 + $0xc8] sm:$0xff]
      %v371 = vld [vmem:[#allocation2 + $0xd0] sm:$0xff]
      %v372 = vld [vmem:[#allocation2 + $0xd8] sm:$0xff]
      %v373 = vld [vmem:[#allocation2 + $0xe0] sm:$0xff]
      %v374 = vld [vmem:[#allocation2 + $0xe8] sm:$0xff]
      %v375 = vld [vmem:[#allocation2 + $0xf0] sm:$0xff]
      %v376 = vld [vmem:[#allocation2 + $0xf8] sm:$0xff]
      %v377 = vld [vmem:[%s281] sm:$0xff]
      %v378 = vld [vmem:[%s281 + $0x8] sm:$0xff]
      %v379 = vld [vmem:[%s281 + $0x10] sm:$0xff]
      %v380 = vld [vmem:[%s281 + $0x18] sm:$0xff]
      %v381 = vld [vmem:[%s281 + $0x20] sm:$0xff]
      %v382 = vld [vmem:[%s281 + $0x28] sm:$0xff]
      %v383 = vld [vmem:[%s281 + $0x30] sm:$0xff]
      %v384 = vld [vmem:[%s281 + $0x38] sm:$0xff]
      %v385 = vld [vmem:[%s281 + $0x40] sm:$0xff]
      %v386 = vld [vmem:[%s281 + $0x48] sm:$0xff]
      %v387 = vld [vmem:[%s281 + $0x50] sm:$0xff]
      %v388 = vld [vmem:[%s281 + $0x58] sm:$0xff]
      %v389 = vld [vmem:[%s281 + $0x60] sm:$0xff]
      %v390 = vld [vmem:[%s281 + $0x68] sm:$0xff]
      %v391 = vld [vmem:[%s281 + $0x70] sm:$0xff]
      %v392 = vld [vmem:[%s281 + $0x78] sm:$0xff]
      %v393 = vld [vmem:[%s281 + $0x80] sm:$0xff]
      %v394 = vld [vmem:[%s281 + $0x88] sm:$0xff]
      %v395 = vld [vmem:[%s281 + $0x90] sm:$0xff]
      %v396 = vld [vmem:[%s281 + $0x98] sm:$0xff]
      %v397 = vld [vmem:[%s281 + $0xa0] sm:$0xff]
      %v398 = vld [vmem:[%s281 + $0xa8] sm:$0xff]
      %v399 = vld [vmem:[%s281 + $0xb0] sm:$0xff]
      %v400 = vld [vmem:[%s281 + $0xb8] sm:$0xff]
      %v401 = vld [vmem:[%s281 + $0xc0] sm:$0xff]
      %v402 = vld [vmem:[%s281 + $0xc8] sm:$0xff]
      %v403 = vld [vmem:[%s281 + $0xd0] sm:$0xff]
      %v404 = vld [vmem:[%s281 + $0xd8] sm:$0xff]
      %v405 = vld [vmem:[%s281 + $0xe0] sm:$0xff]
      %v406 = vld [vmem:[%s281 + $0xe8] sm:$0xff]
      %v407 = vld [vmem:[%s281 + $0xf0] sm:$0xff]
      %v408 = vld [vmem:[%s281 + $0xf8] sm:$0xff]
      %v409 = vld [vmem:[%s291] sm:$0xf]
      %v410 = vld [vmem:[%s291 + $0x4] sm:$0xf]
      %v411 = vld [vmem:[%s291 + $0x8] sm:$0xf]
      %v412 = vld [vmem:[%s291 + $0xc] sm:$0xf]
      %v413 = vld [vmem:[%s291 + $0x10] sm:$0xf]
      %v414 = vld [vmem:[%s291 + $0x14] sm:$0xf]
      %v415 = vld [vmem:[%s291 + $0x18] sm:$0xf]
      %v416 = vld [vmem:[%s291 + $0x1c] sm:$0xf]
      %v417 = vld [vmem:[%s291 + $0x20] sm:$0xf]
      %v418 = vld [vmem:[%s291 + $0x24] sm:$0xf]
      %v419 = vld [vmem:[%s291 + $0x28] sm:$0xf]
      %v420 = vld [vmem:[%s291 + $0x2c] sm:$0xf]
      %v421 = vld [vmem:[%s291 + $0x30] sm:$0xf]
      %v422 = vld [vmem:[%s291 + $0x34] sm:$0xf]
      %v423 = vld [vmem:[%s291 + $0x38] sm:$0xf]
      %v424 = vld [vmem:[%s291 + $0x3c] sm:$0xf]
      %v425 = vld [vmem:[%s291 + $0x40] sm:$0xf]
      %v426 = vld [vmem:[%s291 + $0x44] sm:$0xf]
      %v427 = vld [vmem:[%s291 + $0x48] sm:$0x3]
      %v460 = vunpack.c.l.b16 %v377
      %v461 = vunpack.c.h.b16 %v377
      %v462 = vunpack.c.l.b16 %v378
      %v463 = vunpack.c.h.b16 %v378
      %v464 = vunpack.c.l.b16 %v379
      %v465 = vunpack.c.h.b16 %v379
      %v466 = vunpack.c.l.b16 %v380
      %v467 = vunpack.c.h.b16 %v380
      %v468 = vunpack.c.l.b16 %v381
      %v469 = vunpack.c.h.b16 %v381
      %v470 = vunpack.c.l.b16 %v382
      %v471 = vunpack.c.h.b16 %v382
      %v472 = vunpack.c.l.b16 %v383
      %v473 = vunpack.c.h.b16 %v383
      %v474 = vunpack.c.l.b16 %v384
      %v475 = vunpack.c.h.b16 %v384
      %v476 = vunpack.c.l.b16 %v385
      %v477 = vunpack.c.h.b16 %v385
      %v478 = vunpack.c.l.b16 %v386
      %v479 = vunpack.c.h.b16 %v386
      %v480 = vunpack.c.l.b16 %v387
      %v481 = vunpack.c.h.b16 %v387
      %v482 = vunpack.c.l.b16 %v388
      %v483 = vunpack.c.h.b16 %v388
      %v484 = vunpack.c.l.b16 %v389
      %v485 = vunpack.c.h.b16 %v389
      %v486 = vunpack.c.l.b16 %v390
      %v487 = vunpack.c.h.b16 %v390
      %v488 = vunpack.c.l.b16 %v391
      %v489 = vunpack.c.h.b16 %v391
      %v490 = vunpack.c.l.b16 %v392
      %v491 = vunpack.c.h.b16 %v392
      %v492 = vunpack.c.l.b16 %v393
      %v493 = vunpack.c.h.b16 %v393
      %v494 = vunpack.c.l.b16 %v394
      %v495 = vunpack.c.h.b16 %v394
      %v496 = vunpack.c.l.b16 %v395
      %v497 = vunpack.c.h.b16 %v395
      %v498 = vunpack.c.l.b16 %v396
      %v499 = vunpack.c.h.b16 %v396
      %v500 = vunpack.c.l.b16 %v397
      %v501 = vunpack.c.h.b16 %v397
      %v502 = vunpack.c.l.b16 %v398
      %v503 = vunpack.c.h.b16 %v398
      %v504 = vunpack.c.l.b16 %v399
      %v505 = vunpack.c.h.b16 %v399
      %v506 = vunpack.c.l.b16 %v400
      %v507 = vunpack.c.h.b16 %v400
      %v508 = vunpack.c.l.b16 %v401
      %v509 = vunpack.c.h.b16 %v401
      %v510 = vunpack.c.l.b16 %v402
      %v511 = vunpack.c.h.b16 %v402
      %v512 = vunpack.c.l.b16 %v403
      %v513 = vunpack.c.h.b16 %v403
      %v514 = vunpack.c.l.b16 %v404
      %v515 = vunpack.c.h.b16 %v404
      %v516 = vunpack.c.l.b16 %v405
      %v517 = vunpack.c.h.b16 %v405
      %v518 = vunpack.c.l.b16 %v406
      %v519 = vunpack.c.h.b16 %v406
      %v520 = vunpack.c.l.b16 %v407
      %v521 = vunpack.c.h.b16 %v407
      %v522 = vunpack.c.l.b16 %v408
      %v523 = vunpack.c.h.b16 %v408
      %v524 = vpack.c.b16 %v462, %v460
      %v525 = vpack.c.b16 %v463, %v461
      %v526 = vpack.c.b16 %v466, %v464
      %v527 = vpack.c.b16 %v467, %v465
      %v528 = vpack.c.b16 %v470, %v468
      %v529 = vpack.c.b16 %v471, %v469
      %v530 = vpack.c.b16 %v474, %v472
      %v531 = vpack.c.b16 %v475, %v473
      %v532 = vpack.c.b16 %v478, %v476
      %v533 = vpack.c.b16 %v479, %v477
      %v534 = vpack.c.b16 %v482, %v480
      %v535 = vpack.c.b16 %v483, %v481
      %v536 = vpack.c.b16 %v486, %v484
      %v537 = vpack.c.b16 %v487, %v485
      %v538 = vpack.c.b16 %v490, %v488
      %v539 = vpack.c.b16 %v491, %v489
      %v540 = vpack.c.b16 %v494, %v492
      %v541 = vpack.c.b16 %v495, %v493
      %v542 = vpack.c.b16 %v498, %v496
      %v543 = vpack.c.b16 %v499, %v497
      %v544 = vpack.c.b16 %v502, %v500
      %v545 = vpack.c.b16 %v503, %v501
      %v546 = vpack.c.b16 %v506, %v504
      %v547 = vpack.c.b16 %v507, %v505
      %v548 = vpack.c.b16 %v510, %v508
      %v549 = vpack.c.b16 %v511, %v509
      %v550 = vpack.c.b16 %v514, %v512
      %v551 = vpack.c.b16 %v515, %v513
      %v552 = vpack.c.b16 %v518, %v516
      %v553 = vpack.c.b16 %v519, %v517
      %v554 = vpack.c.b16 %v522, %v520
      %v555 = vpack.c.b16 %v523, %v521
      %v591 = vunpack.c.l.b16 %v409
      %v592 = vunpack.c.l.b16 %v410
      %v593 = vunpack.c.l.b16 %v411
      %v594 = vunpack.c.l.b16 %v412
      %v595 = vunpack.c.l.b16 %v413
      %v596 = vunpack.c.l.b16 %v414
      %v597 = vunpack.c.l.b16 %v415
      %v598 = vunpack.c.l.b16 %v416
      %v599 = vunpack.c.l.b16 %v417
      %v600 = vunpack.c.l.b16 %v418
      %v601 = vunpack.c.l.b16 %v419
      %v602 = vunpack.c.l.b16 %v420
      %v603 = vunpack.c.l.b16 %v421
      %v604 = vunpack.c.l.b16 %v422
      %v605 = vunpack.c.l.b16 %v423
      %v606 = vunpack.c.l.b16 %v424
      %v607 = vunpack.c.l.b16 %v425
      %v608 = vunpack.c.l.b16 %v426
      %v609 = vunpack.c.l.b16 %v427
      %v610 = vpack.c.b16 %v592, %v591
      %v611 = vpack.c.b16 %v594, %v593
      %v612 = vpack.c.b16 %v596, %v595
      %v613 = vpack.c.b16 %v598, %v597
      %v614 = vpack.c.b16 %v600, %v599
      %v615 = vpack.c.b16 %v602, %v601
      %v616 = vpack.c.b16 %v604, %v603
      %v617 = vpack.c.b16 %v606, %v605
      %v618 = vpack.c.b16 %v608, %v607
      %v619 = vpack.c.b16 %v609, %v609
      %vm629 = vcmask 154624
      %v631 = vsel %vm629, %v525, 0
      %v634 = vsel %vm629, %v527, 0
      %v637 = vsel %vm629, %v529, 0
      %v640 = vsel %vm629, %v531, 0
      %v643 = vsel %vm629, %v533, 0
      %v646 = vsel %vm629, %v535, 0
      %v649 = vsel %vm629, %v537, 0
      %v652 = vsel %vm629, %v539, 0
      %v655 = vsel %vm629, %v541, 0
      %v658 = vsel %vm629, %v543, 0
      %v661 = vsel %vm629, %v545, 0
      %v664 = vsel %vm629, %v547, 0
      %v667 = vsel %vm629, %v549, 0
      %v670 = vsel %vm629, %v551, 0
      %v673 = vsel %vm629, %v553, 0
      %v676 = vsel %vm629, %v555, 0
      %vm678 = vcmask 1040384
      %vm679 = vcmask 1041408
      %v680 = vsel %vm678, 4294967295, 65535
      %v681 = vsel %vm679, %v680, 0
      %v683 = vand.u32 %v619, %v681
      %685 = vmatprep.subr.bf16.mxu0 0
      %686 = vmatpush1.bf16.msra.mxu0 %v617
      %687 = vmatprep.subr.bf16.mxu0 0
      %688 = vmatpush1.bf16.msra.mxu0 %v616
      %689 = vmatprep.subr.bf16.mxu0 0
      %690 = vmatpush1.bf16.msra.mxu0 %v615
      %691 = vmatprep.subr.bf16.mxu0 0
      %692 = vmatpush1.bf16.msra.mxu0 %v614
      %693 = vmatprep.subr.bf16.mxu0 0
      %694 = vmatpush1.bf16.msra.mxu0 %v613
      %695 = vmatprep.subr.bf16.mxu0 0
      %696 = vmatpush1.bf16.msra.mxu0 %v612
      %697 = vmatprep.subr.bf16.mxu0 0
      %698 = vmatpush1.bf16.msra.mxu0 %v611
      %699 = vmatprep.subr.bf16.mxu0 0
      %700 = vmatpush1.bf16.msra.mxu0 %v610
      %701 = vmatprep.subr.bf16.mxu0 0
      %702 = vmatpush2.bf16.msra.mxu0 0
      %703 = vmatprep.subr.bf16.mxu0 0
      %704 = vmatpush2.bf16.msra.mxu0 0
      %705 = vmatprep.subr.bf16.mxu0 0
      %706 = vmatpush2.bf16.msra.mxu0 0
      %707 = vmatprep.subr.bf16.mxu0 0
      %708 = vmatpush2.bf16.msra.mxu0 0
      %709 = vmatprep.subr.bf16.mxu0 0
      %710 = vmatpush2.bf16.msra.mxu0 0
      %711 = vmatprep.subr.bf16.mxu0 0
      %712 = vmatpush2.bf16.msra.mxu0 0
      %713 = vmatprep.subr.bf16.mxu0 0
      %714 = vmatpush2.bf16.msra.mxu0 %v683
      %715 = vmatprep.subr.bf16.mxu0 0
      %716 = vmatpush2.bf16.msra.mxu0 %v618
      %717 = vmatprep.mubr.bf16.mxu0 %v631
      %718 = vmatmul.mubr.bf16.gmra.mxu0 %v524
      %v719 = vpop.f32.mrf.mxu0
      %v720 = vadd.f32 0.0, %v719
      %v721 = vpop.f32.mrf.mxu0
      %v722 = vpop.f32.mrf.mxu0
      %v723 = vadd.f32 0.0, %v722
      %v724 = vpop.f32.mrf.mxu0
      %725 = vmatprep.mubr.bf16.mxu0 %v634
      %726 = vmatmul.mubr.bf16.gmra.mxu0 %v526
      %v727 = vpop.f32.mrf.mxu0
      %v728 = vadd.f32 0.0, %v727
      %v729 = vpop.f32.mrf.mxu0
      %v730 = vpop.f32.mrf.mxu0
      %v731 = vadd.f32 0.0, %v730
      %v732 = vpop.f32.mrf.mxu0
      %733 = vmatprep.mubr.bf16.mxu0 %v637
      %734 = vmatmul.mubr.bf16.gmra.mxu0 %v528
      %v735 = vpop.f32.mrf.mxu0
      %v736 = vadd.f32 0.0, %v735
      %v737 = vpop.f32.mrf.mxu0
      %v738 = vpop.f32.mrf.mxu0
      %v739 = vadd.f32 0.0, %v738
      %v740 = vpop.f32.mrf.mxu0
      %741 = vmatprep.mubr.bf16.mxu0 %v640
      %742 = vmatmul.mubr.bf16.gmra.mxu0 %v530
      %v743 = vpop.f32.mrf.mxu0
      %v744 = vadd.f32 0.0, %v743
      %v745 = vpop.f32.mrf.mxu0
      %v746 = vpop.f32.mrf.mxu0
      %v747 = vadd.f32 0.0, %v746
      %v748 = vpop.f32.mrf.mxu0
      %749 = vmatprep.mubr.bf16.mxu0 %v643
      %750 = vmatmul.mubr.bf16.gmra.mxu0 %v532
      %v751 = vpop.f32.mrf.mxu0
      %v752 = vadd.f32 0.0, %v751
      %v753 = vpop.f32.mrf.mxu0
      %v754 = vpop.f32.mrf.mxu0
      %v755 = vadd.f32 0.0, %v754
      %v756 = vpop.f32.mrf.mxu0
      %757 = vmatprep.mubr.bf16.mxu0 %v646
      %758 = vmatmul.mubr.bf16.gmra.mxu0 %v534
      %v759 = vpop.f32.mrf.mxu0
      %v760 = vadd.f32 0.0, %v759
      %v761 = vpop.f32.mrf.mxu0
      %v762 = vpop.f32.mrf.mxu0
      %v763 = vadd.f32 0.0, %v762
      %v764 = vpop.f32.mrf.mxu0
      %765 = vmatprep.mubr.bf16.mxu0 %v649
      %766 = vmatmul.mubr.bf16.gmra.mxu0 %v536
      %v767 = vpop.f32.mrf.mxu0
      %v768 = vadd.f32 0.0, %v767
      %v769 = vpop.f32.mrf.mxu0
      %v770 = vpop.f32.mrf.mxu0
      %v771 = vadd.f32 0.0, %v770
      %v772 = vpop.f32.mrf.mxu0
      %773 = vmatprep.mubr.bf16.mxu0 %v652
      %774 = vmatmul.mubr.bf16.gmra.mxu0 %v538
      %v775 = vpop.f32.mrf.mxu0
      %v776 = vadd.f32 0.0, %v775
      %v777 = vpop.f32.mrf.mxu0
      %v778 = vpop.f32.mrf.mxu0
      %v779 = vadd.f32 0.0, %v778
      %v780 = vpop.f32.mrf.mxu0
      %781 = vmatprep.mubr.bf16.mxu0 %v655
      %782 = vmatmul.mubr.bf16.gmra.mxu0 %v540
      %v783 = vpop.f32.mrf.mxu0
      %v784 = vadd.f32 0.0, %v783
      %v785 = vpop.f32.mrf.mxu0
      %v786 = vpop.f32.mrf.mxu0
      %v787 = vadd.f32 0.0, %v786
      %v788 = vpop.f32.mrf.mxu0
      %789 = vmatprep.mubr.bf16.mxu0 %v658
      %790 = vmatmul.mubr.bf16.gmra.mxu0 %v542
      %v791 = vpop.f32.mrf.mxu0
      %v792 = vadd.f32 0.0, %v791
      %v793 = vpop.f32.mrf.mxu0
      %v794 = vpop.f32.mrf.mxu0
      %v795 = vadd.f32 0.0, %v794
      %v796 = vpop.f32.mrf.mxu0
      %797 = vmatprep.mubr.bf16.mxu0 %v661
      %798 = vmatmul.mubr.bf16.gmra.mxu0 %v544
      %v799 = vpop.f32.mrf.mxu0
      %v800 = vadd.f32 0.0, %v799
      %v801 = vpop.f32.mrf.mxu0
      %v802 = vpop.f32.mrf.mxu0
      %v803 = vadd.f32 0.0, %v802
      %v804 = vpop.f32.mrf.mxu0
      %805 = vmatprep.mubr.bf16.mxu0 %v664
      %806 = vmatmul.mubr.bf16.gmra.mxu0 %v546
      %v807 = vpop.f32.mrf.mxu0
      %v808 = vadd.f32 0.0, %v807
      %v809 = vpop.f32.mrf.mxu0
      %v810 = vpop.f32.mrf.mxu0
      %v811 = vadd.f32 0.0, %v810
      %v812 = vpop.f32.mrf.mxu0
      %813 = vmatprep.mubr.bf16.mxu0 %v667
      %814 = vmatmul.mubr.bf16.gmra.mxu0 %v548
      %v815 = vpop.f32.mrf.mxu0
      %v816 = vadd.f32 0.0, %v815
      %v817 = vpop.f32.mrf.mxu0
      %v818 = vpop.f32.mrf.mxu0
      %v819 = vadd.f32 0.0, %v818
      %v820 = vpop.f32.mrf.mxu0
      %821 = vmatprep.mubr.bf16.mxu0 %v670
      %822 = vmatmul.mubr.bf16.gmra.mxu0 %v550
      %v823 = vpop.f32.mrf.mxu0
      %v824 = vadd.f32 0.0, %v823
      %v825 = vpop.f32.mrf.mxu0
      %v826 = vpop.f32.mrf.mxu0
      %v827 = vadd.f32 0.0, %v826
      %v828 = vpop.f32.mrf.mxu0
      %829 = vmatprep.mubr.bf16.mxu0 %v673
      %830 = vmatmul.mubr.bf16.gmra.mxu0 %v552
      %v831 = vpop.f32.mrf.mxu0
      %v832 = vadd.f32 0.0, %v831
      %v833 = vpop.f32.mrf.mxu0
      %v834 = vpop.f32.mrf.mxu0
      %v835 = vadd.f32 0.0, %v834
      %v836 = vpop.f32.mrf.mxu0
      %837 = vmatprep.mubr.bf16.mxu0 %v676
      %838 = vmatmul.mubr.bf16.gmra.mxu0 %v554
      %v839 = vpop.f32.mrf.mxu0
      %v840 = vadd.f32 0.0, %v839
      %v841 = vpop.f32.mrf.mxu0
      %v842 = vpop.f32.mrf.mxu0
      %v843 = vadd.f32 0.0, %v842
      %v844 = vpop.f32.mrf.mxu0
      %845 = vdwg.mxu0
      %v846 = vadd.f32 %v345, %v720
      %v847 = vadd.f32 %v346, %v723
      %v848 = vadd.f32 %v347, %v728
      %v849 = vadd.f32 %v348, %v731
      %v850 = vadd.f32 %v349, %v736
      %v851 = vadd.f32 %v350, %v739
      %v852 = vadd.f32 %v351, %v744
      %v853 = vadd.f32 %v352, %v747
      %v854 = vadd.f32 %v353, %v752
      %v855 = vadd.f32 %v354, %v755
      %v856 = vadd.f32 %v355, %v760
      %v857 = vadd.f32 %v356, %v763
      %v858 = vadd.f32 %v357, %v768
      %v859 = vadd.f32 %v358, %v771
      %v860 = vadd.f32 %v359, %v776
      %v861 = vadd.f32 %v360, %v779
      %v862 = vadd.f32 %v361, %v784
      %v863 = vadd.f32 %v362, %v787
      %v864 = vadd.f32 %v363, %v792
      %v865 = vadd.f32 %v364, %v795
      %v866 = vadd.f32 %v365, %v800
      %v867 = vadd.f32 %v366, %v803
      %v868 = vadd.f32 %v367, %v808
      %v869 = vadd.f32 %v368, %v811
      %v870 = vadd.f32 %v369, %v816
      %v871 = vadd.f32 %v370, %v819
      %v872 = vadd.f32 %v371, %v824
      %v873 = vadd.f32 %v372, %v827
      %v874 = vadd.f32 %v373, %v832
      %v875 = vadd.f32 %v374, %v835
      %v876 = vadd.f32 %v375, %v840
      %v877 = vadd.f32 %v376, %v843
      %878 = vst [vmem:[#allocation2] sm:$0xff] %v846
      %879 = vst [vmem:[#allocation2 + $0x8] sm:$0xff] %v847
      %880 = vst [vmem:[#allocation2 + $0x10] sm:$0xff] %v848
      %881 = vst [vmem:[#allocation2 + $0x18] sm:$0xff] %v849
      %882 = vst [vmem:[#allocation2 + $0x20] sm:$0xff] %v850
      %883 = vst [vmem:[#allocation2 + $0x28] sm:$0xff] %v851
      %884 = vst [vmem:[#allocation2 + $0x30] sm:$0xff] %v852
      %885 = vst [vmem:[#allocation2 + $0x38] sm:$0xff] %v853
      %886 = vst [vmem:[#allocation2 + $0x40] sm:$0xff] %v854
      %887 = vst [vmem:[#allocation2 + $0x48] sm:$0xff] %v855
      %888 = vst [vmem:[#allocation2 + $0x50] sm:$0xff] %v856
      %889 = vst [vmem:[#allocation2 + $0x58] sm:$0xff] %v857
      %890 = vst [vmem:[#allocation2 + $0x60] sm:$0xff] %v858
      %891 = vst [vmem:[#allocation2 + $0x68] sm:$0xff] %v859
      %892 = vst [vmem:[#allocation2 + $0x70] sm:$0xff] %v860
      %893 = vst [vmem:[#allocation2 + $0x78] sm:$0xff] %v861
      %894 = vst [vmem:[#allocation2 + $0x80] sm:$0xff] %v862
      %895 = vst [vmem:[#allocation2 + $0x88] sm:$0xff] %v863
      %896 = vst [vmem:[#allocation2 + $0x90] sm:$0xff] %v864
      %897 = vst [vmem:[#allocation2 + $0x98] sm:$0xff] %v865
      %898 = vst [vmem:[#allocation2 + $0xa0] sm:$0xff] %v866
      %899 = vst [vmem:[#allocation2 + $0xa8] sm:$0xff] %v867
      %900 = vst [vmem:[#allocation2 + $0xb0] sm:$0xff] %v868
      %901 = vst [vmem:[#allocation2 + $0xb8] sm:$0xff] %v869
      %902 = vst [vmem:[#allocation2 + $0xc0] sm:$0xff] %v870
      %903 = vst [vmem:[#allocation2 + $0xc8] sm:$0xff] %v871
      %904 = vst [vmem:[#allocation2 + $0xd0] sm:$0xff] %v872
      %905 = vst [vmem:[#allocation2 + $0xd8] sm:$0xff] %v873
      %906 = vst [vmem:[#allocation2 + $0xe0] sm:$0xff] %v874
      %907 = vst [vmem:[#allocation2 + $0xe8] sm:$0xff] %v875
      %908 = vst [vmem:[#allocation2 + $0xf0] sm:$0xff] %v876
      %909 = vst [vmem:[#allocation2 + $0xf8] sm:$0xff] %v877
      // Predicated region
      $region41: #{_lambda_.55} parent=35 // pred_check
        %p910 = pneg %p309
      $region42: #{_lambda_.55} parent=35 // pred_check_branch
        %912 = sbr.rel (%p910) target = $region44
      $region43: #{_lambda_.55} parent=35 // pred_region
        %v913 = vld [vmem:[#allocation2] sm:$0xff]
        %v914 = vld [vmem:[#allocation2 + $0x8] sm:$0xff]
        %v915 = vld [vmem:[#allocation2 + $0x10] sm:$0xff]
        %v916 = vld [vmem:[#allocation2 + $0x18] sm:$0xff]
        %v917 = vld [vmem:[#allocation2 + $0x20] sm:$0xff]
        %v918 = vld [vmem:[#allocation2 + $0x28] sm:$0xff]
        %v919 = vld [vmem:[#allocation2 + $0x30] sm:$0xff]
        %v920 = vld [vmem:[#allocation2 + $0x38] sm:$0xff]
        %v921 = vld [vmem:[#allocation2 + $0x40] sm:$0xff]
        %v922 = vld [vmem:[#allocation2 + $0x48] sm:$0xff]
        %v923 = vld [vmem:[#allocation2 + $0x50] sm:$0xff]
        %v924 = vld [vmem:[#allocation2 + $0x58] sm:$0xff]
        %v925 = vld [vmem:[#allocation2 + $0x60] sm:$0xff]
        %v926 = vld [vmem:[#allocation2 + $0x68] sm:$0xff]
        %v927 = vld [vmem:[#allocation2 + $0x70] sm:$0xff]
        %v928 = vld [vmem:[#allocation2 + $0x78] sm:$0xff]
        %v929 = vld [vmem:[#allocation2 + $0x80] sm:$0xff]
        %v930 = vld [vmem:[#allocation2 + $0x88] sm:$0xff]
        %v931 = vld [vmem:[#allocation2 + $0x90] sm:$0xff]
        %v932 = vld [vmem:[#allocation2 + $0x98] sm:$0xff]
        %v933 = vld [vmem:[#allocation2 + $0xa0] sm:$0xff]
        %v934 = vld [vmem:[#allocation2 + $0xa8] sm:$0xff]
        %v935 = vld [vmem:[#allocation2 + $0xb0] sm:$0xff]
        %v936 = vld [vmem:[#allocation2 + $0xb8] sm:$0xff]
        %v937 = vld [vmem:[#allocation2 + $0xc0] sm:$0xff]
        %v938 = vld [vmem:[#allocation2 + $0xc8] sm:$0xff]
        %v939 = vld [vmem:[#allocation2 + $0xd0] sm:$0xff]
        %v940 = vld [vmem:[#allocation2 + $0xd8] sm:$0xff]
        %v941 = vld [vmem:[#allocation2 + $0xe0] sm:$0xff]
        %v942 = vld [vmem:[#allocation2 + $0xe8] sm:$0xff]
        %v943 = vld [vmem:[#allocation2 + $0xf0] sm:$0xff]
        %v944 = vld [vmem:[#allocation2 + $0xf8] sm:$0xff]
        %v945 = vld [vmem:[%s295] sm:$0x1]
        %v947 = vlaneseq
        %v948 = vshrl.u32 %v947, 7
        %v949 = vsub.s32 0, %v948
        %v950 = vrot.slane %v945, %v949
        %v952 = vmul.f32 %v913, %v950
        %v953 = vmul.f32 %v914, %v950
        %v954 = vmul.f32 %v915, %v950
        %v955 = vmul.f32 %v916, %v950
        %v956 = vmul.f32 %v917, %v950
        %v957 = vmul.f32 %v918, %v950
        %v958 = vmul.f32 %v919, %v950
        %v959 = vmul.f32 %v920, %v950
        %v960 = vmul.f32 %v921, %v950
        %v961 = vmul.f32 %v922, %v950
        %v962 = vmul.f32 %v923, %v950
        %v963 = vmul.f32 %v924, %v950
        %v964 = vmul.f32 %v925, %v950
        %v965 = vmul.f32 %v926, %v950
        %v966 = vmul.f32 %v927, %v950
        %v967 = vmul.f32 %v928, %v950
        %v968 = vmul.f32 %v929, %v950
        %v969 = vmul.f32 %v930, %v950
        %v970 = vmul.f32 %v931, %v950
        %v971 = vmul.f32 %v932, %v950
        %v972 = vmul.f32 %v933, %v950
        %v973 = vmul.f32 %v934, %v950
        %v974 = vmul.f32 %v935, %v950
        %v975 = vmul.f32 %v936, %v950
        %v976 = vmul.f32 %v937, %v950
        %v977 = vmul.f32 %v938, %v950
        %v978 = vmul.f32 %v939, %v950
        %v979 = vmul.f32 %v940, %v950
        %v980 = vmul.f32 %v941, %v950
        %v981 = vmul.f32 %v942, %v950
        %v982 = vmul.f32 %v943, %v950
        %v983 = vmul.f32 %v944, %v950
        %v984 = vld [vmem:[%s298] sm:$0x1]
        %v986 = vlaneseq
        %v987 = vshrl.u32 %v986, 7
        %v988 = vsub.s32 0, %v987
        %v989 = vrot.slane %v984, %v988
        %v991 = vadd.f32 %v952, %v989
        %v992 = vadd.f32 %v953, %v989
        %v993 = vadd.f32 %v954, %v989
        %v994 = vadd.f32 %v955, %v989
        %v995 = vadd.f32 %v956, %v989
        %v996 = vadd.f32 %v957, %v989
        %v997 = vadd.f32 %v958, %v989
        %v998 = vadd.f32 %v959, %v989
        %v999 = vadd.f32 %v960, %v989
        %v1000 = vadd.f32 %v961, %v989
        %v1001 = vadd.f32 %v962, %v989
        %v1002 = vadd.f32 %v963, %v989
        %v1003 = vadd.f32 %v964, %v989
        %v1004 = vadd.f32 %v965, %v989
        %v1005 = vadd.f32 %v966, %v989
        %v1006 = vadd.f32 %v967, %v989
        %v1007 = vadd.f32 %v968, %v989
        %v1008 = vadd.f32 %v969, %v989
        %v1009 = vadd.f32 %v970, %v989
        %v1010 = vadd.f32 %v971, %v989
        %v1011 = vadd.f32 %v972, %v989
        %v1012 = vadd.f32 %v973, %v989
        %v1013 = vadd.f32 %v974, %v989
        %v1014 = vadd.f32 %v975, %v989
        %v1015 = vadd.f32 %v976, %v989
        %v1016 = vadd.f32 %v977, %v989
        %v1017 = vadd.f32 %v978, %v989
        %v1018 = vadd.f32 %v979, %v989
        %v1019 = vadd.f32 %v980, %v989
        %v1020 = vadd.f32 %v981, %v989
        %v1021 = vadd.f32 %v982, %v989
        %v1022 = vadd.f32 %v983, %v989
        %v1023 = vmax.f32 %v991, 0.0
        %v1024 = vmax.f32 %v992, 0.0
        %v1025 = vmax.f32 %v993, 0.0
        %v1026 = vmax.f32 %v994, 0.0
        %v1027 = vmax.f32 %v995, 0.0
        %v1028 = vmax.f32 %v996, 0.0
        %v1029 = vmax.f32 %v997, 0.0
        %v1030 = vmax.f32 %v998, 0.0
        %v1031 = vmax.f32 %v999, 0.0
        %v1032 = vmax.f32 %v1000, 0.0
        %v1033 = vmax.f32 %v1001, 0.0
        %v1034 = vmax.f32 %v1002, 0.0
        %v1035 = vmax.f32 %v1003, 0.0
        %v1036 = vmax.f32 %v1004, 0.0
        %v1037 = vmax.f32 %v1005, 0.0
        %v1038 = vmax.f32 %v1006, 0.0
        %v1039 = vmax.f32 %v1007, 0.0
        %v1040 = vmax.f32 %v1008, 0.0
        %v1041 = vmax.f32 %v1009, 0.0
        %v1042 = vmax.f32 %v1010, 0.0
        %v1043 = vmax.f32 %v1011, 0.0
        %v1044 = vmax.f32 %v1012, 0.0
        %v1045 = vmax.f32 %v1013, 0.0
        %v1046 = vmax.f32 %v1014, 0.0
        %v1047 = vmax.f32 %v1015, 0.0
        %v1048 = vmax.f32 %v1016, 0.0
        %v1049 = vmax.f32 %v1017, 0.0
        %v1050 = vmax.f32 %v1018, 0.0
        %v1051 = vmax.f32 %v1019, 0.0
        %v1052 = vmax.f32 %v1020, 0.0
        %v1053 = vmax.f32 %v1021, 0.0
        %v1054 = vmax.f32 %v1022, 0.0
        %v1055 = vpack.c.bf16 %v1024, %v1023
        %v1056 = vpack.c.bf16 %v1026, %v1025
        %v1057 = vpack.c.bf16 %v1028, %v1027
        %v1058 = vpack.c.bf16 %v1030, %v1029
        %v1059 = vpack.c.bf16 %v1032, %v1031
        %v1060 = vpack.c.bf16 %v1034, %v1033
        %v1061 = vpack.c.bf16 %v1036, %v1035
        %v1062 = vpack.c.bf16 %v1038, %v1037
        %v1063 = vpack.c.bf16 %v1040, %v1039
        %v1064 = vpack.c.bf16 %v1042, %v1041
        %v1065 = vpack.c.bf16 %v1044, %v1043
        %v1066 = vpack.c.bf16 %v1046, %v1045
        %v1067 = vpack.c.bf16 %v1048, %v1047
        %v1068 = vpack.c.bf16 %v1050, %v1049
        %v1069 = vpack.c.bf16 %v1052, %v1051
        %v1070 = vpack.c.bf16 %v1054, %v1053
        %v1087 = vunpack.c.l.b16 %v1055
        %v1088 = vunpack.c.h.b16 %v1055
        %v1089 = vunpack.c.l.b16 %v1056
        %v1090 = vunpack.c.h.b16 %v1056
        %v1091 = vunpack.c.l.b16 %v1057
        %v1092 = vunpack.c.h.b16 %v1057
        %v1093 = vunpack.c.l.b16 %v1058
        %v1094 = vunpack.c.h.b16 %v1058
        %v1095 = vunpack.c.l.b16 %v1059
        %v1096 = vunpack.c.h.b16 %v1059
        %v1097 = vunpack.c.l.b16 %v1060
        %v1098 = vunpack.c.h.b16 %v1060
        %v1099 = vunpack.c.l.b16 %v1061
        %v1100 = vunpack.c.h.b16 %v1061
        %v1101 = vunpack.c.l.b16 %v1062
        %v1102 = vunpack.c.h.b16 %v1062
        %v1103 = vunpack.c.l.b16 %v1063
        %v1104 = vunpack.c.h.b16 %v1063
        %v1105 = vunpack.c.l.b16 %v1064
        %v1106 = vunpack.c.h.b16 %v1064
        %v1107 = vunpack.c.l.b16 %v1065
        %v1108 = vunpack.c.h.b16 %v1065
        %v1109 = vunpack.c.l.b16 %v1066
        %v1110 = vunpack.c.h.b16 %v1066
        %v1111 = vunpack.c.l.b16 %v1067
        %v1112 = vunpack.c.h.b16 %v1067
        %v1113 = vunpack.c.l.b16 %v1068
        %v1114 = vunpack.c.h.b16 %v1068
        %v1115 = vunpack.c.l.b16 %v1069
        %v1116 = vunpack.c.h.b16 %v1069
        %v1117 = vunpack.c.l.b16 %v1070
        %v1118 = vunpack.c.h.b16 %v1070
        %v1119 = vpack.c.b16 %v1087, %v1087
        %v1120 = vpack.c.b16 %v1088, %v1088
        %v1121 = vpack.c.b16 %v1089, %v1089
        %v1122 = vpack.c.b16 %v1090, %v1090
        %v1123 = vpack.c.b16 %v1091, %v1091
        %v1124 = vpack.c.b16 %v1092, %v1092
        %v1125 = vpack.c.b16 %v1093, %v1093
        %v1126 = vpack.c.b16 %v1094, %v1094
        %v1127 = vpack.c.b16 %v1095, %v1095
        %v1128 = vpack.c.b16 %v1096, %v1096
        %v1129 = vpack.c.b16 %v1097, %v1097
        %v1130 = vpack.c.b16 %v1098, %v1098
        %v1131 = vpack.c.b16 %v1099, %v1099
        %v1132 = vpack.c.b16 %v1100, %v1100
        %v1133 = vpack.c.b16 %v1101, %v1101
        %v1134 = vpack.c.b16 %v1102, %v1102
        %v1135 = vpack.c.b16 %v1103, %v1103
        %v1136 = vpack.c.b16 %v1104, %v1104
        %v1137 = vpack.c.b16 %v1105, %v1105
        %v1138 = vpack.c.b16 %v1106, %v1106
        %v1139 = vpack.c.b16 %v1107, %v1107
        %v1140 = vpack.c.b16 %v1108, %v1108
        %v1141 = vpack.c.b16 %v1109, %v1109
        %v1142 = vpack.c.b16 %v1110, %v1110
        %v1143 = vpack.c.b16 %v1111, %v1111
        %v1144 = vpack.c.b16 %v1112, %v1112
        %v1145 = vpack.c.b16 %v1113, %v1113
        %v1146 = vpack.c.b16 %v1114, %v1114
        %v1147 = vpack.c.b16 %v1115, %v1115
        %v1148 = vpack.c.b16 %v1116, %v1116
        %v1149 = vpack.c.b16 %v1117, %v1117
        %v1150 = vpack.c.b16 %v1118, %v1118
        %1183 = vst [vmem:[%s306] sm:$0xf] %v1119
        %1184 = vst [vmem:[%s306 + $0x4] sm:$0xf] %v1120
        %1185 = vst [vmem:[%s306 + $0x8] sm:$0xf] %v1121
        %1186 = vst [vmem:[%s306 + $0xc] sm:$0xf] %v1122
        %1187 = vst [vmem:[%s306 + $0x10] sm:$0xf] %v1123
        %1188 = vst [vmem:[%s306 + $0x14] sm:$0xf] %v1124
        %1189 = vst [vmem:[%s306 + $0x18] sm:$0xf] %v1125
        %1190 = vst [vmem:[%s306 + $0x1c] sm:$0xf] %v1126
        %1191 = vst [vmem:[%s306 + $0x20] sm:$0xf] %v1127
        %1192 = vst [vmem:[%s306 + $0x24] sm:$0xf] %v1128
        %1193 = vst [vmem:[%s306 + $0x28] sm:$0xf] %v1129
        %1194 = vst [vmem:[%s306 + $0x2c] sm:$0xf] %v1130
        %1195 = vst [vmem:[%s306 + $0x30] sm:$0xf] %v1131
        %1196 = vst [vmem:[%s306 + $0x34] sm:$0xf] %v1132
        %1197 = vst [vmem:[%s306 + $0x38] sm:$0xf] %v1133
        %1198 = vst [vmem:[%s306 + $0x3c] sm:$0xf] %v1134
        %1199 = vst [vmem:[%s306 + $0x40] sm:$0xf] %v1135
        %1200 = vst [vmem:[%s306 + $0x44] sm:$0xf] %v1136
        %1201 = vst [vmem:[%s306 + $0x48] sm:$0xf] %v1137
        %1202 = vst [vmem:[%s306 + $0x4c] sm:$0xf] %v1138
        %1203 = vst [vmem:[%s306 + $0x50] sm:$0xf] %v1139
        %1204 = vst [vmem:[%s306 + $0x54] sm:$0xf] %v1140
        %1205 = vst [vmem:[%s306 + $0x58] sm:$0xf] %v1141
        %1206 = vst [vmem:[%s306 + $0x5c] sm:$0xf] %v1142
        %1207 = vst [vmem:[%s306 + $0x60] sm:$0xf] %v1143
        %1208 = vst [vmem:[%s306 + $0x64] sm:$0xf] %v1144
        %1209 = vst [vmem:[%s306 + $0x68] sm:$0xf] %v1145
        %1210 = vst [vmem:[%s306 + $0x6c] sm:$0xf] %v1146
        %1211 = vst [vmem:[%s306 + $0x70] sm:$0xf] %v1147
        %1212 = vst [vmem:[%s306 + $0x74] sm:$0xf] %v1148
        %1213 = vst [vmem:[%s306 + $0x78] sm:$0xf] %v1149
        %1214 = vst [vmem:[%s306 + $0x7c] sm:$0xf] %v1150
      $region44: #{_lambda_.55} parent=35 // pred_fallthru
        _
      %s1215 = smul.u32 32, %s20
      %p1216 = scmp.lt.s32.totalorder %s1215, 63
      %s1217 = scalar_select %p1216, %s1215, 63
      %p1218 = scmp.lt.s32.totalorder %s21, 0
      %s1219 = scalar_select %p1218, %s21, 0
      %s1220 = sadd.s32 %s1219, %s1217
      %s1221 = smul.addr %s1220, 4
      %s1222 = scalar_lea.vmem %s4, %s1221
      // Predicated region
      $region45: #{_lambda_.55} parent=35 // pred_check
        %p1223 = pneg %p162
      $region46: #{_lambda_.55} parent=35 // pred_check_branch
        %1225 = sbr.rel (%p1223) target = $region48
      $region47: #{_lambda_.55} parent=35 // pred_region
        %s1226 = smul.u32 32, %s20
      $region48: #{_lambda_.55} parent=35 // pred_fallthru
        _
    $region36: #{_lambda_.55} parent=5 // pred_fallthru
      _
    %p1227 = scmp.le.s32.totalorder 2, %s10
    // Predicated region
    $region49: #{_lambda_.55} parent=5 // pred_check
      %p1228 = pneg %p1227
    $region50: #{_lambda_.55} parent=5 // pred_check_branch
      %1230 = sbr.rel (%p1228) target = $region52
    $region51: #{_lambda_.55} parent=5 // pred_region
      %s1231 = ssub.s32 %s10, 2
      // Predicated region
      $region53: #{_lambda_.55} parent=51 // pred_check
        %p1232 = pneg %p168
      $region54: #{_lambda_.55} parent=51 // pred_check_branch
        %1234 = sbr.rel (%p1232) target = $region56
      $region55: #{_lambda_.55} parent=51 // pred_region
        %s1235 = smul.u32 32, %s23
        %p1236 = scmp.lt.s32.totalorder %s1235, 63
        %s1237 = scalar_select %p1236, %s1235, 63
        %p1238 = scmp.lt.s32.totalorder %s24, 0
        %s1239 = scalar_select %p1238, %s24, 0
        %s1240 = sadd.s32 %s1239, %s1237
        %s1241 = smul.addr %s1240, 4
        %s1242 = scalar_lea.vmem %s4, %s1241
      $region56: #{_lambda_.55} parent=51 // pred_fallthru
        _
    $region52: #{_lambda_.55} parent=5 // pred_fallthru
      _
  $region6: #{_lambda_.55} parent=0 // loop_footer
    %s14 = sadd.s32 1, %s10
  $region7: #{_lambda_.55} parent=0 // loop_footer_branch
    %9 = sbr.rel target = $region3
  $region8: #{_lambda_.55} parent=0 // loop_exit
    _

// kernel: _lambda_.56
$region0: #{_lambda_.56}
  #allocation0 [shape = 'u32[]', space=smem, size = 0x4, offset = 0x4, fixed_abs, tag = 'smem constant byte address 0x4 - core index']
  #allocation1 [shape = 'u32[144,128]{1,0:T(1,128)}', space=vmem, size = 0x12000, scoped, tag = 'internal scratch']
  #allocation2 [shape = 'f32[128,128]{1,0:T(8,128)}', space=vmem, size = 0x10000, scoped, tag = 'scratch operand']
  %s0 = inlined_call_operand.vmem [shape: bf16[128,128], index: 0, kind: input, shape index: {}]
  %s1 = inlined_call_operand.vmem [shape: bf16[128,128], index: 1, kind: input, shape index: {}]
  %s2 = inlined_call_operand.vmem [shape: f32[1,128], index: 2, kind: input, shape index: {}]
  %s3 = inlined_call_operand.vmem [shape: f32[1,128], index: 3, kind: input, shape index: {}]
  %s4 = inlined_call_operand.vmem [shape: bf16[128,128], index: 4, kind: output, shape index: {}]
  %s5 = sld [smem:[#allocation0]]
  $region34: #{_lambda_.56} parent=0
    _
  %s7 = ssub.s32 1, %s5
  %s8 = scalar_select 0, %s7, %s5
  // Predicated region
  $region2: #{_lambda_.56} parent=0 // pred_check
    _
  $region3: #{_lambda_.56} parent=0 // pred_check_branch
    %10 = sbr.rel (0) target = $region5
  $region4: #{_lambda_.56} parent=0 // pred_region
    _
  $region5: #{_lambda_.56} parent=0 // pred_fallthru
    _
  // Predicated region
  $region6: #{_lambda_.56} parent=0 // pred_check
    _
  $region7: #{_lambda_.56} parent=0 // pred_check_branch
    %12 = sbr.rel (0) target = $region9
  $region8: #{_lambda_.56} parent=0 // pred_region
    _
  $region9: #{_lambda_.56} parent=0 // pred_fallthru
    _
  // Predicated region
  $region10: #{_lambda_.56} parent=0 // pred_check
    _
  $region11: #{_lambda_.56} parent=0 // pred_check_branch
    %14 = sbr.rel (0) target = $region13
  $region12: #{_lambda_.56} parent=0 // pred_region
    _
  $region13: #{_lambda_.56} parent=0 // pred_fallthru
    _
  // Predicated region
  $region14: #{_lambda_.56} parent=0 // pred_check
    _
  $region15: #{_lambda_.56} parent=0 // pred_check_branch
    %16 = sbr.rel (0) target = $region17
  $region16: #{_lambda_.56} parent=0 // pred_region
    _
  $region17: #{_lambda_.56} parent=0 // pred_fallthru
    _
  %p18 = scmp.eq.s32.totalorder 0, 0
  // Predicated region
  $region18: #{_lambda_.56} parent=0 // pred_check
    %p19 = pneg %p18
  $region19: #{_lambda_.56} parent=0 // pred_check_branch
    %21 = sbr.rel (%p19) target = $region21
  $region20: #{_lambda_.56} parent=0 // pred_region
    %22 = vst [vmem:[#allocation2] sm:$0xff] 0.0
    %23 = vst [vmem:[#allocation2 + $0x8] sm:$0xff] 0.0
    %24 = vst [vmem:[#allocation2 + $0x10] sm:$0xff] 0.0
    %25 = vst [vmem:[#allocation2 + $0x18] sm:$0xff] 0.0
    %26 = vst [vmem:[#allocation2 + $0x20] sm:$0xff] 0.0
    %27 = vst [vmem:[#allocation2 + $0x28] sm:$0xff] 0.0
    %28 = vst [vmem:[#allocation2 + $0x30] sm:$0xff] 0.0
    %29 = vst [vmem:[#allocation2 + $0x38] sm:$0xff] 0.0
    %30 = vst [vmem:[#allocation2 + $0x40] sm:$0xff] 0.0
    %31 = vst [vmem:[#allocation2 + $0x48] sm:$0xff] 0.0
    %32 = vst [vmem:[#allocation2 + $0x50] sm:$0xff] 0.0
    %33 = vst [vmem:[#allocation2 + $0x58] sm:$0xff] 0.0
    %34 = vst [vmem:[#allocation2 + $0x60] sm:$0xff] 0.0
    %35 = vst [vmem:[#allocation2 + $0x68] sm:$0xff] 0.0
    %36 = vst [vmem:[#allocation2 + $0x70] sm:$0xff] 0.0
    %37 = vst [vmem:[#allocation2 + $0x78] sm:$0xff] 0.0
  $region21: #{_lambda_.56} parent=0 // pred_fallthru
    _
  %v38 = vld [vmem:[#allocation2] sm:$0xff]
  %v39 = vld [vmem:[#allocation2 + $0x8] sm:$0xff]
  %v40 = vld [vmem:[#allocation2 + $0x10] sm:$0xff]
  %v41 = vld [vmem:[#allocation2 + $0x18] sm:$0xff]
  %v42 = vld [vmem:[#allocation2 + $0x20] sm:$0xff]
  %v43 = vld [vmem:[#allocation2 + $0x28] sm:$0xff]
  %v44 = vld [vmem:[#allocation2 + $0x30] sm:$0xff]
  %v45 = vld [vmem:[#allocation2 + $0x38] sm:$0xff]
  %v46 = vld [vmem:[#allocation2 + $0x40] sm:$0xff]
  %v47 = vld [vmem:[#allocation2 + $0x48] sm:$0xff]
  %v48 = vld [vmem:[#allocation2 + $0x50] sm:$0xff]
  %v49 = vld [vmem:[#allocation2 + $0x58] sm:$0xff]
  %v50 = vld [vmem:[#allocation2 + $0x60] sm:$0xff]
  %v51 = vld [vmem:[#allocation2 + $0x68] sm:$0xff]
  %v52 = vld [vmem:[#allocation2 + $0x70] sm:$0xff]
  %v53 = vld [vmem:[#allocation2 + $0x78] sm:$0xff]
  %v54 = vld [vmem:[%s0] sm:$0xf]
  %v55 = vld [vmem:[%s0 + $0x4] sm:$0xf]
  %v56 = vld [vmem:[%s0 + $0x8] sm:$0xf]
  %v57 = vld [vmem:[%s0 + $0xc] sm:$0xf]
  %v58 = vld [vmem:[%s0 + $0x10] sm:$0xf]
  %v59 = vld [vmem:[%s0 + $0x14] sm:$0xf]
  %v60 = vld [vmem:[%s0 + $0x18] sm:$0xf]
  %v61 = vld [vmem:[%s0 + $0x1c] sm:$0xf]
  %v62 = vld [vmem:[%s0 + $0x20] sm:$0xf]
  %v63 = vld [vmem:[%s0 + $0x24] sm:$0xf]
  %v64 = vld [vmem:[%s0 + $0x28] sm:$0xf]
  %v65 = vld [vmem:[%s0 + $0x2c] sm:$0xf]
  %v66 = vld [vmem:[%s0 + $0x30] sm:$0xf]
  %v67 = vld [vmem:[%s0 + $0x34] sm:$0xf]
  %v68 = vld [vmem:[%s0 + $0x38] sm:$0xf]
  %v69 = vld [vmem:[%s0 + $0x3c] sm:$0xf]
  %v70 = vld [vmem:[%s1] sm:$0xf]
  %v71 = vld [vmem:[%s1 + $0x4] sm:$0xf]
  %v72 = vld [vmem:[%s1 + $0x8] sm:$0xf]
  %v73 = vld [vmem:[%s1 + $0xc] sm:$0xf]
  %v74 = vld [vmem:[%s1 + $0x10] sm:$0xf]
  %v75 = vld [vmem:[%s1 + $0x14] sm:$0xf]
  %v76 = vld [vmem:[%s1 + $0x18] sm:$0xf]
  %v77 = vld [vmem:[%s1 + $0x1c] sm:$0xf]
  %v78 = vld [vmem:[%s1 + $0x20] sm:$0xf]
  %v79 = vld [vmem:[%s1 + $0x24] sm:$0xf]
  %v80 = vld [vmem:[%s1 + $0x28] sm:$0xf]
  %v81 = vld [vmem:[%s1 + $0x2c] sm:$0xf]
  %v82 = vld [vmem:[%s1 + $0x30] sm:$0xf]
  %v83 = vld [vmem:[%s1 + $0x34] sm:$0xf]
  %v84 = vld [vmem:[%s1 + $0x38] sm:$0xf]
  %v85 = vld [vmem:[%s1 + $0x3c] sm:$0xf]
  %v102 = vunpack.c.l.b16 %v54
  %v103 = vunpack.c.l.b16 %v55
  %v104 = vunpack.c.l.b16 %v56
  %v105 = vunpack.c.l.b16 %v57
  %v106 = vunpack.c.l.b16 %v58
  %v107 = vunpack.c.l.b16 %v59
  %v108 = vunpack.c.l.b16 %v60
  %v109 = vunpack.c.l.b16 %v61
  %v110 = vunpack.c.l.b16 %v62
  %v111 = vunpack.c.l.b16 %v63
  %v112 = vunpack.c.l.b16 %v64
  %v113 = vunpack.c.l.b16 %v65
  %v114 = vunpack.c.l.b16 %v66
  %v115 = vunpack.c.l.b16 %v67
  %v116 = vunpack.c.l.b16 %v68
  %v117 = vunpack.c.l.b16 %v69
  %v118 = vpack.c.b16 %v103, %v102
  %v119 = vpack.c.b16 %v105, %v104
  %v120 = vpack.c.b16 %v107, %v106
  %v121 = vpack.c.b16 %v109, %v108
  %v122 = vpack.c.b16 %v111, %v110
  %v123 = vpack.c.b16 %v113, %v112
  %v124 = vpack.c.b16 %v115, %v114
  %v125 = vpack.c.b16 %v117, %v116
  %v150 = vunpack.c.l.b16 %v70
  %v151 = vunpack.c.l.b16 %v71
  %v152 = vunpack.c.l.b16 %v72
  %v153 = vunpack.c.l.b16 %v73
  %v154 = vunpack.c.l.b16 %v74
  %v155 = vunpack.c.l.b16 %v75
  %v156 = vunpack.c.l.b16 %v76
  %v157 = vunpack.c.l.b16 %v77
  %v158 = vunpack.c.l.b16 %v78
  %v159 = vunpack.c.l.b16 %v79
  %v160 = vunpack.c.l.b16 %v80
  %v161 = vunpack.c.l.b16 %v81
  %v162 = vunpack.c.l.b16 %v82
  %v163 = vunpack.c.l.b16 %v83
  %v164 = vunpack.c.l.b16 %v84
  %v165 = vunpack.c.l.b16 %v85
  %v166 = vpack.c.b16 %v151, %v150
  %v167 = vpack.c.b16 %v153, %v152
  %v168 = vpack.c.b16 %v155, %v154
  %v169 = vpack.c.b16 %v157, %v156
  %v170 = vpack.c.b16 %v159, %v158
  %v171 = vpack.c.b16 %v161, %v160
  %v172 = vpack.c.b16 %v163, %v162
  %v173 = vpack.c.b16 %v165, %v164
  %182 = vmatprep.subr.bf16.mxu0 0
  %183 = vmatpush1.bf16.msra.mxu0 %v173
  %184 = vmatprep.subr.bf16.mxu0 0
  %185 = vmatpush1.bf16.msra.mxu0 %v172
  %186 = vmatprep.subr.bf16.mxu0 0
  %187 = vmatpush1.bf16.msra.mxu0 %v171
  %188 = vmatprep.subr.bf16.mxu0 0
  %189 = vmatpush1.bf16.msra.mxu0 %v170
  %190 = vmatprep.subr.bf16.mxu0 0
  %191 = vmatpush1.bf16.msra.mxu0 %v169
  %192 = vmatprep.subr.bf16.mxu0 0
  %193 = vmatpush1.bf16.msra.mxu0 %v168
  %194 = vmatprep.subr.bf16.mxu0 0
  %195 = vmatpush1.bf16.msra.mxu0 %v167
  %196 = vmatprep.subr.bf16.mxu0 0
  %197 = vmatpush1.bf16.msra.mxu0 %v166
  %198 = vmatprep.subr.bf16.mxu0 0
  %199 = vmatpush2.bf16.msra.mxu0 0
  %200 = vmatprep.subr.bf16.mxu0 0
  %201 = vmatpush2.bf16.msra.mxu0 0
  %202 = vmatprep.subr.bf16.mxu0 0
  %203 = vmatpush2.bf16.msra.mxu0 0
  %204 = vmatprep.subr.bf16.mxu0 0
  %205 = vmatpush2.bf16.msra.mxu0 0
  %206 = vmatprep.subr.bf16.mxu0 0
  %207 = vmatpush2.bf16.msra.mxu0 0
  %208 = vmatprep.subr.bf16.mxu0 0
  %209 = vmatpush2.bf16.msra.mxu0 0
  %210 = vmatprep.subr.bf16.mxu0 0
  %211 = vmatpush2.bf16.msra.mxu0 0
  %212 = vmatprep.subr.bf16.mxu0 0
  %213 = vmatpush2.bf16.msra.mxu0 0
  %214 = vmatprep.mubr.bf16.mxu0 0
  %215 = vmatmul.mubr.bf16.gmra.mxu0 %v118
  %v216 = vpop.f32.mrf.mxu0
  %v217 = vadd.f32 0.0, %v216
  %v218 = vpop.f32.mrf.mxu0
  %v219 = vpop.f32.mrf.mxu0
  %v220 = vadd.f32 0.0, %v219
  %v221 = vpop.f32.mrf.mxu0
  %222 = vmatprep.mubr.bf16.mxu0 0
  %223 = vmatmul.mubr.bf16.gmra.mxu0 %v119
  %v224 = vpop.f32.mrf.mxu0
  %v225 = vadd.f32 0.0, %v224
  %v226 = vpop.f32.mrf.mxu0
  %v227 = vpop.f32.mrf.mxu0
  %v228 = vadd.f32 0.0, %v227
  %v229 = vpop.f32.mrf.mxu0
  %230 = vmatprep.mubr.bf16.mxu0 0
  %231 = vmatmul.mubr.bf16.gmra.mxu0 %v120
  %v232 = vpop.f32.mrf.mxu0
  %v233 = vadd.f32 0.0, %v232
  %v234 = vpop.f32.mrf.mxu0
  %v235 = vpop.f32.mrf.mxu0
  %v236 = vadd.f32 0.0, %v235
  %v237 = vpop.f32.mrf.mxu0
  %238 = vmatprep.mubr.bf16.mxu0 0
  %239 = vmatmul.mubr.bf16.gmra.mxu0 %v121
  %v240 = vpop.f32.mrf.mxu0
  %v241 = vadd.f32 0.0, %v240
  %v242 = vpop.f32.mrf.mxu0
  %v243 = vpop.f32.mrf.mxu0
  %v244 = vadd.f32 0.0, %v243
  %v245 = vpop.f32.mrf.mxu0
  %246 = vmatprep.mubr.bf16.mxu0 0
  %247 = vmatmul.mubr.bf16.gmra.mxu0 %v122
  %v248 = vpop.f32.mrf.mxu0
  %v249 = vadd.f32 0.0, %v248
  %v250 = vpop.f32.mrf.mxu0
  %v251 = vpop.f32.mrf.mxu0
  %v252 = vadd.f32 0.0, %v251
  %v253 = vpop.f32.mrf.mxu0
  %254 = vmatprep.mubr.bf16.mxu0 0
  %255 = vmatmul.mubr.bf16.gmra.mxu0 %v123
  %v256 = vpop.f32.mrf.mxu0
  %v257 = vadd.f32 0.0, %v256
  %v258 = vpop.f32.mrf.mxu0
  %v259 = vpop.f32.mrf.mxu0
  %v260 = vadd.f32 0.0, %v259
  %v261 = vpop.f32.mrf.mxu0
  %262 = vmatprep.mubr.bf16.mxu0 0
  %263 = vmatmul.mubr.bf16.gmra.mxu0 %v124
  %v264 = vpop.f32.mrf.mxu0
  %v265 = vadd.f32 0.0, %v264
  %v266 = vpop.f32.mrf.mxu0
  %v267 = vpop.f32.mrf.mxu0
  %v268 = vadd.f32 0.0, %v267
  %v269 = vpop.f32.mrf.mxu0
  %270 = vmatprep.mubr.bf16.mxu0 0
  %271 = vmatmul.mubr.bf16.gmra.mxu0 %v125
  %v272 = vpop.f32.mrf.mxu0
  %v273 = vadd.f32 0.0, %v272
  %v274 = vpop.f32.mrf.mxu0
  %v275 = vpop.f32.mrf.mxu0
  %v276 = vadd.f32 0.0, %v275
  %v277 = vpop.f32.mrf.mxu0
  %278 = vdwg.mxu0
  %v279 = vadd.f32 %v38, %v217
  %v280 = vadd.f32 %v39, %v220
  %v281 = vadd.f32 %v40, %v225
  %v282 = vadd.f32 %v41, %v228
  %v283 = vadd.f32 %v42, %v233
  %v284 = vadd.f32 %v43, %v236
  %v285 = vadd.f32 %v44, %v241
  %v286 = vadd.f32 %v45, %v244
  %v287 = vadd.f32 %v46, %v249
  %v288 = vadd.f32 %v47, %v252
  %v289 = vadd.f32 %v48, %v257
  %v290 = vadd.f32 %v49, %v260
  %v291 = vadd.f32 %v50, %v265
  %v292 = vadd.f32 %v51, %v268
  %v293 = vadd.f32 %v52, %v273
  %v294 = vadd.f32 %v53, %v276
  %295 = vst [vmem:[#allocation2] sm:$0xff] %v279
  %296 = vst [vmem:[#allocation2 + $0x8] sm:$0xff] %v280
  %297 = vst [vmem:[#allocation2 + $0x10] sm:$0xff] %v281
  %298 = vst [vmem:[#allocation2 + $0x18] sm:$0xff] %v282
  %299 = vst [vmem:[#allocation2 + $0x20] sm:$0xff] %v283
  %300 = vst [vmem:[#allocation2 + $0x28] sm:$0xff] %v284
  %301 = vst [vmem:[#allocation2 + $0x30] sm:$0xff] %v285
  %302 = vst [vmem:[#allocation2 + $0x38] sm:$0xff] %v286
  %303 = vst [vmem:[#allocation2 + $0x40] sm:$0xff] %v287
  %304 = vst [vmem:[#allocation2 + $0x48] sm:$0xff] %v288
  %305 = vst [vmem:[#allocation2 + $0x50] sm:$0xff] %v289
  %306 = vst [vmem:[#allocation2 + $0x58] sm:$0xff] %v290
  %307 = vst [vmem:[#allocation2 + $0x60] sm:$0xff] %v291
  %308 = vst [vmem:[#allocation2 + $0x68] sm:$0xff] %v292
  %309 = vst [vmem:[#allocation2 + $0x70] sm:$0xff] %v293
  %310 = vst [vmem:[#allocation2 + $0x78] sm:$0xff] %v294
  // Predicated region
  $region22: #{_lambda_.56} parent=0 // pred_check
    %p311 = pneg %p18
  $region23: #{_lambda_.56} parent=0 // pred_check_branch
    %313 = sbr.rel (%p311) target = $region25
  $region24: #{_lambda_.56} parent=0 // pred_region
    %v314 = vld [vmem:[#allocation2] sm:$0xff]
    %v315 = vld [vmem:[#allocation2 + $0x8] sm:$0xff]
    %v316 = vld [vmem:[#allocation2 + $0x10] sm:$0xff]
    %v317 = vld [vmem:[#allocation2 + $0x18] sm:$0xff]
    %v318 = vld [vmem:[#allocation2 + $0x20] sm:$0xff]
    %v319 = vld [vmem:[#allocation2 + $0x28] sm:$0xff]
    %v320 = vld [vmem:[#allocation2 + $0x30] sm:$0xff]
    %v321 = vld [vmem:[#allocation2 + $0x38] sm:$0xff]
    %v322 = vld [vmem:[#allocation2 + $0x40] sm:$0xff]
    %v323 = vld [vmem:[#allocation2 + $0x48] sm:$0xff]
    %v324 = vld [vmem:[#allocation2 + $0x50] sm:$0xff]
    %v325 = vld [vmem:[#allocation2 + $0x58] sm:$0xff]
    %v326 = vld [vmem:[#allocation2 + $0x60] sm:$0xff]
    %v327 = vld [vmem:[#allocation2 + $0x68] sm:$0xff]
    %v328 = vld [vmem:[#allocation2 + $0x70] sm:$0xff]
    %v329 = vld [vmem:[#allocation2 + $0x78] sm:$0xff]
    %v330 = vld [vmem:[%s2] sm:$0x1]
    %v332 = vlaneseq
    %v333 = vshrl.u32 %v332, 7
    %v334 = vsub.s32 0, %v333
    %v335 = vrot.slane %v330, %v334
    %v337 = vmul.f32 %v314, %v335
    %v338 = vmul.f32 %v315, %v335
    %v339 = vmul.f32 %v316, %v335
    %v340 = vmul.f32 %v317, %v335
    %v341 = vmul.f32 %v318, %v335
    %v342 = vmul.f32 %v319, %v335
    %v343 = vmul.f32 %v320, %v335
    %v344 = vmul.f32 %v321, %v335
    %v345 = vmul.f32 %v322, %v335
    %v346 = vmul.f32 %v323, %v335
    %v347 = vmul.f32 %v324, %v335
    %v348 = vmul.f32 %v325, %v335
    %v349 = vmul.f32 %v326, %v335
    %v350 = vmul.f32 %v327, %v335
    %v351 = vmul.f32 %v328, %v335
    %v352 = vmul.f32 %v329, %v335
    %v353 = vld [vmem:[%s3] sm:$0x1]
    %v355 = vlaneseq
    %v356 = vshrl.u32 %v355, 7
    %v357 = vsub.s32 0, %v356
    %v358 = vrot.slane %v353, %v357
    %v360 = vadd.f32 %v337, %v358
    %v361 = vadd.f32 %v338, %v358
    %v362 = vadd.f32 %v339, %v358
    %v363 = vadd.f32 %v340, %v358
    %v364 = vadd.f32 %v341, %v358
    %v365 = vadd.f32 %v342, %v358
    %v366 = vadd.f32 %v343, %v358
    %v367 = vadd.f32 %v344, %v358
    %v368 = vadd.f32 %v345, %v358
    %v369 = vadd.f32 %v346, %v358
    %v370 = vadd.f32 %v347, %v358
    %v371 = vadd.f32 %v348, %v358
    %v372 = vadd.f32 %v349, %v358
    %v373 = vadd.f32 %v350, %v358
    %v374 = vadd.f32 %v351, %v358
    %v375 = vadd.f32 %v352, %v358
    %v376 = vmax.f32 %v360, 0.0
    %v377 = vmax.f32 %v361, 0.0
    %v378 = vmax.f32 %v362, 0.0
    %v379 = vmax.f32 %v363, 0.0
    %v380 = vmax.f32 %v364, 0.0
    %v381 = vmax.f32 %v365, 0.0
    %v382 = vmax.f32 %v366, 0.0
    %v383 = vmax.f32 %v367, 0.0
    %v384 = vmax.f32 %v368, 0.0
    %v385 = vmax.f32 %v369, 0.0
    %v386 = vmax.f32 %v370, 0.0
    %v387 = vmax.f32 %v371, 0.0
    %v388 = vmax.f32 %v372, 0.0
    %v389 = vmax.f32 %v373, 0.0
    %v390 = vmax.f32 %v374, 0.0
    %v391 = vmax.f32 %v375, 0.0
    %v392 = vpack.c.bf16 %v377, %v376
    %v393 = vpack.c.bf16 %v379, %v378
    %v394 = vpack.c.bf16 %v381, %v380
    %v395 = vpack.c.bf16 %v383, %v382
    %v396 = vpack.c.bf16 %v385, %v384
    %v397 = vpack.c.bf16 %v387, %v386
    %v398 = vpack.c.bf16 %v389, %v388
    %v399 = vpack.c.bf16 %v391, %v390
    %v408 = vunpack.c.l.b16 %v392
    %v409 = vunpack.c.h.b16 %v392
    %v410 = vunpack.c.l.b16 %v393
    %v411 = vunpack.c.h.b16 %v393
    %v412 = vunpack.c.l.b16 %v394
    %v413 = vunpack.c.h.b16 %v394
    %v414 = vunpack.c.l.b16 %v395
    %v415 = vunpack.c.h.b16 %v395
    %v416 = vunpack.c.l.b16 %v396
    %v417 = vunpack.c.h.b16 %v396
    %v418 = vunpack.c.l.b16 %v397
    %v419 = vunpack.c.h.b16 %v397
    %v420 = vunpack.c.l.b16 %v398
    %v421 = vunpack.c.h.b16 %v398
    %v422 = vunpack.c.l.b16 %v399
    %v423 = vunpack.c.h.b16 %v399
    %v424 = vpack.c.b16 %v408, %v408
    %v425 = vpack.c.b16 %v409, %v409
    %v426 = vpack.c.b16 %v410, %v410
    %v427 = vpack.c.b16 %v411, %v411
    %v428 = vpack.c.b16 %v412, %v412
    %v429 = vpack.c.b16 %v413, %v413
    %v430 = vpack.c.b16 %v414, %v414
    %v431 = vpack.c.b16 %v415, %v415
    %v432 = vpack.c.b16 %v416, %v416
    %v433 = vpack.c.b16 %v417, %v417
    %v434 = vpack.c.b16 %v418, %v418
    %v435 = vpack.c.b16 %v419, %v419
    %v436 = vpack.c.b16 %v420, %v420
    %v437 = vpack.c.b16 %v421, %v421
    %v438 = vpack.c.b16 %v422, %v422
    %v439 = vpack.c.b16 %v423, %v423
    %456 = vst [vmem:[%s4] sm:$0xf] %v424
    %457 = vst [vmem:[%s4 + $0x4] sm:$0xf] %v425
    %458 = vst [vmem:[%s4 + $0x8] sm:$0xf] %v426
    %459 = vst [vmem:[%s4 + $0xc] sm:$0xf] %v427
    %460 = vst [vmem:[%s4 + $0x10] sm:$0xf] %v428
    %461 = vst [vmem:[%s4 + $0x14] sm:$0xf] %v429
    %462 = vst [vmem:[%s4 + $0x18] sm:$0xf] %v430
    %463 = vst [vmem:[%s4 + $0x1c] sm:$0xf] %v431
    %464 = vst [vmem:[%s4 + $0x20] sm:$0xf] %v432
    %465 = vst [vmem:[%s4 + $0x24] sm:$0xf] %v433
    %466 = vst [vmem:[%s4 + $0x28] sm:$0xf] %v434
    %467 = vst [vmem:[%s4 + $0x2c] sm:$0xf] %v435
    %468 = vst [vmem:[%s4 + $0x30] sm:$0xf] %v436
    %469 = vst [vmem:[%s4 + $0x34] sm:$0xf] %v437
    %470 = vst [vmem:[%s4 + $0x38] sm:$0xf] %v438
    %471 = vst [vmem:[%s4 + $0x3c] sm:$0xf] %v439
  $region25: #{_lambda_.56} parent=0 // pred_fallthru
    _
  // Predicated region
  $region26: #{_lambda_.56} parent=0 // pred_check
    _
  $region27: #{_lambda_.56} parent=0 // pred_check_branch
    %473 = sbr.rel (0) target = $region29
  $region28: #{_lambda_.56} parent=0 // pred_region
    _
  $region29: #{_lambda_.56} parent=0 // pred_fallthru
    _
  // Predicated region
  $region30: #{_lambda_.56} parent=0 // pred_check
    _
  $region31: #{_lambda_.56} parent=0 // pred_check_branch
    %475 = sbr.rel (0) target = $region33
  $region32: #{_lambda_.56} parent=0 // pred_region
    _
  $region33: #{_lambda_.56} parent=0 // pred_fallthru
    _

// kernel: _lambda_.58
$region0: #{_lambda_.58}
  #allocation0 [shape = 'u32[]', space=smem, size = 0x4, offset = 0x4, fixed_abs, tag = 'smem constant byte address 0x4 - core index']
  #allocation1 [shape = 'u32[144,128]{1,0:T(1,128)}', space=vmem, size = 0x12000, scoped, tag = 'internal scratch']
  #allocation2 [shape = 'f32[128,128]{1,0:T(8,128)}', space=vmem, size = 0x10000, scoped, tag = 'scratch operand']
  %s0 = inlined_call_operand.vmem [shape: bf16[128,128], index: 0, kind: input, shape index: {}]
  %s1 = inlined_call_operand.vmem [shape: bf16[128,128], index: 1, kind: input, shape index: {}]
  %s2 = inlined_call_operand.vmem [shape: f32[1,128], index: 2, kind: input, shape index: {}]
  %s3 = inlined_call_operand.vmem [shape: f32[1,128], index: 3, kind: input, shape index: {}]
  %s4 = inlined_call_operand.vmem [shape: bf16[128,128], index: 4, kind: output, shape index: {}]
  %s5 = sld [smem:[#allocation0]]
  $region34: #{_lambda_.58} parent=0
    _
  %s7 = ssub.s32 1, %s5
  %s8 = scalar_select 0, %s7, %s5
  // Predicated region
  $region2: #{_lambda_.58} parent=0 // pred_check
    _
  $region3: #{_lambda_.58} parent=0 // pred_check_branch
    %10 = sbr.rel (0) target = $region5
  $region4: #{_lambda_.58} parent=0 // pred_region
    _
  $region5: #{_lambda_.58} parent=0 // pred_fallthru
    _
  // Predicated region
  $region6: #{_lambda_.58} parent=0 // pred_check
    _
  $region7: #{_lambda_.58} parent=0 // pred_check_branch
    %12 = sbr.rel (0) target = $region9
  $region8: #{_lambda_.58} parent=0 // pred_region
    _
  $region9: #{_lambda_.58} parent=0 // pred_fallthru
    _
  // Predicated region
  $region10: #{_lambda_.58} parent=0 // pred_check
    _
  $region11: #{_lambda_.58} parent=0 // pred_check_branch
    %14 = sbr.rel (0) target = $region13
  $region12: #{_lambda_.58} parent=0 // pred_region
    _
  $region13: #{_lambda_.58} parent=0 // pred_fallthru
    _
  // Predicated region
  $region14: #{_lambda_.58} parent=0 // pred_check
    _
  $region15: #{_lambda_.58} parent=0 // pred_check_branch
    %16 = sbr.rel (0) target = $region17
  $region16: #{_lambda_.58} parent=0 // pred_region
    _
  $region17: #{_lambda_.58} parent=0 // pred_fallthru
    _
  %p18 = scmp.eq.s32.totalorder 0, 0
  // Predicated region
  $region18: #{_lambda_.58} parent=0 // pred_check
    %p19 = pneg %p18
  $region19: #{_lambda_.58} parent=0 // pred_check_branch
    %21 = sbr.rel (%p19) target = $region21
  $region20: #{_lambda_.58} parent=0 // pred_region
    %22 = vst [vmem:[#allocation2] sm:$0xff] 0.0
    %23 = vst [vmem:[#allocation2 + $0x8] sm:$0xff] 0.0
    %24 = vst [vmem:[#allocation2 + $0x10] sm:$0xff] 0.0
    %25 = vst [vmem:[#allocation2 + $0x18] sm:$0xff] 0.0
    %26 = vst [vmem:[#allocation2 + $0x20] sm:$0xff] 0.0
    %27 = vst [vmem:[#allocation2 + $0x28] sm:$0xff] 0.0
    %28 = vst [vmem:[#allocation2 + $0x30] sm:$0xff] 0.0
    %29 = vst [vmem:[#allocation2 + $0x38] sm:$0xff] 0.0
    %30 = vst [vmem:[#allocation2 + $0x40] sm:$0xff] 0.0
    %31 = vst [vmem:[#allocation2 + $0x48] sm:$0xff] 0.0
    %32 = vst [vmem:[#allocation2 + $0x50] sm:$0xff] 0.0
    %33 = vst [vmem:[#allocation2 + $0x58] sm:$0xff] 0.0
    %34 = vst [vmem:[#allocation2 + $0x60] sm:$0xff] 0.0
    %35 = vst [vmem:[#allocation2 + $0x68] sm:$0xff] 0.0
    %36 = vst [vmem:[#allocation2 + $0x70] sm:$0xff] 0.0
    %37 = vst [vmem:[#allocation2 + $0x78] sm:$0xff] 0.0
  $region21: #{_lambda_.58} parent=0 // pred_fallthru
    _
  %v38 = vld [vmem:[#allocation2] sm:$0xff]
  %v39 = vld [vmem:[#allocation2 + $0x8] sm:$0xff]
  %v40 = vld [vmem:[#allocation2 + $0x10] sm:$0xff]
  %v41 = vld [vmem:[#allocation2 + $0x18] sm:$0xff]
  %v42 = vld [vmem:[#allocation2 + $0x20] sm:$0xff]
  %v43 = vld [vmem:[#allocation2 + $0x28] sm:$0xff]
  %v44 = vld [vmem:[#allocation2 + $0x30] sm:$0xff]
  %v45 = vld [vmem:[#allocation2 + $0x38] sm:$0xff]
  %v46 = vld [vmem:[#allocation2 + $0x40] sm:$0xff]
  %v47 = vld [vmem:[#allocation2 + $0x48] sm:$0xff]
  %v48 = vld [vmem:[#allocation2 + $0x50] sm:$0xff]
  %v49 = vld [vmem:[#allocation2 + $0x58] sm:$0xff]
  %v50 = vld [vmem:[#allocation2 + $0x60] sm:$0xff]
  %v51 = vld [vmem:[#allocation2 + $0x68] sm:$0xff]
  %v52 = vld [vmem:[#allocation2 + $0x70] sm:$0xff]
  %v53 = vld [vmem:[#allocation2 + $0x78] sm:$0xff]
  %v54 = vld [vmem:[%s0] sm:$0xf]
  %v55 = vld [vmem:[%s0 + $0x4] sm:$0xf]
  %v56 = vld [vmem:[%s0 + $0x8] sm:$0xf]
  %v57 = vld [vmem:[%s0 + $0xc] sm:$0xf]
  %v58 = vld [vmem:[%s0 + $0x10] sm:$0xf]
  %v59 = vld [vmem:[%s0 + $0x14] sm:$0xf]
  %v60 = vld [vmem:[%s0 + $0x18] sm:$0xf]
  %v61 = vld [vmem:[%s0 + $0x1c] sm:$0xf]
  %v62 = vld [vmem:[%s0 + $0x20] sm:$0xf]
  %v63 = vld [vmem:[%s0 + $0x24] sm:$0xf]
  %v64 = vld [vmem:[%s0 + $0x28] sm:$0xf]
  %v65 = vld [vmem:[%s0 + $0x2c] sm:$0xf]
  %v66 = vld [vmem:[%s0 + $0x30] sm:$0xf]
  %v67 = vld [vmem:[%s0 + $0x34] sm:$0xf]
  %v68 = vld [vmem:[%s0 + $0x38] sm:$0xf]
  %v69 = vld [vmem:[%s0 + $0x3c] sm:$0xf]
  %v70 = vld [vmem:[%s1] sm:$0xf]
  %v71 = vld [vmem:[%s1 + $0x4] sm:$0xf]
  %v72 = vld [vmem:[%s1 + $0x8] sm:$0xf]
  %v73 = vld [vmem:[%s1 + $0xc] sm:$0xf]
  %v74 = vld [vmem:[%s1 + $0x10] sm:$0xf]
  %v75 = vld [vmem:[%s1 + $0x14] sm:$0xf]
  %v76 = vld [vmem:[%s1 + $0x18] sm:$0xf]
  %v77 = vld [vmem:[%s1 + $0x1c] sm:$0xf]
  %v78 = vld [vmem:[%s1 + $0x20] sm:$0xf]
  %v79 = vld [vmem:[%s1 + $0x24] sm:$0xf]
  %v80 = vld [vmem:[%s1 + $0x28] sm:$0xf]
  %v81 = vld [vmem:[%s1 + $0x2c] sm:$0xf]
  %v82 = vld [vmem:[%s1 + $0x30] sm:$0xf]
  %v83 = vld [vmem:[%s1 + $0x34] sm:$0xf]
  %v84 = vld [vmem:[%s1 + $0x38] sm:$0xf]
  %v85 = vld [vmem:[%s1 + $0x3c] sm:$0xf]
  %v102 = vunpack.c.l.b16 %v54
  %v103 = vunpack.c.l.b16 %v55
  %v104 = vunpack.c.l.b16 %v56
  %v105 = vunpack.c.l.b16 %v57
  %v106 = vunpack.c.l.b16 %v58
  %v107 = vunpack.c.l.b16 %v59
  %v108 = vunpack.c.l.b16 %v60
  %v109 = vunpack.c.l.b16 %v61
  %v110 = vunpack.c.l.b16 %v62
  %v111 = vunpack.c.l.b16 %v63
  %v112 = vunpack.c.l.b16 %v64
  %v113 = vunpack.c.l.b16 %v65
  %v114 = vunpack.c.l.b16 %v66
  %v115 = vunpack.c.l.b16 %v67
  %v116 = vunpack.c.l.b16 %v68
  %v117 = vunpack.c.l.b16 %v69
  %v118 = vpack.c.b16 %v103, %v102
  %v119 = vpack.c.b16 %v105, %v104
  %v120 = vpack.c.b16 %v107, %v106
  %v121 = vpack.c.b16 %v109, %v108
  %v122 = vpack.c.b16 %v111, %v110
  %v123 = vpack.c.b16 %v113, %v112
  %v124 = vpack.c.b16 %v115, %v114
  %v125 = vpack.c.b16 %v117, %v116
  %v150 = vunpack.c.l.b16 %v70
  %v151 = vunpack.c.l.b16 %v71
  %v152 = vunpack.c.l.b16 %v72
  %v153 = vunpack.c.l.b16 %v73
  %v154 = vunpack.c.l.b16 %v74
  %v155 = vunpack.c.l.b16 %v75
  %v156 = vunpack.c.l.b16 %v76
  %v157 = vunpack.c.l.b16 %v77
  %v158 = vunpack.c.l.b16 %v78
  %v159 = vunpack.c.l.b16 %v79
  %v160 = vunpack.c.l.b16 %v80
  %v161 = vunpack.c.l.b16 %v81
  %v162 = vunpack.c.l.b16 %v82
  %v163 = vunpack.c.l.b16 %v83
  %v164 = vunpack.c.l.b16 %v84
  %v165 = vunpack.c.l.b16 %v85
  %v166 = vpack.c.b16 %v151, %v150
  %v167 = vpack.c.b16 %v153, %v152
  %v168 = vpack.c.b16 %v155, %v154
  %v169 = vpack.c.b16 %v157, %v156
  %v170 = vpack.c.b16 %v159, %v158
  %v171 = vpack.c.b16 %v161, %v160
  %v172 = vpack.c.b16 %v163, %v162
  %v173 = vpack.c.b16 %v165, %v164
  %182 = vmatprep.subr.bf16.mxu0 0
  %183 = vmatpush1.bf16.msra.mxu0 %v173
  %184 = vmatprep.subr.bf16.mxu0 0
  %185 = vmatpush1.bf16.msra.mxu0 %v172
  %186 = vmatprep.subr.bf16.mxu0 0
  %187 = vmatpush1.bf16.msra.mxu0 %v171
  %188 = vmatprep.subr.bf16.mxu0 0
  %189 = vmatpush1.bf16.msra.mxu0 %v170
  %190 = vmatprep.subr.bf16.mxu0 0
  %191 = vmatpush1.bf16.msra.mxu0 %v169
  %192 = vmatprep.subr.bf16.mxu0 0
  %193 = vmatpush1.bf16.msra.mxu0 %v168
  %194 = vmatprep.subr.bf16.mxu0 0
  %195 = vmatpush1.bf16.msra.mxu0 %v167
  %196 = vmatprep.subr.bf16.mxu0 0
  %197 = vmatpush1.bf16.msra.mxu0 %v166
  %198 = vmatprep.subr.bf16.mxu0 0
  %199 = vmatpush2.bf16.msra.mxu0 0
  %200 = vmatprep.subr.bf16.mxu0 0
  %201 = vmatpush2.bf16.msra.mxu0 0
  %202 = vmatprep.subr.bf16.mxu0 0
  %203 = vmatpush2.bf16.msra.mxu0 0
  %204 = vmatprep.subr.bf16.mxu0 0
  %205 = vmatpush2.bf16.msra.mxu0 0
  %206 = vmatprep.subr.bf16.mxu0 0
  %207 = vmatpush2.bf16.msra.mxu0 0
  %208 = vmatprep.subr.bf16.mxu0 0
  %209 = vmatpush2.bf16.msra.mxu0 0
  %210 = vmatprep.subr.bf16.mxu0 0
  %211 = vmatpush2.bf16.msra.mxu0 0
  %212 = vmatprep.subr.bf16.mxu0 0
  %213 = vmatpush2.bf16.msra.mxu0 0
  %214 = vmatprep.mubr.bf16.mxu0 0
  %215 = vmatmul.mubr.bf16.gmra.mxu0 %v118
  %v216 = vpop.f32.mrf.mxu0
  %v217 = vadd.f32 0.0, %v216
  %v218 = vpop.f32.mrf.mxu0
  %v219 = vpop.f32.mrf.mxu0
  %v220 = vadd.f32 0.0, %v219
  %v221 = vpop.f32.mrf.mxu0
  %222 = vmatprep.mubr.bf16.mxu0 0
  %223 = vmatmul.mubr.bf16.gmra.mxu0 %v119
  %v224 = vpop.f32.mrf.mxu0
  %v225 = vadd.f32 0.0, %v224
  %v226 = vpop.f32.mrf.mxu0
  %v227 = vpop.f32.mrf.mxu0
  %v228 = vadd.f32 0.0, %v227
  %v229 = vpop.f32.mrf.mxu0
  %230 = vmatprep.mubr.bf16.mxu0 0
  %231 = vmatmul.mubr.bf16.gmra.mxu0 %v120
  %v232 = vpop.f32.mrf.mxu0
  %v233 = vadd.f32 0.0, %v232
  %v234 = vpop.f32.mrf.mxu0
  %v235 = vpop.f32.mrf.mxu0
  %v236 = vadd.f32 0.0, %v235
  %v237 = vpop.f32.mrf.mxu0
  %238 = vmatprep.mubr.bf16.mxu0 0
  %239 = vmatmul.mubr.bf16.gmra.mxu0 %v121
  %v240 = vpop.f32.mrf.mxu0
  %v241 = vadd.f32 0.0, %v240
  %v242 = vpop.f32.mrf.mxu0
  %v243 = vpop.f32.mrf.mxu0
  %v244 = vadd.f32 0.0, %v243
  %v245 = vpop.f32.mrf.mxu0
  %246 = vmatprep.mubr.bf16.mxu0 0
  %247 = vmatmul.mubr.bf16.gmra.mxu0 %v122
  %v248 = vpop.f32.mrf.mxu0
  %v249 = vadd.f32 0.0, %v248
  %v250 = vpop.f32.mrf.mxu0
  %v251 = vpop.f32.mrf.mxu0
  %v252 = vadd.f32 0.0, %v251
  %v253 = vpop.f32.mrf.mxu0
  %254 = vmatprep.mubr.bf16.mxu0 0
  %255 = vmatmul.mubr.bf16.gmra.mxu0 %v123
  %v256 = vpop.f32.mrf.mxu0
  %v257 = vadd.f32 0.0, %v256
  %v258 = vpop.f32.mrf.mxu0
  %v259 = vpop.f32.mrf.mxu0
  %v260 = vadd.f32 0.0, %v259
  %v261 = vpop.f32.mrf.mxu0
  %262 = vmatprep.mubr.bf16.mxu0 0
  %263 = vmatmul.mubr.bf16.gmra.mxu0 %v124
  %v264 = vpop.f32.mrf.mxu0
  %v265 = vadd.f32 0.0, %v264
  %v266 = vpop.f32.mrf.mxu0
  %v267 = vpop.f32.mrf.mxu0
  %v268 = vadd.f32 0.0, %v267
  %v269 = vpop.f32.mrf.mxu0
  %270 = vmatprep.mubr.bf16.mxu0 0
  %271 = vmatmul.mubr.bf16.gmra.mxu0 %v125
  %v272 = vpop.f32.mrf.mxu0
  %v273 = vadd.f32 0.0, %v272
  %v274 = vpop.f32.mrf.mxu0
  %v275 = vpop.f32.mrf.mxu0
  %v276 = vadd.f32 0.0, %v275
  %v277 = vpop.f32.mrf.mxu0
  %278 = vdwg.mxu0
  %v279 = vadd.f32 %v38, %v217
  %v280 = vadd.f32 %v39, %v220
  %v281 = vadd.f32 %v40, %v225
  %v282 = vadd.f32 %v41, %v228
  %v283 = vadd.f32 %v42, %v233
  %v284 = vadd.f32 %v43, %v236
  %v285 = vadd.f32 %v44, %v241
  %v286 = vadd.f32 %v45, %v244
  %v287 = vadd.f32 %v46, %v249
  %v288 = vadd.f32 %v47, %v252
  %v289 = vadd.f32 %v48, %v257
  %v290 = vadd.f32 %v49, %v260
  %v291 = vadd.f32 %v50, %v265
  %v292 = vadd.f32 %v51, %v268
  %v293 = vadd.f32 %v52, %v273
  %v294 = vadd.f32 %v53, %v276
  %295 = vst [vmem:[#allocation2] sm:$0xff] %v279
  %296 = vst [vmem:[#allocation2 + $0x8] sm:$0xff] %v280
  %297 = vst [vmem:[#allocation2 + $0x10] sm:$0xff] %v281
  %298 = vst [vmem:[#allocation2 + $0x18] sm:$0xff] %v282
  %299 = vst [vmem:[#allocation2 + $0x20] sm:$0xff] %v283
  %300 = vst [vmem:[#allocation2 + $0x28] sm:$0xff] %v284
  %301 = vst [vmem:[#allocation2 + $0x30] sm:$0xff] %v285
  %302 = vst [vmem:[#allocation2 + $0x38] sm:$0xff] %v286
  %303 = vst [vmem:[#allocation2 + $0x40] sm:$0xff] %v287
  %304 = vst [vmem:[#allocation2 + $0x48] sm:$0xff] %v288
  %305 = vst [vmem:[#allocation2 + $0x50] sm:$0xff] %v289
  %306 = vst [vmem:[#allocation2 + $0x58] sm:$0xff] %v290
  %307 = vst [vmem:[#allocation2 + $0x60] sm:$0xff] %v291
  %308 = vst [vmem:[#allocation2 + $0x68] sm:$0xff] %v292
  %309 = vst [vmem:[#allocation2 + $0x70] sm:$0xff] %v293
  %310 = vst [vmem:[#allocation2 + $0x78] sm:$0xff] %v294
  // Predicated region
  $region22: #{_lambda_.58} parent=0 // pred_check
    %p311 = pneg %p18
  $region23: #{_lambda_.58} parent=0 // pred_check_branch
    %313 = sbr.rel (%p311) target = $region25
  $region24: #{_lambda_.58} parent=0 // pred_region
    %v314 = vld [vmem:[#allocation2] sm:$0xff]
    %v315 = vld [vmem:[#allocation2 + $0x8] sm:$0xff]
    %v316 = vld [vmem:[#allocation2 + $0x10] sm:$0xff]
    %v317 = vld [vmem:[#allocation2 + $0x18] sm:$0xff]
    %v318 = vld [vmem:[#allocation2 + $0x20] sm:$0xff]
    %v319 = vld [vmem:[#allocation2 + $0x28] sm:$0xff]
    %v320 = vld [vmem:[#allocation2 + $0x30] sm:$0xff]
    %v321 = vld [vmem:[#allocation2 + $0x38] sm:$0xff]
    %v322 = vld [vmem:[#allocation2 + $0x40] sm:$0xff]
    %v323 = vld [vmem:[#allocation2 + $0x48] sm:$0xff]
    %v324 = vld [vmem:[#allocation2 + $0x50] sm:$0xff]
    %v325 = vld [vmem:[#allocation2 + $0x58] sm:$0xff]
    %v326 = vld [vmem:[#allocation2 + $0x60] sm:$0xff]
    %v327 = vld [vmem:[#allocation2 + $0x68] sm:$0xff]
    %v328 = vld [vmem:[#allocation2 + $0x70] sm:$0xff]
    %v329 = vld [vmem:[#allocation2 + $0x78] sm:$0xff]
    %v330 = vld [vmem:[%s2] sm:$0x1]
    %v332 = vlaneseq
    %v333 = vshrl.u32 %v332, 7
    %v334 = vsub.s32 0, %v333
    %v335 = vrot.slane %v330, %v334
    %v337 = vmul.f32 %v314, %v335
    %v338 = vmul.f32 %v315, %v335
    %v339 = vmul.f32 %v316, %v335
    %v340 = vmul.f32 %v317, %v335
    %v341 = vmul.f32 %v318, %v335
    %v342 = vmul.f32 %v319, %v335
    %v343 = vmul.f32 %v320, %v335
    %v344 = vmul.f32 %v321, %v335
    %v345 = vmul.f32 %v322, %v335
    %v346 = vmul.f32 %v323, %v335
    %v347 = vmul.f32 %v324, %v335
    %v348 = vmul.f32 %v325, %v335
    %v349 = vmul.f32 %v326, %v335
    %v350 = vmul.f32 %v327, %v335
    %v351 = vmul.f32 %v328, %v335
    %v352 = vmul.f32 %v329, %v335
    %v353 = vld [vmem:[%s3] sm:$0x1]
    %v355 = vlaneseq
    %v356 = vshrl.u32 %v355, 7
    %v357 = vsub.s32 0, %v356
    %v358 = vrot.slane %v353, %v357
    %v360 = vadd.f32 %v337, %v358
    %v361 = vadd.f32 %v338, %v358
    %v362 = vadd.f32 %v339, %v358
    %v363 = vadd.f32 %v340, %v358
    %v364 = vadd.f32 %v341, %v358
    %v365 = vadd.f32 %v342, %v358
    %v366 = vadd.f32 %v343, %v358
    %v367 = vadd.f32 %v344, %v358
    %v368 = vadd.f32 %v345, %v358
    %v369 = vadd.f32 %v346, %v358
    %v370 = vadd.f32 %v347, %v358
    %v371 = vadd.f32 %v348, %v358
    %v372 = vadd.f32 %v349, %v358
    %v373 = vadd.f32 %v350, %v358
    %v374 = vadd.f32 %v351, %v358
    %v375 = vadd.f32 %v352, %v358
    %v376 = vpack.c.bf16 %v361, %v360
    %v377 = vpack.c.bf16 %v363, %v362
    %v378 = vpack.c.bf16 %v365, %v364
    %v379 = vpack.c.bf16 %v367, %v366
    %v380 = vpack.c.bf16 %v369, %v368
    %v381 = vpack.c.bf16 %v371, %v370
    %v382 = vpack.c.bf16 %v373, %v372
    %v383 = vpack.c.bf16 %v375, %v374
    %v392 = vunpack.c.l.b16 %v376
    %v393 = vunpack.c.h.b16 %v376
    %v394 = vunpack.c.l.b16 %v377
    %v395 = vunpack.c.h.b16 %v377
    %v396 = vunpack.c.l.b16 %v378
    %v397 = vunpack.c.h.b16 %v378
    %v398 = vunpack.c.l.b16 %v379
    %v399 = vunpack.c.h.b16 %v379
    %v400 = vunpack.c.l.b16 %v380
    %v401 = vunpack.c.h.b16 %v380
    %v402 = vunpack.c.l.b16 %v381
    %v403 = vunpack.c.h.b16 %v381
    %v404 = vunpack.c.l.b16 %v382
    %v405 = vunpack.c.h.b16 %v382
    %v406 = vunpack.c.l.b16 %v383
    %v407 = vunpack.c.h.b16 %v383
    %v408 = vpack.c.b16 %v392, %v392
    %v409 = vpack.c.b16 %v393, %v393
    %v410 = vpack.c.b16 %v394, %v394
    %v411 = vpack.c.b16 %v395, %v395
    %v412 = vpack.c.b16 %v396, %v396
    %v413 = vpack.c.b16 %v397, %v397
    %v414 = vpack.c.b16 %v398, %v398
    %v415 = vpack.c.b16 %v399, %v399
    %v416 = vpack.c.b16 %v400, %v400
    %v417 = vpack.c.b16 %v401, %v401
    %v418 = vpack.c.b16 %v402, %v402
    %v419 = vpack.c.b16 %v403, %v403
    %v420 = vpack.c.b16 %v404, %v404
    %v421 = vpack.c.b16 %v405, %v405
    %v422 = vpack.c.b16 %v406, %v406
    %v423 = vpack.c.b16 %v407, %v407
    %440 = vst [vmem:[%s4] sm:$0xf] %v408
    %441 = vst [vmem:[%s4 + $0x4] sm:$0xf] %v409
    %442 = vst [vmem:[%s4 + $0x8] sm:$0xf] %v410
    %443 = vst [vmem:[%s4 + $0xc] sm:$0xf] %v411
    %444 = vst [vmem:[%s4 + $0x10] sm:$0xf] %v412
    %445 = vst [vmem:[%s4 + $0x14] sm:$0xf] %v413
    %446 = vst [vmem:[%s4 + $0x18] sm:$0xf] %v414
    %447 = vst [vmem:[%s4 + $0x1c] sm:$0xf] %v415
    %448 = vst [vmem:[%s4 + $0x20] sm:$0xf] %v416
    %449 = vst [vmem:[%s4 + $0x24] sm:$0xf] %v417
    %450 = vst [vmem:[%s4 + $0x28] sm:$0xf] %v418
    %451 = vst [vmem:[%s4 + $0x2c] sm:$0xf] %v419
    %452 = vst [vmem:[%s4 + $0x30] sm:$0xf] %v420
    %453 = vst [vmem:[%s4 + $0x34] sm:$0xf] %v421
    %454 = vst [vmem:[%s4 + $0x38] sm:$0xf] %v422
    %455 = vst [vmem:[%s4 + $0x3c] sm:$0xf] %v423
  $region25: #{_lambda_.58} parent=0 // pred_fallthru
    _
  // Predicated region
  $region26: #{_lambda_.58} parent=0 // pred_check
    _
  $region27: #{_lambda_.58} parent=0 // pred_check_branch
    %457 = sbr.rel (0) target = $region29
  $region28: #{_lambda_.58} parent=0 // pred_region
    _
  $region29: #{_lambda_.58} parent=0 // pred_fallthru
    _
  // Predicated region
  $region30: #{_lambda_.58} parent=0 // pred_check
    _
  $region31: #{_lambda_.58} parent=0 // pred_check_branch
    %459 = sbr.rel (0) target = $region33
  $region32: #{_lambda_.58} parent=0 // pred_region
    _
  $region33: #{_lambda_.58} parent=0 // pred_fallthru
    _

// kernel: _lambda_.59
$region0: #{_lambda_.59}
  #allocation0 [shape = 'u32[]', space=smem, size = 0x4, offset = 0x4, fixed_abs, tag = 'smem constant byte address 0x4 - core index']
  #allocation1 [shape = 'u32[144,128]{1,0:T(1,128)}', space=vmem, size = 0x12000, scoped, tag = 'internal scratch']
  #allocation2 [shape = 'f32[128,128]{1,0:T(8,128)}', space=vmem, size = 0x10000, scoped, tag = 'scratch operand']
  %s0 = inlined_call_operand.vmem [shape: bf16[128,128], index: 0, kind: input, shape index: {}]
  %s1 = inlined_call_operand.vmem [shape: bf16[128,128], index: 1, kind: input, shape index: {}]
  %s2 = inlined_call_operand.vmem [shape: f32[1,128], index: 2, kind: input, shape index: {}]
  %s3 = inlined_call_operand.vmem [shape: f32[1,128], index: 3, kind: input, shape index: {}]
  %s4 = inlined_call_operand.vmem [shape: bf16[128,128], index: 4, kind: input, shape index: {}]
  %s5 = inlined_call_operand.vmem [shape: bf16[128,128], index: 5, kind: output, shape index: {}]
  %s6 = sld [smem:[#allocation0]]
  $region38: #{_lambda_.59} parent=0
    _
  %s8 = ssub.s32 1, %s6
  %s9 = scalar_select 0, %s8, %s6
  // Predicated region
  $region2: #{_lambda_.59} parent=0 // pred_check
    _
  $region3: #{_lambda_.59} parent=0 // pred_check_branch
    %11 = sbr.rel (0) target = $region5
  $region4: #{_lambda_.59} parent=0 // pred_region
    _
  $region5: #{_lambda_.59} parent=0 // pred_fallthru
    _
  // Predicated region
  $region6: #{_lambda_.59} parent=0 // pred_check
    _
  $region7: #{_lambda_.59} parent=0 // pred_check_branch
    %13 = sbr.rel (0) target = $region9
  $region8: #{_lambda_.59} parent=0 // pred_region
    _
  $region9: #{_lambda_.59} parent=0 // pred_fallthru
    _
  // Predicated region
  $region10: #{_lambda_.59} parent=0 // pred_check
    _
  $region11: #{_lambda_.59} parent=0 // pred_check_branch
    %15 = sbr.rel (0) target = $region13
  $region12: #{_lambda_.59} parent=0 // pred_region
    _
  $region13: #{_lambda_.59} parent=0 // pred_fallthru
    _
  // Predicated region
  $region14: #{_lambda_.59} parent=0 // pred_check
    _
  $region15: #{_lambda_.59} parent=0 // pred_check_branch
    %17 = sbr.rel (0) target = $region17
  $region16: #{_lambda_.59} parent=0 // pred_region
    _
  $region17: #{_lambda_.59} parent=0 // pred_fallthru
    _
  // Predicated region
  $region18: #{_lambda_.59} parent=0 // pred_check
    _
  $region19: #{_lambda_.59} parent=0 // pred_check_branch
    %19 = sbr.rel (0) target = $region21
  $region20: #{_lambda_.59} parent=0 // pred_region
    _
  $region21: #{_lambda_.59} parent=0 // pred_fallthru
    _
  %p21 = scmp.eq.s32.totalorder 0, 0
  // Predicated region
  $region22: #{_lambda_.59} parent=0 // pred_check
    %p22 = pneg %p21
  $region23: #{_lambda_.59} parent=0 // pred_check_branch
    %24 = sbr.rel (%p22) target = $region25
  $region24: #{_lambda_.59} parent=0 // pred_region
    %25 = vst [vmem:[#allocation2] sm:$0xff] 0.0
    %26 = vst [vmem:[#allocation2 + $0x8] sm:$0xff] 0.0
    %27 = vst [vmem:[#allocation2 + $0x10] sm:$0xff] 0.0
    %28 = vst [vmem:[#allocation2 + $0x18] sm:$0xff] 0.0
    %29 = vst [vmem:[#allocation2 + $0x20] sm:$0xff] 0.0
    %30 = vst [vmem:[#allocation2 + $0x28] sm:$0xff] 0.0
    %31 = vst [vmem:[#allocation2 + $0x30] sm:$0xff] 0.0
    %32 = vst [vmem:[#allocation2 + $0x38] sm:$0xff] 0.0
    %33 = vst [vmem:[#allocation2 + $0x40] sm:$0xff] 0.0
    %34 = vst [vmem:[#allocation2 + $0x48] sm:$0xff] 0.0
    %35 = vst [vmem:[#allocation2 + $0x50] sm:$0xff] 0.0
    %36 = vst [vmem:[#allocation2 + $0x58] sm:$0xff] 0.0
    %37 = vst [vmem:[#allocation2 + $0x60] sm:$0xff] 0.0
    %38 = vst [vmem:[#allocation2 + $0x68] sm:$0xff] 0.0
    %39 = vst [vmem:[#allocation2 + $0x70] sm:$0xff] 0.0
    %40 = vst [vmem:[#allocation2 + $0x78] sm:$0xff] 0.0
  $region25: #{_lambda_.59} parent=0 // pred_fallthru
    _
  %v41 = vld [vmem:[#allocation2] sm:$0xff]
  %v42 = vld [vmem:[#allocation2 + $0x8] sm:$0xff]
  %v43 = vld [vmem:[#allocation2 + $0x10] sm:$0xff]
  %v44 = vld [vmem:[#allocation2 + $0x18] sm:$0xff]
  %v45 = vld [vmem:[#allocation2 + $0x20] sm:$0xff]
  %v46 = vld [vmem:[#allocation2 + $0x28] sm:$0xff]
  %v47 = vld [vmem:[#allocation2 + $0x30] sm:$0xff]
  %v48 = vld [vmem:[#allocation2 + $0x38] sm:$0xff]
  %v49 = vld [vmem:[#allocation2 + $0x40] sm:$0xff]
  %v50 = vld [vmem:[#allocation2 + $0x48] sm:$0xff]
  %v51 = vld [vmem:[#allocation2 + $0x50] sm:$0xff]
  %v52 = vld [vmem:[#allocation2 + $0x58] sm:$0xff]
  %v53 = vld [vmem:[#allocation2 + $0x60] sm:$0xff]
  %v54 = vld [vmem:[#allocation2 + $0x68] sm:$0xff]
  %v55 = vld [vmem:[#allocation2 + $0x70] sm:$0xff]
  %v56 = vld [vmem:[#allocation2 + $0x78] sm:$0xff]
  %v57 = vld [vmem:[%s0] sm:$0xf]
  %v58 = vld [vmem:[%s0 + $0x4] sm:$0xf]
  %v59 = vld [vmem:[%s0 + $0x8] sm:$0xf]
  %v60 = vld [vmem:[%s0 + $0xc] sm:$0xf]
  %v61 = vld [vmem:[%s0 + $0x10] sm:$0xf]
  %v62 = vld [vmem:[%s0 + $0x14] sm:$0xf]
  %v63 = vld [vmem:[%s0 + $0x18] sm:$0xf]
  %v64 = vld [vmem:[%s0 + $0x1c] sm:$0xf]
  %v65 = vld [vmem:[%s0 + $0x20] sm:$0xf]
  %v66 = vld [vmem:[%s0 + $0x24] sm:$0xf]
  %v67 = vld [vmem:[%s0 + $0x28] sm:$0xf]
  %v68 = vld [vmem:[%s0 + $0x2c] sm:$0xf]
  %v69 = vld [vmem:[%s0 + $0x30] sm:$0xf]
  %v70 = vld [vmem:[%s0 + $0x34] sm:$0xf]
  %v71 = vld [vmem:[%s0 + $0x38] sm:$0xf]
  %v72 = vld [vmem:[%s0 + $0x3c] sm:$0xf]
  %v73 = vld [vmem:[%s1] sm:$0xf]
  %v74 = vld [vmem:[%s1 + $0x4] sm:$0xf]
  %v75 = vld [vmem:[%s1 + $0x8] sm:$0xf]
  %v76 = vld [vmem:[%s1 + $0xc] sm:$0xf]
  %v77 = vld [vmem:[%s1 + $0x10] sm:$0xf]
  %v78 = vld [vmem:[%s1 + $0x14] sm:$0xf]
  %v79 = vld [vmem:[%s1 + $0x18] sm:$0xf]
  %v80 = vld [vmem:[%s1 + $0x1c] sm:$0xf]
  %v81 = vld [vmem:[%s1 + $0x20] sm:$0xf]
  %v82 = vld [vmem:[%s1 + $0x24] sm:$0xf]
  %v83 = vld [vmem:[%s1 + $0x28] sm:$0xf]
  %v84 = vld [vmem:[%s1 + $0x2c] sm:$0xf]
  %v85 = vld [vmem:[%s1 + $0x30] sm:$0xf]
  %v86 = vld [vmem:[%s1 + $0x34] sm:$0xf]
  %v87 = vld [vmem:[%s1 + $0x38] sm:$0xf]
  %v88 = vld [vmem:[%s1 + $0x3c] sm:$0xf]
  %v105 = vunpack.c.l.b16 %v57
  %v106 = vunpack.c.l.b16 %v58
  %v107 = vunpack.c.l.b16 %v59
  %v108 = vunpack.c.l.b16 %v60
  %v109 = vunpack.c.l.b16 %v61
  %v110 = vunpack.c.l.b16 %v62
  %v111 = vunpack.c.l.b16 %v63
  %v112 = vunpack.c.l.b16 %v64
  %v113 = vunpack.c.l.b16 %v65
  %v114 = vunpack.c.l.b16 %v66
  %v115 = vunpack.c.l.b16 %v67
  %v116 = vunpack.c.l.b16 %v68
  %v117 = vunpack.c.l.b16 %v69
  %v118 = vunpack.c.l.b16 %v70
  %v119 = vunpack.c.l.b16 %v71
  %v120 = vunpack.c.l.b16 %v72
  %v121 = vpack.c.b16 %v106, %v105
  %v122 = vpack.c.b16 %v108, %v107
  %v123 = vpack.c.b16 %v110, %v109
  %v124 = vpack.c.b16 %v112, %v111
  %v125 = vpack.c.b16 %v114, %v113
  %v126 = vpack.c.b16 %v116, %v115
  %v127 = vpack.c.b16 %v118, %v117
  %v128 = vpack.c.b16 %v120, %v119
  %v153 = vunpack.c.l.b16 %v73
  %v154 = vunpack.c.l.b16 %v74
  %v155 = vunpack.c.l.b16 %v75
  %v156 = vunpack.c.l.b16 %v76
  %v157 = vunpack.c.l.b16 %v77
  %v158 = vunpack.c.l.b16 %v78
  %v159 = vunpack.c.l.b16 %v79
  %v160 = vunpack.c.l.b16 %v80
  %v161 = vunpack.c.l.b16 %v81
  %v162 = vunpack.c.l.b16 %v82
  %v163 = vunpack.c.l.b16 %v83
  %v164 = vunpack.c.l.b16 %v84
  %v165 = vunpack.c.l.b16 %v85
  %v166 = vunpack.c.l.b16 %v86
  %v167 = vunpack.c.l.b16 %v87
  %v168 = vunpack.c.l.b16 %v88
  %v169 = vpack.c.b16 %v154, %v153
  %v170 = vpack.c.b16 %v156, %v155
  %v171 = vpack.c.b16 %v158, %v157
  %v172 = vpack.c.b16 %v160, %v159
  %v173 = vpack.c.b16 %v162, %v161
  %v174 = vpack.c.b16 %v164, %v163
  %v175 = vpack.c.b16 %v166, %v165
  %v176 = vpack.c.b16 %v168, %v167
  %185 = vmatprep.subr.bf16.mxu0 0
  %186 = vmatpush1.bf16.msra.mxu0 %v176
  %187 = vmatprep.subr.bf16.mxu0 0
  %188 = vmatpush1.bf16.msra.mxu0 %v175
  %189 = vmatprep.subr.bf16.mxu0 0
  %190 = vmatpush1.bf16.msra.mxu0 %v174
  %191 = vmatprep.subr.bf16.mxu0 0
  %192 = vmatpush1.bf16.msra.mxu0 %v173
  %193 = vmatprep.subr.bf16.mxu0 0
  %194 = vmatpush1.bf16.msra.mxu0 %v172
  %195 = vmatprep.subr.bf16.mxu0 0
  %196 = vmatpush1.bf16.msra.mxu0 %v171
  %197 = vmatprep.subr.bf16.mxu0 0
  %198 = vmatpush1.bf16.msra.mxu0 %v170
  %199 = vmatprep.subr.bf16.mxu0 0
  %200 = vmatpush1.bf16.msra.mxu0 %v169
  %201 = vmatprep.subr.bf16.mxu0 0
  %202 = vmatpush2.bf16.msra.mxu0 0
  %203 = vmatprep.subr.bf16.mxu0 0
  %204 = vmatpush2.bf16.msra.mxu0 0
  %205 = vmatprep.subr.bf16.mxu0 0
  %206 = vmatpush2.bf16.msra.mxu0 0
  %207 = vmatprep.subr.bf16.mxu0 0
  %208 = vmatpush2.bf16.msra.mxu0 0
  %209 = vmatprep.subr.bf16.mxu0 0
  %210 = vmatpush2.bf16.msra.mxu0 0
  %211 = vmatprep.subr.bf16.mxu0 0
  %212 = vmatpush2.bf16.msra.mxu0 0
  %213 = vmatprep.subr.bf16.mxu0 0
  %214 = vmatpush2.bf16.msra.mxu0 0
  %215 = vmatprep.subr.bf16.mxu0 0
  %216 = vmatpush2.bf16.msra.mxu0 0
  %217 = vmatprep.mubr.bf16.mxu0 0
  %218 = vmatmul.mubr.bf16.gmra.mxu0 %v121
  %v219 = vpop.f32.mrf.mxu0
  %v220 = vadd.f32 0.0, %v219
  %v221 = vpop.f32.mrf.mxu0
  %v222 = vpop.f32.mrf.mxu0
  %v223 = vadd.f32 0.0, %v222
  %v224 = vpop.f32.mrf.mxu0
  %225 = vmatprep.mubr.bf16.mxu0 0
  %226 = vmatmul.mubr.bf16.gmra.mxu0 %v122
  %v227 = vpop.f32.mrf.mxu0
  %v228 = vadd.f32 0.0, %v227
  %v229 = vpop.f32.mrf.mxu0
  %v230 = vpop.f32.mrf.mxu0
  %v231 = vadd.f32 0.0, %v230
  %v232 = vpop.f32.mrf.mxu0
  %233 = vmatprep.mubr.bf16.mxu0 0
  %234 = vmatmul.mubr.bf16.gmra.mxu0 %v123
  %v235 = vpop.f32.mrf.mxu0
  %v236 = vadd.f32 0.0, %v235
  %v237 = vpop.f32.mrf.mxu0
  %v238 = vpop.f32.mrf.mxu0
  %v239 = vadd.f32 0.0, %v238
  %v240 = vpop.f32.mrf.mxu0
  %241 = vmatprep.mubr.bf16.mxu0 0
  %242 = vmatmul.mubr.bf16.gmra.mxu0 %v124
  %v243 = vpop.f32.mrf.mxu0
  %v244 = vadd.f32 0.0, %v243
  %v245 = vpop.f32.mrf.mxu0
  %v246 = vpop.f32.mrf.mxu0
  %v247 = vadd.f32 0.0, %v246
  %v248 = vpop.f32.mrf.mxu0
  %249 = vmatprep.mubr.bf16.mxu0 0
  %250 = vmatmul.mubr.bf16.gmra.mxu0 %v125
  %v251 = vpop.f32.mrf.mxu0
  %v252 = vadd.f32 0.0, %v251
  %v253 = vpop.f32.mrf.mxu0
  %v254 = vpop.f32.mrf.mxu0
  %v255 = vadd.f32 0.0, %v254
  %v256 = vpop.f32.mrf.mxu0
  %257 = vmatprep.mubr.bf16.mxu0 0
  %258 = vmatmul.mubr.bf16.gmra.mxu0 %v126
  %v259 = vpop.f32.mrf.mxu0
  %v260 = vadd.f32 0.0, %v259
  %v261 = vpop.f32.mrf.mxu0
  %v262 = vpop.f32.mrf.mxu0
  %v263 = vadd.f32 0.0, %v262
  %v264 = vpop.f32.mrf.mxu0
  %265 = vmatprep.mubr.bf16.mxu0 0
  %266 = vmatmul.mubr.bf16.gmra.mxu0 %v127
  %v267 = vpop.f32.mrf.mxu0
  %v268 = vadd.f32 0.0, %v267
  %v269 = vpop.f32.mrf.mxu0
  %v270 = vpop.f32.mrf.mxu0
  %v271 = vadd.f32 0.0, %v270
  %v272 = vpop.f32.mrf.mxu0
  %273 = vmatprep.mubr.bf16.mxu0 0
  %274 = vmatmul.mubr.bf16.gmra.mxu0 %v128
  %v275 = vpop.f32.mrf.mxu0
  %v276 = vadd.f32 0.0, %v275
  %v277 = vpop.f32.mrf.mxu0
  %v278 = vpop.f32.mrf.mxu0
  %v279 = vadd.f32 0.0, %v278
  %v280 = vpop.f32.mrf.mxu0
  %281 = vdwg.mxu0
  %v282 = vadd.f32 %v41, %v220
  %v283 = vadd.f32 %v42, %v223
  %v284 = vadd.f32 %v43, %v228
  %v285 = vadd.f32 %v44, %v231
  %v286 = vadd.f32 %v45, %v236
  %v287 = vadd.f32 %v46, %v239
  %v288 = vadd.f32 %v47, %v244
  %v289 = vadd.f32 %v48, %v247
  %v290 = vadd.f32 %v49, %v252
  %v291 = vadd.f32 %v50, %v255
  %v292 = vadd.f32 %v51, %v260
  %v293 = vadd.f32 %v52, %v263
  %v294 = vadd.f32 %v53, %v268
  %v295 = vadd.f32 %v54, %v271
  %v296 = vadd.f32 %v55, %v276
  %v297 = vadd.f32 %v56, %v279
  %298 = vst [vmem:[#allocation2] sm:$0xff] %v282
  %299 = vst [vmem:[#allocation2 + $0x8] sm:$0xff] %v283
  %300 = vst [vmem:[#allocation2 + $0x10] sm:$0xff] %v284
  %301 = vst [vmem:[#allocation2 + $0x18] sm:$0xff] %v285
  %302 = vst [vmem:[#allocation2 + $0x20] sm:$0xff] %v286
  %303 = vst [vmem:[#allocation2 + $0x28] sm:$0xff] %v287
  %304 = vst [vmem:[#allocation2 + $0x30] sm:$0xff] %v288
  %305 = vst [vmem:[#allocation2 + $0x38] sm:$0xff] %v289
  %306 = vst [vmem:[#allocation2 + $0x40] sm:$0xff] %v290
  %307 = vst [vmem:[#allocation2 + $0x48] sm:$0xff] %v291
  %308 = vst [vmem:[#allocation2 + $0x50] sm:$0xff] %v292
  %309 = vst [vmem:[#allocation2 + $0x58] sm:$0xff] %v293
  %310 = vst [vmem:[#allocation2 + $0x60] sm:$0xff] %v294
  %311 = vst [vmem:[#allocation2 + $0x68] sm:$0xff] %v295
  %312 = vst [vmem:[#allocation2 + $0x70] sm:$0xff] %v296
  %313 = vst [vmem:[#allocation2 + $0x78] sm:$0xff] %v297
  // Predicated region
  $region26: #{_lambda_.59} parent=0 // pred_check
    %p314 = pneg %p21
  $region27: #{_lambda_.59} parent=0 // pred_check_branch
    %316 = sbr.rel (%p314) target = $region29
  $region28: #{_lambda_.59} parent=0 // pred_region
    %v317 = vld [vmem:[#allocation2] sm:$0xff]
    %v318 = vld [vmem:[#allocation2 + $0x8] sm:$0xff]
    %v319 = vld [vmem:[#allocation2 + $0x10] sm:$0xff]
    %v320 = vld [vmem:[#allocation2 + $0x18] sm:$0xff]
    %v321 = vld [vmem:[#allocation2 + $0x20] sm:$0xff]
    %v322 = vld [vmem:[#allocation2 + $0x28] sm:$0xff]
    %v323 = vld [vmem:[#allocation2 + $0x30] sm:$0xff]
    %v324 = vld [vmem:[#allocation2 + $0x38] sm:$0xff]
    %v325 = vld [vmem:[#allocation2 + $0x40] sm:$0xff]
    %v326 = vld [vmem:[#allocation2 + $0x48] sm:$0xff]
    %v327 = vld [vmem:[#allocation2 + $0x50] sm:$0xff]
    %v328 = vld [vmem:[#allocation2 + $0x58] sm:$0xff]
    %v329 = vld [vmem:[#allocation2 + $0x60] sm:$0xff]
    %v330 = vld [vmem:[#allocation2 + $0x68] sm:$0xff]
    %v331 = vld [vmem:[#allocation2 + $0x70] sm:$0xff]
    %v332 = vld [vmem:[#allocation2 + $0x78] sm:$0xff]
    %v333 = vld [vmem:[%s2] sm:$0x1]
    %v335 = vlaneseq
    %v336 = vshrl.u32 %v335, 7
    %v337 = vsub.s32 0, %v336
    %v338 = vrot.slane %v333, %v337
    %v340 = vmul.f32 %v317, %v338
    %v341 = vmul.f32 %v318, %v338
    %v342 = vmul.f32 %v319, %v338
    %v343 = vmul.f32 %v320, %v338
    %v344 = vmul.f32 %v321, %v338
    %v345 = vmul.f32 %v322, %v338
    %v346 = vmul.f32 %v323, %v338
    %v347 = vmul.f32 %v324, %v338
    %v348 = vmul.f32 %v325, %v338
    %v349 = vmul.f32 %v326, %v338
    %v350 = vmul.f32 %v327, %v338
    %v351 = vmul.f32 %v328, %v338
    %v352 = vmul.f32 %v329, %v338
    %v353 = vmul.f32 %v330, %v338
    %v354 = vmul.f32 %v331, %v338
    %v355 = vmul.f32 %v332, %v338
    %v356 = vld [vmem:[%s3] sm:$0x1]
    %v358 = vlaneseq
    %v359 = vshrl.u32 %v358, 7
    %v360 = vsub.s32 0, %v359
    %v361 = vrot.slane %v356, %v360
    %v363 = vadd.f32 %v340, %v361
    %v364 = vadd.f32 %v341, %v361
    %v365 = vadd.f32 %v342, %v361
    %v366 = vadd.f32 %v343, %v361
    %v367 = vadd.f32 %v344, %v361
    %v368 = vadd.f32 %v345, %v361
    %v369 = vadd.f32 %v346, %v361
    %v370 = vadd.f32 %v347, %v361
    %v371 = vadd.f32 %v348, %v361
    %v372 = vadd.f32 %v349, %v361
    %v373 = vadd.f32 %v350, %v361
    %v374 = vadd.f32 %v351, %v361
    %v375 = vadd.f32 %v352, %v361
    %v376 = vadd.f32 %v353, %v361
    %v377 = vadd.f32 %v354, %v361
    %v378 = vadd.f32 %v355, %v361
    %v379 = vld [vmem:[%s4] sm:$0xf]
    %v380 = vld [vmem:[%s4 + $0x4] sm:$0xf]
    %v381 = vld [vmem:[%s4 + $0x8] sm:$0xf]
    %v382 = vld [vmem:[%s4 + $0xc] sm:$0xf]
    %v383 = vld [vmem:[%s4 + $0x10] sm:$0xf]
    %v384 = vld [vmem:[%s4 + $0x14] sm:$0xf]
    %v385 = vld [vmem:[%s4 + $0x18] sm:$0xf]
    %v386 = vld [vmem:[%s4 + $0x1c] sm:$0xf]
    %v387 = vld [vmem:[%s4 + $0x20] sm:$0xf]
    %v388 = vld [vmem:[%s4 + $0x24] sm:$0xf]
    %v389 = vld [vmem:[%s4 + $0x28] sm:$0xf]
    %v390 = vld [vmem:[%s4 + $0x2c] sm:$0xf]
    %v391 = vld [vmem:[%s4 + $0x30] sm:$0xf]
    %v392 = vld [vmem:[%s4 + $0x34] sm:$0xf]
    %v393 = vld [vmem:[%s4 + $0x38] sm:$0xf]
    %v394 = vld [vmem:[%s4 + $0x3c] sm:$0xf]
    %v395 = vunpack.c.l.bf16 %v379
    %v396 = vunpack.c.l.bf16 %v380
    %v397 = vunpack.c.l.bf16 %v381
    %v398 = vunpack.c.l.bf16 %v382
    %v399 = vunpack.c.l.bf16 %v383
    %v400 = vunpack.c.l.bf16 %v384
    %v401 = vunpack.c.l.bf16 %v385
    %v402 = vunpack.c.l.bf16 %v386
    %v403 = vunpack.c.l.bf16 %v387
    %v404 = vunpack.c.l.bf16 %v388
    %v405 = vunpack.c.l.bf16 %v389
    %v406 = vunpack.c.l.bf16 %v390
    %v407 = vunpack.c.l.bf16 %v391
    %v408 = vunpack.c.l.bf16 %v392
    %v409 = vunpack.c.l.bf16 %v393
    %v410 = vunpack.c.l.bf16 %v394
    %v411 = vadd.f32 %v363, %v395
    %v412 = vadd.f32 %v364, %v396
    %v413 = vadd.f32 %v365, %v397
    %v414 = vadd.f32 %v366, %v398
    %v415 = vadd.f32 %v367, %v399
    %v416 = vadd.f32 %v368, %v400
    %v417 = vadd.f32 %v369, %v401
    %v418 = vadd.f32 %v370, %v402
    %v419 = vadd.f32 %v371, %v403
    %v420 = vadd.f32 %v372, %v404
    %v421 = vadd.f32 %v373, %v405
    %v422 = vadd.f32 %v374, %v406
    %v423 = vadd.f32 %v375, %v407
    %v424 = vadd.f32 %v376, %v408
    %v425 = vadd.f32 %v377, %v409
    %v426 = vadd.f32 %v378, %v410
    %v427 = vmax.f32 %v411, 0.0
    %v428 = vmax.f32 %v412, 0.0
    %v429 = vmax.f32 %v413, 0.0
    %v430 = vmax.f32 %v414, 0.0
    %v431 = vmax.f32 %v415, 0.0
    %v432 = vmax.f32 %v416, 0.0
    %v433 = vmax.f32 %v417, 0.0
    %v434 = vmax.f32 %v418, 0.0
    %v435 = vmax.f32 %v419, 0.0
    %v436 = vmax.f32 %v420, 0.0
    %v437 = vmax.f32 %v421, 0.0
    %v438 = vmax.f32 %v422, 0.0
    %v439 = vmax.f32 %v423, 0.0
    %v440 = vmax.f32 %v424, 0.0
    %v441 = vmax.f32 %v425, 0.0
    %v442 = vmax.f32 %v426, 0.0
    %v443 = vpack.c.bf16 %v428, %v427
    %v444 = vpack.c.bf16 %v430, %v429
    %v445 = vpack.c.bf16 %v432, %v431
    %v446 = vpack.c.bf16 %v434, %v433
    %v447 = vpack.c.bf16 %v436, %v435
    %v448 = vpack.c.bf16 %v438, %v437
    %v449 = vpack.c.bf16 %v440, %v439
    %v450 = vpack.c.bf16 %v442, %v441
    %v459 = vunpack.c.l.b16 %v443
    %v460 = vunpack.c.h.b16 %v443
    %v461 = vunpack.c.l.b16 %v444
    %v462 = vunpack.c.h.b16 %v444
    %v463 = vunpack.c.l.b16 %v445
    %v464 = vunpack.c.h.b16 %v445
    %v465 = vunpack.c.l.b16 %v446
    %v466 = vunpack.c.h.b16 %v446
    %v467 = vunpack.c.l.b16 %v447
    %v468 = vunpack.c.h.b16 %v447
    %v469 = vunpack.c.l.b16 %v448
    %v470 = vunpack.c.h.b16 %v448
    %v471 = vunpack.c.l.b16 %v449
    %v472 = vunpack.c.h.b16 %v449
    %v473 = vunpack.c.l.b16 %v450
    %v474 = vunpack.c.h.b16 %v450
    %v475 = vpack.c.b16 %v459, %v459
    %v476 = vpack.c.b16 %v460, %v460
    %v477 = vpack.c.b16 %v461, %v461
    %v478 = vpack.c.b16 %v462, %v462
    %v479 = vpack.c.b16 %v463, %v463
    %v480 = vpack.c.b16 %v464, %v464
    %v481 = vpack.c.b16 %v465, %v465
    %v482 = vpack.c.b16 %v466, %v466
    %v483 = vpack.c.b16 %v467, %v467
    %v484 = vpack.c.b16 %v468, %v468
    %v485 = vpack.c.b16 %v469, %v469
    %v486 = vpack.c.b16 %v470, %v470
    %v487 = vpack.c.b16 %v471, %v471
    %v488 = vpack.c.b16 %v472, %v472
    %v489 = vpack.c.b16 %v473, %v473
    %v490 = vpack.c.b16 %v474, %v474
    %507 = vst [vmem:[%s5] sm:$0xf] %v475
    %508 = vst [vmem:[%s5 + $0x4] sm:$0xf] %v476
    %509 = vst [vmem:[%s5 + $0x8] sm:$0xf] %v477
    %510 = vst [vmem:[%s5 + $0xc] sm:$0xf] %v478
    %511 = vst [vmem:[%s5 + $0x10] sm:$0xf] %v479
    %512 = vst [vmem:[%s5 + $0x14] sm:$0xf] %v480
    %513 = vst [vmem:[%s5 + $0x18] sm:$0xf] %v481
    %514 = vst [vmem:[%s5 + $0x1c] sm:$0xf] %v482
    %515 = vst [vmem:[%s5 + $0x20] sm:$0xf] %v483
    %516 = vst [vmem:[%s5 + $0x24] sm:$0xf] %v484
    %517 = vst [vmem:[%s5 + $0x28] sm:$0xf] %v485
    %518 = vst [vmem:[%s5 + $0x2c] sm:$0xf] %v486
    %519 = vst [vmem:[%s5 + $0x30] sm:$0xf] %v487
    %520 = vst [vmem:[%s5 + $0x34] sm:$0xf] %v488
    %521 = vst [vmem:[%s5 + $0x38] sm:$0xf] %v489
    %522 = vst [vmem:[%s5 + $0x3c] sm:$0xf] %v490
  $region29: #{_lambda_.59} parent=0 // pred_fallthru
    _
  // Predicated region
  $region30: #{_lambda_.59} parent=0 // pred_check
    _
  $region31: #{_lambda_.59} parent=0 // pred_check_branch
    %524 = sbr.rel (0) target = $region33
  $region32: #{_lambda_.59} parent=0 // pred_region
    _
  $region33: #{_lambda_.59} parent=0 // pred_fallthru
    _
  // Predicated region
  $region34: #{_lambda_.59} parent=0 // pred_check
    _
  $region35: #{_lambda_.59} parent=0 // pred_check_branch
    %526 = sbr.rel (0) target = $region37
  $region36: #{_lambda_.59} parent=0 // pred_region
    _
  $region37: #{_lambda_.59} parent=0 // pred_fallthru
    _

// kernel: _lambda_.57
$region0: #{_lambda_.57}
  #allocation0 [shape = 'u32[]', space=smem, size = 0x4, offset = 0x4, fixed_abs, tag = 'smem constant byte address 0x4 - core index']
  #allocation1 [shape = 'u32[144,128]{1,0:T(1,128)}', space=vmem, size = 0x12000, scoped, tag = 'internal scratch']
  #allocation2 [shape = 'f32[128,128]{1,0:T(8,128)}', space=vmem, size = 0x10000, scoped, tag = 'scratch operand']
  %s0 = inlined_call_operand.vmem [shape: bf16[128,1152], index: 0, kind: input, shape index: {}]
  %s1 = inlined_call_operand.vmem [shape: bf16[1152,128], index: 1, kind: input, shape index: {}]
  %s2 = inlined_call_operand.vmem [shape: f32[1,128], index: 2, kind: input, shape index: {}]
  %s3 = inlined_call_operand.vmem [shape: f32[1,128], index: 3, kind: input, shape index: {}]
  %s4 = inlined_call_operand.vmem [shape: bf16[128,128], index: 4, kind: output, shape index: {}]
  %s5 = sld [smem:[#allocation0]]
  $region34: #{_lambda_.57} parent=0
    _
  %s7 = ssub.s32 1, %s5
  %s8 = scalar_select 0, %s7, %s5
  // Predicated region
  $region2: #{_lambda_.57} parent=0 // pred_check
    _
  $region3: #{_lambda_.57} parent=0 // pred_check_branch
    %10 = sbr.rel (0) target = $region5
  $region4: #{_lambda_.57} parent=0 // pred_region
    _
  $region5: #{_lambda_.57} parent=0 // pred_fallthru
    _
  // Predicated region
  $region6: #{_lambda_.57} parent=0 // pred_check
    _
  $region7: #{_lambda_.57} parent=0 // pred_check_branch
    %12 = sbr.rel (0) target = $region9
  $region8: #{_lambda_.57} parent=0 // pred_region
    _
  $region9: #{_lambda_.57} parent=0 // pred_fallthru
    _
  // Predicated region
  $region10: #{_lambda_.57} parent=0 // pred_check
    _
  $region11: #{_lambda_.57} parent=0 // pred_check_branch
    %14 = sbr.rel (0) target = $region13
  $region12: #{_lambda_.57} parent=0 // pred_region
    _
  $region13: #{_lambda_.57} parent=0 // pred_fallthru
    _
  // Predicated region
  $region14: #{_lambda_.57} parent=0 // pred_check
    _
  $region15: #{_lambda_.57} parent=0 // pred_check_branch
    %16 = sbr.rel (0) target = $region17
  $region16: #{_lambda_.57} parent=0 // pred_region
    _
  $region17: #{_lambda_.57} parent=0 // pred_fallthru
    _
  %p18 = scmp.eq.s32.totalorder 0, 0
  // Predicated region
  $region18: #{_lambda_.57} parent=0 // pred_check
    %p19 = pneg %p18
  $region19: #{_lambda_.57} parent=0 // pred_check_branch
    %21 = sbr.rel (%p19) target = $region21
  $region20: #{_lambda_.57} parent=0 // pred_region
    %22 = vst [vmem:[#allocation2] sm:$0xff] 0.0
    %23 = vst [vmem:[#allocation2 + $0x8] sm:$0xff] 0.0
    %24 = vst [vmem:[#allocation2 + $0x10] sm:$0xff] 0.0
    %25 = vst [vmem:[#allocation2 + $0x18] sm:$0xff] 0.0
    %26 = vst [vmem:[#allocation2 + $0x20] sm:$0xff] 0.0
    %27 = vst [vmem:[#allocation2 + $0x28] sm:$0xff] 0.0
    %28 = vst [vmem:[#allocation2 + $0x30] sm:$0xff] 0.0
    %29 = vst [vmem:[#allocation2 + $0x38] sm:$0xff] 0.0
    %30 = vst [vmem:[#allocation2 + $0x40] sm:$0xff] 0.0
    %31 = vst [vmem:[#allocation2 + $0x48] sm:$0xff] 0.0
    %32 = vst [vmem:[#allocation2 + $0x50] sm:$0xff] 0.0
    %33 = vst [vmem:[#allocation2 + $0x58] sm:$0xff] 0.0
    %34 = vst [vmem:[#allocation2 + $0x60] sm:$0xff] 0.0
    %35 = vst [vmem:[#allocation2 + $0x68] sm:$0xff] 0.0
    %36 = vst [vmem:[#allocation2 + $0x70] sm:$0xff] 0.0
    %37 = vst [vmem:[#allocation2 + $0x78] sm:$0xff] 0.0
  $region21: #{_lambda_.57} parent=0 // pred_fallthru
    _
  %v38 = vld [vmem:[#allocation2] sm:$0xff]
  %v39 = vld [vmem:[#allocation2 + $0x8] sm:$0xff]
  %v40 = vld [vmem:[#allocation2 + $0x10] sm:$0xff]
  %v41 = vld [vmem:[#allocation2 + $0x18] sm:$0xff]
  %v42 = vld [vmem:[#allocation2 + $0x20] sm:$0xff]
  %v43 = vld [vmem:[#allocation2 + $0x28] sm:$0xff]
  %v44 = vld [vmem:[#allocation2 + $0x30] sm:$0xff]
  %v45 = vld [vmem:[#allocation2 + $0x38] sm:$0xff]
  %v46 = vld [vmem:[#allocation2 + $0x40] sm:$0xff]
  %v47 = vld [vmem:[#allocation2 + $0x48] sm:$0xff]
  %v48 = vld [vmem:[#allocation2 + $0x50] sm:$0xff]
  %v49 = vld [vmem:[#allocation2 + $0x58] sm:$0xff]
  %v50 = vld [vmem:[#allocation2 + $0x60] sm:$0xff]
  %v51 = vld [vmem:[#allocation2 + $0x68] sm:$0xff]
  %v52 = vld [vmem:[#allocation2 + $0x70] sm:$0xff]
  %v53 = vld [vmem:[#allocation2 + $0x78] sm:$0xff]
  %v54 = vld [vmem:[%s0] sm:$0xff]
  %v55 = vld [vmem:[%s0 + $0x8] sm:$0xff]
  %v56 = vld [vmem:[%s0 + $0x10] sm:$0xff]
  %v57 = vld [vmem:[%s0 + $0x18] sm:$0xff]
  %v58 = vld [vmem:[%s0 + $0x20] sm:$0xf]
  %v59 = vld [vmem:[%s0 + $0x24] sm:$0xff]
  %v60 = vld [vmem:[%s0 + $0x2c] sm:$0xff]
  %v61 = vld [vmem:[%s0 + $0x34] sm:$0xff]
  %v62 = vld [vmem:[%s0 + $0x3c] sm:$0xff]
  %v63 = vld [vmem:[%s0 + $0x44] sm:$0xf]
  %v64 = vld [vmem:[%s0 + $0x48] sm:$0xff]
  %v65 = vld [vmem:[%s0 + $0x50] sm:$0xff]
  %v66 = vld [vmem:[%s0 + $0x58] sm:$0xff]
  %v67 = vld [vmem:[%s0 + $0x60] sm:$0xff]
  %v68 = vld [vmem:[%s0 + $0x68] sm:$0xf]
  %v69 = vld [vmem:[%s0 + $0x6c] sm:$0xff]
  %v70 = vld [vmem:[%s0 + $0x74] sm:$0xff]
  %v71 = vld [vmem:[%s0 + $0x7c] sm:$0xff]
  %v72 = vld [vmem:[%s0 + $0x84] sm:$0xff]
  %v73 = vld [vmem:[%s0 + $0x8c] sm:$0xf]
  %v74 = vld [vmem:[%s0 + $0x90] sm:$0xff]
  %v75 = vld [vmem:[%s0 + $0x98] sm:$0xff]
  %v76 = vld [vmem:[%s0 + $0xa0] sm:$0xff]
  %v77 = vld [vmem:[%s0 + $0xa8] sm:$0xff]
  %v78 = vld [vmem:[%s0 + $0xb0] sm:$0xf]
  %v79 = vld [vmem:[%s0 + $0xb4] sm:$0xff]
  %v80 = vld [vmem:[%s0 + $0xbc] sm:$0xff]
  %v81 = vld [vmem:[%s0 + $0xc4] sm:$0xff]
  %v82 = vld [vmem:[%s0 + $0xcc] sm:$0xff]
  %v83 = vld [vmem:[%s0 + $0xd4] sm:$0xf]
  %v84 = vld [vmem:[%s0 + $0xd8] sm:$0xff]
  %v85 = vld [vmem:[%s0 + $0xe0] sm:$0xff]
  %v86 = vld [vmem:[%s0 + $0xe8] sm:$0xff]
  %v87 = vld [vmem:[%s0 + $0xf0] sm:$0xff]
  %v88 = vld [vmem:[%s0 + $0xf8] sm:$0xf]
  %v89 = vld [vmem:[%s0 + $0xfc] sm:$0xff]
  %v90 = vld [vmem:[%s0 + $0x104] sm:$0xff]
  %v91 = vld [vmem:[%s0 + $0x10c] sm:$0xff]
  %v92 = vld [vmem:[%s0 + $0x114] sm:$0xff]
  %v93 = vld [vmem:[%s0 + $0x11c] sm:$0xf]
  %v94 = vld [vmem:[%s0 + $0x120] sm:$0xff]
  %v95 = vld [vmem:[%s0 + $0x128] sm:$0xff]
  %v96 = vld [vmem:[%s0 + $0x130] sm:$0xff]
  %v97 = vld [vmem:[%s0 + $0x138] sm:$0xff]
  %v98 = vld [vmem:[%s0 + $0x140] sm:$0xf]
  %v99 = vld [vmem:[%s0 + $0x144] sm:$0xff]
  %v100 = vld [vmem:[%s0 + $0x14c] sm:$0xff]
  %v101 = vld [vmem:[%s0 + $0x154] sm:$0xff]
  %v102 = vld [vmem:[%s0 + $0x15c] sm:$0xff]
  %v103 = vld [vmem:[%s0 + $0x164] sm:$0xf]
  %v104 = vld [vmem:[%s0 + $0x168] sm:$0xff]
  %v105 = vld [vmem:[%s0 + $0x170] sm:$0xff]
  %v106 = vld [vmem:[%s0 + $0x178] sm:$0xff]
  %v107 = vld [vmem:[%s0 + $0x180] sm:$0xff]
  %v108 = vld [vmem:[%s0 + $0x188] sm:$0xf]
  %v109 = vld [vmem:[%s0 + $0x18c] sm:$0xff]
  %v110 = vld [vmem:[%s0 + $0x194] sm:$0xff]
  %v111 = vld [vmem:[%s0 + $0x19c] sm:$0xff]
  %v112 = vld [vmem:[%s0 + $0x1a4] sm:$0xff]
  %v113 = vld [vmem:[%s0 + $0x1ac] sm:$0xf]
  %v114 = vld [vmem:[%s0 + $0x1b0] sm:$0xff]
  %v115 = vld [vmem:[%s0 + $0x1b8] sm:$0xff]
  %v116 = vld [vmem:[%s0 + $0x1c0] sm:$0xff]
  %v117 = vld [vmem:[%s0 + $0x1c8] sm:$0xff]
  %v118 = vld [vmem:[%s0 + $0x1d0] sm:$0xf]
  %v119 = vld [vmem:[%s0 + $0x1d4] sm:$0xff]
  %v120 = vld [vmem:[%s0 + $0x1dc] sm:$0xff]
  %v121 = vld [vmem:[%s0 + $0x1e4] sm:$0xff]
  %v122 = vld [vmem:[%s0 + $0x1ec] sm:$0xff]
  %v123 = vld [vmem:[%s0 + $0x1f4] sm:$0xf]
  %v124 = vld [vmem:[%s0 + $0x1f8] sm:$0xff]
  %v125 = vld [vmem:[%s0 + $0x200] sm:$0xff]
  %v126 = vld [vmem:[%s0 + $0x208] sm:$0xff]
  %v127 = vld [vmem:[%s0 + $0x210] sm:$0xff]
  %v128 = vld [vmem:[%s0 + $0x218] sm:$0xf]
  %v129 = vld [vmem:[%s0 + $0x21c] sm:$0xff]
  %v130 = vld [vmem:[%s0 + $0x224] sm:$0xff]
  %v131 = vld [vmem:[%s0 + $0x22c] sm:$0xff]
  %v132 = vld [vmem:[%s0 + $0x234] sm:$0xff]
  %v133 = vld [vmem:[%s0 + $0x23c] sm:$0xf]
  %v134 = vld [vmem:[%s1] sm:$0xf]
  %v135 = vld [vmem:[%s1 + $0x4] sm:$0xf]
  %v136 = vld [vmem:[%s1 + $0x8] sm:$0xf]
  %v137 = vld [vmem:[%s1 + $0xc] sm:$0xf]
  %v138 = vld [vmem:[%s1 + $0x10] sm:$0xf]
  %v139 = vld [vmem:[%s1 + $0x14] sm:$0xf]
  %v140 = vld [vmem:[%s1 + $0x18] sm:$0xf]
  %v141 = vld [vmem:[%s1 + $0x1c] sm:$0xf]
  %v142 = vld [vmem:[%s1 + $0x20] sm:$0xf]
  %v143 = vld [vmem:[%s1 + $0x24] sm:$0xf]
  %v144 = vld [vmem:[%s1 + $0x28] sm:$0xf]
  %v145 = vld [vmem:[%s1 + $0x2c] sm:$0xf]
  %v146 = vld [vmem:[%s1 + $0x30] sm:$0xf]
  %v147 = vld [vmem:[%s1 + $0x34] sm:$0xf]
  %v148 = vld [vmem:[%s1 + $0x38] sm:$0xf]
  %v149 = vld [vmem:[%s1 + $0x3c] sm:$0xf]
  %v150 = vld [vmem:[%s1 + $0x40] sm:$0xf]
  %v151 = vld [vmem:[%s1 + $0x44] sm:$0xf]
  %v152 = vld [vmem:[%s1 + $0x48] sm:$0xf]
  %v153 = vld [vmem:[%s1 + $0x4c] sm:$0xf]
  %v154 = vld [vmem:[%s1 + $0x50] sm:$0xf]
  %v155 = vld [vmem:[%s1 + $0x54] sm:$0xf]
  %v156 = vld [vmem:[%s1 + $0x58] sm:$0xf]
  %v157 = vld [vmem:[%s1 + $0x5c] sm:$0xf]
  %v158 = vld [vmem:[%s1 + $0x60] sm:$0xf]
  %v159 = vld [vmem:[%s1 + $0x64] sm:$0xf]
  %v160 = vld [vmem:[%s1 + $0x68] sm:$0xf]
  %v161 = vld [vmem:[%s1 + $0x6c] sm:$0xf]
  %v162 = vld [vmem:[%s1 + $0x70] sm:$0xf]
  %v163 = vld [vmem:[%s1 + $0x74] sm:$0xf]
  %v164 = vld [vmem:[%s1 + $0x78] sm:$0xf]
  %v165 = vld [vmem:[%s1 + $0x7c] sm:$0xf]
  %v166 = vld [vmem:[%s1 + $0x80] sm:$0xf]
  %v167 = vld [vmem:[%s1 + $0x84] sm:$0xf]
  %v168 = vld [vmem:[%s1 + $0x88] sm:$0xf]
  %v169 = vld [vmem:[%s1 + $0x8c] sm:$0xf]
  %v170 = vld [vmem:[%s1 + $0x90] sm:$0xf]
  %v171 = vld [vmem:[%s1 + $0x94] sm:$0xf]
  %v172 = vld [vmem:[%s1 + $0x98] sm:$0xf]
  %v173 = vld [vmem:[%s1 + $0x9c] sm:$0xf]
  %v174 = vld [vmem:[%s1 + $0xa0] sm:$0xf]
  %v175 = vld [vmem:[%s1 + $0xa4] sm:$0xf]
  %v176 = vld [vmem:[%s1 + $0xa8] sm:$0xf]
  %v177 = vld [vmem:[%s1 + $0xac] sm:$0xf]
  %v178 = vld [vmem:[%s1 + $0xb0] sm:$0xf]
  %v179 = vld [vmem:[%s1 + $0xb4] sm:$0xf]
  %v180 = vld [vmem:[%s1 + $0xb8] sm:$0xf]
  %v181 = vld [vmem:[%s1 + $0xbc] sm:$0xf]
  %v182 = vld [vmem:[%s1 + $0xc0] sm:$0xf]
  %v183 = vld [vmem:[%s1 + $0xc4] sm:$0xf]
  %v184 = vld [vmem:[%s1 + $0xc8] sm:$0xf]
  %v185 = vld [vmem:[%s1 + $0xcc] sm:$0xf]
  %v186 = vld [vmem:[%s1 + $0xd0] sm:$0xf]
  %v187 = vld [vmem:[%s1 + $0xd4] sm:$0xf]
  %v188 = vld [vmem:[%s1 + $0xd8] sm:$0xf]
  %v189 = vld [vmem:[%s1 + $0xdc] sm:$0xf]
  %v190 = vld [vmem:[%s1 + $0xe0] sm:$0xf]
  %v191 = vld [vmem:[%s1 + $0xe4] sm:$0xf]
  %v192 = vld [vmem:[%s1 + $0xe8] sm:$0xf]
  %v193 = vld [vmem:[%s1 + $0xec] sm:$0xf]
  %v194 = vld [vmem:[%s1 + $0xf0] sm:$0xf]
  %v195 = vld [vmem:[%s1 + $0xf4] sm:$0xf]
  %v196 = vld [vmem:[%s1 + $0xf8] sm:$0xf]
  %v197 = vld [vmem:[%s1 + $0xfc] sm:$0xf]
  %v198 = vld [vmem:[%s1 + $0x100] sm:$0xf]
  %v199 = vld [vmem:[%s1 + $0x104] sm:$0xf]
  %v200 = vld [vmem:[%s1 + $0x108] sm:$0xf]
  %v201 = vld [vmem:[%s1 + $0x10c] sm:$0xf]
  %v202 = vld [vmem:[%s1 + $0x110] sm:$0xf]
  %v203 = vld [vmem:[%s1 + $0x114] sm:$0xf]
  %v204 = vld [vmem:[%s1 + $0x118] sm:$0xf]
  %v205 = vld [vmem:[%s1 + $0x11c] sm:$0xf]
  %v206 = vld [vmem:[%s1 + $0x120] sm:$0xf]
  %v207 = vld [vmem:[%s1 + $0x124] sm:$0xf]
  %v208 = vld [vmem:[%s1 + $0x128] sm:$0xf]
  %v209 = vld [vmem:[%s1 + $0x12c] sm:$0xf]
  %v210 = vld [vmem:[%s1 + $0x130] sm:$0xf]
  %v211 = vld [vmem:[%s1 + $0x134] sm:$0xf]
  %v212 = vld [vmem:[%s1 + $0x138] sm:$0xf]
  %v213 = vld [vmem:[%s1 + $0x13c] sm:$0xf]
  %v214 = vld [vmem:[%s1 + $0x140] sm:$0xf]
  %v215 = vld [vmem:[%s1 + $0x144] sm:$0xf]
  %v216 = vld [vmem:[%s1 + $0x148] sm:$0xf]
  %v217 = vld [vmem:[%s1 + $0x14c] sm:$0xf]
  %v218 = vld [vmem:[%s1 + $0x150] sm:$0xf]
  %v219 = vld [vmem:[%s1 + $0x154] sm:$0xf]
  %v220 = vld [vmem:[%s1 + $0x158] sm:$0xf]
  %v221 = vld [vmem:[%s1 + $0x15c] sm:$0xf]
  %v222 = vld [vmem:[%s1 + $0x160] sm:$0xf]
  %v223 = vld [vmem:[%s1 + $0x164] sm:$0xf]
  %v224 = vld [vmem:[%s1 + $0x168] sm:$0xf]
  %v225 = vld [vmem:[%s1 + $0x16c] sm:$0xf]
  %v226 = vld [vmem:[%s1 + $0x170] sm:$0xf]
  %v227 = vld [vmem:[%s1 + $0x174] sm:$0xf]
  %v228 = vld [vmem:[%s1 + $0x178] sm:$0xf]
  %v229 = vld [vmem:[%s1 + $0x17c] sm:$0xf]
  %v230 = vld [vmem:[%s1 + $0x180] sm:$0xf]
  %v231 = vld [vmem:[%s1 + $0x184] sm:$0xf]
  %v232 = vld [vmem:[%s1 + $0x188] sm:$0xf]
  %v233 = vld [vmem:[%s1 + $0x18c] sm:$0xf]
  %v234 = vld [vmem:[%s1 + $0x190] sm:$0xf]
  %v235 = vld [vmem:[%s1 + $0x194] sm:$0xf]
  %v236 = vld [vmem:[%s1 + $0x198] sm:$0xf]
  %v237 = vld [vmem:[%s1 + $0x19c] sm:$0xf]
  %v238 = vld [vmem:[%s1 + $0x1a0] sm:$0xf]
  %v239 = vld [vmem:[%s1 + $0x1a4] sm:$0xf]
  %v240 = vld [vmem:[%s1 + $0x1a8] sm:$0xf]
  %v241 = vld [vmem:[%s1 + $0x1ac] sm:$0xf]
  %v242 = vld [vmem:[%s1 + $0x1b0] sm:$0xf]
  %v243 = vld [vmem:[%s1 + $0x1b4] sm:$0xf]
  %v244 = vld [vmem:[%s1 + $0x1b8] sm:$0xf]
  %v245 = vld [vmem:[%s1 + $0x1bc] sm:$0xf]
  %v246 = vld [vmem:[%s1 + $0x1c0] sm:$0xf]
  %v247 = vld [vmem:[%s1 + $0x1c4] sm:$0xf]
  %v248 = vld [vmem:[%s1 + $0x1c8] sm:$0xf]
  %v249 = vld [vmem:[%s1 + $0x1cc] sm:$0xf]
  %v250 = vld [vmem:[%s1 + $0x1d0] sm:$0xf]
  %v251 = vld [vmem:[%s1 + $0x1d4] sm:$0xf]
  %v252 = vld [vmem:[%s1 + $0x1d8] sm:$0xf]
  %v253 = vld [vmem:[%s1 + $0x1dc] sm:$0xf]
  %v254 = vld [vmem:[%s1 + $0x1e0] sm:$0xf]
  %v255 = vld [vmem:[%s1 + $0x1e4] sm:$0xf]
  %v256 = vld [vmem:[%s1 + $0x1e8] sm:$0xf]
  %v257 = vld [vmem:[%s1 + $0x1ec] sm:$0xf]
  %v258 = vld [vmem:[%s1 + $0x1f0] sm:$0xf]
  %v259 = vld [vmem:[%s1 + $0x1f4] sm:$0xf]
  %v260 = vld [vmem:[%s1 + $0x1f8] sm:$0xf]
  %v261 = vld [vmem:[%s1 + $0x1fc] sm:$0xf]
  %v262 = vld [vmem:[%s1 + $0x200] sm:$0xf]
  %v263 = vld [vmem:[%s1 + $0x204] sm:$0xf]
  %v264 = vld [vmem:[%s1 + $0x208] sm:$0xf]
  %v265 = vld [vmem:[%s1 + $0x20c] sm:$0xf]
  %v266 = vld [vmem:[%s1 + $0x210] sm:$0xf]
  %v267 = vld [vmem:[%s1 + $0x214] sm:$0xf]
  %v268 = vld [vmem:[%s1 + $0x218] sm:$0xf]
  %v269 = vld [vmem:[%s1 + $0x21c] sm:$0xf]
  %v270 = vld [vmem:[%s1 + $0x220] sm:$0xf]
  %v271 = vld [vmem:[%s1 + $0x224] sm:$0xf]
  %v272 = vld [vmem:[%s1 + $0x228] sm:$0xf]
  %v273 = vld [vmem:[%s1 + $0x22c] sm:$0xf]
  %v274 = vld [vmem:[%s1 + $0x230] sm:$0xf]
  %v275 = vld [vmem:[%s1 + $0x234] sm:$0xf]
  %v276 = vld [vmem:[%s1 + $0x238] sm:$0xf]
  %v277 = vld [vmem:[%s1 + $0x23c] sm:$0xf]
  %v358 = vunpack.c.l.b16 %v54
  %v359 = vunpack.c.h.b16 %v54
  %v360 = vunpack.c.l.b16 %v55
  %v361 = vunpack.c.h.b16 %v55
  %v362 = vunpack.c.l.b16 %v56
  %v363 = vunpack.c.h.b16 %v56
  %v364 = vunpack.c.l.b16 %v57
  %v365 = vunpack.c.h.b16 %v57
  %v366 = vunpack.c.l.b16 %v58
  %v367 = vunpack.c.l.b16 %v59
  %v368 = vunpack.c.h.b16 %v59
  %v369 = vunpack.c.l.b16 %v60
  %v370 = vunpack.c.h.b16 %v60
  %v371 = vunpack.c.l.b16 %v61
  %v372 = vunpack.c.h.b16 %v61
  %v373 = vunpack.c.l.b16 %v62
  %v374 = vunpack.c.h.b16 %v62
  %v375 = vunpack.c.l.b16 %v63
  %v376 = vunpack.c.l.b16 %v64
  %v377 = vunpack.c.h.b16 %v64
  %v378 = vunpack.c.l.b16 %v65
  %v379 = vunpack.c.h.b16 %v65
  %v380 = vunpack.c.l.b16 %v66
  %v381 = vunpack.c.h.b16 %v66
  %v382 = vunpack.c.l.b16 %v67
  %v383 = vunpack.c.h.b16 %v67
  %v384 = vunpack.c.l.b16 %v68
  %v385 = vunpack.c.l.b16 %v69
  %v386 = vunpack.c.h.b16 %v69
  %v387 = vunpack.c.l.b16 %v70
  %v388 = vunpack.c.h.b16 %v70
  %v389 = vunpack.c.l.b16 %v71
  %v390 = vunpack.c.h.b16 %v71
  %v391 = vunpack.c.l.b16 %v72
  %v392 = vunpack.c.h.b16 %v72
  %v393 = vunpack.c.l.b16 %v73
  %v394 = vunpack.c.l.b16 %v74
  %v395 = vunpack.c.h.b16 %v74
  %v396 = vunpack.c.l.b16 %v75
  %v397 = vunpack.c.h.b16 %v75
  %v398 = vunpack.c.l.b16 %v76
  %v399 = vunpack.c.h.b16 %v76
  %v400 = vunpack.c.l.b16 %v77
  %v401 = vunpack.c.h.b16 %v77
  %v402 = vunpack.c.l.b16 %v78
  %v403 = vunpack.c.l.b16 %v79
  %v404 = vunpack.c.h.b16 %v79
  %v405 = vunpack.c.l.b16 %v80
  %v406 = vunpack.c.h.b16 %v80
  %v407 = vunpack.c.l.b16 %v81
  %v408 = vunpack.c.h.b16 %v81
  %v409 = vunpack.c.l.b16 %v82
  %v410 = vunpack.c.h.b16 %v82
  %v411 = vunpack.c.l.b16 %v83
  %v412 = vunpack.c.l.b16 %v84
  %v413 = vunpack.c.h.b16 %v84
  %v414 = vunpack.c.l.b16 %v85
  %v415 = vunpack.c.h.b16 %v85
  %v416 = vunpack.c.l.b16 %v86
  %v417 = vunpack.c.h.b16 %v86
  %v418 = vunpack.c.l.b16 %v87
  %v419 = vunpack.c.h.b16 %v87
  %v420 = vunpack.c.l.b16 %v88
  %v421 = vunpack.c.l.b16 %v89
  %v422 = vunpack.c.h.b16 %v89
  %v423 = vunpack.c.l.b16 %v90
  %v424 = vunpack.c.h.b16 %v90
  %v425 = vunpack.c.l.b16 %v91
  %v426 = vunpack.c.h.b16 %v91
  %v427 = vunpack.c.l.b16 %v92
  %v428 = vunpack.c.h.b16 %v92
  %v429 = vunpack.c.l.b16 %v93
  %v430 = vunpack.c.l.b16 %v94
  %v431 = vunpack.c.h.b16 %v94
  %v432 = vunpack.c.l.b16 %v95
  %v433 = vunpack.c.h.b16 %v95
  %v434 = vunpack.c.l.b16 %v96
  %v435 = vunpack.c.h.b16 %v96
  %v436 = vunpack.c.l.b16 %v97
  %v437 = vunpack.c.h.b16 %v97
  %v438 = vunpack.c.l.b16 %v98
  %v439 = vunpack.c.l.b16 %v99
  %v440 = vunpack.c.h.b16 %v99
  %v441 = vunpack.c.l.b16 %v100
  %v442 = vunpack.c.h.b16 %v100
  %v443 = vunpack.c.l.b16 %v101
  %v444 = vunpack.c.h.b16 %v101
  %v445 = vunpack.c.l.b16 %v102
  %v446 = vunpack.c.h.b16 %v102
  %v447 = vunpack.c.l.b16 %v103
  %v448 = vunpack.c.l.b16 %v104
  %v449 = vunpack.c.h.b16 %v104
  %v450 = vunpack.c.l.b16 %v105
  %v451 = vunpack.c.h.b16 %v105
  %v452 = vunpack.c.l.b16 %v106
  %v453 = vunpack.c.h.b16 %v106
  %v454 = vunpack.c.l.b16 %v107
  %v455 = vunpack.c.h.b16 %v107
  %v456 = vunpack.c.l.b16 %v108
  %v457 = vunpack.c.l.b16 %v109
  %v458 = vunpack.c.h.b16 %v109
  %v459 = vunpack.c.l.b16 %v110
  %v460 = vunpack.c.h.b16 %v110
  %v461 = vunpack.c.l.b16 %v111
  %v462 = vunpack.c.h.b16 %v111
  %v463 = vunpack.c.l.b16 %v112
  %v464 = vunpack.c.h.b16 %v112
  %v465 = vunpack.c.l.b16 %v113
  %v466 = vunpack.c.l.b16 %v114
  %v467 = vunpack.c.h.b16 %v114
  %v468 = vunpack.c.l.b16 %v115
  %v469 = vunpack.c.h.b16 %v115
  %v470 = vunpack.c.l.b16 %v116
  %v471 = vunpack.c.h.b16 %v116
  %v472 = vunpack.c.l.b16 %v117
  %v473 = vunpack.c.h.b16 %v117
  %v474 = vunpack.c.l.b16 %v118
  %v475 = vunpack.c.l.b16 %v119
  %v476 = vunpack.c.h.b16 %v119
  %v477 = vunpack.c.l.b16 %v120
  %v478 = vunpack.c.h.b16 %v120
  %v479 = vunpack.c.l.b16 %v121
  %v480 = vunpack.c.h.b16 %v121
  %v481 = vunpack.c.l.b16 %v122
  %v482 = vunpack.c.h.b16 %v122
  %v483 = vunpack.c.l.b16 %v123
  %v484 = vunpack.c.l.b16 %v124
  %v485 = vunpack.c.h.b16 %v124
  %v486 = vunpack.c.l.b16 %v125
  %v487 = vunpack.c.h.b16 %v125
  %v488 = vunpack.c.l.b16 %v126
  %v489 = vunpack.c.h.b16 %v126
  %v490 = vunpack.c.l.b16 %v127
  %v491 = vunpack.c.h.b16 %v127
  %v492 = vunpack.c.l.b16 %v128
  %v493 = vunpack.c.l.b16 %v129
  %v494 = vunpack.c.h.b16 %v129
  %v495 = vunpack.c.l.b16 %v130
  %v496 = vunpack.c.h.b16 %v130
  %v497 = vunpack.c.l.b16 %v131
  %v498 = vunpack.c.h.b16 %v131
  %v499 = vunpack.c.l.b16 %v132
  %v500 = vunpack.c.h.b16 %v132
  %v501 = vunpack.c.l.b16 %v133
  %v502 = vpack.c.b16 %v367, %v358
  %v503 = vpack.c.b16 %v368, %v359
  %v504 = vpack.c.b16 %v369, %v360
  %v505 = vpack.c.b16 %v370, %v361
  %v506 = vpack.c.b16 %v371, %v362
  %v507 = vpack.c.b16 %v372, %v363
  %v508 = vpack.c.b16 %v373, %v364
  %v509 = vpack.c.b16 %v374, %v365
  %v510 = vpack.c.b16 %v375, %v366
  %v511 = vpack.c.b16 %v385, %v376
  %v512 = vpack.c.b16 %v386, %v377
  %v513 = vpack.c.b16 %v387, %v378
  %v514 = vpack.c.b16 %v388, %v379
  %v515 = vpack.c.b16 %v389, %v380
  %v516 = vpack.c.b16 %v390, %v381
  %v517 = vpack.c.b16 %v391, %v382
  %v518 = vpack.c.b16 %v392, %v383
  %v519 = vpack.c.b16 %v393, %v384
  %v520 = vpack.c.b16 %v403, %v394
  %v521 = vpack.c.b16 %v404, %v395
  %v522 = vpack.c.b16 %v405, %v396
  %v523 = vpack.c.b16 %v406, %v397
  %v524 = vpack.c.b16 %v407, %v398
  %v525 = vpack.c.b16 %v408, %v399
  %v526 = vpack.c.b16 %v409, %v400
  %v527 = vpack.c.b16 %v410, %v401
  %v528 = vpack.c.b16 %v411, %v402
  %v529 = vpack.c.b16 %v421, %v412
  %v530 = vpack.c.b16 %v422, %v413
  %v531 = vpack.c.b16 %v423, %v414
  %v532 = vpack.c.b16 %v424, %v415
  %v533 = vpack.c.b16 %v425, %v416
  %v534 = vpack.c.b16 %v426, %v417
  %v535 = vpack.c.b16 %v427, %v418
  %v536 = vpack.c.b16 %v428, %v419
  %v537 = vpack.c.b16 %v429, %v420
  %v538 = vpack.c.b16 %v439, %v430
  %v539 = vpack.c.b16 %v440, %v431
  %v540 = vpack.c.b16 %v441, %v432
  %v541 = vpack.c.b16 %v442, %v433
  %v542 = vpack.c.b16 %v443, %v434
  %v543 = vpack.c.b16 %v444, %v435
  %v544 = vpack.c.b16 %v445, %v436
  %v545 = vpack.c.b16 %v446, %v437
  %v546 = vpack.c.b16 %v447, %v438
  %v547 = vpack.c.b16 %v457, %v448
  %v548 = vpack.c.b16 %v458, %v449
  %v549 = vpack.c.b16 %v459, %v450
  %v550 = vpack.c.b16 %v460, %v451
  %v551 = vpack.c.b16 %v461, %v452
  %v552 = vpack.c.b16 %v462, %v453
  %v553 = vpack.c.b16 %v463, %v454
  %v554 = vpack.c.b16 %v464, %v455
  %v555 = vpack.c.b16 %v465, %v456
  %v556 = vpack.c.b16 %v475, %v466
  %v557 = vpack.c.b16 %v476, %v467
  %v558 = vpack.c.b16 %v477, %v468
  %v559 = vpack.c.b16 %v478, %v469
  %v560 = vpack.c.b16 %v479, %v470
  %v561 = vpack.c.b16 %v480, %v471
  %v562 = vpack.c.b16 %v481, %v472
  %v563 = vpack.c.b16 %v482, %v473
  %v564 = vpack.c.b16 %v483, %v474
  %v565 = vpack.c.b16 %v493, %v484
  %v566 = vpack.c.b16 %v494, %v485
  %v567 = vpack.c.b16 %v495, %v486
  %v568 = vpack.c.b16 %v496, %v487
  %v569 = vpack.c.b16 %v497, %v488
  %v570 = vpack.c.b16 %v498, %v489
  %v571 = vpack.c.b16 %v499, %v490
  %v572 = vpack.c.b16 %v500, %v491
  %v573 = vpack.c.b16 %v501, %v492
  %v790 = vunpack.c.l.b16 %v134
  %v791 = vunpack.c.l.b16 %v135
  %v792 = vunpack.c.l.b16 %v136
  %v793 = vunpack.c.l.b16 %v137
  %v794 = vunpack.c.l.b16 %v138
  %v795 = vunpack.c.l.b16 %v139
  %v796 = vunpack.c.l.b16 %v140
  %v797 = vunpack.c.l.b16 %v141
  %v798 = vunpack.c.l.b16 %v142
  %v799 = vunpack.c.l.b16 %v143
  %v800 = vunpack.c.l.b16 %v144
  %v801 = vunpack.c.l.b16 %v145
  %v802 = vunpack.c.l.b16 %v146
  %v803 = vunpack.c.l.b16 %v147
  %v804 = vunpack.c.l.b16 %v148
  %v805 = vunpack.c.l.b16 %v149
  %v806 = vunpack.c.l.b16 %v150
  %v807 = vunpack.c.l.b16 %v151
  %v808 = vunpack.c.l.b16 %v152
  %v809 = vunpack.c.l.b16 %v153
  %v810 = vunpack.c.l.b16 %v154
  %v811 = vunpack.c.l.b16 %v155
  %v812 = vunpack.c.l.b16 %v156
  %v813 = vunpack.c.l.b16 %v157
  %v814 = vunpack.c.l.b16 %v158
  %v815 = vunpack.c.l.b16 %v159
  %v816 = vunpack.c.l.b16 %v160
  %v817 = vunpack.c.l.b16 %v161
  %v818 = vunpack.c.l.b16 %v162
  %v819 = vunpack.c.l.b16 %v163
  %v820 = vunpack.c.l.b16 %v164
  %v821 = vunpack.c.l.b16 %v165
  %v822 = vunpack.c.l.b16 %v166
  %v823 = vunpack.c.l.b16 %v167
  %v824 = vunpack.c.l.b16 %v168
  %v825 = vunpack.c.l.b16 %v169
  %v826 = vunpack.c.l.b16 %v170
  %v827 = vunpack.c.l.b16 %v171
  %v828 = vunpack.c.l.b16 %v172
  %v829 = vunpack.c.l.b16 %v173
  %v830 = vunpack.c.l.b16 %v174
  %v831 = vunpack.c.l.b16 %v175
  %v832 = vunpack.c.l.b16 %v176
  %v833 = vunpack.c.l.b16 %v177
  %v834 = vunpack.c.l.b16 %v178
  %v835 = vunpack.c.l.b16 %v179
  %v836 = vunpack.c.l.b16 %v180
  %v837 = vunpack.c.l.b16 %v181
  %v838 = vunpack.c.l.b16 %v182
  %v839 = vunpack.c.l.b16 %v183
  %v840 = vunpack.c.l.b16 %v184
  %v841 = vunpack.c.l.b16 %v185
  %v842 = vunpack.c.l.b16 %v186
  %v843 = vunpack.c.l.b16 %v187
  %v844 = vunpack.c.l.b16 %v188
  %v845 = vunpack.c.l.b16 %v189
  %v846 = vunpack.c.l.b16 %v190
  %v847 = vunpack.c.l.b16 %v191
  %v848 = vunpack.c.l.b16 %v192
  %v849 = vunpack.c.l.b16 %v193
  %v850 = vunpack.c.l.b16 %v194
  %v851 = vunpack.c.l.b16 %v195
  %v852 = vunpack.c.l.b16 %v196
  %v853 = vunpack.c.l.b16 %v197
  %v854 = vunpack.c.l.b16 %v198
  %v855 = vunpack.c.l.b16 %v199
  %v856 = vunpack.c.l.b16 %v200
  %v857 = vunpack.c.l.b16 %v201
  %v858 = vunpack.c.l.b16 %v202
  %v859 = vunpack.c.l.b16 %v203
  %v860 = vunpack.c.l.b16 %v204
  %v861 = vunpack.c.l.b16 %v205
  %v862 = vunpack.c.l.b16 %v206
  %v863 = vunpack.c.l.b16 %v207
  %v864 = vunpack.c.l.b16 %v208
  %v865 = vunpack.c.l.b16 %v209
  %v866 = vunpack.c.l.b16 %v210
  %v867 = vunpack.c.l.b16 %v211
  %v868 = vunpack.c.l.b16 %v212
  %v869 = vunpack.c.l.b16 %v213
  %v870 = vunpack.c.l.b16 %v214
  %v871 = vunpack.c.l.b16 %v215
  %v872 = vunpack.c.l.b16 %v216
  %v873 = vunpack.c.l.b16 %v217
  %v874 = vunpack.c.l.b16 %v218
  %v875 = vunpack.c.l.b16 %v219
  %v876 = vunpack.c.l.b16 %v220
  %v877 = vunpack.c.l.b16 %v221
  %v878 = vunpack.c.l.b16 %v222
  %v879 = vunpack.c.l.b16 %v223
  %v880 = vunpack.c.l.b16 %v224
  %v881 = vunpack.c.l.b16 %v225
  %v882 = vunpack.c.l.b16 %v226
  %v883 = vunpack.c.l.b16 %v227
  %v884 = vunpack.c.l.b16 %v228
  %v885 = vunpack.c.l.b16 %v229
  %v886 = vunpack.c.l.b16 %v230
  %v887 = vunpack.c.l.b16 %v231
  %v888 = vunpack.c.l.b16 %v232
  %v889 = vunpack.c.l.b16 %v233
  %v890 = vunpack.c.l.b16 %v234
  %v891 = vunpack.c.l.b16 %v235
  %v892 = vunpack.c.l.b16 %v236
  %v893 = vunpack.c.l.b16 %v237
  %v894 = vunpack.c.l.b16 %v238
  %v895 = vunpack.c.l.b16 %v239
  %v896 = vunpack.c.l.b16 %v240
  %v897 = vunpack.c.l.b16 %v241
  %v898 = vunpack.c.l.b16 %v242
  %v899 = vunpack.c.l.b16 %v243
  %v900 = vunpack.c.l.b16 %v244
  %v901 = vunpack.c.l.b16 %v245
  %v902 = vunpack.c.l.b16 %v246
  %v903 = vunpack.c.l.b16 %v247
  %v904 = vunpack.c.l.b16 %v248
  %v905 = vunpack.c.l.b16 %v249
  %v906 = vunpack.c.l.b16 %v250
  %v907 = vunpack.c.l.b16 %v251
  %v908 = vunpack.c.l.b16 %v252
  %v909 = vunpack.c.l.b16 %v253
  %v910 = vunpack.c.l.b16 %v254
  %v911 = vunpack.c.l.b16 %v255
  %v912 = vunpack.c.l.b16 %v256
  %v913 = vunpack.c.l.b16 %v257
  %v914 = vunpack.c.l.b16 %v258
  %v915 = vunpack.c.l.b16 %v259
  %v916 = vunpack.c.l.b16 %v260
  %v917 = vunpack.c.l.b16 %v261
  %v918 = vunpack.c.l.b16 %v262
  %v919 = vunpack.c.l.b16 %v263
  %v920 = vunpack.c.l.b16 %v264
  %v921 = vunpack.c.l.b16 %v265
  %v922 = vunpack.c.l.b16 %v266
  %v923 = vunpack.c.l.b16 %v267
  %v924 = vunpack.c.l.b16 %v268
  %v925 = vunpack.c.l.b16 %v269
  %v926 = vunpack.c.l.b16 %v270
  %v927 = vunpack.c.l.b16 %v271
  %v928 = vunpack.c.l.b16 %v272
  %v929 = vunpack.c.l.b16 %v273
  %v930 = vunpack.c.l.b16 %v274
  %v931 = vunpack.c.l.b16 %v275
  %v932 = vunpack.c.l.b16 %v276
  %v933 = vunpack.c.l.b16 %v277
  %v934 = vpack.c.b16 %v791, %v790
  %v935 = vpack.c.b16 %v793, %v792
  %v936 = vpack.c.b16 %v795, %v794
  %v937 = vpack.c.b16 %v797, %v796
  %v938 = vpack.c.b16 %v799, %v798
  %v939 = vpack.c.b16 %v801, %v800
  %v940 = vpack.c.b16 %v803, %v802
  %v941 = vpack.c.b16 %v805, %v804
  %v942 = vpack.c.b16 %v807, %v806
  %v943 = vpack.c.b16 %v809, %v808
  %v944 = vpack.c.b16 %v811, %v810
  %v945 = vpack.c.b16 %v813, %v812
  %v946 = vpack.c.b16 %v815, %v814
  %v947 = vpack.c.b16 %v817, %v816
  %v948 = vpack.c.b16 %v819, %v818
  %v949 = vpack.c.b16 %v821, %v820
  %v950 = vpack.c.b16 %v823, %v822
  %v951 = vpack.c.b16 %v825, %v824
  %v952 = vpack.c.b16 %v827, %v826
  %v953 = vpack.c.b16 %v829, %v828
  %v954 = vpack.c.b16 %v831, %v830
  %v955 = vpack.c.b16 %v833, %v832
  %v956 = vpack.c.b16 %v835, %v834
  %v957 = vpack.c.b16 %v837, %v836
  %v958 = vpack.c.b16 %v839, %v838
  %v959 = vpack.c.b16 %v841, %v840
  %v960 = vpack.c.b16 %v843, %v842
  %v961 = vpack.c.b16 %v845, %v844
  %v962 = vpack.c.b16 %v847, %v846
  %v963 = vpack.c.b16 %v849, %v848
  %v964 = vpack.c.b16 %v851, %v850
  %v965 = vpack.c.b16 %v853, %v852
  %v966 = vpack.c.b16 %v855, %v854
  %v967 = vpack.c.b16 %v857, %v856
  %v968 = vpack.c.b16 %v859, %v858
  %v969 = vpack.c.b16 %v861, %v860
  %v970 = vpack.c.b16 %v863, %v862
  %v971 = vpack.c.b16 %v865, %v864
  %v972 = vpack.c.b16 %v867, %v866
  %v973 = vpack.c.b16 %v869, %v868
  %v974 = vpack.c.b16 %v871, %v870
  %v975 = vpack.c.b16 %v873, %v872
  %v976 = vpack.c.b16 %v875, %v874
  %v977 = vpack.c.b16 %v877, %v876
  %v978 = vpack.c.b16 %v879, %v878
  %v979 = vpack.c.b16 %v881, %v880
  %v980 = vpack.c.b16 %v883, %v882
  %v981 = vpack.c.b16 %v885, %v884
  %v982 = vpack.c.b16 %v887, %v886
  %v983 = vpack.c.b16 %v889, %v888
  %v984 = vpack.c.b16 %v891, %v890
  %v985 = vpack.c.b16 %v893, %v892
  %v986 = vpack.c.b16 %v895, %v894
  %v987 = vpack.c.b16 %v897, %v896
  %v988 = vpack.c.b16 %v899, %v898
  %v989 = vpack.c.b16 %v901, %v900
  %v990 = vpack.c.b16 %v903, %v902
  %v991 = vpack.c.b16 %v905, %v904
  %v992 = vpack.c.b16 %v907, %v906
  %v993 = vpack.c.b16 %v909, %v908
  %v994 = vpack.c.b16 %v911, %v910
  %v995 = vpack.c.b16 %v913, %v912
  %v996 = vpack.c.b16 %v915, %v914
  %v997 = vpack.c.b16 %v917, %v916
  %v998 = vpack.c.b16 %v919, %v918
  %v999 = vpack.c.b16 %v921, %v920
  %v1000 = vpack.c.b16 %v923, %v922
  %v1001 = vpack.c.b16 %v925, %v924
  %v1002 = vpack.c.b16 %v927, %v926
  %v1003 = vpack.c.b16 %v929, %v928
  %v1004 = vpack.c.b16 %v931, %v930
  %v1005 = vpack.c.b16 %v933, %v932
  %1078 = vmatprep.subr.bf16.mxu0 0
  %1079 = vmatpush1.bf16.msra.mxu0 %v941
  %1080 = vmatprep.subr.bf16.mxu0 0
  %1081 = vmatpush1.bf16.msra.mxu0 %v940
  %1082 = vmatprep.subr.bf16.mxu0 0
  %1083 = vmatpush1.bf16.msra.mxu0 %v939
  %1084 = vmatprep.subr.bf16.mxu0 0
  %1085 = vmatpush1.bf16.msra.mxu0 %v938
  %1086 = vmatprep.subr.bf16.mxu0 0
  %1087 = vmatpush1.bf16.msra.mxu0 %v937
  %1088 = vmatprep.subr.bf16.mxu0 0
  %1089 = vmatpush1.bf16.msra.mxu0 %v936
  %1090 = vmatprep.subr.bf16.mxu0 0
  %1091 = vmatpush1.bf16.msra.mxu0 %v935
  %1092 = vmatprep.subr.bf16.mxu0 0
  %1093 = vmatpush1.bf16.msra.mxu0 %v934
  %1094 = vmatprep.subr.bf16.mxu0 0
  %1095 = vmatpush2.bf16.msra.mxu0 %v949
  %1096 = vmatprep.subr.bf16.mxu0 0
  %1097 = vmatpush2.bf16.msra.mxu0 %v948
  %1098 = vmatprep.subr.bf16.mxu0 0
  %1099 = vmatpush2.bf16.msra.mxu0 %v947
  %1100 = vmatprep.subr.bf16.mxu0 0
  %1101 = vmatpush2.bf16.msra.mxu0 %v946
  %1102 = vmatprep.subr.bf16.mxu0 0
  %1103 = vmatpush2.bf16.msra.mxu0 %v945
  %1104 = vmatprep.subr.bf16.mxu0 0
  %1105 = vmatpush2.bf16.msra.mxu0 %v944
  %1106 = vmatprep.subr.bf16.mxu0 0
  %1107 = vmatpush2.bf16.msra.mxu0 %v943
  %1108 = vmatprep.subr.bf16.mxu0 0
  %1109 = vmatpush2.bf16.msra.mxu0 %v942
  %1110 = vmatprep.mubr.bf16.mxu0 %v503
  %1111 = vmatmul.mubr.bf16.gmra.mxu0 %v502
  %v1112 = vpop.f32.mrf.mxu0
  %v1113 = vadd.f32 0.0, %v1112
  %v1114 = vpop.f32.mrf.mxu0
  %v1115 = vpop.f32.mrf.mxu0
  %v1116 = vadd.f32 0.0, %v1115
  %v1117 = vpop.f32.mrf.mxu0
  %1118 = vmatprep.mubr.bf16.mxu0 %v512
  %1119 = vmatmul.mubr.bf16.gmra.mxu0 %v511
  %v1120 = vpop.f32.mrf.mxu0
  %v1121 = vadd.f32 0.0, %v1120
  %v1122 = vpop.f32.mrf.mxu0
  %v1123 = vpop.f32.mrf.mxu0
  %v1124 = vadd.f32 0.0, %v1123
  %v1125 = vpop.f32.mrf.mxu0
  %1126 = vmatprep.mubr.bf16.mxu0 %v521
  %1127 = vmatmul.mubr.bf16.gmra.mxu0 %v520
  %v1128 = vpop.f32.mrf.mxu0
  %v1129 = vadd.f32 0.0, %v1128
  %v1130 = vpop.f32.mrf.mxu0
  %v1131 = vpop.f32.mrf.mxu0
  %v1132 = vadd.f32 0.0, %v1131
  %v1133 = vpop.f32.mrf.mxu0
  %1134 = vmatprep.mubr.bf16.mxu0 %v530
  %1135 = vmatmul.mubr.bf16.gmra.mxu0 %v529
  %v1136 = vpop.f32.mrf.mxu0
  %v1137 = vadd.f32 0.0, %v1136
  %v1138 = vpop.f32.mrf.mxu0
  %v1139 = vpop.f32.mrf.mxu0
  %v1140 = vadd.f32 0.0, %v1139
  %v1141 = vpop.f32.mrf.mxu0
  %1142 = vmatprep.mubr.bf16.mxu0 %v539
  %1143 = vmatmul.mubr.bf16.gmra.mxu0 %v538
  %v1144 = vpop.f32.mrf.mxu0
  %v1145 = vadd.f32 0.0, %v1144
  %v1146 = vpop.f32.mrf.mxu0
  %v1147 = vpop.f32.mrf.mxu0
  %v1148 = vadd.f32 0.0, %v1147
  %v1149 = vpop.f32.mrf.mxu0
  %1150 = vmatprep.mubr.bf16.mxu0 %v548
  %1151 = vmatmul.mubr.bf16.gmra.mxu0 %v547
  %v1152 = vpop.f32.mrf.mxu0
  %v1153 = vadd.f32 0.0, %v1152
  %v1154 = vpop.f32.mrf.mxu0
  %v1155 = vpop.f32.mrf.mxu0
  %v1156 = vadd.f32 0.0, %v1155
  %v1157 = vpop.f32.mrf.mxu0
  %1158 = vmatprep.mubr.bf16.mxu0 %v557
  %1159 = vmatmul.mubr.bf16.gmra.mxu0 %v556
  %v1160 = vpop.f32.mrf.mxu0
  %v1161 = vadd.f32 0.0, %v1160
  %v1162 = vpop.f32.mrf.mxu0
  %v1163 = vpop.f32.mrf.mxu0
  %v1164 = vadd.f32 0.0, %v1163
  %v1165 = vpop.f32.mrf.mxu0
  %1166 = vmatprep.mubr.bf16.mxu0 %v566
  %1167 = vmatmul.mubr.bf16.gmra.mxu0 %v565
  %v1168 = vpop.f32.mrf.mxu0
  %v1169 = vadd.f32 0.0, %v1168
  %v1170 = vpop.f32.mrf.mxu0
  %v1171 = vpop.f32.mrf.mxu0
  %v1172 = vadd.f32 0.0, %v1171
  %v1173 = vpop.f32.mrf.mxu0
  %1174 = vdwg.mxu0
  %1175 = vmatprep.subr.bf16.mxu0 0
  %1176 = vmatpush1.bf16.msra.mxu0 %v957
  %1177 = vmatprep.subr.bf16.mxu0 0
  %1178 = vmatpush1.bf16.msra.mxu0 %v956
  %1179 = vmatprep.subr.bf16.mxu0 0
  %1180 = vmatpush1.bf16.msra.mxu0 %v955
  %1181 = vmatprep.subr.bf16.mxu0 0
  %1182 = vmatpush1.bf16.msra.mxu0 %v954
  %1183 = vmatprep.subr.bf16.mxu0 0
  %1184 = vmatpush1.bf16.msra.mxu0 %v953
  %1185 = vmatprep.subr.bf16.mxu0 0
  %1186 = vmatpush1.bf16.msra.mxu0 %v952
  %1187 = vmatprep.subr.bf16.mxu0 0
  %1188 = vmatpush1.bf16.msra.mxu0 %v951
  %1189 = vmatprep.subr.bf16.mxu0 0
  %1190 = vmatpush1.bf16.msra.mxu0 %v950
  %1191 = vmatprep.subr.bf16.mxu0 0
  %1192 = vmatpush2.bf16.msra.mxu0 %v965
  %1193 = vmatprep.subr.bf16.mxu0 0
  %1194 = vmatpush2.bf16.msra.mxu0 %v964
  %1195 = vmatprep.subr.bf16.mxu0 0
  %1196 = vmatpush2.bf16.msra.mxu0 %v963
  %1197 = vmatprep.subr.bf16.mxu0 0
  %1198 = vmatpush2.bf16.msra.mxu0 %v962
  %1199 = vmatprep.subr.bf16.mxu0 0
  %1200 = vmatpush2.bf16.msra.mxu0 %v961
  %1201 = vmatprep.subr.bf16.mxu0 0
  %1202 = vmatpush2.bf16.msra.mxu0 %v960
  %1203 = vmatprep.subr.bf16.mxu0 0
  %1204 = vmatpush2.bf16.msra.mxu0 %v959
  %1205 = vmatprep.subr.bf16.mxu0 0
  %1206 = vmatpush2.bf16.msra.mxu0 %v958
  %1207 = vmatprep.mubr.bf16.mxu0 %v505
  %1208 = vmatmul.mubr.bf16.gmra.mxu0 %v504
  %v1209 = vpop.f32.mrf.mxu0
  %v1210 = vadd.f32 %v1113, %v1209
  %v1211 = vpop.f32.mrf.mxu0
  %v1212 = vpop.f32.mrf.mxu0
  %v1213 = vadd.f32 %v1116, %v1212
  %v1214 = vpop.f32.mrf.mxu0
  %1215 = vmatprep.mubr.bf16.mxu0 %v514
  %1216 = vmatmul.mubr.bf16.gmra.mxu0 %v513
  %v1217 = vpop.f32.mrf.mxu0
  %v1218 = vadd.f32 %v1121, %v1217
  %v1219 = vpop.f32.mrf.mxu0
  %v1220 = vpop.f32.mrf.mxu0
  %v1221 = vadd.f32 %v1124, %v1220
  %v1222 = vpop.f32.mrf.mxu0
  %1223 = vmatprep.mubr.bf16.mxu0 %v523
  %1224 = vmatmul.mubr.bf16.gmra.mxu0 %v522
  %v1225 = vpop.f32.mrf.mxu0
  %v1226 = vadd.f32 %v1129, %v1225
  %v1227 = vpop.f32.mrf.mxu0
  %v1228 = vpop.f32.mrf.mxu0
  %v1229 = vadd.f32 %v1132, %v1228
  %v1230 = vpop.f32.mrf.mxu0
  %1231 = vmatprep.mubr.bf16.mxu0 %v532
  %1232 = vmatmul.mubr.bf16.gmra.mxu0 %v531
  %v1233 = vpop.f32.mrf.mxu0
  %v1234 = vadd.f32 %v1137, %v1233
  %v1235 = vpop.f32.mrf.mxu0
  %v1236 = vpop.f32.mrf.mxu0
  %v1237 = vadd.f32 %v1140, %v1236
  %v1238 = vpop.f32.mrf.mxu0
  %1239 = vmatprep.mubr.bf16.mxu0 %v541
  %1240 = vmatmul.mubr.bf16.gmra.mxu0 %v540
  %v1241 = vpop.f32.mrf.mxu0
  %v1242 = vadd.f32 %v1145, %v1241
  %v1243 = vpop.f32.mrf.mxu0
  %v1244 = vpop.f32.mrf.mxu0
  %v1245 = vadd.f32 %v1148, %v1244
  %v1246 = vpop.f32.mrf.mxu0
  %1247 = vmatprep.mubr.bf16.mxu0 %v550
  %1248 = vmatmul.mubr.bf16.gmra.mxu0 %v549
  %v1249 = vpop.f32.mrf.mxu0
  %v1250 = vadd.f32 %v1153, %v1249
  %v1251 = vpop.f32.mrf.mxu0
  %v1252 = vpop.f32.mrf.mxu0
  %v1253 = vadd.f32 %v1156, %v1252
  %v1254 = vpop.f32.mrf.mxu0
  %1255 = vmatprep.mubr.bf16.mxu0 %v559
  %1256 = vmatmul.mubr.bf16.gmra.mxu0 %v558
  %v1257 = vpop.f32.mrf.mxu0
  %v1258 = vadd.f32 %v1161, %v1257
  %v1259 = vpop.f32.mrf.mxu0
  %v1260 = vpop.f32.mrf.mxu0
  %v1261 = vadd.f32 %v1164, %v1260
  %v1262 = vpop.f32.mrf.mxu0
  %1263 = vmatprep.mubr.bf16.mxu0 %v568
  %1264 = vmatmul.mubr.bf16.gmra.mxu0 %v567
  %v1265 = vpop.f32.mrf.mxu0
  %v1266 = vadd.f32 %v1169, %v1265
  %v1267 = vpop.f32.mrf.mxu0
  %v1268 = vpop.f32.mrf.mxu0
  %v1269 = vadd.f32 %v1172, %v1268
  %v1270 = vpop.f32.mrf.mxu0
  %1271 = vdwg.mxu0
  %1272 = vmatprep.subr.bf16.mxu0 0
  %1273 = vmatpush1.bf16.msra.mxu0 %v973
  %1274 = vmatprep.subr.bf16.mxu0 0
  %1275 = vmatpush1.bf16.msra.mxu0 %v972
  %1276 = vmatprep.subr.bf16.mxu0 0
  %1277 = vmatpush1.bf16.msra.mxu0 %v971
  %1278 = vmatprep.subr.bf16.mxu0 0
  %1279 = vmatpush1.bf16.msra.mxu0 %v970
  %1280 = vmatprep.subr.bf16.mxu0 0
  %1281 = vmatpush1.bf16.msra.mxu0 %v969
  %1282 = vmatprep.subr.bf16.mxu0 0
  %1283 = vmatpush1.bf16.msra.mxu0 %v968
  %1284 = vmatprep.subr.bf16.mxu0 0
  %1285 = vmatpush1.bf16.msra.mxu0 %v967
  %1286 = vmatprep.subr.bf16.mxu0 0
  %1287 = vmatpush1.bf16.msra.mxu0 %v966
  %1288 = vmatprep.subr.bf16.mxu0 0
  %1289 = vmatpush2.bf16.msra.mxu0 %v981
  %1290 = vmatprep.subr.bf16.mxu0 0
  %1291 = vmatpush2.bf16.msra.mxu0 %v980
  %1292 = vmatprep.subr.bf16.mxu0 0
  %1293 = vmatpush2.bf16.msra.mxu0 %v979
  %1294 = vmatprep.subr.bf16.mxu0 0
  %1295 = vmatpush2.bf16.msra.mxu0 %v978
  %1296 = vmatprep.subr.bf16.mxu0 0
  %1297 = vmatpush2.bf16.msra.mxu0 %v977
  %1298 = vmatprep.subr.bf16.mxu0 0
  %1299 = vmatpush2.bf16.msra.mxu0 %v976
  %1300 = vmatprep.subr.bf16.mxu0 0
  %1301 = vmatpush2.bf16.msra.mxu0 %v975
  %1302 = vmatprep.subr.bf16.mxu0 0
  %1303 = vmatpush2.bf16.msra.mxu0 %v974
  %1304 = vmatprep.mubr.bf16.mxu0 %v507
  %1305 = vmatmul.mubr.bf16.gmra.mxu0 %v506
  %v1306 = vpop.f32.mrf.mxu0
  %v1307 = vadd.f32 %v1210, %v1306
  %v1308 = vpop.f32.mrf.mxu0
  %v1309 = vpop.f32.mrf.mxu0
  %v1310 = vadd.f32 %v1213, %v1309
  %v1311 = vpop.f32.mrf.mxu0
  %1312 = vmatprep.mubr.bf16.mxu0 %v516
  %1313 = vmatmul.mubr.bf16.gmra.mxu0 %v515
  %v1314 = vpop.f32.mrf.mxu0
  %v1315 = vadd.f32 %v1218, %v1314
  %v1316 = vpop.f32.mrf.mxu0
  %v1317 = vpop.f32.mrf.mxu0
  %v1318 = vadd.f32 %v1221, %v1317
  %v1319 = vpop.f32.mrf.mxu0
  %1320 = vmatprep.mubr.bf16.mxu0 %v525
  %1321 = vmatmul.mubr.bf16.gmra.mxu0 %v524
  %v1322 = vpop.f32.mrf.mxu0
  %v1323 = vadd.f32 %v1226, %v1322
  %v1324 = vpop.f32.mrf.mxu0
  %v1325 = vpop.f32.mrf.mxu0
  %v1326 = vadd.f32 %v1229, %v1325
  %v1327 = vpop.f32.mrf.mxu0
  %1328 = vmatprep.mubr.bf16.mxu0 %v534
  %1329 = vmatmul.mubr.bf16.gmra.mxu0 %v533
  %v1330 = vpop.f32.mrf.mxu0
  %v1331 = vadd.f32 %v1234, %v1330
  %v1332 = vpop.f32.mrf.mxu0
  %v1333 = vpop.f32.mrf.mxu0
  %v1334 = vadd.f32 %v1237, %v1333
  %v1335 = vpop.f32.mrf.mxu0
  %1336 = vmatprep.mubr.bf16.mxu0 %v543
  %1337 = vmatmul.mubr.bf16.gmra.mxu0 %v542
  %v1338 = vpop.f32.mrf.mxu0
  %v1339 = vadd.f32 %v1242, %v1338
  %v1340 = vpop.f32.mrf.mxu0
  %v1341 = vpop.f32.mrf.mxu0
  %v1342 = vadd.f32 %v1245, %v1341
  %v1343 = vpop.f32.mrf.mxu0
  %1344 = vmatprep.mubr.bf16.mxu0 %v552
  %1345 = vmatmul.mubr.bf16.gmra.mxu0 %v551
  %v1346 = vpop.f32.mrf.mxu0
  %v1347 = vadd.f32 %v1250, %v1346
  %v1348 = vpop.f32.mrf.mxu0
  %v1349 = vpop.f32.mrf.mxu0
  %v1350 = vadd.f32 %v1253, %v1349
  %v1351 = vpop.f32.mrf.mxu0
  %1352 = vmatprep.mubr.bf16.mxu0 %v561
  %1353 = vmatmul.mubr.bf16.gmra.mxu0 %v560
  %v1354 = vpop.f32.mrf.mxu0
  %v1355 = vadd.f32 %v1258, %v1354
  %v1356 = vpop.f32.mrf.mxu0
  %v1357 = vpop.f32.mrf.mxu0
  %v1358 = vadd.f32 %v1261, %v1357
  %v1359 = vpop.f32.mrf.mxu0
  %1360 = vmatprep.mubr.bf16.mxu0 %v570
  %1361 = vmatmul.mubr.bf16.gmra.mxu0 %v569
  %v1362 = vpop.f32.mrf.mxu0
  %v1363 = vadd.f32 %v1266, %v1362
  %v1364 = vpop.f32.mrf.mxu0
  %v1365 = vpop.f32.mrf.mxu0
  %v1366 = vadd.f32 %v1269, %v1365
  %v1367 = vpop.f32.mrf.mxu0
  %1368 = vdwg.mxu0
  %1369 = vmatprep.subr.bf16.mxu0 0
  %1370 = vmatpush1.bf16.msra.mxu0 %v989
  %1371 = vmatprep.subr.bf16.mxu0 0
  %1372 = vmatpush1.bf16.msra.mxu0 %v988
  %1373 = vmatprep.subr.bf16.mxu0 0
  %1374 = vmatpush1.bf16.msra.mxu0 %v987
  %1375 = vmatprep.subr.bf16.mxu0 0
  %1376 = vmatpush1.bf16.msra.mxu0 %v986
  %1377 = vmatprep.subr.bf16.mxu0 0
  %1378 = vmatpush1.bf16.msra.mxu0 %v985
  %1379 = vmatprep.subr.bf16.mxu0 0
  %1380 = vmatpush1.bf16.msra.mxu0 %v984
  %1381 = vmatprep.subr.bf16.mxu0 0
  %1382 = vmatpush1.bf16.msra.mxu0 %v983
  %1383 = vmatprep.subr.bf16.mxu0 0
  %1384 = vmatpush1.bf16.msra.mxu0 %v982
  %1385 = vmatprep.subr.bf16.mxu0 0
  %1386 = vmatpush2.bf16.msra.mxu0 %v997
  %1387 = vmatprep.subr.bf16.mxu0 0
  %1388 = vmatpush2.bf16.msra.mxu0 %v996
  %1389 = vmatprep.subr.bf16.mxu0 0
  %1390 = vmatpush2.bf16.msra.mxu0 %v995
  %1391 = vmatprep.subr.bf16.mxu0 0
  %1392 = vmatpush2.bf16.msra.mxu0 %v994
  %1393 = vmatprep.subr.bf16.mxu0 0
  %1394 = vmatpush2.bf16.msra.mxu0 %v993
  %1395 = vmatprep.subr.bf16.mxu0 0
  %1396 = vmatpush2.bf16.msra.mxu0 %v992
  %1397 = vmatprep.subr.bf16.mxu0 0
  %1398 = vmatpush2.bf16.msra.mxu0 %v991
  %1399 = vmatprep.subr.bf16.mxu0 0
  %1400 = vmatpush2.bf16.msra.mxu0 %v990
  %1401 = vmatprep.mubr.bf16.mxu0 %v509
  %1402 = vmatmul.mubr.bf16.gmra.mxu0 %v508
  %v1403 = vpop.f32.mrf.mxu0
  %v1404 = vadd.f32 %v1307, %v1403
  %v1405 = vpop.f32.mrf.mxu0
  %v1406 = vpop.f32.mrf.mxu0
  %v1407 = vadd.f32 %v1310, %v1406
  %v1408 = vpop.f32.mrf.mxu0
  %1409 = vmatprep.mubr.bf16.mxu0 %v518
  %1410 = vmatmul.mubr.bf16.gmra.mxu0 %v517
  %v1411 = vpop.f32.mrf.mxu0
  %v1412 = vadd.f32 %v1315, %v1411
  %v1413 = vpop.f32.mrf.mxu0
  %v1414 = vpop.f32.mrf.mxu0
  %v1415 = vadd.f32 %v1318, %v1414
  %v1416 = vpop.f32.mrf.mxu0
  %1417 = vmatprep.mubr.bf16.mxu0 %v527
  %1418 = vmatmul.mubr.bf16.gmra.mxu0 %v526
  %v1419 = vpop.f32.mrf.mxu0
  %v1420 = vadd.f32 %v1323, %v1419
  %v1421 = vpop.f32.mrf.mxu0
  %v1422 = vpop.f32.mrf.mxu0
  %v1423 = vadd.f32 %v1326, %v1422
  %v1424 = vpop.f32.mrf.mxu0
  %1425 = vmatprep.mubr.bf16.mxu0 %v536
  %1426 = vmatmul.mubr.bf16.gmra.mxu0 %v535
  %v1427 = vpop.f32.mrf.mxu0
  %v1428 = vadd.f32 %v1331, %v1427
  %v1429 = vpop.f32.mrf.mxu0
  %v1430 = vpop.f32.mrf.mxu0
  %v1431 = vadd.f32 %v1334, %v1430
  %v1432 = vpop.f32.mrf.mxu0
  %1433 = vmatprep.mubr.bf16.mxu0 %v545
  %1434 = vmatmul.mubr.bf16.gmra.mxu0 %v544
  %v1435 = vpop.f32.mrf.mxu0
  %v1436 = vadd.f32 %v1339, %v1435
  %v1437 = vpop.f32.mrf.mxu0
  %v1438 = vpop.f32.mrf.mxu0
  %v1439 = vadd.f32 %v1342, %v1438
  %v1440 = vpop.f32.mrf.mxu0
  %1441 = vmatprep.mubr.bf16.mxu0 %v554
  %1442 = vmatmul.mubr.bf16.gmra.mxu0 %v553
  %v1443 = vpop.f32.mrf.mxu0
  %v1444 = vadd.f32 %v1347, %v1443
  %v1445 = vpop.f32.mrf.mxu0
  %v1446 = vpop.f32.mrf.mxu0
  %v1447 = vadd.f32 %v1350, %v1446
  %v1448 = vpop.f32.mrf.mxu0
  %1449 = vmatprep.mubr.bf16.mxu0 %v563
  %1450 = vmatmul.mubr.bf16.gmra.mxu0 %v562
  %v1451 = vpop.f32.mrf.mxu0
  %v1452 = vadd.f32 %v1355, %v1451
  %v1453 = vpop.f32.mrf.mxu0
  %v1454 = vpop.f32.mrf.mxu0
  %v1455 = vadd.f32 %v1358, %v1454
  %v1456 = vpop.f32.mrf.mxu0
  %1457 = vmatprep.mubr.bf16.mxu0 %v572
  %1458 = vmatmul.mubr.bf16.gmra.mxu0 %v571
  %v1459 = vpop.f32.mrf.mxu0
  %v1460 = vadd.f32 %v1363, %v1459
  %v1461 = vpop.f32.mrf.mxu0
  %v1462 = vpop.f32.mrf.mxu0
  %v1463 = vadd.f32 %v1366, %v1462
  %v1464 = vpop.f32.mrf.mxu0
  %1465 = vdwg.mxu0
  %1466 = vmatprep.subr.bf16.mxu0 0
  %1467 = vmatpush1.bf16.msra.mxu0 %v1005
  %1468 = vmatprep.subr.bf16.mxu0 0
  %1469 = vmatpush1.bf16.msra.mxu0 %v1004
  %1470 = vmatprep.subr.bf16.mxu0 0
  %1471 = vmatpush1.bf16.msra.mxu0 %v1003
  %1472 = vmatprep.subr.bf16.mxu0 0
  %1473 = vmatpush1.bf16.msra.mxu0 %v1002
  %1474 = vmatprep.subr.bf16.mxu0 0
  %1475 = vmatpush1.bf16.msra.mxu0 %v1001
  %1476 = vmatprep.subr.bf16.mxu0 0
  %1477 = vmatpush1.bf16.msra.mxu0 %v1000
  %1478 = vmatprep.subr.bf16.mxu0 0
  %1479 = vmatpush1.bf16.msra.mxu0 %v999
  %1480 = vmatprep.subr.bf16.mxu0 0
  %1481 = vmatpush1.bf16.msra.mxu0 %v998
  %1482 = vmatprep.subr.bf16.mxu0 0
  %1483 = vmatpush2.bf16.msra.mxu0 0
  %1484 = vmatprep.subr.bf16.mxu0 0
  %1485 = vmatpush2.bf16.msra.mxu0 0
  %1486 = vmatprep.subr.bf16.mxu0 0
  %1487 = vmatpush2.bf16.msra.mxu0 0
  %1488 = vmatprep.subr.bf16.mxu0 0
  %1489 = vmatpush2.bf16.msra.mxu0 0
  %1490 = vmatprep.subr.bf16.mxu0 0
  %1491 = vmatpush2.bf16.msra.mxu0 0
  %1492 = vmatprep.subr.bf16.mxu0 0
  %1493 = vmatpush2.bf16.msra.mxu0 0
  %1494 = vmatprep.subr.bf16.mxu0 0
  %1495 = vmatpush2.bf16.msra.mxu0 0
  %1496 = vmatprep.subr.bf16.mxu0 0
  %1497 = vmatpush2.bf16.msra.mxu0 0
  %1498 = vmatprep.mubr.bf16.mxu0 0
  %1499 = vmatmul.mubr.bf16.gmra.mxu0 %v510
  %v1500 = vpop.f32.mrf.mxu0
  %v1501 = vadd.f32 %v1404, %v1500
  %v1502 = vpop.f32.mrf.mxu0
  %v1503 = vpop.f32.mrf.mxu0
  %v1504 = vadd.f32 %v1407, %v1503
  %v1505 = vpop.f32.mrf.mxu0
  %1506 = vmatprep.mubr.bf16.mxu0 0
  %1507 = vmatmul.mubr.bf16.gmra.mxu0 %v519
  %v1508 = vpop.f32.mrf.mxu0
  %v1509 = vadd.f32 %v1412, %v1508
  %v1510 = vpop.f32.mrf.mxu0
  %v1511 = vpop.f32.mrf.mxu0
  %v1512 = vadd.f32 %v1415, %v1511
  %v1513 = vpop.f32.mrf.mxu0
  %1514 = vmatprep.mubr.bf16.mxu0 0
  %1515 = vmatmul.mubr.bf16.gmra.mxu0 %v528
  %v1516 = vpop.f32.mrf.mxu0
  %v1517 = vadd.f32 %v1420, %v1516
  %v1518 = vpop.f32.mrf.mxu0
  %v1519 = vpop.f32.mrf.mxu0
  %v1520 = vadd.f32 %v1423, %v1519
  %v1521 = vpop.f32.mrf.mxu0
  %1522 = vmatprep.mubr.bf16.mxu0 0
  %1523 = vmatmul.mubr.bf16.gmra.mxu0 %v537
  %v1524 = vpop.f32.mrf.mxu0
  %v1525 = vadd.f32 %v1428, %v1524
  %v1526 = vpop.f32.mrf.mxu0
  %v1527 = vpop.f32.mrf.mxu0
  %v1528 = vadd.f32 %v1431, %v1527
  %v1529 = vpop.f32.mrf.mxu0
  %1530 = vmatprep.mubr.bf16.mxu0 0
  %1531 = vmatmul.mubr.bf16.gmra.mxu0 %v546
  %v1532 = vpop.f32.mrf.mxu0
  %v1533 = vadd.f32 %v1436, %v1532
  %v1534 = vpop.f32.mrf.mxu0
  %v1535 = vpop.f32.mrf.mxu0
  %v1536 = vadd.f32 %v1439, %v1535
  %v1537 = vpop.f32.mrf.mxu0
  %1538 = vmatprep.mubr.bf16.mxu0 0
  %1539 = vmatmul.mubr.bf16.gmra.mxu0 %v555
  %v1540 = vpop.f32.mrf.mxu0
  %v1541 = vadd.f32 %v1444, %v1540
  %v1542 = vpop.f32.mrf.mxu0
  %v1543 = vpop.f32.mrf.mxu0
  %v1544 = vadd.f32 %v1447, %v1543
  %v1545 = vpop.f32.mrf.mxu0
  %1546 = vmatprep.mubr.bf16.mxu0 0
  %1547 = vmatmul.mubr.bf16.gmra.mxu0 %v564
  %v1548 = vpop.f32.mrf.mxu0
  %v1549 = vadd.f32 %v1452, %v1548
  %v1550 = vpop.f32.mrf.mxu0
  %v1551 = vpop.f32.mrf.mxu0
  %v1552 = vadd.f32 %v1455, %v1551
  %v1553 = vpop.f32.mrf.mxu0
  %1554 = vmatprep.mubr.bf16.mxu0 0
  %1555 = vmatmul.mubr.bf16.gmra.mxu0 %v573
  %v1556 = vpop.f32.mrf.mxu0
  %v1557 = vadd.f32 %v1460, %v1556
  %v1558 = vpop.f32.mrf.mxu0
  %v1559 = vpop.f32.mrf.mxu0
  %v1560 = vadd.f32 %v1463, %v1559
  %v1561 = vpop.f32.mrf.mxu0
  %1562 = vdwg.mxu0
  %v1563 = vadd.f32 %v38, %v1501
  %v1564 = vadd.f32 %v39, %v1504
  %v1565 = vadd.f32 %v40, %v1509
  %v1566 = vadd.f32 %v41, %v1512
  %v1567 = vadd.f32 %v42, %v1517
  %v1568 = vadd.f32 %v43, %v1520
  %v1569 = vadd.f32 %v44, %v1525
  %v1570 = vadd.f32 %v45, %v1528
  %v1571 = vadd.f32 %v46, %v1533
  %v1572 = vadd.f32 %v47, %v1536
  %v1573 = vadd.f32 %v48, %v1541
  %v1574 = vadd.f32 %v49, %v1544
  %v1575 = vadd.f32 %v50, %v1549
  %v1576 = vadd.f32 %v51, %v1552
  %v1577 = vadd.f32 %v52, %v1557
  %v1578 = vadd.f32 %v53, %v1560
  %1579 = vst [vmem:[#allocation2] sm:$0xff] %v1563
  %1580 = vst [vmem:[#allocation2 + $0x8] sm:$0xff] %v1564
  %1581 = vst [vmem:[#allocation2 + $0x10] sm:$0xff] %v1565
  %1582 = vst [vmem:[#allocation2 + $0x18] sm:$0xff] %v1566
  %1583 = vst [vmem:[#allocation2 + $0x20] sm:$0xff] %v1567
  %1584 = vst [vmem:[#allocation2 + $0x28] sm:$0xff] %v1568
  %1585 = vst [vmem:[#allocation2 + $0x30] sm:$0xff] %v1569
  %1586 = vst [vmem:[#allocation2 + $0x38] sm:$0xff] %v1570
  %1587 = vst [vmem:[#allocation2 + $0x40] sm:$0xff] %v1571
  %1588 = vst [vmem:[#allocation2 + $0x48] sm:$0xff] %v1572
  %1589 = vst [vmem:[#allocation2 + $0x50] sm:$0xff] %v1573
  %1590 = vst [vmem:[#allocation2 + $0x58] sm:$0xff] %v1574
  %1591 = vst [vmem:[#allocation2 + $0x60] sm:$0xff] %v1575
  %1592 = vst [vmem:[#allocation2 + $0x68] sm:$0xff] %v1576
  %1593 = vst [vmem:[#allocation2 + $0x70] sm:$0xff] %v1577
  %1594 = vst [vmem:[#allocation2 + $0x78] sm:$0xff] %v1578
  // Predicated region
  $region22: #{_lambda_.57} parent=0 // pred_check
    %p1595 = pneg %p18
  $region23: #{_lambda_.57} parent=0 // pred_check_branch
    %1597 = sbr.rel (%p1595) target = $region25
  $region24: #{_lambda_.57} parent=0 // pred_region
    %v1598 = vld [vmem:[#allocation2] sm:$0xff]
    %v1599 = vld [vmem:[#allocation2 + $0x8] sm:$0xff]
    %v1600 = vld [vmem:[#allocation2 + $0x10] sm:$0xff]
    %v1601 = vld [vmem:[#allocation2 + $0x18] sm:$0xff]
    %v1602 = vld [vmem:[#allocation2 + $0x20] sm:$0xff]
    %v1603 = vld [vmem:[#allocation2 + $0x28] sm:$0xff]
    %v1604 = vld [vmem:[#allocation2 + $0x30] sm:$0xff]
    %v1605 = vld [vmem:[#allocation2 + $0x38] sm:$0xff]
    %v1606 = vld [vmem:[#allocation2 + $0x40] sm:$0xff]
    %v1607 = vld [vmem:[#allocation2 + $0x48] sm:$0xff]
    %v1608 = vld [vmem:[#allocation2 + $0x50] sm:$0xff]
    %v1609 = vld [vmem:[#allocation2 + $0x58] sm:$0xff]
    %v1610 = vld [vmem:[#allocation2 + $0x60] sm:$0xff]
    %v1611 = vld [vmem:[#allocation2 + $0x68] sm:$0xff]
    %v1612 = vld [vmem:[#allocation2 + $0x70] sm:$0xff]
    %v1613 = vld [vmem:[#allocation2 + $0x78] sm:$0xff]
    %v1614 = vld [vmem:[%s2] sm:$0x1]
    %v1616 = vlaneseq
    %v1617 = vshrl.u32 %v1616, 7
    %v1618 = vsub.s32 0, %v1617
    %v1619 = vrot.slane %v1614, %v1618
    %v1621 = vmul.f32 %v1598, %v1619
    %v1622 = vmul.f32 %v1599, %v1619
    %v1623 = vmul.f32 %v1600, %v1619
    %v1624 = vmul.f32 %v1601, %v1619
    %v1625 = vmul.f32 %v1602, %v1619
    %v1626 = vmul.f32 %v1603, %v1619
    %v1627 = vmul.f32 %v1604, %v1619
    %v1628 = vmul.f32 %v1605, %v1619
    %v1629 = vmul.f32 %v1606, %v1619
    %v1630 = vmul.f32 %v1607, %v1619
    %v1631 = vmul.f32 %v1608, %v1619
    %v1632 = vmul.f32 %v1609, %v1619
    %v1633 = vmul.f32 %v1610, %v1619
    %v1634 = vmul.f32 %v1611, %v1619
    %v1635 = vmul.f32 %v1612, %v1619
    %v1636 = vmul.f32 %v1613, %v1619
    %v1637 = vld [vmem:[%s3] sm:$0x1]
    %v1639 = vlaneseq
    %v1640 = vshrl.u32 %v1639, 7
    %v1641 = vsub.s32 0, %v1640
    %v1642 = vrot.slane %v1637, %v1641
    %v1644 = vadd.f32 %v1621, %v1642
    %v1645 = vadd.f32 %v1622, %v1642
    %v1646 = vadd.f32 %v1623, %v1642
    %v1647 = vadd.f32 %v1624, %v1642
    %v1648 = vadd.f32 %v1625, %v1642
    %v1649 = vadd.f32 %v1626, %v1642
    %v1650 = vadd.f32 %v1627, %v1642
    %v1651 = vadd.f32 %v1628, %v1642
    %v1652 = vadd.f32 %v1629, %v1642
    %v1653 = vadd.f32 %v1630, %v1642
    %v1654 = vadd.f32 %v1631, %v1642
    %v1655 = vadd.f32 %v1632, %v1642
    %v1656 = vadd.f32 %v1633, %v1642
    %v1657 = vadd.f32 %v1634, %v1642
    %v1658 = vadd.f32 %v1635, %v1642
    %v1659 = vadd.f32 %v1636, %v1642
    %v1660 = vmax.f32 %v1644, 0.0
    %v1661 = vmax.f32 %v1645, 0.0
    %v1662 = vmax.f32 %v1646, 0.0
    %v1663 = vmax.f32 %v1647, 0.0
    %v1664 = vmax.f32 %v1648, 0.0
    %v1665 = vmax.f32 %v1649, 0.0
    %v1666 = vmax.f32 %v1650, 0.0
    %v1667 = vmax.f32 %v1651, 0.0
    %v1668 = vmax.f32 %v1652, 0.0
    %v1669 = vmax.f32 %v1653, 0.0
    %v1670 = vmax.f32 %v1654, 0.0
    %v1671 = vmax.f32 %v1655, 0.0
    %v1672 = vmax.f32 %v1656, 0.0
    %v1673 = vmax.f32 %v1657, 0.0
    %v1674 = vmax.f32 %v1658, 0.0
    %v1675 = vmax.f32 %v1659, 0.0
    %v1676 = vpack.c.bf16 %v1661, %v1660
    %v1677 = vpack.c.bf16 %v1663, %v1662
    %v1678 = vpack.c.bf16 %v1665, %v1664
    %v1679 = vpack.c.bf16 %v1667, %v1666
    %v1680 = vpack.c.bf16 %v1669, %v1668
    %v1681 = vpack.c.bf16 %v1671, %v1670
    %v1682 = vpack.c.bf16 %v1673, %v1672
    %v1683 = vpack.c.bf16 %v1675, %v1674
    %v1692 = vunpack.c.l.b16 %v1676
    %v1693 = vunpack.c.h.b16 %v1676
    %v1694 = vunpack.c.l.b16 %v1677
    %v1695 = vunpack.c.h.b16 %v1677
    %v1696 = vunpack.c.l.b16 %v1678
    %v1697 = vunpack.c.h.b16 %v1678
    %v1698 = vunpack.c.l.b16 %v1679
    %v1699 = vunpack.c.h.b16 %v1679
    %v1700 = vunpack.c.l.b16 %v1680
    %v1701 = vunpack.c.h.b16 %v1680
    %v1702 = vunpack.c.l.b16 %v1681
    %v1703 = vunpack.c.h.b16 %v1681
    %v1704 = vunpack.c.l.b16 %v1682
    %v1705 = vunpack.c.h.b16 %v1682
    %v1706 = vunpack.c.l.b16 %v1683
    %v1707 = vunpack.c.h.b16 %v1683
    %v1708 = vpack.c.b16 %v1692, %v1692
    %v1709 = vpack.c.b16 %v1693, %v1693
    %v1710 = vpack.c.b16 %v1694, %v1694
    %v1711 = vpack.c.b16 %v1695, %v1695
    %v1712 = vpack.c.b16 %v1696, %v1696
    %v1713 = vpack.c.b16 %v1697, %v1697
    %v1714 = vpack.c.b16 %v1698, %v1698
    %v1715 = vpack.c.b16 %v1699, %v1699
    %v1716 = vpack.c.b16 %v1700, %v1700
    %v1717 = vpack.c.b16 %v1701, %v1701
    %v1718 = vpack.c.b16 %v1702, %v1702
    %v1719 = vpack.c.b16 %v1703, %v1703
    %v1720 = vpack.c.b16 %v1704, %v1704
    %v1721 = vpack.c.b16 %v1705, %v1705
    %v1722 = vpack.c.b16 %v1706, %v1706
    %v1723 = vpack.c.b16 %v1707, %v1707
    %1740 = vst [vmem:[%s4] sm:$0xf] %v1708
    %1741 = vst [vmem:[%s4 + $0x4] sm:$0xf] %v1709
    %1742 = vst [vmem:[%s4 + $0x8] sm:$0xf] %v1710
    %1743 = vst [vmem:[%s4 + $0xc] sm:$0xf] %v1711
    %1744 = vst [vmem:[%s4 + $0x10] sm:$0xf] %v1712
    %1745 = vst [vmem:[%s4 + $0x14] sm:$0xf] %v1713
    %1746 = vst [vmem:[%s4 + $0x18] sm:$0xf] %v1714
    %1747 = vst [vmem:[%s4 + $0x1c] sm:$0xf] %v1715
    %1748 = vst [vmem:[%s4 + $0x20] sm:$0xf] %v1716
    %1749 = vst [vmem:[%s4 + $0x24] sm:$0xf] %v1717
    %1750 = vst [vmem:[%s4 + $0x28] sm:$0xf] %v1718
    %1751 = vst [vmem:[%s4 + $0x2c] sm:$0xf] %v1719
    %1752 = vst [vmem:[%s4 + $0x30] sm:$0xf] %v1720
    %1753 = vst [vmem:[%s4 + $0x34] sm:$0xf] %v1721
    %1754 = vst [vmem:[%s4 + $0x38] sm:$0xf] %v1722
    %1755 = vst [vmem:[%s4 + $0x3c] sm:$0xf] %v1723
  $region25: #{_lambda_.57} parent=0 // pred_fallthru
    _
  // Predicated region
  $region26: #{_lambda_.57} parent=0 // pred_check
    _
  $region27: #{_lambda_.57} parent=0 // pred_check_branch
    %1757 = sbr.rel (0) target = $region29
  $region28: #{_lambda_.57} parent=0 // pred_region
    _
  $region29: #{_lambda_.57} parent=0 // pred_fallthru
    _
  // Predicated region
  $region30: #{_lambda_.57} parent=0 // pred_check
    _
  $region31: #{_lambda_.57} parent=0 // pred_check_branch
    %1759 = sbr.rel (0) target = $region33
  $region32: #{_lambda_.57} parent=0 // pred_region
    _
  $region33: #{_lambda_.57} parent=0 // pred_fallthru
    _

// kernel: _lambda_.68
$region0: #{_lambda_.68}
  #allocation0 [shape = 'u32[]', space=smem, size = 0x4, offset = 0x4, fixed_abs, tag = 'smem constant byte address 0x4 - core index']
  #allocation1 [shape = 'u32[144,128]{1,0:T(1,128)}', space=vmem, size = 0x12000, scoped, tag = 'internal scratch']
  #allocation2 [shape = 'f32[32,128]{1,0:T(8,128)}', space=vmem, size = 0x4000, scoped, tag = 'scratch operand']
  %s0 = inlined_call_operand.vmem [shape: bf16[32,128], index: 0, kind: input, shape index: {}]
  %s1 = inlined_call_operand.vmem [shape: bf16[128,128], index: 1, kind: input, shape index: {}]
  %s2 = inlined_call_operand.vmem [shape: f32[1,128], index: 2, kind: input, shape index: {}]
  %s3 = inlined_call_operand.vmem [shape: f32[1,128], index: 3, kind: input, shape index: {}]
  %s4 = inlined_call_operand.vmem [shape: bf16[32,128], index: 4, kind: output, shape index: {}]
  %s5 = sld [smem:[#allocation0]]
  $region34: #{_lambda_.68} parent=0
    _
  %s7 = ssub.s32 1, %s5
  %s8 = scalar_select 0, %s7, %s5
  // Predicated region
  $region2: #{_lambda_.68} parent=0 // pred_check
    _
  $region3: #{_lambda_.68} parent=0 // pred_check_branch
    %10 = sbr.rel (0) target = $region5
  $region4: #{_lambda_.68} parent=0 // pred_region
    _
  $region5: #{_lambda_.68} parent=0 // pred_fallthru
    _
  // Predicated region
  $region6: #{_lambda_.68} parent=0 // pred_check
    _
  $region7: #{_lambda_.68} parent=0 // pred_check_branch
    %12 = sbr.rel (0) target = $region9
  $region8: #{_lambda_.68} parent=0 // pred_region
    _
  $region9: #{_lambda_.68} parent=0 // pred_fallthru
    _
  // Predicated region
  $region10: #{_lambda_.68} parent=0 // pred_check
    _
  $region11: #{_lambda_.68} parent=0 // pred_check_branch
    %14 = sbr.rel (0) target = $region13
  $region12: #{_lambda_.68} parent=0 // pred_region
    _
  $region13: #{_lambda_.68} parent=0 // pred_fallthru
    _
  // Predicated region
  $region14: #{_lambda_.68} parent=0 // pred_check
    _
  $region15: #{_lambda_.68} parent=0 // pred_check_branch
    %16 = sbr.rel (0) target = $region17
  $region16: #{_lambda_.68} parent=0 // pred_region
    _
  $region17: #{_lambda_.68} parent=0 // pred_fallthru
    _
  %p18 = scmp.eq.s32.totalorder 0, 0
  // Predicated region
  $region18: #{_lambda_.68} parent=0 // pred_check
    %p19 = pneg %p18
  $region19: #{_lambda_.68} parent=0 // pred_check_branch
    %21 = sbr.rel (%p19) target = $region21
  $region20: #{_lambda_.68} parent=0 // pred_region
    %22 = vst [vmem:[#allocation2] sm:$0xff] 0.0
    %23 = vst [vmem:[#allocation2 + $0x8] sm:$0xff] 0.0
    %24 = vst [vmem:[#allocation2 + $0x10] sm:$0xff] 0.0
    %25 = vst [vmem:[#allocation2 + $0x18] sm:$0xff] 0.0
  $region21: #{_lambda_.68} parent=0 // pred_fallthru
    _
  %v26 = vld [vmem:[#allocation2] sm:$0xff]
  %v27 = vld [vmem:[#allocation2 + $0x8] sm:$0xff]
  %v28 = vld [vmem:[#allocation2 + $0x10] sm:$0xff]
  %v29 = vld [vmem:[#allocation2 + $0x18] sm:$0xff]
  %v30 = vld [vmem:[%s0] sm:$0xf]
  %v31 = vld [vmem:[%s0 + $0x4] sm:$0xf]
  %v32 = vld [vmem:[%s0 + $0x8] sm:$0xf]
  %v33 = vld [vmem:[%s0 + $0xc] sm:$0xf]
  %v34 = vld [vmem:[%s1] sm:$0xf]
  %v35 = vld [vmem:[%s1 + $0x4] sm:$0xf]
  %v36 = vld [vmem:[%s1 + $0x8] sm:$0xf]
  %v37 = vld [vmem:[%s1 + $0xc] sm:$0xf]
  %v38 = vld [vmem:[%s1 + $0x10] sm:$0xf]
  %v39 = vld [vmem:[%s1 + $0x14] sm:$0xf]
  %v40 = vld [vmem:[%s1 + $0x18] sm:$0xf]
  %v41 = vld [vmem:[%s1 + $0x1c] sm:$0xf]
  %v42 = vld [vmem:[%s1 + $0x20] sm:$0xf]
  %v43 = vld [vmem:[%s1 + $0x24] sm:$0xf]
  %v44 = vld [vmem:[%s1 + $0x28] sm:$0xf]
  %v45 = vld [vmem:[%s1 + $0x2c] sm:$0xf]
  %v46 = vld [vmem:[%s1 + $0x30] sm:$0xf]
  %v47 = vld [vmem:[%s1 + $0x34] sm:$0xf]
  %v48 = vld [vmem:[%s1 + $0x38] sm:$0xf]
  %v49 = vld [vmem:[%s1 + $0x3c] sm:$0xf]
  %v54 = vunpack.c.l.b16 %v30
  %v55 = vunpack.c.l.b16 %v31
  %v56 = vunpack.c.l.b16 %v32
  %v57 = vunpack.c.l.b16 %v33
  %v58 = vpack.c.b16 %v55, %v54
  %v59 = vpack.c.b16 %v57, %v56
  %v78 = vunpack.c.l.b16 %v34
  %v79 = vunpack.c.l.b16 %v35
  %v80 = vunpack.c.l.b16 %v36
  %v81 = vunpack.c.l.b16 %v37
  %v82 = vunpack.c.l.b16 %v38
  %v83 = vunpack.c.l.b16 %v39
  %v84 = vunpack.c.l.b16 %v40
  %v85 = vunpack.c.l.b16 %v41
  %v86 = vunpack.c.l.b16 %v42
  %v87 = vunpack.c.l.b16 %v43
  %v88 = vunpack.c.l.b16 %v44
  %v89 = vunpack.c.l.b16 %v45
  %v90 = vunpack.c.l.b16 %v46
  %v91 = vunpack.c.l.b16 %v47
  %v92 = vunpack.c.l.b16 %v48
  %v93 = vunpack.c.l.b16 %v49
  %v94 = vpack.c.b16 %v79, %v78
  %v95 = vpack.c.b16 %v81, %v80
  %v96 = vpack.c.b16 %v83, %v82
  %v97 = vpack.c.b16 %v85, %v84
  %v98 = vpack.c.b16 %v87, %v86
  %v99 = vpack.c.b16 %v89, %v88
  %v100 = vpack.c.b16 %v91, %v90
  %v101 = vpack.c.b16 %v93, %v92
  %110 = vmatprep.subr.bf16.mxu0 0
  %111 = vmatpush1.bf16.msra.mxu0 %v101
  %112 = vmatprep.subr.bf16.mxu0 0
  %113 = vmatpush1.bf16.msra.mxu0 %v100
  %114 = vmatprep.subr.bf16.mxu0 0
  %115 = vmatpush1.bf16.msra.mxu0 %v99
  %116 = vmatprep.subr.bf16.mxu0 0
  %117 = vmatpush1.bf16.msra.mxu0 %v98
  %118 = vmatprep.subr.bf16.mxu0 0
  %119 = vmatpush1.bf16.msra.mxu0 %v97
  %120 = vmatprep.subr.bf16.mxu0 0
  %121 = vmatpush1.bf16.msra.mxu0 %v96
  %122 = vmatprep.subr.bf16.mxu0 0
  %123 = vmatpush1.bf16.msra.mxu0 %v95
  %124 = vmatprep.subr.bf16.mxu0 0
  %125 = vmatpush1.bf16.msra.mxu0 %v94
  %126 = vmatprep.subr.bf16.mxu0 0
  %127 = vmatpush2.bf16.msra.mxu0 0
  %128 = vmatprep.subr.bf16.mxu0 0
  %129 = vmatpush2.bf16.msra.mxu0 0
  %130 = vmatprep.subr.bf16.mxu0 0
  %131 = vmatpush2.bf16.msra.mxu0 0
  %132 = vmatprep.subr.bf16.mxu0 0
  %133 = vmatpush2.bf16.msra.mxu0 0
  %134 = vmatprep.subr.bf16.mxu0 0
  %135 = vmatpush2.bf16.msra.mxu0 0
  %136 = vmatprep.subr.bf16.mxu0 0
  %137 = vmatpush2.bf16.msra.mxu0 0
  %138 = vmatprep.subr.bf16.mxu0 0
  %139 = vmatpush2.bf16.msra.mxu0 0
  %140 = vmatprep.subr.bf16.mxu0 0
  %141 = vmatpush2.bf16.msra.mxu0 0
  %142 = vmatprep.mubr.bf16.mxu0 0
  %143 = vmatmul.mubr.bf16.gmra.mxu0 %v58
  %v144 = vpop.f32.mrf.mxu0
  %v145 = vadd.f32 0.0, %v144
  %v146 = vpop.f32.mrf.mxu0
  %v147 = vpop.f32.mrf.mxu0
  %v148 = vadd.f32 0.0, %v147
  %v149 = vpop.f32.mrf.mxu0
  %150 = vmatprep.mubr.bf16.mxu0 0
  %151 = vmatmul.mubr.bf16.gmra.mxu0 %v59
  %v152 = vpop.f32.mrf.mxu0
  %v153 = vadd.f32 0.0, %v152
  %v154 = vpop.f32.mrf.mxu0
  %v155 = vpop.f32.mrf.mxu0
  %v156 = vadd.f32 0.0, %v155
  %v157 = vpop.f32.mrf.mxu0
  %158 = vdwg.mxu0
  %v159 = vadd.f32 %v26, %v145
  %v160 = vadd.f32 %v27, %v148
  %v161 = vadd.f32 %v28, %v153
  %v162 = vadd.f32 %v29, %v156
  %163 = vst [vmem:[#allocation2] sm:$0xff] %v159
  %164 = vst [vmem:[#allocation2 + $0x8] sm:$0xff] %v160
  %165 = vst [vmem:[#allocation2 + $0x10] sm:$0xff] %v161
  %166 = vst [vmem:[#allocation2 + $0x18] sm:$0xff] %v162
  // Predicated region
  $region22: #{_lambda_.68} parent=0 // pred_check
    %p167 = pneg %p18
  $region23: #{_lambda_.68} parent=0 // pred_check_branch
    %169 = sbr.rel (%p167) target = $region25
  $region24: #{_lambda_.68} parent=0 // pred_region
    %v170 = vld [vmem:[#allocation2] sm:$0xff]
    %v171 = vld [vmem:[#allocation2 + $0x8] sm:$0xff]
    %v172 = vld [vmem:[#allocation2 + $0x10] sm:$0xff]
    %v173 = vld [vmem:[#allocation2 + $0x18] sm:$0xff]
    %v174 = vld [vmem:[%s2] sm:$0x1]
    %v176 = vlaneseq
    %v177 = vshrl.u32 %v176, 7
    %v178 = vsub.s32 0, %v177
    %v179 = vrot.slane %v174, %v178
    %v181 = vmul.f32 %v170, %v179
    %v182 = vmul.f32 %v171, %v179
    %v183 = vmul.f32 %v172, %v179
    %v184 = vmul.f32 %v173, %v179
    %v185 = vld [vmem:[%s3] sm:$0x1]
    %v187 = vlaneseq
    %v188 = vshrl.u32 %v187, 7
    %v189 = vsub.s32 0, %v188
    %v190 = vrot.slane %v185, %v189
    %v192 = vadd.f32 %v181, %v190
    %v193 = vadd.f32 %v182, %v190
    %v194 = vadd.f32 %v183, %v190
    %v195 = vadd.f32 %v184, %v190
    %v196 = vpack.c.bf16 %v193, %v192
    %v197 = vpack.c.bf16 %v195, %v194
    %v200 = vunpack.c.l.b16 %v196
    %v201 = vunpack.c.h.b16 %v196
    %v202 = vunpack.c.l.b16 %v197
    %v203 = vunpack.c.h.b16 %v197
    %v204 = vpack.c.b16 %v200, %v200
    %v205 = vpack.c.b16 %v201, %v201
    %v206 = vpack.c.b16 %v202, %v202
    %v207 = vpack.c.b16 %v203, %v203
    %212 = vst [vmem:[%s4] sm:$0xf] %v204
    %213 = vst [vmem:[%s4 + $0x4] sm:$0xf] %v205
    %214 = vst [vmem:[%s4 + $0x8] sm:$0xf] %v206
    %215 = vst [vmem:[%s4 + $0xc] sm:$0xf] %v207
  $region25: #{_lambda_.68} parent=0 // pred_fallthru
    _
  // Predicated region
  $region26: #{_lambda_.68} parent=0 // pred_check
    _
  $region27: #{_lambda_.68} parent=0 // pred_check_branch
    %217 = sbr.rel (0) target = $region29
  $region28: #{_lambda_.68} parent=0 // pred_region
    _
  $region29: #{_lambda_.68} parent=0 // pred_fallthru
    _
  // Predicated region
  $region30: #{_lambda_.68} parent=0 // pred_check
    _
  $region31: #{_lambda_.68} parent=0 // pred_check_branch
    %219 = sbr.rel (0) target = $region33
  $region32: #{_lambda_.68} parent=0 // pred_region
    _
  $region33: #{_lambda_.68} parent=0 // pred_fallthru
    _

// kernel: _lambda_.70
$region0: #{_lambda_.70}
  #allocation0 [shape = 'u32[]', space=smem, size = 0x4, offset = 0x4, fixed_abs, tag = 'smem constant byte address 0x4 - core index']
  #allocation1 [shape = 'u32[144,128]{1,0:T(1,128)}', space=vmem, size = 0x12000, scoped, tag = 'internal scratch']
  #allocation2 [shape = 'f32[32,128]{1,0:T(8,128)}', space=vmem, size = 0x4000, scoped, tag = 'scratch operand']
  %s0 = inlined_call_operand.vmem [shape: bf16[32,128], index: 0, kind: input, shape index: {}]
  %s1 = inlined_call_operand.vmem [shape: bf16[128,128], index: 1, kind: input, shape index: {}]
  %s2 = inlined_call_operand.vmem [shape: f32[1,128], index: 2, kind: input, shape index: {}]
  %s3 = inlined_call_operand.vmem [shape: f32[1,128], index: 3, kind: input, shape index: {}]
  %s4 = inlined_call_operand.vmem [shape: bf16[32,128], index: 4, kind: output, shape index: {}]
  %s5 = sld [smem:[#allocation0]]
  $region34: #{_lambda_.70} parent=0
    _
  %s7 = ssub.s32 1, %s5
  %s8 = scalar_select 0, %s7, %s5
  // Predicated region
  $region2: #{_lambda_.70} parent=0 // pred_check
    _
  $region3: #{_lambda_.70} parent=0 // pred_check_branch
    %10 = sbr.rel (0) target = $region5
  $region4: #{_lambda_.70} parent=0 // pred_region
    _
  $region5: #{_lambda_.70} parent=0 // pred_fallthru
    _
  // Predicated region
  $region6: #{_lambda_.70} parent=0 // pred_check
    _
  $region7: #{_lambda_.70} parent=0 // pred_check_branch
    %12 = sbr.rel (0) target = $region9
  $region8: #{_lambda_.70} parent=0 // pred_region
    _
  $region9: #{_lambda_.70} parent=0 // pred_fallthru
    _
  // Predicated region
  $region10: #{_lambda_.70} parent=0 // pred_check
    _
  $region11: #{_lambda_.70} parent=0 // pred_check_branch
    %14 = sbr.rel (0) target = $region13
  $region12: #{_lambda_.70} parent=0 // pred_region
    _
  $region13: #{_lambda_.70} parent=0 // pred_fallthru
    _
  // Predicated region
  $region14: #{_lambda_.70} parent=0 // pred_check
    _
  $region15: #{_lambda_.70} parent=0 // pred_check_branch
    %16 = sbr.rel (0) target = $region17
  $region16: #{_lambda_.70} parent=0 // pred_region
    _
  $region17: #{_lambda_.70} parent=0 // pred_fallthru
    _
  %p18 = scmp.eq.s32.totalorder 0, 0
  // Predicated region
  $region18: #{_lambda_.70} parent=0 // pred_check
    %p19 = pneg %p18
  $region19: #{_lambda_.70} parent=0 // pred_check_branch
    %21 = sbr.rel (%p19) target = $region21
  $region20: #{_lambda_.70} parent=0 // pred_region
    %22 = vst [vmem:[#allocation2] sm:$0xff] 0.0
    %23 = vst [vmem:[#allocation2 + $0x8] sm:$0xff] 0.0
    %24 = vst [vmem:[#allocation2 + $0x10] sm:$0xff] 0.0
    %25 = vst [vmem:[#allocation2 + $0x18] sm:$0xff] 0.0
  $region21: #{_lambda_.70} parent=0 // pred_fallthru
    _
  %v26 = vld [vmem:[#allocation2] sm:$0xff]
  %v27 = vld [vmem:[#allocation2 + $0x8] sm:$0xff]
  %v28 = vld [vmem:[#allocation2 + $0x10] sm:$0xff]
  %v29 = vld [vmem:[#allocation2 + $0x18] sm:$0xff]
  %v30 = vld [vmem:[%s0] sm:$0xf]
  %v31 = vld [vmem:[%s0 + $0x4] sm:$0xf]
  %v32 = vld [vmem:[%s0 + $0x8] sm:$0xf]
  %v33 = vld [vmem:[%s0 + $0xc] sm:$0xf]
  %v34 = vld [vmem:[%s1] sm:$0xf]
  %v35 = vld [vmem:[%s1 + $0x4] sm:$0xf]
  %v36 = vld [vmem:[%s1 + $0x8] sm:$0xf]
  %v37 = vld [vmem:[%s1 + $0xc] sm:$0xf]
  %v38 = vld [vmem:[%s1 + $0x10] sm:$0xf]
  %v39 = vld [vmem:[%s1 + $0x14] sm:$0xf]
  %v40 = vld [vmem:[%s1 + $0x18] sm:$0xf]
  %v41 = vld [vmem:[%s1 + $0x1c] sm:$0xf]
  %v42 = vld [vmem:[%s1 + $0x20] sm:$0xf]
  %v43 = vld [vmem:[%s1 + $0x24] sm:$0xf]
  %v44 = vld [vmem:[%s1 + $0x28] sm:$0xf]
  %v45 = vld [vmem:[%s1 + $0x2c] sm:$0xf]
  %v46 = vld [vmem:[%s1 + $0x30] sm:$0xf]
  %v47 = vld [vmem:[%s1 + $0x34] sm:$0xf]
  %v48 = vld [vmem:[%s1 + $0x38] sm:$0xf]
  %v49 = vld [vmem:[%s1 + $0x3c] sm:$0xf]
  %v54 = vunpack.c.l.b16 %v30
  %v55 = vunpack.c.l.b16 %v31
  %v56 = vunpack.c.l.b16 %v32
  %v57 = vunpack.c.l.b16 %v33
  %v58 = vpack.c.b16 %v55, %v54
  %v59 = vpack.c.b16 %v57, %v56
  %v78 = vunpack.c.l.b16 %v34
  %v79 = vunpack.c.l.b16 %v35
  %v80 = vunpack.c.l.b16 %v36
  %v81 = vunpack.c.l.b16 %v37
  %v82 = vunpack.c.l.b16 %v38
  %v83 = vunpack.c.l.b16 %v39
  %v84 = vunpack.c.l.b16 %v40
  %v85 = vunpack.c.l.b16 %v41
  %v86 = vunpack.c.l.b16 %v42
  %v87 = vunpack.c.l.b16 %v43
  %v88 = vunpack.c.l.b16 %v44
  %v89 = vunpack.c.l.b16 %v45
  %v90 = vunpack.c.l.b16 %v46
  %v91 = vunpack.c.l.b16 %v47
  %v92 = vunpack.c.l.b16 %v48
  %v93 = vunpack.c.l.b16 %v49
  %v94 = vpack.c.b16 %v79, %v78
  %v95 = vpack.c.b16 %v81, %v80
  %v96 = vpack.c.b16 %v83, %v82
  %v97 = vpack.c.b16 %v85, %v84
  %v98 = vpack.c.b16 %v87, %v86
  %v99 = vpack.c.b16 %v89, %v88
  %v100 = vpack.c.b16 %v91, %v90
  %v101 = vpack.c.b16 %v93, %v92
  %110 = vmatprep.subr.bf16.mxu0 0
  %111 = vmatpush1.bf16.msra.mxu0 %v101
  %112 = vmatprep.subr.bf16.mxu0 0
  %113 = vmatpush1.bf16.msra.mxu0 %v100
  %114 = vmatprep.subr.bf16.mxu0 0
  %115 = vmatpush1.bf16.msra.mxu0 %v99
  %116 = vmatprep.subr.bf16.mxu0 0
  %117 = vmatpush1.bf16.msra.mxu0 %v98
  %118 = vmatprep.subr.bf16.mxu0 0
  %119 = vmatpush1.bf16.msra.mxu0 %v97
  %120 = vmatprep.subr.bf16.mxu0 0
  %121 = vmatpush1.bf16.msra.mxu0 %v96
  %122 = vmatprep.subr.bf16.mxu0 0
  %123 = vmatpush1.bf16.msra.mxu0 %v95
  %124 = vmatprep.subr.bf16.mxu0 0
  %125 = vmatpush1.bf16.msra.mxu0 %v94
  %126 = vmatprep.subr.bf16.mxu0 0
  %127 = vmatpush2.bf16.msra.mxu0 0
  %128 = vmatprep.subr.bf16.mxu0 0
  %129 = vmatpush2.bf16.msra.mxu0 0
  %130 = vmatprep.subr.bf16.mxu0 0
  %131 = vmatpush2.bf16.msra.mxu0 0
  %132 = vmatprep.subr.bf16.mxu0 0
  %133 = vmatpush2.bf16.msra.mxu0 0
  %134 = vmatprep.subr.bf16.mxu0 0
  %135 = vmatpush2.bf16.msra.mxu0 0
  %136 = vmatprep.subr.bf16.mxu0 0
  %137 = vmatpush2.bf16.msra.mxu0 0
  %138 = vmatprep.subr.bf16.mxu0 0
  %139 = vmatpush2.bf16.msra.mxu0 0
  %140 = vmatprep.subr.bf16.mxu0 0
  %141 = vmatpush2.bf16.msra.mxu0 0
  %142 = vmatprep.mubr.bf16.mxu0 0
  %143 = vmatmul.mubr.bf16.gmra.mxu0 %v58
  %v144 = vpop.f32.mrf.mxu0
  %v145 = vadd.f32 0.0, %v144
  %v146 = vpop.f32.mrf.mxu0
  %v147 = vpop.f32.mrf.mxu0
  %v148 = vadd.f32 0.0, %v147
  %v149 = vpop.f32.mrf.mxu0
  %150 = vmatprep.mubr.bf16.mxu0 0
  %151 = vmatmul.mubr.bf16.gmra.mxu0 %v59
  %v152 = vpop.f32.mrf.mxu0
  %v153 = vadd.f32 0.0, %v152
  %v154 = vpop.f32.mrf.mxu0
  %v155 = vpop.f32.mrf.mxu0
  %v156 = vadd.f32 0.0, %v155
  %v157 = vpop.f32.mrf.mxu0
  %158 = vdwg.mxu0
  %v159 = vadd.f32 %v26, %v145
  %v160 = vadd.f32 %v27, %v148
  %v161 = vadd.f32 %v28, %v153
  %v162 = vadd.f32 %v29, %v156
  %163 = vst [vmem:[#allocation2] sm:$0xff] %v159
  %164 = vst [vmem:[#allocation2 + $0x8] sm:$0xff] %v160
  %165 = vst [vmem:[#allocation2 + $0x10] sm:$0xff] %v161
  %166 = vst [vmem:[#allocation2 + $0x18] sm:$0xff] %v162
  // Predicated region
  $region22: #{_lambda_.70} parent=0 // pred_check
    %p167 = pneg %p18
  $region23: #{_lambda_.70} parent=0 // pred_check_branch
    %169 = sbr.rel (%p167) target = $region25
  $region24: #{_lambda_.70} parent=0 // pred_region
    %v170 = vld [vmem:[#allocation2] sm:$0xff]
    %v171 = vld [vmem:[#allocation2 + $0x8] sm:$0xff]
    %v172 = vld [vmem:[#allocation2 + $0x10] sm:$0xff]
    %v173 = vld [vmem:[#allocation2 + $0x18] sm:$0xff]
    %v174 = vld [vmem:[%s2] sm:$0x1]
    %v176 = vlaneseq
    %v177 = vshrl.u32 %v176, 7
    %v178 = vsub.s32 0, %v177
    %v179 = vrot.slane %v174, %v178
    %v181 = vmul.f32 %v170, %v179
    %v182 = vmul.f32 %v171, %v179
    %v183 = vmul.f32 %v172, %v179
    %v184 = vmul.f32 %v173, %v179
    %v185 = vld [vmem:[%s3] sm:$0x1]
    %v187 = vlaneseq
    %v188 = vshrl.u32 %v187, 7
    %v189 = vsub.s32 0, %v188
    %v190 = vrot.slane %v185, %v189
    %v192 = vadd.f32 %v181, %v190
    %v193 = vadd.f32 %v182, %v190
    %v194 = vadd.f32 %v183, %v190
    %v195 = vadd.f32 %v184, %v190
    %v196 = vmax.f32 %v192, 0.0
    %v197 = vmax.f32 %v193, 0.0
    %v198 = vmax.f32 %v194, 0.0
    %v199 = vmax.f32 %v195, 0.0
    %v200 = vpack.c.bf16 %v197, %v196
    %v201 = vpack.c.bf16 %v199, %v198
    %v204 = vunpack.c.l.b16 %v200
    %v205 = vunpack.c.h.b16 %v200
    %v206 = vunpack.c.l.b16 %v201
    %v207 = vunpack.c.h.b16 %v201
    %v208 = vpack.c.b16 %v204, %v204
    %v209 = vpack.c.b16 %v205, %v205
    %v210 = vpack.c.b16 %v206, %v206
    %v211 = vpack.c.b16 %v207, %v207
    %216 = vst [vmem:[%s4] sm:$0xf] %v208
    %217 = vst [vmem:[%s4 + $0x4] sm:$0xf] %v209
    %218 = vst [vmem:[%s4 + $0x8] sm:$0xf] %v210
    %219 = vst [vmem:[%s4 + $0xc] sm:$0xf] %v211
  $region25: #{_lambda_.70} parent=0 // pred_fallthru
    _
  // Predicated region
  $region26: #{_lambda_.70} parent=0 // pred_check
    _
  $region27: #{_lambda_.70} parent=0 // pred_check_branch
    %221 = sbr.rel (0) target = $region29
  $region28: #{_lambda_.70} parent=0 // pred_region
    _
  $region29: #{_lambda_.70} parent=0 // pred_fallthru
    _
  // Predicated region
  $region30: #{_lambda_.70} parent=0 // pred_check
    _
  $region31: #{_lambda_.70} parent=0 // pred_check_branch
    %223 = sbr.rel (0) target = $region33
  $region32: #{_lambda_.70} parent=0 // pred_region
    _
  $region33: #{_lambda_.70} parent=0 // pred_fallthru
    _

// kernel: _lambda_.69
$region0: #{_lambda_.69}
  #allocation0 [shape = 'u32[]', space=smem, size = 0x4, offset = 0x4, fixed_abs, tag = 'smem constant byte address 0x4 - core index']
  #allocation1 [shape = 'u32[144,128]{1,0:T(1,128)}', space=vmem, size = 0x12000, scoped, tag = 'internal scratch']
  #allocation2 [shape = 'f32[32,128]{1,0:T(8,128)}', space=vmem, size = 0x4000, scoped, tag = 'scratch operand']
  %s0 = inlined_call_operand.vmem [shape: bf16[32,128], index: 0, kind: input, shape index: {}]
  %s1 = inlined_call_operand.vmem [shape: bf16[128,128], index: 1, kind: input, shape index: {}]
  %s2 = inlined_call_operand.vmem [shape: f32[1,128], index: 2, kind: input, shape index: {}]
  %s3 = inlined_call_operand.vmem [shape: f32[1,128], index: 3, kind: input, shape index: {}]
  %s4 = inlined_call_operand.vmem [shape: bf16[32,128], index: 4, kind: input, shape index: {}]
  %s5 = inlined_call_operand.vmem [shape: bf16[32,128], index: 5, kind: output, shape index: {}]
  %s6 = sld [smem:[#allocation0]]
  $region38: #{_lambda_.69} parent=0
    _
  %s8 = ssub.s32 1, %s6
  %s9 = scalar_select 0, %s8, %s6
  // Predicated region
  $region2: #{_lambda_.69} parent=0 // pred_check
    _
  $region3: #{_lambda_.69} parent=0 // pred_check_branch
    %11 = sbr.rel (0) target = $region5
  $region4: #{_lambda_.69} parent=0 // pred_region
    _
  $region5: #{_lambda_.69} parent=0 // pred_fallthru
    _
  // Predicated region
  $region6: #{_lambda_.69} parent=0 // pred_check
    _
  $region7: #{_lambda_.69} parent=0 // pred_check_branch
    %13 = sbr.rel (0) target = $region9
  $region8: #{_lambda_.69} parent=0 // pred_region
    _
  $region9: #{_lambda_.69} parent=0 // pred_fallthru
    _
  // Predicated region
  $region10: #{_lambda_.69} parent=0 // pred_check
    _
  $region11: #{_lambda_.69} parent=0 // pred_check_branch
    %15 = sbr.rel (0) target = $region13
  $region12: #{_lambda_.69} parent=0 // pred_region
    _
  $region13: #{_lambda_.69} parent=0 // pred_fallthru
    _
  // Predicated region
  $region14: #{_lambda_.69} parent=0 // pred_check
    _
  $region15: #{_lambda_.69} parent=0 // pred_check_branch
    %17 = sbr.rel (0) target = $region17
  $region16: #{_lambda_.69} parent=0 // pred_region
    _
  $region17: #{_lambda_.69} parent=0 // pred_fallthru
    _
  // Predicated region
  $region18: #{_lambda_.69} parent=0 // pred_check
    _
  $region19: #{_lambda_.69} parent=0 // pred_check_branch
    %19 = sbr.rel (0) target = $region21
  $region20: #{_lambda_.69} parent=0 // pred_region
    _
  $region21: #{_lambda_.69} parent=0 // pred_fallthru
    _
  %p21 = scmp.eq.s32.totalorder 0, 0
  // Predicated region
  $region22: #{_lambda_.69} parent=0 // pred_check
    %p22 = pneg %p21
  $region23: #{_lambda_.69} parent=0 // pred_check_branch
    %24 = sbr.rel (%p22) target = $region25
  $region24: #{_lambda_.69} parent=0 // pred_region
    %25 = vst [vmem:[#allocation2] sm:$0xff] 0.0
    %26 = vst [vmem:[#allocation2 + $0x8] sm:$0xff] 0.0
    %27 = vst [vmem:[#allocation2 + $0x10] sm:$0xff] 0.0
    %28 = vst [vmem:[#allocation2 + $0x18] sm:$0xff] 0.0
  $region25: #{_lambda_.69} parent=0 // pred_fallthru
    _
  %v29 = vld [vmem:[#allocation2] sm:$0xff]
  %v30 = vld [vmem:[#allocation2 + $0x8] sm:$0xff]
  %v31 = vld [vmem:[#allocation2 + $0x10] sm:$0xff]
  %v32 = vld [vmem:[#allocation2 + $0x18] sm:$0xff]
  %v33 = vld [vmem:[%s0] sm:$0xf]
  %v34 = vld [vmem:[%s0 + $0x4] sm:$0xf]
  %v35 = vld [vmem:[%s0 + $0x8] sm:$0xf]
  %v36 = vld [vmem:[%s0 + $0xc] sm:$0xf]
  %v37 = vld [vmem:[%s1] sm:$0xf]
  %v38 = vld [vmem:[%s1 + $0x4] sm:$0xf]
  %v39 = vld [vmem:[%s1 + $0x8] sm:$0xf]
  %v40 = vld [vmem:[%s1 + $0xc] sm:$0xf]
  %v41 = vld [vmem:[%s1 + $0x10] sm:$0xf]
  %v42 = vld [vmem:[%s1 + $0x14] sm:$0xf]
  %v43 = vld [vmem:[%s1 + $0x18] sm:$0xf]
  %v44 = vld [vmem:[%s1 + $0x1c] sm:$0xf]
  %v45 = vld [vmem:[%s1 + $0x20] sm:$0xf]
  %v46 = vld [vmem:[%s1 + $0x24] sm:$0xf]
  %v47 = vld [vmem:[%s1 + $0x28] sm:$0xf]
  %v48 = vld [vmem:[%s1 + $0x2c] sm:$0xf]
  %v49 = vld [vmem:[%s1 + $0x30] sm:$0xf]
  %v50 = vld [vmem:[%s1 + $0x34] sm:$0xf]
  %v51 = vld [vmem:[%s1 + $0x38] sm:$0xf]
  %v52 = vld [vmem:[%s1 + $0x3c] sm:$0xf]
  %v57 = vunpack.c.l.b16 %v33
  %v58 = vunpack.c.l.b16 %v34
  %v59 = vunpack.c.l.b16 %v35
  %v60 = vunpack.c.l.b16 %v36
  %v61 = vpack.c.b16 %v58, %v57
  %v62 = vpack.c.b16 %v60, %v59
  %v81 = vunpack.c.l.b16 %v37
  %v82 = vunpack.c.l.b16 %v38
  %v83 = vunpack.c.l.b16 %v39
  %v84 = vunpack.c.l.b16 %v40
  %v85 = vunpack.c.l.b16 %v41
  %v86 = vunpack.c.l.b16 %v42
  %v87 = vunpack.c.l.b16 %v43
  %v88 = vunpack.c.l.b16 %v44
  %v89 = vunpack.c.l.b16 %v45
  %v90 = vunpack.c.l.b16 %v46
  %v91 = vunpack.c.l.b16 %v47
  %v92 = vunpack.c.l.b16 %v48
  %v93 = vunpack.c.l.b16 %v49
  %v94 = vunpack.c.l.b16 %v50
  %v95 = vunpack.c.l.b16 %v51
  %v96 = vunpack.c.l.b16 %v52
  %v97 = vpack.c.b16 %v82, %v81
  %v98 = vpack.c.b16 %v84, %v83
  %v99 = vpack.c.b16 %v86, %v85
  %v100 = vpack.c.b16 %v88, %v87
  %v101 = vpack.c.b16 %v90, %v89
  %v102 = vpack.c.b16 %v92, %v91
  %v103 = vpack.c.b16 %v94, %v93
  %v104 = vpack.c.b16 %v96, %v95
  %113 = vmatprep.subr.bf16.mxu0 0
  %114 = vmatpush1.bf16.msra.mxu0 %v104
  %115 = vmatprep.subr.bf16.mxu0 0
  %116 = vmatpush1.bf16.msra.mxu0 %v103
  %117 = vmatprep.subr.bf16.mxu0 0
  %118 = vmatpush1.bf16.msra.mxu0 %v102
  %119 = vmatprep.subr.bf16.mxu0 0
  %120 = vmatpush1.bf16.msra.mxu0 %v101
  %121 = vmatprep.subr.bf16.mxu0 0
  %122 = vmatpush1.bf16.msra.mxu0 %v100
  %123 = vmatprep.subr.bf16.mxu0 0
  %124 = vmatpush1.bf16.msra.mxu0 %v99
  %125 = vmatprep.subr.bf16.mxu0 0
  %126 = vmatpush1.bf16.msra.mxu0 %v98
  %127 = vmatprep.subr.bf16.mxu0 0
  %128 = vmatpush1.bf16.msra.mxu0 %v97
  %129 = vmatprep.subr.bf16.mxu0 0
  %130 = vmatpush2.bf16.msra.mxu0 0
  %131 = vmatprep.subr.bf16.mxu0 0
  %132 = vmatpush2.bf16.msra.mxu0 0
  %133 = vmatprep.subr.bf16.mxu0 0
  %134 = vmatpush2.bf16.msra.mxu0 0
  %135 = vmatprep.subr.bf16.mxu0 0
  %136 = vmatpush2.bf16.msra.mxu0 0
  %137 = vmatprep.subr.bf16.mxu0 0
  %138 = vmatpush2.bf16.msra.mxu0 0
  %139 = vmatprep.subr.bf16.mxu0 0
  %140 = vmatpush2.bf16.msra.mxu0 0
  %141 = vmatprep.subr.bf16.mxu0 0
  %142 = vmatpush2.bf16.msra.mxu0 0
  %143 = vmatprep.subr.bf16.mxu0 0
  %144 = vmatpush2.bf16.msra.mxu0 0
  %145 = vmatprep.mubr.bf16.mxu0 0
  %146 = vmatmul.mubr.bf16.gmra.mxu0 %v61
  %v147 = vpop.f32.mrf.mxu0
  %v148 = vadd.f32 0.0, %v147
  %v149 = vpop.f32.mrf.mxu0
  %v150 = vpop.f32.mrf.mxu0
  %v151 = vadd.f32 0.0, %v150
  %v152 = vpop.f32.mrf.mxu0
  %153 = vmatprep.mubr.bf16.mxu0 0
  %154 = vmatmul.mubr.bf16.gmra.mxu0 %v62
  %v155 = vpop.f32.mrf.mxu0
  %v156 = vadd.f32 0.0, %v155
  %v157 = vpop.f32.mrf.mxu0
  %v158 = vpop.f32.mrf.mxu0
  %v159 = vadd.f32 0.0, %v158
  %v160 = vpop.f32.mrf.mxu0
  %161 = vdwg.mxu0
  %v162 = vadd.f32 %v29, %v148
  %v163 = vadd.f32 %v30, %v151
  %v164 = vadd.f32 %v31, %v156
  %v165 = vadd.f32 %v32, %v159
  %166 = vst [vmem:[#allocation2] sm:$0xff] %v162
  %167 = vst [vmem:[#allocation2 + $0x8] sm:$0xff] %v163
  %168 = vst [vmem:[#allocation2 + $0x10] sm:$0xff] %v164
  %169 = vst [vmem:[#allocation2 + $0x18] sm:$0xff] %v165
  // Predicated region
  $region26: #{_lambda_.69} parent=0 // pred_check
    %p170 = pneg %p21
  $region27: #{_lambda_.69} parent=0 // pred_check_branch
    %172 = sbr.rel (%p170) target = $region29
  $region28: #{_lambda_.69} parent=0 // pred_region
    %v173 = vld [vmem:[#allocation2] sm:$0xff]
    %v174 = vld [vmem:[#allocation2 + $0x8] sm:$0xff]
    %v175 = vld [vmem:[#allocation2 + $0x10] sm:$0xff]
    %v176 = vld [vmem:[#allocation2 + $0x18] sm:$0xff]
    %v177 = vld [vmem:[%s2] sm:$0x1]
    %v179 = vlaneseq
    %v180 = vshrl.u32 %v179, 7
    %v181 = vsub.s32 0, %v180
    %v182 = vrot.slane %v177, %v181
    %v184 = vmul.f32 %v173, %v182
    %v185 = vmul.f32 %v174, %v182
    %v186 = vmul.f32 %v175, %v182
    %v187 = vmul.f32 %v176, %v182
    %v188 = vld [vmem:[%s3] sm:$0x1]
    %v190 = vlaneseq
    %v191 = vshrl.u32 %v190, 7
    %v192 = vsub.s32 0, %v191
    %v193 = vrot.slane %v188, %v192
    %v195 = vadd.f32 %v184, %v193
    %v196 = vadd.f32 %v185, %v193
    %v197 = vadd.f32 %v186, %v193
    %v198 = vadd.f32 %v187, %v193
    %v199 = vld [vmem:[%s4] sm:$0xf]
    %v200 = vld [vmem:[%s4 + $0x4] sm:$0xf]
    %v201 = vld [vmem:[%s4 + $0x8] sm:$0xf]
    %v202 = vld [vmem:[%s4 + $0xc] sm:$0xf]
    %v203 = vunpack.c.l.bf16 %v199
    %v204 = vunpack.c.l.bf16 %v200
    %v205 = vunpack.c.l.bf16 %v201
    %v206 = vunpack.c.l.bf16 %v202
    %v207 = vadd.f32 %v195, %v203
    %v208 = vadd.f32 %v196, %v204
    %v209 = vadd.f32 %v197, %v205
    %v210 = vadd.f32 %v198, %v206
    %v211 = vmax.f32 %v207, 0.0
    %v212 = vmax.f32 %v208, 0.0
    %v213 = vmax.f32 %v209, 0.0
    %v214 = vmax.f32 %v210, 0.0
    %v215 = vpack.c.bf16 %v212, %v211
    %v216 = vpack.c.bf16 %v214, %v213
    %v219 = vunpack.c.l.b16 %v215
    %v220 = vunpack.c.h.b16 %v215
    %v221 = vunpack.c.l.b16 %v216
    %v222 = vunpack.c.h.b16 %v216
    %v223 = vpack.c.b16 %v219, %v219
    %v224 = vpack.c.b16 %v220, %v220
    %v225 = vpack.c.b16 %v221, %v221
    %v226 = vpack.c.b16 %v222, %v222
    %231 = vst [vmem:[%s5] sm:$0xf] %v223
    %232 = vst [vmem:[%s5 + $0x4] sm:$0xf] %v224
    %233 = vst [vmem:[%s5 + $0x8] sm:$0xf] %v225
    %234 = vst [vmem:[%s5 + $0xc] sm:$0xf] %v226
  $region29: #{_lambda_.69} parent=0 // pred_fallthru
    _
  // Predicated region
  $region30: #{_lambda_.69} parent=0 // pred_check
    _
  $region31: #{_lambda_.69} parent=0 // pred_check_branch
    %236 = sbr.rel (0) target = $region33
  $region32: #{_lambda_.69} parent=0 // pred_region
    _
  $region33: #{_lambda_.69} parent=0 // pred_fallthru
    _
  // Predicated region
  $region34: #{_lambda_.69} parent=0 // pred_check
    _
  $region35: #{_lambda_.69} parent=0 // pred_check_branch
    %238 = sbr.rel (0) target = $region37
  $region36: #{_lambda_.69} parent=0 // pred_region
    _
  $region37: #{_lambda_.69} parent=0 // pred_fallthru
    _

// kernel: _lambda_.67
$region0: #{_lambda_.67}
  #allocation0 [shape = 'u32[]', space=smem, size = 0x4, offset = 0x4, fixed_abs, tag = 'smem constant byte address 0x4 - core index']
  #allocation1 [shape = 'u32[144,128]{1,0:T(1,128)}', space=vmem, size = 0x12000, scoped, tag = 'internal scratch']
  #allocation2 [shape = 'f32[32,128]{1,0:T(8,128)}', space=vmem, size = 0x4000, scoped, tag = 'scratch operand']
  %s0 = inlined_call_operand.vmem [shape: bf16[32,1152], index: 0, kind: input, shape index: {}]
  %s1 = inlined_call_operand.vmem [shape: bf16[1152,128], index: 1, kind: input, shape index: {}]
  %s2 = inlined_call_operand.vmem [shape: f32[1,128], index: 2, kind: input, shape index: {}]
  %s3 = inlined_call_operand.vmem [shape: f32[1,128], index: 3, kind: input, shape index: {}]
  %s4 = inlined_call_operand.vmem [shape: bf16[32,128], index: 4, kind: output, shape index: {}]
  %s5 = sld [smem:[#allocation0]]
  $region34: #{_lambda_.67} parent=0
    _
  %s7 = ssub.s32 1, %s5
  %s8 = scalar_select 0, %s7, %s5
  // Predicated region
  $region2: #{_lambda_.67} parent=0 // pred_check
    _
  $region3: #{_lambda_.67} parent=0 // pred_check_branch
    %10 = sbr.rel (0) target = $region5
  $region4: #{_lambda_.67} parent=0 // pred_region
    _
  $region5: #{_lambda_.67} parent=0 // pred_fallthru
    _
  // Predicated region
  $region6: #{_lambda_.67} parent=0 // pred_check
    _
  $region7: #{_lambda_.67} parent=0 // pred_check_branch
    %12 = sbr.rel (0) target = $region9
  $region8: #{_lambda_.67} parent=0 // pred_region
    _
  $region9: #{_lambda_.67} parent=0 // pred_fallthru
    _
  // Predicated region
  $region10: #{_lambda_.67} parent=0 // pred_check
    _
  $region11: #{_lambda_.67} parent=0 // pred_check_branch
    %14 = sbr.rel (0) target = $region13
  $region12: #{_lambda_.67} parent=0 // pred_region
    _
  $region13: #{_lambda_.67} parent=0 // pred_fallthru
    _
  // Predicated region
  $region14: #{_lambda_.67} parent=0 // pred_check
    _
  $region15: #{_lambda_.67} parent=0 // pred_check_branch
    %16 = sbr.rel (0) target = $region17
  $region16: #{_lambda_.67} parent=0 // pred_region
    _
  $region17: #{_lambda_.67} parent=0 // pred_fallthru
    _
  %p18 = scmp.eq.s32.totalorder 0, 0
  // Predicated region
  $region18: #{_lambda_.67} parent=0 // pred_check
    %p19 = pneg %p18
  $region19: #{_lambda_.67} parent=0 // pred_check_branch
    %21 = sbr.rel (%p19) target = $region21
  $region20: #{_lambda_.67} parent=0 // pred_region
    %22 = vst [vmem:[#allocation2] sm:$0xff] 0.0
    %23 = vst [vmem:[#allocation2 + $0x8] sm:$0xff] 0.0
    %24 = vst [vmem:[#allocation2 + $0x10] sm:$0xff] 0.0
    %25 = vst [vmem:[#allocation2 + $0x18] sm:$0xff] 0.0
  $region21: #{_lambda_.67} parent=0 // pred_fallthru
    _
  %v26 = vld [vmem:[#allocation2] sm:$0xff]
  %v27 = vld [vmem:[#allocation2 + $0x8] sm:$0xff]
  %v28 = vld [vmem:[#allocation2 + $0x10] sm:$0xff]
  %v29 = vld [vmem:[#allocation2 + $0x18] sm:$0xff]
  %v30 = vld [vmem:[%s0] sm:$0xff]
  %v31 = vld [vmem:[%s0 + $0x8] sm:$0xff]
  %v32 = vld [vmem:[%s0 + $0x10] sm:$0xff]
  %v33 = vld [vmem:[%s0 + $0x18] sm:$0xff]
  %v34 = vld [vmem:[%s0 + $0x20] sm:$0xf]
  %v35 = vld [vmem:[%s0 + $0x24] sm:$0xff]
  %v36 = vld [vmem:[%s0 + $0x2c] sm:$0xff]
  %v37 = vld [vmem:[%s0 + $0x34] sm:$0xff]
  %v38 = vld [vmem:[%s0 + $0x3c] sm:$0xff]
  %v39 = vld [vmem:[%s0 + $0x44] sm:$0xf]
  %v40 = vld [vmem:[%s0 + $0x48] sm:$0xff]
  %v41 = vld [vmem:[%s0 + $0x50] sm:$0xff]
  %v42 = vld [vmem:[%s0 + $0x58] sm:$0xff]
  %v43 = vld [vmem:[%s0 + $0x60] sm:$0xff]
  %v44 = vld [vmem:[%s0 + $0x68] sm:$0xf]
  %v45 = vld [vmem:[%s0 + $0x6c] sm:$0xff]
  %v46 = vld [vmem:[%s0 + $0x74] sm:$0xff]
  %v47 = vld [vmem:[%s0 + $0x7c] sm:$0xff]
  %v48 = vld [vmem:[%s0 + $0x84] sm:$0xff]
  %v49 = vld [vmem:[%s0 + $0x8c] sm:$0xf]
  %v50 = vld [vmem:[%s1] sm:$0xf]
  %v51 = vld [vmem:[%s1 + $0x4] sm:$0xf]
  %v52 = vld [vmem:[%s1 + $0x8] sm:$0xf]
  %v53 = vld [vmem:[%s1 + $0xc] sm:$0xf]
  %v54 = vld [vmem:[%s1 + $0x10] sm:$0xf]
  %v55 = vld [vmem:[%s1 + $0x14] sm:$0xf]
  %v56 = vld [vmem:[%s1 + $0x18] sm:$0xf]
  %v57 = vld [vmem:[%s1 + $0x1c] sm:$0xf]
  %v58 = vld [vmem:[%s1 + $0x20] sm:$0xf]
  %v59 = vld [vmem:[%s1 + $0x24] sm:$0xf]
  %v60 = vld [vmem:[%s1 + $0x28] sm:$0xf]
  %v61 = vld [vmem:[%s1 + $0x2c] sm:$0xf]
  %v62 = vld [vmem:[%s1 + $0x30] sm:$0xf]
  %v63 = vld [vmem:[%s1 + $0x34] sm:$0xf]
  %v64 = vld [vmem:[%s1 + $0x38] sm:$0xf]
  %v65 = vld [vmem:[%s1 + $0x3c] sm:$0xf]
  %v66 = vld [vmem:[%s1 + $0x40] sm:$0xf]
  %v67 = vld [vmem:[%s1 + $0x44] sm:$0xf]
  %v68 = vld [vmem:[%s1 + $0x48] sm:$0xf]
  %v69 = vld [vmem:[%s1 + $0x4c] sm:$0xf]
  %v70 = vld [vmem:[%s1 + $0x50] sm:$0xf]
  %v71 = vld [vmem:[%s1 + $0x54] sm:$0xf]
  %v72 = vld [vmem:[%s1 + $0x58] sm:$0xf]
  %v73 = vld [vmem:[%s1 + $0x5c] sm:$0xf]
  %v74 = vld [vmem:[%s1 + $0x60] sm:$0xf]
  %v75 = vld [vmem:[%s1 + $0x64] sm:$0xf]
  %v76 = vld [vmem:[%s1 + $0x68] sm:$0xf]
  %v77 = vld [vmem:[%s1 + $0x6c] sm:$0xf]
  %v78 = vld [vmem:[%s1 + $0x70] sm:$0xf]
  %v79 = vld [vmem:[%s1 + $0x74] sm:$0xf]
  %v80 = vld [vmem:[%s1 + $0x78] sm:$0xf]
  %v81 = vld [vmem:[%s1 + $0x7c] sm:$0xf]
  %v82 = vld [vmem:[%s1 + $0x80] sm:$0xf]
  %v83 = vld [vmem:[%s1 + $0x84] sm:$0xf]
  %v84 = vld [vmem:[%s1 + $0x88] sm:$0xf]
  %v85 = vld [vmem:[%s1 + $0x8c] sm:$0xf]
  %v86 = vld [vmem:[%s1 + $0x90] sm:$0xf]
  %v87 = vld [vmem:[%s1 + $0x94] sm:$0xf]
  %v88 = vld [vmem:[%s1 + $0x98] sm:$0xf]
  %v89 = vld [vmem:[%s1 + $0x9c] sm:$0xf]
  %v90 = vld [vmem:[%s1 + $0xa0] sm:$0xf]
  %v91 = vld [vmem:[%s1 + $0xa4] sm:$0xf]
  %v92 = vld [vmem:[%s1 + $0xa8] sm:$0xf]
  %v93 = vld [vmem:[%s1 + $0xac] sm:$0xf]
  %v94 = vld [vmem:[%s1 + $0xb0] sm:$0xf]
  %v95 = vld [vmem:[%s1 + $0xb4] sm:$0xf]
  %v96 = vld [vmem:[%s1 + $0xb8] sm:$0xf]
  %v97 = vld [vmem:[%s1 + $0xbc] sm:$0xf]
  %v98 = vld [vmem:[%s1 + $0xc0] sm:$0xf]
  %v99 = vld [vmem:[%s1 + $0xc4] sm:$0xf]
  %v100 = vld [vmem:[%s1 + $0xc8] sm:$0xf]
  %v101 = vld [vmem:[%s1 + $0xcc] sm:$0xf]
  %v102 = vld [vmem:[%s1 + $0xd0] sm:$0xf]
  %v103 = vld [vmem:[%s1 + $0xd4] sm:$0xf]
  %v104 = vld [vmem:[%s1 + $0xd8] sm:$0xf]
  %v105 = vld [vmem:[%s1 + $0xdc] sm:$0xf]
  %v106 = vld [vmem:[%s1 + $0xe0] sm:$0xf]
  %v107 = vld [vmem:[%s1 + $0xe4] sm:$0xf]
  %v108 = vld [vmem:[%s1 + $0xe8] sm:$0xf]
  %v109 = vld [vmem:[%s1 + $0xec] sm:$0xf]
  %v110 = vld [vmem:[%s1 + $0xf0] sm:$0xf]
  %v111 = vld [vmem:[%s1 + $0xf4] sm:$0xf]
  %v112 = vld [vmem:[%s1 + $0xf8] sm:$0xf]
  %v113 = vld [vmem:[%s1 + $0xfc] sm:$0xf]
  %v114 = vld [vmem:[%s1 + $0x100] sm:$0xf]
  %v115 = vld [vmem:[%s1 + $0x104] sm:$0xf]
  %v116 = vld [vmem:[%s1 + $0x108] sm:$0xf]
  %v117 = vld [vmem:[%s1 + $0x10c] sm:$0xf]
  %v118 = vld [vmem:[%s1 + $0x110] sm:$0xf]
  %v119 = vld [vmem:[%s1 + $0x114] sm:$0xf]
  %v120 = vld [vmem:[%s1 + $0x118] sm:$0xf]
  %v121 = vld [vmem:[%s1 + $0x11c] sm:$0xf]
  %v122 = vld [vmem:[%s1 + $0x120] sm:$0xf]
  %v123 = vld [vmem:[%s1 + $0x124] sm:$0xf]
  %v124 = vld [vmem:[%s1 + $0x128] sm:$0xf]
  %v125 = vld [vmem:[%s1 + $0x12c] sm:$0xf]
  %v126 = vld [vmem:[%s1 + $0x130] sm:$0xf]
  %v127 = vld [vmem:[%s1 + $0x134] sm:$0xf]
  %v128 = vld [vmem:[%s1 + $0x138] sm:$0xf]
  %v129 = vld [vmem:[%s1 + $0x13c] sm:$0xf]
  %v130 = vld [vmem:[%s1 + $0x140] sm:$0xf]
  %v131 = vld [vmem:[%s1 + $0x144] sm:$0xf]
  %v132 = vld [vmem:[%s1 + $0x148] sm:$0xf]
  %v133 = vld [vmem:[%s1 + $0x14c] sm:$0xf]
  %v134 = vld [vmem:[%s1 + $0x150] sm:$0xf]
  %v135 = vld [vmem:[%s1 + $0x154] sm:$0xf]
  %v136 = vld [vmem:[%s1 + $0x158] sm:$0xf]
  %v137 = vld [vmem:[%s1 + $0x15c] sm:$0xf]
  %v138 = vld [vmem:[%s1 + $0x160] sm:$0xf]
  %v139 = vld [vmem:[%s1 + $0x164] sm:$0xf]
  %v140 = vld [vmem:[%s1 + $0x168] sm:$0xf]
  %v141 = vld [vmem:[%s1 + $0x16c] sm:$0xf]
  %v142 = vld [vmem:[%s1 + $0x170] sm:$0xf]
  %v143 = vld [vmem:[%s1 + $0x174] sm:$0xf]
  %v144 = vld [vmem:[%s1 + $0x178] sm:$0xf]
  %v145 = vld [vmem:[%s1 + $0x17c] sm:$0xf]
  %v146 = vld [vmem:[%s1 + $0x180] sm:$0xf]
  %v147 = vld [vmem:[%s1 + $0x184] sm:$0xf]
  %v148 = vld [vmem:[%s1 + $0x188] sm:$0xf]
  %v149 = vld [vmem:[%s1 + $0x18c] sm:$0xf]
  %v150 = vld [vmem:[%s1 + $0x190] sm:$0xf]
  %v151 = vld [vmem:[%s1 + $0x194] sm:$0xf]
  %v152 = vld [vmem:[%s1 + $0x198] sm:$0xf]
  %v153 = vld [vmem:[%s1 + $0x19c] sm:$0xf]
  %v154 = vld [vmem:[%s1 + $0x1a0] sm:$0xf]
  %v155 = vld [vmem:[%s1 + $0x1a4] sm:$0xf]
  %v156 = vld [vmem:[%s1 + $0x1a8] sm:$0xf]
  %v157 = vld [vmem:[%s1 + $0x1ac] sm:$0xf]
  %v158 = vld [vmem:[%s1 + $0x1b0] sm:$0xf]
  %v159 = vld [vmem:[%s1 + $0x1b4] sm:$0xf]
  %v160 = vld [vmem:[%s1 + $0x1b8] sm:$0xf]
  %v161 = vld [vmem:[%s1 + $0x1bc] sm:$0xf]
  %v162 = vld [vmem:[%s1 + $0x1c0] sm:$0xf]
  %v163 = vld [vmem:[%s1 + $0x1c4] sm:$0xf]
  %v164 = vld [vmem:[%s1 + $0x1c8] sm:$0xf]
  %v165 = vld [vmem:[%s1 + $0x1cc] sm:$0xf]
  %v166 = vld [vmem:[%s1 + $0x1d0] sm:$0xf]
  %v167 = vld [vmem:[%s1 + $0x1d4] sm:$0xf]
  %v168 = vld [vmem:[%s1 + $0x1d8] sm:$0xf]
  %v169 = vld [vmem:[%s1 + $0x1dc] sm:$0xf]
  %v170 = vld [vmem:[%s1 + $0x1e0] sm:$0xf]
  %v171 = vld [vmem:[%s1 + $0x1e4] sm:$0xf]
  %v172 = vld [vmem:[%s1 + $0x1e8] sm:$0xf]
  %v173 = vld [vmem:[%s1 + $0x1ec] sm:$0xf]
  %v174 = vld [vmem:[%s1 + $0x1f0] sm:$0xf]
  %v175 = vld [vmem:[%s1 + $0x1f4] sm:$0xf]
  %v176 = vld [vmem:[%s1 + $0x1f8] sm:$0xf]
  %v177 = vld [vmem:[%s1 + $0x1fc] sm:$0xf]
  %v178 = vld [vmem:[%s1 + $0x200] sm:$0xf]
  %v179 = vld [vmem:[%s1 + $0x204] sm:$0xf]
  %v180 = vld [vmem:[%s1 + $0x208] sm:$0xf]
  %v181 = vld [vmem:[%s1 + $0x20c] sm:$0xf]
  %v182 = vld [vmem:[%s1 + $0x210] sm:$0xf]
  %v183 = vld [vmem:[%s1 + $0x214] sm:$0xf]
  %v184 = vld [vmem:[%s1 + $0x218] sm:$0xf]
  %v185 = vld [vmem:[%s1 + $0x21c] sm:$0xf]
  %v186 = vld [vmem:[%s1 + $0x220] sm:$0xf]
  %v187 = vld [vmem:[%s1 + $0x224] sm:$0xf]
  %v188 = vld [vmem:[%s1 + $0x228] sm:$0xf]
  %v189 = vld [vmem:[%s1 + $0x22c] sm:$0xf]
  %v190 = vld [vmem:[%s1 + $0x230] sm:$0xf]
  %v191 = vld [vmem:[%s1 + $0x234] sm:$0xf]
  %v192 = vld [vmem:[%s1 + $0x238] sm:$0xf]
  %v193 = vld [vmem:[%s1 + $0x23c] sm:$0xf]
  %v214 = vunpack.c.l.b16 %v30
  %v215 = vunpack.c.h.b16 %v30
  %v216 = vunpack.c.l.b16 %v31
  %v217 = vunpack.c.h.b16 %v31
  %v218 = vunpack.c.l.b16 %v32
  %v219 = vunpack.c.h.b16 %v32
  %v220 = vunpack.c.l.b16 %v33
  %v221 = vunpack.c.h.b16 %v33
  %v222 = vunpack.c.l.b16 %v34
  %v223 = vunpack.c.l.b16 %v35
  %v224 = vunpack.c.h.b16 %v35
  %v225 = vunpack.c.l.b16 %v36
  %v226 = vunpack.c.h.b16 %v36
  %v227 = vunpack.c.l.b16 %v37
  %v228 = vunpack.c.h.b16 %v37
  %v229 = vunpack.c.l.b16 %v38
  %v230 = vunpack.c.h.b16 %v38
  %v231 = vunpack.c.l.b16 %v39
  %v232 = vunpack.c.l.b16 %v40
  %v233 = vunpack.c.h.b16 %v40
  %v234 = vunpack.c.l.b16 %v41
  %v235 = vunpack.c.h.b16 %v41
  %v236 = vunpack.c.l.b16 %v42
  %v237 = vunpack.c.h.b16 %v42
  %v238 = vunpack.c.l.b16 %v43
  %v239 = vunpack.c.h.b16 %v43
  %v240 = vunpack.c.l.b16 %v44
  %v241 = vunpack.c.l.b16 %v45
  %v242 = vunpack.c.h.b16 %v45
  %v243 = vunpack.c.l.b16 %v46
  %v244 = vunpack.c.h.b16 %v46
  %v245 = vunpack.c.l.b16 %v47
  %v246 = vunpack.c.h.b16 %v47
  %v247 = vunpack.c.l.b16 %v48
  %v248 = vunpack.c.h.b16 %v48
  %v249 = vunpack.c.l.b16 %v49
  %v250 = vpack.c.b16 %v223, %v214
  %v251 = vpack.c.b16 %v224, %v215
  %v252 = vpack.c.b16 %v225, %v216
  %v253 = vpack.c.b16 %v226, %v217
  %v254 = vpack.c.b16 %v227, %v218
  %v255 = vpack.c.b16 %v228, %v219
  %v256 = vpack.c.b16 %v229, %v220
  %v257 = vpack.c.b16 %v230, %v221
  %v258 = vpack.c.b16 %v231, %v222
  %v259 = vpack.c.b16 %v241, %v232
  %v260 = vpack.c.b16 %v242, %v233
  %v261 = vpack.c.b16 %v243, %v234
  %v262 = vpack.c.b16 %v244, %v235
  %v263 = vpack.c.b16 %v245, %v236
  %v264 = vpack.c.b16 %v246, %v237
  %v265 = vpack.c.b16 %v247, %v238
  %v266 = vpack.c.b16 %v248, %v239
  %v267 = vpack.c.b16 %v249, %v240
  %v430 = vunpack.c.l.b16 %v50
  %v431 = vunpack.c.l.b16 %v51
  %v432 = vunpack.c.l.b16 %v52
  %v433 = vunpack.c.l.b16 %v53
  %v434 = vunpack.c.l.b16 %v54
  %v435 = vunpack.c.l.b16 %v55
  %v436 = vunpack.c.l.b16 %v56
  %v437 = vunpack.c.l.b16 %v57
  %v438 = vunpack.c.l.b16 %v58
  %v439 = vunpack.c.l.b16 %v59
  %v440 = vunpack.c.l.b16 %v60
  %v441 = vunpack.c.l.b16 %v61
  %v442 = vunpack.c.l.b16 %v62
  %v443 = vunpack.c.l.b16 %v63
  %v444 = vunpack.c.l.b16 %v64
  %v445 = vunpack.c.l.b16 %v65
  %v446 = vunpack.c.l.b16 %v66
  %v447 = vunpack.c.l.b16 %v67
  %v448 = vunpack.c.l.b16 %v68
  %v449 = vunpack.c.l.b16 %v69
  %v450 = vunpack.c.l.b16 %v70
  %v451 = vunpack.c.l.b16 %v71
  %v452 = vunpack.c.l.b16 %v72
  %v453 = vunpack.c.l.b16 %v73
  %v454 = vunpack.c.l.b16 %v74
  %v455 = vunpack.c.l.b16 %v75
  %v456 = vunpack.c.l.b16 %v76
  %v457 = vunpack.c.l.b16 %v77
  %v458 = vunpack.c.l.b16 %v78
  %v459 = vunpack.c.l.b16 %v79
  %v460 = vunpack.c.l.b16 %v80
  %v461 = vunpack.c.l.b16 %v81
  %v462 = vunpack.c.l.b16 %v82
  %v463 = vunpack.c.l.b16 %v83
  %v464 = vunpack.c.l.b16 %v84
  %v465 = vunpack.c.l.b16 %v85
  %v466 = vunpack.c.l.b16 %v86
  %v467 = vunpack.c.l.b16 %v87
  %v468 = vunpack.c.l.b16 %v88
  %v469 = vunpack.c.l.b16 %v89
  %v470 = vunpack.c.l.b16 %v90
  %v471 = vunpack.c.l.b16 %v91
  %v472 = vunpack.c.l.b16 %v92
  %v473 = vunpack.c.l.b16 %v93
  %v474 = vunpack.c.l.b16 %v94
  %v475 = vunpack.c.l.b16 %v95
  %v476 = vunpack.c.l.b16 %v96
  %v477 = vunpack.c.l.b16 %v97
  %v478 = vunpack.c.l.b16 %v98
  %v479 = vunpack.c.l.b16 %v99
  %v480 = vunpack.c.l.b16 %v100
  %v481 = vunpack.c.l.b16 %v101
  %v482 = vunpack.c.l.b16 %v102
  %v483 = vunpack.c.l.b16 %v103
  %v484 = vunpack.c.l.b16 %v104
  %v485 = vunpack.c.l.b16 %v105
  %v486 = vunpack.c.l.b16 %v106
  %v487 = vunpack.c.l.b16 %v107
  %v488 = vunpack.c.l.b16 %v108
  %v489 = vunpack.c.l.b16 %v109
  %v490 = vunpack.c.l.b16 %v110
  %v491 = vunpack.c.l.b16 %v111
  %v492 = vunpack.c.l.b16 %v112
  %v493 = vunpack.c.l.b16 %v113
  %v494 = vunpack.c.l.b16 %v114
  %v495 = vunpack.c.l.b16 %v115
  %v496 = vunpack.c.l.b16 %v116
  %v497 = vunpack.c.l.b16 %v117
  %v498 = vunpack.c.l.b16 %v118
  %v499 = vunpack.c.l.b16 %v119
  %v500 = vunpack.c.l.b16 %v120
  %v501 = vunpack.c.l.b16 %v121
  %v502 = vunpack.c.l.b16 %v122
  %v503 = vunpack.c.l.b16 %v123
  %v504 = vunpack.c.l.b16 %v124
  %v505 = vunpack.c.l.b16 %v125
  %v506 = vunpack.c.l.b16 %v126
  %v507 = vunpack.c.l.b16 %v127
  %v508 = vunpack.c.l.b16 %v128
  %v509 = vunpack.c.l.b16 %v129
  %v510 = vunpack.c.l.b16 %v130
  %v511 = vunpack.c.l.b16 %v131
  %v512 = vunpack.c.l.b16 %v132
  %v513 = vunpack.c.l.b16 %v133
  %v514 = vunpack.c.l.b16 %v134
  %v515 = vunpack.c.l.b16 %v135
  %v516 = vunpack.c.l.b16 %v136
  %v517 = vunpack.c.l.b16 %v137
  %v518 = vunpack.c.l.b16 %v138
  %v519 = vunpack.c.l.b16 %v139
  %v520 = vunpack.c.l.b16 %v140
  %v521 = vunpack.c.l.b16 %v141
  %v522 = vunpack.c.l.b16 %v142
  %v523 = vunpack.c.l.b16 %v143
  %v524 = vunpack.c.l.b16 %v144
  %v525 = vunpack.c.l.b16 %v145
  %v526 = vunpack.c.l.b16 %v146
  %v527 = vunpack.c.l.b16 %v147
  %v528 = vunpack.c.l.b16 %v148
  %v529 = vunpack.c.l.b16 %v149
  %v530 = vunpack.c.l.b16 %v150
  %v531 = vunpack.c.l.b16 %v151
  %v532 = vunpack.c.l.b16 %v152
  %v533 = vunpack.c.l.b16 %v153
  %v534 = vunpack.c.l.b16 %v154
  %v535 = vunpack.c.l.b16 %v155
  %v536 = vunpack.c.l.b16 %v156
  %v537 = vunpack.c.l.b16 %v157
  %v538 = vunpack.c.l.b16 %v158
  %v539 = vunpack.c.l.b16 %v159
  %v540 = vunpack.c.l.b16 %v160
  %v541 = vunpack.c.l.b16 %v161
  %v542 = vunpack.c.l.b16 %v162
  %v543 = vunpack.c.l.b16 %v163
  %v544 = vunpack.c.l.b16 %v164
  %v545 = vunpack.c.l.b16 %v165
  %v546 = vunpack.c.l.b16 %v166
  %v547 = vunpack.c.l.b16 %v167
  %v548 = vunpack.c.l.b16 %v168
  %v549 = vunpack.c.l.b16 %v169
  %v550 = vunpack.c.l.b16 %v170
  %v551 = vunpack.c.l.b16 %v171
  %v552 = vunpack.c.l.b16 %v172
  %v553 = vunpack.c.l.b16 %v173
  %v554 = vunpack.c.l.b16 %v174
  %v555 = vunpack.c.l.b16 %v175
  %v556 = vunpack.c.l.b16 %v176
  %v557 = vunpack.c.l.b16 %v177
  %v558 = vunpack.c.l.b16 %v178
  %v559 = vunpack.c.l.b16 %v179
  %v560 = vunpack.c.l.b16 %v180
  %v561 = vunpack.c.l.b16 %v181
  %v562 = vunpack.c.l.b16 %v182
  %v563 = vunpack.c.l.b16 %v183
  %v564 = vunpack.c.l.b16 %v184
  %v565 = vunpack.c.l.b16 %v185
  %v566 = vunpack.c.l.b16 %v186
  %v567 = vunpack.c.l.b16 %v187
  %v568 = vunpack.c.l.b16 %v188
  %v569 = vunpack.c.l.b16 %v189
  %v570 = vunpack.c.l.b16 %v190
  %v571 = vunpack.c.l.b16 %v191
  %v572 = vunpack.c.l.b16 %v192
  %v573 = vunpack.c.l.b16 %v193
  %v574 = vpack.c.b16 %v431, %v430
  %v575 = vpack.c.b16 %v433, %v432
  %v576 = vpack.c.b16 %v435, %v434
  %v577 = vpack.c.b16 %v437, %v436
  %v578 = vpack.c.b16 %v439, %v438
  %v579 = vpack.c.b16 %v441, %v440
  %v580 = vpack.c.b16 %v443, %v442
  %v581 = vpack.c.b16 %v445, %v444
  %v582 = vpack.c.b16 %v447, %v446
  %v583 = vpack.c.b16 %v449, %v448
  %v584 = vpack.c.b16 %v451, %v450
  %v585 = vpack.c.b16 %v453, %v452
  %v586 = vpack.c.b16 %v455, %v454
  %v587 = vpack.c.b16 %v457, %v456
  %v588 = vpack.c.b16 %v459, %v458
  %v589 = vpack.c.b16 %v461, %v460
  %v590 = vpack.c.b16 %v463, %v462
  %v591 = vpack.c.b16 %v465, %v464
  %v592 = vpack.c.b16 %v467, %v466
  %v593 = vpack.c.b16 %v469, %v468
  %v594 = vpack.c.b16 %v471, %v470
  %v595 = vpack.c.b16 %v473, %v472
  %v596 = vpack.c.b16 %v475, %v474
  %v597 = vpack.c.b16 %v477, %v476
  %v598 = vpack.c.b16 %v479, %v478
  %v599 = vpack.c.b16 %v481, %v480
  %v600 = vpack.c.b16 %v483, %v482
  %v601 = vpack.c.b16 %v485, %v484
  %v602 = vpack.c.b16 %v487, %v486
  %v603 = vpack.c.b16 %v489, %v488
  %v604 = vpack.c.b16 %v491, %v490
  %v605 = vpack.c.b16 %v493, %v492
  %v606 = vpack.c.b16 %v495, %v494
  %v607 = vpack.c.b16 %v497, %v496
  %v608 = vpack.c.b16 %v499, %v498
  %v609 = vpack.c.b16 %v501, %v500
  %v610 = vpack.c.b16 %v503, %v502
  %v611 = vpack.c.b16 %v505, %v504
  %v612 = vpack.c.b16 %v507, %v506
  %v613 = vpack.c.b16 %v509, %v508
  %v614 = vpack.c.b16 %v511, %v510
  %v615 = vpack.c.b16 %v513, %v512
  %v616 = vpack.c.b16 %v515, %v514
  %v617 = vpack.c.b16 %v517, %v516
  %v618 = vpack.c.b16 %v519, %v518
  %v619 = vpack.c.b16 %v521, %v520
  %v620 = vpack.c.b16 %v523, %v522
  %v621 = vpack.c.b16 %v525, %v524
  %v622 = vpack.c.b16 %v527, %v526
  %v623 = vpack.c.b16 %v529, %v528
  %v624 = vpack.c.b16 %v531, %v530
  %v625 = vpack.c.b16 %v533, %v532
  %v626 = vpack.c.b16 %v535, %v534
  %v627 = vpack.c.b16 %v537, %v536
  %v628 = vpack.c.b16 %v539, %v538
  %v629 = vpack.c.b16 %v541, %v540
  %v630 = vpack.c.b16 %v543, %v542
  %v631 = vpack.c.b16 %v545, %v544
  %v632 = vpack.c.b16 %v547, %v546
  %v633 = vpack.c.b16 %v549, %v548
  %v634 = vpack.c.b16 %v551, %v550
  %v635 = vpack.c.b16 %v553, %v552
  %v636 = vpack.c.b16 %v555, %v554
  %v637 = vpack.c.b16 %v557, %v556
  %v638 = vpack.c.b16 %v559, %v558
  %v639 = vpack.c.b16 %v561, %v560
  %v640 = vpack.c.b16 %v563, %v562
  %v641 = vpack.c.b16 %v565, %v564
  %v642 = vpack.c.b16 %v567, %v566
  %v643 = vpack.c.b16 %v569, %v568
  %v644 = vpack.c.b16 %v571, %v570
  %v645 = vpack.c.b16 %v573, %v572
  %718 = vmatprep.subr.bf16.mxu0 0
  %719 = vmatpush1.bf16.msra.mxu0 %v581
  %720 = vmatprep.subr.bf16.mxu0 0
  %721 = vmatpush1.bf16.msra.mxu0 %v580
  %722 = vmatprep.subr.bf16.mxu0 0
  %723 = vmatpush1.bf16.msra.mxu0 %v579
  %724 = vmatprep.subr.bf16.mxu0 0
  %725 = vmatpush1.bf16.msra.mxu0 %v578
  %726 = vmatprep.subr.bf16.mxu0 0
  %727 = vmatpush1.bf16.msra.mxu0 %v577
  %728 = vmatprep.subr.bf16.mxu0 0
  %729 = vmatpush1.bf16.msra.mxu0 %v576
  %730 = vmatprep.subr.bf16.mxu0 0
  %731 = vmatpush1.bf16.msra.mxu0 %v575
  %732 = vmatprep.subr.bf16.mxu0 0
  %733 = vmatpush1.bf16.msra.mxu0 %v574
  %734 = vmatprep.subr.bf16.mxu0 0
  %735 = vmatpush2.bf16.msra.mxu0 %v589
  %736 = vmatprep.subr.bf16.mxu0 0
  %737 = vmatpush2.bf16.msra.mxu0 %v588
  %738 = vmatprep.subr.bf16.mxu0 0
  %739 = vmatpush2.bf16.msra.mxu0 %v587
  %740 = vmatprep.subr.bf16.mxu0 0
  %741 = vmatpush2.bf16.msra.mxu0 %v586
  %742 = vmatprep.subr.bf16.mxu0 0
  %743 = vmatpush2.bf16.msra.mxu0 %v585
  %744 = vmatprep.subr.bf16.mxu0 0
  %745 = vmatpush2.bf16.msra.mxu0 %v584
  %746 = vmatprep.subr.bf16.mxu0 0
  %747 = vmatpush2.bf16.msra.mxu0 %v583
  %748 = vmatprep.subr.bf16.mxu0 0
  %749 = vmatpush2.bf16.msra.mxu0 %v582
  %750 = vmatprep.mubr.bf16.mxu0 %v251
  %751 = vmatmul.mubr.bf16.gmra.mxu0 %v250
  %v752 = vpop.f32.mrf.mxu0
  %v753 = vadd.f32 0.0, %v752
  %v754 = vpop.f32.mrf.mxu0
  %v755 = vpop.f32.mrf.mxu0
  %v756 = vadd.f32 0.0, %v755
  %v757 = vpop.f32.mrf.mxu0
  %758 = vmatprep.mubr.bf16.mxu0 %v260
  %759 = vmatmul.mubr.bf16.gmra.mxu0 %v259
  %v760 = vpop.f32.mrf.mxu0
  %v761 = vadd.f32 0.0, %v760
  %v762 = vpop.f32.mrf.mxu0
  %v763 = vpop.f32.mrf.mxu0
  %v764 = vadd.f32 0.0, %v763
  %v765 = vpop.f32.mrf.mxu0
  %766 = vdwg.mxu0
  %767 = vmatprep.subr.bf16.mxu0 0
  %768 = vmatpush1.bf16.msra.mxu0 %v597
  %769 = vmatprep.subr.bf16.mxu0 0
  %770 = vmatpush1.bf16.msra.mxu0 %v596
  %771 = vmatprep.subr.bf16.mxu0 0
  %772 = vmatpush1.bf16.msra.mxu0 %v595
  %773 = vmatprep.subr.bf16.mxu0 0
  %774 = vmatpush1.bf16.msra.mxu0 %v594
  %775 = vmatprep.subr.bf16.mxu0 0
  %776 = vmatpush1.bf16.msra.mxu0 %v593
  %777 = vmatprep.subr.bf16.mxu0 0
  %778 = vmatpush1.bf16.msra.mxu0 %v592
  %779 = vmatprep.subr.bf16.mxu0 0
  %780 = vmatpush1.bf16.msra.mxu0 %v591
  %781 = vmatprep.subr.bf16.mxu0 0
  %782 = vmatpush1.bf16.msra.mxu0 %v590
  %783 = vmatprep.subr.bf16.mxu0 0
  %784 = vmatpush2.bf16.msra.mxu0 %v605
  %785 = vmatprep.subr.bf16.mxu0 0
  %786 = vmatpush2.bf16.msra.mxu0 %v604
  %787 = vmatprep.subr.bf16.mxu0 0
  %788 = vmatpush2.bf16.msra.mxu0 %v603
  %789 = vmatprep.subr.bf16.mxu0 0
  %790 = vmatpush2.bf16.msra.mxu0 %v602
  %791 = vmatprep.subr.bf16.mxu0 0
  %792 = vmatpush2.bf16.msra.mxu0 %v601
  %793 = vmatprep.subr.bf16.mxu0 0
  %794 = vmatpush2.bf16.msra.mxu0 %v600
  %795 = vmatprep.subr.bf16.mxu0 0
  %796 = vmatpush2.bf16.msra.mxu0 %v599
  %797 = vmatprep.subr.bf16.mxu0 0
  %798 = vmatpush2.bf16.msra.mxu0 %v598
  %799 = vmatprep.mubr.bf16.mxu0 %v253
  %800 = vmatmul.mubr.bf16.gmra.mxu0 %v252
  %v801 = vpop.f32.mrf.mxu0
  %v802 = vadd.f32 %v753, %v801
  %v803 = vpop.f32.mrf.mxu0
  %v804 = vpop.f32.mrf.mxu0
  %v805 = vadd.f32 %v756, %v804
  %v806 = vpop.f32.mrf.mxu0
  %807 = vmatprep.mubr.bf16.mxu0 %v262
  %808 = vmatmul.mubr.bf16.gmra.mxu0 %v261
  %v809 = vpop.f32.mrf.mxu0
  %v810 = vadd.f32 %v761, %v809
  %v811 = vpop.f32.mrf.mxu0
  %v812 = vpop.f32.mrf.mxu0
  %v813 = vadd.f32 %v764, %v812
  %v814 = vpop.f32.mrf.mxu0
  %815 = vdwg.mxu0
  %816 = vmatprep.subr.bf16.mxu0 0
  %817 = vmatpush1.bf16.msra.mxu0 %v613
  %818 = vmatprep.subr.bf16.mxu0 0
  %819 = vmatpush1.bf16.msra.mxu0 %v612
  %820 = vmatprep.subr.bf16.mxu0 0
  %821 = vmatpush1.bf16.msra.mxu0 %v611
  %822 = vmatprep.subr.bf16.mxu0 0
  %823 = vmatpush1.bf16.msra.mxu0 %v610
  %824 = vmatprep.subr.bf16.mxu0 0
  %825 = vmatpush1.bf16.msra.mxu0 %v609
  %826 = vmatprep.subr.bf16.mxu0 0
  %827 = vmatpush1.bf16.msra.mxu0 %v608
  %828 = vmatprep.subr.bf16.mxu0 0
  %829 = vmatpush1.bf16.msra.mxu0 %v607
  %830 = vmatprep.subr.bf16.mxu0 0
  %831 = vmatpush1.bf16.msra.mxu0 %v606
  %832 = vmatprep.subr.bf16.mxu0 0
  %833 = vmatpush2.bf16.msra.mxu0 %v621
  %834 = vmatprep.subr.bf16.mxu0 0
  %835 = vmatpush2.bf16.msra.mxu0 %v620
  %836 = vmatprep.subr.bf16.mxu0 0
  %837 = vmatpush2.bf16.msra.mxu0 %v619
  %838 = vmatprep.subr.bf16.mxu0 0
  %839 = vmatpush2.bf16.msra.mxu0 %v618
  %840 = vmatprep.subr.bf16.mxu0 0
  %841 = vmatpush2.bf16.msra.mxu0 %v617
  %842 = vmatprep.subr.bf16.mxu0 0
  %843 = vmatpush2.bf16.msra.mxu0 %v616
  %844 = vmatprep.subr.bf16.mxu0 0
  %845 = vmatpush2.bf16.msra.mxu0 %v615
  %846 = vmatprep.subr.bf16.mxu0 0
  %847 = vmatpush2.bf16.msra.mxu0 %v614
  %848 = vmatprep.mubr.bf16.mxu0 %v255
  %849 = vmatmul.mubr.bf16.gmra.mxu0 %v254
  %v850 = vpop.f32.mrf.mxu0
  %v851 = vadd.f32 %v802, %v850
  %v852 = vpop.f32.mrf.mxu0
  %v853 = vpop.f32.mrf.mxu0
  %v854 = vadd.f32 %v805, %v853
  %v855 = vpop.f32.mrf.mxu0
  %856 = vmatprep.mubr.bf16.mxu0 %v264
  %857 = vmatmul.mubr.bf16.gmra.mxu0 %v263
  %v858 = vpop.f32.mrf.mxu0
  %v859 = vadd.f32 %v810, %v858
  %v860 = vpop.f32.mrf.mxu0
  %v861 = vpop.f32.mrf.mxu0
  %v862 = vadd.f32 %v813, %v861
  %v863 = vpop.f32.mrf.mxu0
  %864 = vdwg.mxu0
  %865 = vmatprep.subr.bf16.mxu0 0
  %866 = vmatpush1.bf16.msra.mxu0 %v629
  %867 = vmatprep.subr.bf16.mxu0 0
  %868 = vmatpush1.bf16.msra.mxu0 %v628
  %869 = vmatprep.subr.bf16.mxu0 0
  %870 = vmatpush1.bf16.msra.mxu0 %v627
  %871 = vmatprep.subr.bf16.mxu0 0
  %872 = vmatpush1.bf16.msra.mxu0 %v626
  %873 = vmatprep.subr.bf16.mxu0 0
  %874 = vmatpush1.bf16.msra.mxu0 %v625
  %875 = vmatprep.subr.bf16.mxu0 0
  %876 = vmatpush1.bf16.msra.mxu0 %v624
  %877 = vmatprep.subr.bf16.mxu0 0
  %878 = vmatpush1.bf16.msra.mxu0 %v623
  %879 = vmatprep.subr.bf16.mxu0 0
  %880 = vmatpush1.bf16.msra.mxu0 %v622
  %881 = vmatprep.subr.bf16.mxu0 0
  %882 = vmatpush2.bf16.msra.mxu0 %v637
  %883 = vmatprep.subr.bf16.mxu0 0
  %884 = vmatpush2.bf16.msra.mxu0 %v636
  %885 = vmatprep.subr.bf16.mxu0 0
  %886 = vmatpush2.bf16.msra.mxu0 %v635
  %887 = vmatprep.subr.bf16.mxu0 0
  %888 = vmatpush2.bf16.msra.mxu0 %v634
  %889 = vmatprep.subr.bf16.mxu0 0
  %890 = vmatpush2.bf16.msra.mxu0 %v633
  %891 = vmatprep.subr.bf16.mxu0 0
  %892 = vmatpush2.bf16.msra.mxu0 %v632
  %893 = vmatprep.subr.bf16.mxu0 0
  %894 = vmatpush2.bf16.msra.mxu0 %v631
  %895 = vmatprep.subr.bf16.mxu0 0
  %896 = vmatpush2.bf16.msra.mxu0 %v630
  %897 = vmatprep.mubr.bf16.mxu0 %v257
  %898 = vmatmul.mubr.bf16.gmra.mxu0 %v256
  %v899 = vpop.f32.mrf.mxu0
  %v900 = vadd.f32 %v851, %v899
  %v901 = vpop.f32.mrf.mxu0
  %v902 = vpop.f32.mrf.mxu0
  %v903 = vadd.f32 %v854, %v902
  %v904 = vpop.f32.mrf.mxu0
  %905 = vmatprep.mubr.bf16.mxu0 %v266
  %906 = vmatmul.mubr.bf16.gmra.mxu0 %v265
  %v907 = vpop.f32.mrf.mxu0
  %v908 = vadd.f32 %v859, %v907
  %v909 = vpop.f32.mrf.mxu0
  %v910 = vpop.f32.mrf.mxu0
  %v911 = vadd.f32 %v862, %v910
  %v912 = vpop.f32.mrf.mxu0
  %913 = vdwg.mxu0
  %914 = vmatprep.subr.bf16.mxu0 0
  %915 = vmatpush1.bf16.msra.mxu0 %v645
  %916 = vmatprep.subr.bf16.mxu0 0
  %917 = vmatpush1.bf16.msra.mxu0 %v644
  %918 = vmatprep.subr.bf16.mxu0 0
  %919 = vmatpush1.bf16.msra.mxu0 %v643
  %920 = vmatprep.subr.bf16.mxu0 0
  %921 = vmatpush1.bf16.msra.mxu0 %v642
  %922 = vmatprep.subr.bf16.mxu0 0
  %923 = vmatpush1.bf16.msra.mxu0 %v641
  %924 = vmatprep.subr.bf16.mxu0 0
  %925 = vmatpush1.bf16.msra.mxu0 %v640
  %926 = vmatprep.subr.bf16.mxu0 0
  %927 = vmatpush1.bf16.msra.mxu0 %v639
  %928 = vmatprep.subr.bf16.mxu0 0
  %929 = vmatpush1.bf16.msra.mxu0 %v638
  %930 = vmatprep.subr.bf16.mxu0 0
  %931 = vmatpush2.bf16.msra.mxu0 0
  %932 = vmatprep.subr.bf16.mxu0 0
  %933 = vmatpush2.bf16.msra.mxu0 0
  %934 = vmatprep.subr.bf16.mxu0 0
  %935 = vmatpush2.bf16.msra.mxu0 0
  %936 = vmatprep.subr.bf16.mxu0 0
  %937 = vmatpush2.bf16.msra.mxu0 0
  %938 = vmatprep.subr.bf16.mxu0 0
  %939 = vmatpush2.bf16.msra.mxu0 0
  %940 = vmatprep.subr.bf16.mxu0 0
  %941 = vmatpush2.bf16.msra.mxu0 0
  %942 = vmatprep.subr.bf16.mxu0 0
  %943 = vmatpush2.bf16.msra.mxu0 0
  %944 = vmatprep.subr.bf16.mxu0 0
  %945 = vmatpush2.bf16.msra.mxu0 0
  %946 = vmatprep.mubr.bf16.mxu0 0
  %947 = vmatmul.mubr.bf16.gmra.mxu0 %v258
  %v948 = vpop.f32.mrf.mxu0
  %v949 = vadd.f32 %v900, %v948
  %v950 = vpop.f32.mrf.mxu0
  %v951 = vpop.f32.mrf.mxu0
  %v952 = vadd.f32 %v903, %v951
  %v953 = vpop.f32.mrf.mxu0
  %954 = vmatprep.mubr.bf16.mxu0 0
  %955 = vmatmul.mubr.bf16.gmra.mxu0 %v267
  %v956 = vpop.f32.mrf.mxu0
  %v957 = vadd.f32 %v908, %v956
  %v958 = vpop.f32.mrf.mxu0
  %v959 = vpop.f32.mrf.mxu0
  %v960 = vadd.f32 %v911, %v959
  %v961 = vpop.f32.mrf.mxu0
  %962 = vdwg.mxu0
  %v963 = vadd.f32 %v26, %v949
  %v964 = vadd.f32 %v27, %v952
  %v965 = vadd.f32 %v28, %v957
  %v966 = vadd.f32 %v29, %v960
  %967 = vst [vmem:[#allocation2] sm:$0xff] %v963
  %968 = vst [vmem:[#allocation2 + $0x8] sm:$0xff] %v964
  %969 = vst [vmem:[#allocation2 + $0x10] sm:$0xff] %v965
  %970 = vst [vmem:[#allocation2 + $0x18] sm:$0xff] %v966
  // Predicated region
  $region22: #{_lambda_.67} parent=0 // pred_check
    %p971 = pneg %p18
  $region23: #{_lambda_.67} parent=0 // pred_check_branch
    %973 = sbr.rel (%p971) target = $region25
  $region24: #{_lambda_.67} parent=0 // pred_region
    %v974 = vld [vmem:[#allocation2] sm:$0xff]
    %v975 = vld [vmem:[#allocation2 + $0x8] sm:$0xff]
    %v976 = vld [vmem:[#allocation2 + $0x10] sm:$0xff]
    %v977 = vld [vmem:[#allocation2 + $0x18] sm:$0xff]
    %v978 = vld [vmem:[%s2] sm:$0x1]
    %v980 = vlaneseq
    %v981 = vshrl.u32 %v980, 7
    %v982 = vsub.s32 0, %v981
    %v983 = vrot.slane %v978, %v982
    %v985 = vmul.f32 %v974, %v983
    %v986 = vmul.f32 %v975, %v983
    %v987 = vmul.f32 %v976, %v983
    %v988 = vmul.f32 %v977, %v983
    %v989 = vld [vmem:[%s3] sm:$0x1]
    %v991 = vlaneseq
    %v992 = vshrl.u32 %v991, 7
    %v993 = vsub.s32 0, %v992
    %v994 = vrot.slane %v989, %v993
    %v996 = vadd.f32 %v985, %v994
    %v997 = vadd.f32 %v986, %v994
    %v998 = vadd.f32 %v987, %v994
    %v999 = vadd.f32 %v988, %v994
    %v1000 = vmax.f32 %v996, 0.0
    %v1001 = vmax.f32 %v997, 0.0
    %v1002 = vmax.f32 %v998, 0.0
    %v1003 = vmax.f32 %v999, 0.0
    %v1004 = vpack.c.bf16 %v1001, %v1000
    %v1005 = vpack.c.bf16 %v1003, %v1002
    %v1008 = vunpack.c.l.b16 %v1004
    %v1009 = vunpack.c.h.b16 %v1004
    %v1010 = vunpack.c.l.b16 %v1005
    %v1011 = vunpack.c.h.b16 %v1005
    %v1012 = vpack.c.b16 %v1008, %v1008
    %v1013 = vpack.c.b16 %v1009, %v1009
    %v1014 = vpack.c.b16 %v1010, %v1010
    %v1015 = vpack.c.b16 %v1011, %v1011
    %1020 = vst [vmem:[%s4] sm:$0xf] %v1012
    %1021 = vst [vmem:[%s4 + $0x4] sm:$0xf] %v1013
    %1022 = vst [vmem:[%s4 + $0x8] sm:$0xf] %v1014
    %1023 = vst [vmem:[%s4 + $0xc] sm:$0xf] %v1015
  $region25: #{_lambda_.67} parent=0 // pred_fallthru
    _
  // Predicated region
  $region26: #{_lambda_.67} parent=0 // pred_check
    _
  $region27: #{_lambda_.67} parent=0 // pred_check_branch
    %1025 = sbr.rel (0) target = $region29
  $region28: #{_lambda_.67} parent=0 // pred_region
    _
  $region29: #{_lambda_.67} parent=0 // pred_fallthru
    _
  // Predicated region
  $region30: #{_lambda_.67} parent=0 // pred_check
    _
  $region31: #{_lambda_.67} parent=0 // pred_check_branch
    %1027 = sbr.rel (0) target = $region33
  $region32: #{_lambda_.67} parent=0 // pred_region
    _
  $region33: #{_lambda_.67} parent=0 // pred_fallthru
    _

// kernel: _lambda_.82
$region0: #{_lambda_.82}
  #allocation0 [shape = 'u32[]', space=smem, size = 0x4, offset = 0x4, fixed_abs, tag = 'smem constant byte address 0x4 - core index']
  #allocation1 [shape = 'u32[144,128]{1,0:T(1,128)}', space=vmem, size = 0x12000, scoped, tag = 'internal scratch']
  #allocation2 [shape = 'f32[8,128]{1,0:T(8,128)}', space=vmem, size = 0x1000, scoped, tag = 'scratch operand']
  %s0 = inlined_call_operand.vmem [shape: bf16[8,128], index: 0, kind: input, shape index: {}]
  %s1 = inlined_call_operand.vmem [shape: bf16[128,128], index: 1, kind: input, shape index: {}]
  %s2 = inlined_call_operand.vmem [shape: f32[1,128], index: 2, kind: input, shape index: {}]
  %s3 = inlined_call_operand.vmem [shape: f32[1,128], index: 3, kind: input, shape index: {}]
  %s4 = inlined_call_operand.vmem [shape: bf16[8,128], index: 4, kind: input, shape index: {}]
  %s5 = inlined_call_operand.vmem [shape: bf16[8,128], index: 5, kind: output, shape index: {}]
  %s6 = sld [smem:[#allocation0]]
  $region38: #{_lambda_.82} parent=0
    _
  %s8 = ssub.s32 1, %s6
  %s9 = scalar_select 0, %s8, %s6
  // Predicated region
  $region2: #{_lambda_.82} parent=0 // pred_check
    _
  $region3: #{_lambda_.82} parent=0 // pred_check_branch
    %11 = sbr.rel (0) target = $region5
  $region4: #{_lambda_.82} parent=0 // pred_region
    _
  $region5: #{_lambda_.82} parent=0 // pred_fallthru
    _
  // Predicated region
  $region6: #{_lambda_.82} parent=0 // pred_check
    _
  $region7: #{_lambda_.82} parent=0 // pred_check_branch
    %13 = sbr.rel (0) target = $region9
  $region8: #{_lambda_.82} parent=0 // pred_region
    _
  $region9: #{_lambda_.82} parent=0 // pred_fallthru
    _
  // Predicated region
  $region10: #{_lambda_.82} parent=0 // pred_check
    _
  $region11: #{_lambda_.82} parent=0 // pred_check_branch
    %15 = sbr.rel (0) target = $region13
  $region12: #{_lambda_.82} parent=0 // pred_region
    _
  $region13: #{_lambda_.82} parent=0 // pred_fallthru
    _
  // Predicated region
  $region14: #{_lambda_.82} parent=0 // pred_check
    _
  $region15: #{_lambda_.82} parent=0 // pred_check_branch
    %17 = sbr.rel (0) target = $region17
  $region16: #{_lambda_.82} parent=0 // pred_region
    _
  $region17: #{_lambda_.82} parent=0 // pred_fallthru
    _
  // Predicated region
  $region18: #{_lambda_.82} parent=0 // pred_check
    _
  $region19: #{_lambda_.82} parent=0 // pred_check_branch
    %19 = sbr.rel (0) target = $region21
  $region20: #{_lambda_.82} parent=0 // pred_region
    _
  $region21: #{_lambda_.82} parent=0 // pred_fallthru
    _
  %p21 = scmp.eq.s32.totalorder 0, 0
  // Predicated region
  $region22: #{_lambda_.82} parent=0 // pred_check
    %p22 = pneg %p21
  $region23: #{_lambda_.82} parent=0 // pred_check_branch
    %24 = sbr.rel (%p22) target = $region25
  $region24: #{_lambda_.82} parent=0 // pred_region
    %25 = vst [vmem:[#allocation2] sm:$0xff] 0.0
  $region25: #{_lambda_.82} parent=0 // pred_fallthru
    _
  %v26 = vld [vmem:[#allocation2] sm:$0xff]
  %v27 = vld [vmem:[%s0] sm:$0xf]
  %v28 = vld [vmem:[%s1] sm:$0xf]
  %v29 = vld [vmem:[%s1 + $0x4] sm:$0xf]
  %v30 = vld [vmem:[%s1 + $0x8] sm:$0xf]
  %v31 = vld [vmem:[%s1 + $0xc] sm:$0xf]
  %v32 = vld [vmem:[%s1 + $0x10] sm:$0xf]
  %v33 = vld [vmem:[%s1 + $0x14] sm:$0xf]
  %v34 = vld [vmem:[%s1 + $0x18] sm:$0xf]
  %v35 = vld [vmem:[%s1 + $0x1c] sm:$0xf]
  %v36 = vld [vmem:[%s1 + $0x20] sm:$0xf]
  %v37 = vld [vmem:[%s1 + $0x24] sm:$0xf]
  %v38 = vld [vmem:[%s1 + $0x28] sm:$0xf]
  %v39 = vld [vmem:[%s1 + $0x2c] sm:$0xf]
  %v40 = vld [vmem:[%s1 + $0x30] sm:$0xf]
  %v41 = vld [vmem:[%s1 + $0x34] sm:$0xf]
  %v42 = vld [vmem:[%s1 + $0x38] sm:$0xf]
  %v43 = vld [vmem:[%s1 + $0x3c] sm:$0xf]
  %v60 = vunpack.c.l.b16 %v28
  %v61 = vunpack.c.l.b16 %v29
  %v62 = vunpack.c.l.b16 %v30
  %v63 = vunpack.c.l.b16 %v31
  %v64 = vunpack.c.l.b16 %v32
  %v65 = vunpack.c.l.b16 %v33
  %v66 = vunpack.c.l.b16 %v34
  %v67 = vunpack.c.l.b16 %v35
  %v68 = vunpack.c.l.b16 %v36
  %v69 = vunpack.c.l.b16 %v37
  %v70 = vunpack.c.l.b16 %v38
  %v71 = vunpack.c.l.b16 %v39
  %v72 = vunpack.c.l.b16 %v40
  %v73 = vunpack.c.l.b16 %v41
  %v74 = vunpack.c.l.b16 %v42
  %v75 = vunpack.c.l.b16 %v43
  %v76 = vpack.c.b16 %v61, %v60
  %v77 = vpack.c.b16 %v63, %v62
  %v78 = vpack.c.b16 %v65, %v64
  %v79 = vpack.c.b16 %v67, %v66
  %v80 = vpack.c.b16 %v69, %v68
  %v81 = vpack.c.b16 %v71, %v70
  %v82 = vpack.c.b16 %v73, %v72
  %v83 = vpack.c.b16 %v75, %v74
  %92 = vmatprep.subr.bf16.mxu0 0
  %93 = vmatpush1.bf16.msra.mxu0 %v83
  %94 = vmatprep.subr.bf16.mxu0 0
  %95 = vmatpush1.bf16.msra.mxu0 %v82
  %96 = vmatprep.subr.bf16.mxu0 0
  %97 = vmatpush1.bf16.msra.mxu0 %v81
  %98 = vmatprep.subr.bf16.mxu0 0
  %99 = vmatpush1.bf16.msra.mxu0 %v80
  %100 = vmatprep.subr.bf16.mxu0 0
  %101 = vmatpush1.bf16.msra.mxu0 %v79
  %102 = vmatprep.subr.bf16.mxu0 0
  %103 = vmatpush1.bf16.msra.mxu0 %v78
  %104 = vmatprep.subr.bf16.mxu0 0
  %105 = vmatpush1.bf16.msra.mxu0 %v77
  %106 = vmatprep.subr.bf16.mxu0 0
  %107 = vmatpush1.bf16.msra.mxu0 %v76
  %108 = vmatprep.subr.bf16.mxu0 0
  %109 = vmatpush2.bf16.msra.mxu0 0
  %110 = vmatprep.subr.bf16.mxu0 0
  %111 = vmatpush2.bf16.msra.mxu0 0
  %112 = vmatprep.subr.bf16.mxu0 0
  %113 = vmatpush2.bf16.msra.mxu0 0
  %114 = vmatprep.subr.bf16.mxu0 0
  %115 = vmatpush2.bf16.msra.mxu0 0
  %116 = vmatprep.subr.bf16.mxu0 0
  %117 = vmatpush2.bf16.msra.mxu0 0
  %118 = vmatprep.subr.bf16.mxu0 0
  %119 = vmatpush2.bf16.msra.mxu0 0
  %120 = vmatprep.subr.bf16.mxu0 0
  %121 = vmatpush2.bf16.msra.mxu0 0
  %122 = vmatprep.subr.bf16.mxu0 0
  %123 = vmatpush2.bf16.msra.mxu0 0
  %124 = vmatprep.mubr.bf16.mxu0 0
  %125 = vmatmul.mubr.bf16.gmra.mxu0 %v27
  %v126 = vpop.f32.mrf.mxu0
  %v127 = vadd.f32 0.0, %v126
  %v128 = vpop.f32.mrf.mxu0
  %v129 = vpop.f32.mrf.mxu0
  %v130 = vpop.f32.mrf.mxu0
  %131 = vdwg.mxu0
  %v132 = vadd.f32 %v26, %v127
  %133 = vst [vmem:[#allocation2] sm:$0xff] %v132
  // Predicated region
  $region26: #{_lambda_.82} parent=0 // pred_check
    %p134 = pneg %p21
  $region27: #{_lambda_.82} parent=0 // pred_check_branch
    %136 = sbr.rel (%p134) target = $region29
  $region28: #{_lambda_.82} parent=0 // pred_region
    %v137 = vld [vmem:[#allocation2] sm:$0xff]
    %v138 = vld [vmem:[%s2] sm:$0x1]
    %v140 = vlaneseq
    %v141 = vshrl.u32 %v140, 7
    %v142 = vsub.s32 0, %v141
    %v143 = vrot.slane %v138, %v142
    %v145 = vmul.f32 %v137, %v143
    %v146 = vld [vmem:[%s3] sm:$0x1]
    %v148 = vlaneseq
    %v149 = vshrl.u32 %v148, 7
    %v150 = vsub.s32 0, %v149
    %v151 = vrot.slane %v146, %v150
    %v153 = vadd.f32 %v145, %v151
    %v154 = vld [vmem:[%s4] sm:$0xf]
    %v155 = vunpack.c.l.bf16 %v154
    %v156 = vadd.f32 %v153, %v155
    %v157 = vmax.f32 %v156, 0.0
    %v158 = vpack.c.bf16 %v157, %v157
    %159 = vst [vmem:[%s5] sm:$0xf] %v158
  $region29: #{_lambda_.82} parent=0 // pred_fallthru
    _
  // Predicated region
  $region30: #{_lambda_.82} parent=0 // pred_check
    _
  $region31: #{_lambda_.82} parent=0 // pred_check_branch
    %161 = sbr.rel (0) target = $region33
  $region32: #{_lambda_.82} parent=0 // pred_region
    _
  $region33: #{_lambda_.82} parent=0 // pred_fallthru
    _
  // Predicated region
  $region34: #{_lambda_.82} parent=0 // pred_check
    _
  $region35: #{_lambda_.82} parent=0 // pred_check_branch
    %163 = sbr.rel (0) target = $region37
  $region36: #{_lambda_.82} parent=0 // pred_region
    _
  $region37: #{_lambda_.82} parent=0 // pred_fallthru
    _

// kernel: _lambda_.81
$region0: #{_lambda_.81}
  #allocation0 [shape = 'u32[]', space=smem, size = 0x4, offset = 0x4, fixed_abs, tag = 'smem constant byte address 0x4 - core index']
  #allocation1 [shape = 'u32[144,128]{1,0:T(1,128)}', space=vmem, size = 0x12000, scoped, tag = 'internal scratch']
  #allocation2 [shape = 'f32[8,128]{1,0:T(8,128)}', space=vmem, size = 0x1000, scoped, tag = 'scratch operand']
  %s0 = inlined_call_operand.vmem [shape: bf16[8,128], index: 0, kind: input, shape index: {}]
  %s1 = inlined_call_operand.vmem [shape: bf16[128,128], index: 1, kind: input, shape index: {}]
  %s2 = inlined_call_operand.vmem [shape: f32[1,128], index: 2, kind: input, shape index: {}]
  %s3 = inlined_call_operand.vmem [shape: f32[1,128], index: 3, kind: input, shape index: {}]
  %s4 = inlined_call_operand.vmem [shape: bf16[8,128], index: 4, kind: output, shape index: {}]
  %s5 = sld [smem:[#allocation0]]
  $region34: #{_lambda_.81} parent=0
    _
  %s7 = ssub.s32 1, %s5
  %s8 = scalar_select 0, %s7, %s5
  // Predicated region
  $region2: #{_lambda_.81} parent=0 // pred_check
    _
  $region3: #{_lambda_.81} parent=0 // pred_check_branch
    %10 = sbr.rel (0) target = $region5
  $region4: #{_lambda_.81} parent=0 // pred_region
    _
  $region5: #{_lambda_.81} parent=0 // pred_fallthru
    _
  // Predicated region
  $region6: #{_lambda_.81} parent=0 // pred_check
    _
  $region7: #{_lambda_.81} parent=0 // pred_check_branch
    %12 = sbr.rel (0) target = $region9
  $region8: #{_lambda_.81} parent=0 // pred_region
    _
  $region9: #{_lambda_.81} parent=0 // pred_fallthru
    _
  // Predicated region
  $region10: #{_lambda_.81} parent=0 // pred_check
    _
  $region11: #{_lambda_.81} parent=0 // pred_check_branch
    %14 = sbr.rel (0) target = $region13
  $region12: #{_lambda_.81} parent=0 // pred_region
    _
  $region13: #{_lambda_.81} parent=0 // pred_fallthru
    _
  // Predicated region
  $region14: #{_lambda_.81} parent=0 // pred_check
    _
  $region15: #{_lambda_.81} parent=0 // pred_check_branch
    %16 = sbr.rel (0) target = $region17
  $region16: #{_lambda_.81} parent=0 // pred_region
    _
  $region17: #{_lambda_.81} parent=0 // pred_fallthru
    _
  %p18 = scmp.eq.s32.totalorder 0, 0
  // Predicated region
  $region18: #{_lambda_.81} parent=0 // pred_check
    %p19 = pneg %p18
  $region19: #{_lambda_.81} parent=0 // pred_check_branch
    %21 = sbr.rel (%p19) target = $region21
  $region20: #{_lambda_.81} parent=0 // pred_region
    %22 = vst [vmem:[#allocation2] sm:$0xff] 0.0
  $region21: #{_lambda_.81} parent=0 // pred_fallthru
    _
  %v23 = vld [vmem:[#allocation2] sm:$0xff]
  %v24 = vld [vmem:[%s0] sm:$0xf]
  %v25 = vld [vmem:[%s1] sm:$0xf]
  %v26 = vld [vmem:[%s1 + $0x4] sm:$0xf]
  %v27 = vld [vmem:[%s1 + $0x8] sm:$0xf]
  %v28 = vld [vmem:[%s1 + $0xc] sm:$0xf]
  %v29 = vld [vmem:[%s1 + $0x10] sm:$0xf]
  %v30 = vld [vmem:[%s1 + $0x14] sm:$0xf]
  %v31 = vld [vmem:[%s1 + $0x18] sm:$0xf]
  %v32 = vld [vmem:[%s1 + $0x1c] sm:$0xf]
  %v33 = vld [vmem:[%s1 + $0x20] sm:$0xf]
  %v34 = vld [vmem:[%s1 + $0x24] sm:$0xf]
  %v35 = vld [vmem:[%s1 + $0x28] sm:$0xf]
  %v36 = vld [vmem:[%s1 + $0x2c] sm:$0xf]
  %v37 = vld [vmem:[%s1 + $0x30] sm:$0xf]
  %v38 = vld [vmem:[%s1 + $0x34] sm:$0xf]
  %v39 = vld [vmem:[%s1 + $0x38] sm:$0xf]
  %v40 = vld [vmem:[%s1 + $0x3c] sm:$0xf]
  %v57 = vunpack.c.l.b16 %v25
  %v58 = vunpack.c.l.b16 %v26
  %v59 = vunpack.c.l.b16 %v27
  %v60 = vunpack.c.l.b16 %v28
  %v61 = vunpack.c.l.b16 %v29
  %v62 = vunpack.c.l.b16 %v30
  %v63 = vunpack.c.l.b16 %v31
  %v64 = vunpack.c.l.b16 %v32
  %v65 = vunpack.c.l.b16 %v33
  %v66 = vunpack.c.l.b16 %v34
  %v67 = vunpack.c.l.b16 %v35
  %v68 = vunpack.c.l.b16 %v36
  %v69 = vunpack.c.l.b16 %v37
  %v70 = vunpack.c.l.b16 %v38
  %v71 = vunpack.c.l.b16 %v39
  %v72 = vunpack.c.l.b16 %v40
  %v73 = vpack.c.b16 %v58, %v57
  %v74 = vpack.c.b16 %v60, %v59
  %v75 = vpack.c.b16 %v62, %v61
  %v76 = vpack.c.b16 %v64, %v63
  %v77 = vpack.c.b16 %v66, %v65
  %v78 = vpack.c.b16 %v68, %v67
  %v79 = vpack.c.b16 %v70, %v69
  %v80 = vpack.c.b16 %v72, %v71
  %89 = vmatprep.subr.bf16.mxu0 0
  %90 = vmatpush1.bf16.msra.mxu0 %v80
  %91 = vmatprep.subr.bf16.mxu0 0
  %92 = vmatpush1.bf16.msra.mxu0 %v79
  %93 = vmatprep.subr.bf16.mxu0 0
  %94 = vmatpush1.bf16.msra.mxu0 %v78
  %95 = vmatprep.subr.bf16.mxu0 0
  %96 = vmatpush1.bf16.msra.mxu0 %v77
  %97 = vmatprep.subr.bf16.mxu0 0
  %98 = vmatpush1.bf16.msra.mxu0 %v76
  %99 = vmatprep.subr.bf16.mxu0 0
  %100 = vmatpush1.bf16.msra.mxu0 %v75
  %101 = vmatprep.subr.bf16.mxu0 0
  %102 = vmatpush1.bf16.msra.mxu0 %v74
  %103 = vmatprep.subr.bf16.mxu0 0
  %104 = vmatpush1.bf16.msra.mxu0 %v73
  %105 = vmatprep.subr.bf16.mxu0 0
  %106 = vmatpush2.bf16.msra.mxu0 0
  %107 = vmatprep.subr.bf16.mxu0 0
  %108 = vmatpush2.bf16.msra.mxu0 0
  %109 = vmatprep.subr.bf16.mxu0 0
  %110 = vmatpush2.bf16.msra.mxu0 0
  %111 = vmatprep.subr.bf16.mxu0 0
  %112 = vmatpush2.bf16.msra.mxu0 0
  %113 = vmatprep.subr.bf16.mxu0 0
  %114 = vmatpush2.bf16.msra.mxu0 0
  %115 = vmatprep.subr.bf16.mxu0 0
  %116 = vmatpush2.bf16.msra.mxu0 0
  %117 = vmatprep.subr.bf16.mxu0 0
  %118 = vmatpush2.bf16.msra.mxu0 0
  %119 = vmatprep.subr.bf16.mxu0 0
  %120 = vmatpush2.bf16.msra.mxu0 0
  %121 = vmatprep.mubr.bf16.mxu0 0
  %122 = vmatmul.mubr.bf16.gmra.mxu0 %v24
  %v123 = vpop.f32.mrf.mxu0
  %v124 = vadd.f32 0.0, %v123
  %v125 = vpop.f32.mrf.mxu0
  %v126 = vpop.f32.mrf.mxu0
  %v127 = vpop.f32.mrf.mxu0
  %128 = vdwg.mxu0
  %v129 = vadd.f32 %v23, %v124
  %130 = vst [vmem:[#allocation2] sm:$0xff] %v129
  // Predicated region
  $region22: #{_lambda_.81} parent=0 // pred_check
    %p131 = pneg %p18
  $region23: #{_lambda_.81} parent=0 // pred_check_branch
    %133 = sbr.rel (%p131) target = $region25
  $region24: #{_lambda_.81} parent=0 // pred_region
    %v134 = vld [vmem:[#allocation2] sm:$0xff]
    %v135 = vld [vmem:[%s2] sm:$0x1]
    %v137 = vlaneseq
    %v138 = vshrl.u32 %v137, 7
    %v139 = vsub.s32 0, %v138
    %v140 = vrot.slane %v135, %v139
    %v142 = vmul.f32 %v134, %v140
    %v143 = vld [vmem:[%s3] sm:$0x1]
    %v145 = vlaneseq
    %v146 = vshrl.u32 %v145, 7
    %v147 = vsub.s32 0, %v146
    %v148 = vrot.slane %v143, %v147
    %v150 = vadd.f32 %v142, %v148
    %v151 = vpack.c.bf16 %v150, %v150
    %152 = vst [vmem:[%s4] sm:$0xf] %v151
  $region25: #{_lambda_.81} parent=0 // pred_fallthru
    _
  // Predicated region
  $region26: #{_lambda_.81} parent=0 // pred_check
    _
  $region27: #{_lambda_.81} parent=0 // pred_check_branch
    %154 = sbr.rel (0) target = $region29
  $region28: #{_lambda_.81} parent=0 // pred_region
    _
  $region29: #{_lambda_.81} parent=0 // pred_fallthru
    _
  // Predicated region
  $region30: #{_lambda_.81} parent=0 // pred_check
    _
  $region31: #{_lambda_.81} parent=0 // pred_check_branch
    %156 = sbr.rel (0) target = $region33
  $region32: #{_lambda_.81} parent=0 // pred_region
    _
  $region33: #{_lambda_.81} parent=0 // pred_fallthru
    _

// kernel: _lambda_.83
$region0: #{_lambda_.83}
  #allocation0 [shape = 'u32[]', space=smem, size = 0x4, offset = 0x4, fixed_abs, tag = 'smem constant byte address 0x4 - core index']
  #allocation1 [shape = 'u32[144,128]{1,0:T(1,128)}', space=vmem, size = 0x12000, scoped, tag = 'internal scratch']
  #allocation2 [shape = 'f32[8,128]{1,0:T(8,128)}', space=vmem, size = 0x1000, scoped, tag = 'scratch operand']
  %s0 = inlined_call_operand.vmem [shape: bf16[8,128], index: 0, kind: input, shape index: {}]
  %s1 = inlined_call_operand.vmem [shape: bf16[128,128], index: 1, kind: input, shape index: {}]
  %s2 = inlined_call_operand.vmem [shape: f32[1,128], index: 2, kind: input, shape index: {}]
  %s3 = inlined_call_operand.vmem [shape: f32[1,128], index: 3, kind: input, shape index: {}]
  %s4 = inlined_call_operand.vmem [shape: bf16[8,128], index: 4, kind: output, shape index: {}]
  %s5 = sld [smem:[#allocation0]]
  $region34: #{_lambda_.83} parent=0
    _
  %s7 = ssub.s32 1, %s5
  %s8 = scalar_select 0, %s7, %s5
  // Predicated region
  $region2: #{_lambda_.83} parent=0 // pred_check
    _
  $region3: #{_lambda_.83} parent=0 // pred_check_branch
    %10 = sbr.rel (0) target = $region5
  $region4: #{_lambda_.83} parent=0 // pred_region
    _
  $region5: #{_lambda_.83} parent=0 // pred_fallthru
    _
  // Predicated region
  $region6: #{_lambda_.83} parent=0 // pred_check
    _
  $region7: #{_lambda_.83} parent=0 // pred_check_branch
    %12 = sbr.rel (0) target = $region9
  $region8: #{_lambda_.83} parent=0 // pred_region
    _
  $region9: #{_lambda_.83} parent=0 // pred_fallthru
    _
  // Predicated region
  $region10: #{_lambda_.83} parent=0 // pred_check
    _
  $region11: #{_lambda_.83} parent=0 // pred_check_branch
    %14 = sbr.rel (0) target = $region13
  $region12: #{_lambda_.83} parent=0 // pred_region
    _
  $region13: #{_lambda_.83} parent=0 // pred_fallthru
    _
  // Predicated region
  $region14: #{_lambda_.83} parent=0 // pred_check
    _
  $region15: #{_lambda_.83} parent=0 // pred_check_branch
    %16 = sbr.rel (0) target = $region17
  $region16: #{_lambda_.83} parent=0 // pred_region
    _
  $region17: #{_lambda_.83} parent=0 // pred_fallthru
    _
  %p18 = scmp.eq.s32.totalorder 0, 0
  // Predicated region
  $region18: #{_lambda_.83} parent=0 // pred_check
    %p19 = pneg %p18
  $region19: #{_lambda_.83} parent=0 // pred_check_branch
    %21 = sbr.rel (%p19) target = $region21
  $region20: #{_lambda_.83} parent=0 // pred_region
    %22 = vst [vmem:[#allocation2] sm:$0xff] 0.0
  $region21: #{_lambda_.83} parent=0 // pred_fallthru
    _
  %v23 = vld [vmem:[#allocation2] sm:$0xff]
  %v24 = vld [vmem:[%s0] sm:$0xf]
  %v25 = vld [vmem:[%s1] sm:$0xf]
  %v26 = vld [vmem:[%s1 + $0x4] sm:$0xf]
  %v27 = vld [vmem:[%s1 + $0x8] sm:$0xf]
  %v28 = vld [vmem:[%s1 + $0xc] sm:$0xf]
  %v29 = vld [vmem:[%s1 + $0x10] sm:$0xf]
  %v30 = vld [vmem:[%s1 + $0x14] sm:$0xf]
  %v31 = vld [vmem:[%s1 + $0x18] sm:$0xf]
  %v32 = vld [vmem:[%s1 + $0x1c] sm:$0xf]
  %v33 = vld [vmem:[%s1 + $0x20] sm:$0xf]
  %v34 = vld [vmem:[%s1 + $0x24] sm:$0xf]
  %v35 = vld [vmem:[%s1 + $0x28] sm:$0xf]
  %v36 = vld [vmem:[%s1 + $0x2c] sm:$0xf]
  %v37 = vld [vmem:[%s1 + $0x30] sm:$0xf]
  %v38 = vld [vmem:[%s1 + $0x34] sm:$0xf]
  %v39 = vld [vmem:[%s1 + $0x38] sm:$0xf]
  %v40 = vld [vmem:[%s1 + $0x3c] sm:$0xf]
  %v57 = vunpack.c.l.b16 %v25
  %v58 = vunpack.c.l.b16 %v26
  %v59 = vunpack.c.l.b16 %v27
  %v60 = vunpack.c.l.b16 %v28
  %v61 = vunpack.c.l.b16 %v29
  %v62 = vunpack.c.l.b16 %v30
  %v63 = vunpack.c.l.b16 %v31
  %v64 = vunpack.c.l.b16 %v32
  %v65 = vunpack.c.l.b16 %v33
  %v66 = vunpack.c.l.b16 %v34
  %v67 = vunpack.c.l.b16 %v35
  %v68 = vunpack.c.l.b16 %v36
  %v69 = vunpack.c.l.b16 %v37
  %v70 = vunpack.c.l.b16 %v38
  %v71 = vunpack.c.l.b16 %v39
  %v72 = vunpack.c.l.b16 %v40
  %v73 = vpack.c.b16 %v58, %v57
  %v74 = vpack.c.b16 %v60, %v59
  %v75 = vpack.c.b16 %v62, %v61
  %v76 = vpack.c.b16 %v64, %v63
  %v77 = vpack.c.b16 %v66, %v65
  %v78 = vpack.c.b16 %v68, %v67
  %v79 = vpack.c.b16 %v70, %v69
  %v80 = vpack.c.b16 %v72, %v71
  %89 = vmatprep.subr.bf16.mxu0 0
  %90 = vmatpush1.bf16.msra.mxu0 %v80
  %91 = vmatprep.subr.bf16.mxu0 0
  %92 = vmatpush1.bf16.msra.mxu0 %v79
  %93 = vmatprep.subr.bf16.mxu0 0
  %94 = vmatpush1.bf16.msra.mxu0 %v78
  %95 = vmatprep.subr.bf16.mxu0 0
  %96 = vmatpush1.bf16.msra.mxu0 %v77
  %97 = vmatprep.subr.bf16.mxu0 0
  %98 = vmatpush1.bf16.msra.mxu0 %v76
  %99 = vmatprep.subr.bf16.mxu0 0
  %100 = vmatpush1.bf16.msra.mxu0 %v75
  %101 = vmatprep.subr.bf16.mxu0 0
  %102 = vmatpush1.bf16.msra.mxu0 %v74
  %103 = vmatprep.subr.bf16.mxu0 0
  %104 = vmatpush1.bf16.msra.mxu0 %v73
  %105 = vmatprep.subr.bf16.mxu0 0
  %106 = vmatpush2.bf16.msra.mxu0 0
  %107 = vmatprep.subr.bf16.mxu0 0
  %108 = vmatpush2.bf16.msra.mxu0 0
  %109 = vmatprep.subr.bf16.mxu0 0
  %110 = vmatpush2.bf16.msra.mxu0 0
  %111 = vmatprep.subr.bf16.mxu0 0
  %112 = vmatpush2.bf16.msra.mxu0 0
  %113 = vmatprep.subr.bf16.mxu0 0
  %114 = vmatpush2.bf16.msra.mxu0 0
  %115 = vmatprep.subr.bf16.mxu0 0
  %116 = vmatpush2.bf16.msra.mxu0 0
  %117 = vmatprep.subr.bf16.mxu0 0
  %118 = vmatpush2.bf16.msra.mxu0 0
  %119 = vmatprep.subr.bf16.mxu0 0
  %120 = vmatpush2.bf16.msra.mxu0 0
  %121 = vmatprep.mubr.bf16.mxu0 0
  %122 = vmatmul.mubr.bf16.gmra.mxu0 %v24
  %v123 = vpop.f32.mrf.mxu0
  %v124 = vadd.f32 0.0, %v123
  %v125 = vpop.f32.mrf.mxu0
  %v126 = vpop.f32.mrf.mxu0
  %v127 = vpop.f32.mrf.mxu0
  %128 = vdwg.mxu0
  %v129 = vadd.f32 %v23, %v124
  %130 = vst [vmem:[#allocation2] sm:$0xff] %v129
  // Predicated region
  $region22: #{_lambda_.83} parent=0 // pred_check
    %p131 = pneg %p18
  $region23: #{_lambda_.83} parent=0 // pred_check_branch
    %133 = sbr.rel (%p131) target = $region25
  $region24: #{_lambda_.83} parent=0 // pred_region
    %v134 = vld [vmem:[#allocation2] sm:$0xff]
    %v135 = vld [vmem:[%s2] sm:$0x1]
    %v137 = vlaneseq
    %v138 = vshrl.u32 %v137, 7
    %v139 = vsub.s32 0, %v138
    %v140 = vrot.slane %v135, %v139
    %v142 = vmul.f32 %v134, %v140
    %v143 = vld [vmem:[%s3] sm:$0x1]
    %v145 = vlaneseq
    %v146 = vshrl.u32 %v145, 7
    %v147 = vsub.s32 0, %v146
    %v148 = vrot.slane %v143, %v147
    %v150 = vadd.f32 %v142, %v148
    %v151 = vmax.f32 %v150, 0.0
    %v152 = vpack.c.bf16 %v151, %v151
    %153 = vst [vmem:[%s4] sm:$0xf] %v152
  $region25: #{_lambda_.83} parent=0 // pred_fallthru
    _
  // Predicated region
  $region26: #{_lambda_.83} parent=0 // pred_check
    _
  $region27: #{_lambda_.83} parent=0 // pred_check_branch
    %155 = sbr.rel (0) target = $region29
  $region28: #{_lambda_.83} parent=0 // pred_region
    _
  $region29: #{_lambda_.83} parent=0 // pred_fallthru
    _
  // Predicated region
  $region30: #{_lambda_.83} parent=0 // pred_check
    _
  $region31: #{_lambda_.83} parent=0 // pred_check_branch
    %157 = sbr.rel (0) target = $region33
  $region32: #{_lambda_.83} parent=0 // pred_region
    _
  $region33: #{_lambda_.83} parent=0 // pred_fallthru
    _

// kernel: _lambda_.80
$region0: #{_lambda_.80}
  #allocation0 [shape = 'u32[]', space=smem, size = 0x4, offset = 0x4, fixed_abs, tag = 'smem constant byte address 0x4 - core index']
  #allocation1 [shape = 'u32[144,128]{1,0:T(1,128)}', space=vmem, size = 0x12000, scoped, tag = 'internal scratch']
  #allocation2 [shape = 'f32[8,128]{1,0:T(8,128)}', space=vmem, size = 0x1000, scoped, tag = 'scratch operand']
  %s0 = inlined_call_operand.vmem [shape: bf16[8,1152], index: 0, kind: input, shape index: {}]
  %s1 = inlined_call_operand.vmem [shape: bf16[1152,128], index: 1, kind: input, shape index: {}]
  %s2 = inlined_call_operand.vmem [shape: f32[1,128], index: 2, kind: input, shape index: {}]
  %s3 = inlined_call_operand.vmem [shape: f32[1,128], index: 3, kind: input, shape index: {}]
  %s4 = inlined_call_operand.vmem [shape: bf16[8,128], index: 4, kind: output, shape index: {}]
  %s5 = sld [smem:[#allocation0]]
  $region34: #{_lambda_.80} parent=0
    _
  %s7 = ssub.s32 1, %s5
  %s8 = scalar_select 0, %s7, %s5
  // Predicated region
  $region2: #{_lambda_.80} parent=0 // pred_check
    _
  $region3: #{_lambda_.80} parent=0 // pred_check_branch
    %10 = sbr.rel (0) target = $region5
  $region4: #{_lambda_.80} parent=0 // pred_region
    _
  $region5: #{_lambda_.80} parent=0 // pred_fallthru
    _
  // Predicated region
  $region6: #{_lambda_.80} parent=0 // pred_check
    _
  $region7: #{_lambda_.80} parent=0 // pred_check_branch
    %12 = sbr.rel (0) target = $region9
  $region8: #{_lambda_.80} parent=0 // pred_region
    _
  $region9: #{_lambda_.80} parent=0 // pred_fallthru
    _
  // Predicated region
  $region10: #{_lambda_.80} parent=0 // pred_check
    _
  $region11: #{_lambda_.80} parent=0 // pred_check_branch
    %14 = sbr.rel (0) target = $region13
  $region12: #{_lambda_.80} parent=0 // pred_region
    _
  $region13: #{_lambda_.80} parent=0 // pred_fallthru
    _
  // Predicated region
  $region14: #{_lambda_.80} parent=0 // pred_check
    _
  $region15: #{_lambda_.80} parent=0 // pred_check_branch
    %16 = sbr.rel (0) target = $region17
  $region16: #{_lambda_.80} parent=0 // pred_region
    _
  $region17: #{_lambda_.80} parent=0 // pred_fallthru
    _
  %p18 = scmp.eq.s32.totalorder 0, 0
  // Predicated region
  $region18: #{_lambda_.80} parent=0 // pred_check
    %p19 = pneg %p18
  $region19: #{_lambda_.80} parent=0 // pred_check_branch
    %21 = sbr.rel (%p19) target = $region21
  $region20: #{_lambda_.80} parent=0 // pred_region
    %22 = vst [vmem:[#allocation2] sm:$0xff] 0.0
  $region21: #{_lambda_.80} parent=0 // pred_fallthru
    _
  %v23 = vld [vmem:[#allocation2] sm:$0xff]
  %v24 = vld [vmem:[%s0] sm:$0xff]
  %v25 = vld [vmem:[%s0 + $0x8] sm:$0xff]
  %v26 = vld [vmem:[%s0 + $0x10] sm:$0xff]
  %v27 = vld [vmem:[%s0 + $0x18] sm:$0xff]
  %v28 = vld [vmem:[%s0 + $0x20] sm:$0xf]
  %v29 = vld [vmem:[%s1] sm:$0xf]
  %v30 = vld [vmem:[%s1 + $0x4] sm:$0xf]
  %v31 = vld [vmem:[%s1 + $0x8] sm:$0xf]
  %v32 = vld [vmem:[%s1 + $0xc] sm:$0xf]
  %v33 = vld [vmem:[%s1 + $0x10] sm:$0xf]
  %v34 = vld [vmem:[%s1 + $0x14] sm:$0xf]
  %v35 = vld [vmem:[%s1 + $0x18] sm:$0xf]
  %v36 = vld [vmem:[%s1 + $0x1c] sm:$0xf]
  %v37 = vld [vmem:[%s1 + $0x20] sm:$0xf]
  %v38 = vld [vmem:[%s1 + $0x24] sm:$0xf]
  %v39 = vld [vmem:[%s1 + $0x28] sm:$0xf]
  %v40 = vld [vmem:[%s1 + $0x2c] sm:$0xf]
  %v41 = vld [vmem:[%s1 + $0x30] sm:$0xf]
  %v42 = vld [vmem:[%s1 + $0x34] sm:$0xf]
  %v43 = vld [vmem:[%s1 + $0x38] sm:$0xf]
  %v44 = vld [vmem:[%s1 + $0x3c] sm:$0xf]
  %v45 = vld [vmem:[%s1 + $0x40] sm:$0xf]
  %v46 = vld [vmem:[%s1 + $0x44] sm:$0xf]
  %v47 = vld [vmem:[%s1 + $0x48] sm:$0xf]
  %v48 = vld [vmem:[%s1 + $0x4c] sm:$0xf]
  %v49 = vld [vmem:[%s1 + $0x50] sm:$0xf]
  %v50 = vld [vmem:[%s1 + $0x54] sm:$0xf]
  %v51 = vld [vmem:[%s1 + $0x58] sm:$0xf]
  %v52 = vld [vmem:[%s1 + $0x5c] sm:$0xf]
  %v53 = vld [vmem:[%s1 + $0x60] sm:$0xf]
  %v54 = vld [vmem:[%s1 + $0x64] sm:$0xf]
  %v55 = vld [vmem:[%s1 + $0x68] sm:$0xf]
  %v56 = vld [vmem:[%s1 + $0x6c] sm:$0xf]
  %v57 = vld [vmem:[%s1 + $0x70] sm:$0xf]
  %v58 = vld [vmem:[%s1 + $0x74] sm:$0xf]
  %v59 = vld [vmem:[%s1 + $0x78] sm:$0xf]
  %v60 = vld [vmem:[%s1 + $0x7c] sm:$0xf]
  %v61 = vld [vmem:[%s1 + $0x80] sm:$0xf]
  %v62 = vld [vmem:[%s1 + $0x84] sm:$0xf]
  %v63 = vld [vmem:[%s1 + $0x88] sm:$0xf]
  %v64 = vld [vmem:[%s1 + $0x8c] sm:$0xf]
  %v65 = vld [vmem:[%s1 + $0x90] sm:$0xf]
  %v66 = vld [vmem:[%s1 + $0x94] sm:$0xf]
  %v67 = vld [vmem:[%s1 + $0x98] sm:$0xf]
  %v68 = vld [vmem:[%s1 + $0x9c] sm:$0xf]
  %v69 = vld [vmem:[%s1 + $0xa0] sm:$0xf]
  %v70 = vld [vmem:[%s1 + $0xa4] sm:$0xf]
  %v71 = vld [vmem:[%s1 + $0xa8] sm:$0xf]
  %v72 = vld [vmem:[%s1 + $0xac] sm:$0xf]
  %v73 = vld [vmem:[%s1 + $0xb0] sm:$0xf]
  %v74 = vld [vmem:[%s1 + $0xb4] sm:$0xf]
  %v75 = vld [vmem:[%s1 + $0xb8] sm:$0xf]
  %v76 = vld [vmem:[%s1 + $0xbc] sm:$0xf]
  %v77 = vld [vmem:[%s1 + $0xc0] sm:$0xf]
  %v78 = vld [vmem:[%s1 + $0xc4] sm:$0xf]
  %v79 = vld [vmem:[%s1 + $0xc8] sm:$0xf]
  %v80 = vld [vmem:[%s1 + $0xcc] sm:$0xf]
  %v81 = vld [vmem:[%s1 + $0xd0] sm:$0xf]
  %v82 = vld [vmem:[%s1 + $0xd4] sm:$0xf]
  %v83 = vld [vmem:[%s1 + $0xd8] sm:$0xf]
  %v84 = vld [vmem:[%s1 + $0xdc] sm:$0xf]
  %v85 = vld [vmem:[%s1 + $0xe0] sm:$0xf]
  %v86 = vld [vmem:[%s1 + $0xe4] sm:$0xf]
  %v87 = vld [vmem:[%s1 + $0xe8] sm:$0xf]
  %v88 = vld [vmem:[%s1 + $0xec] sm:$0xf]
  %v89 = vld [vmem:[%s1 + $0xf0] sm:$0xf]
  %v90 = vld [vmem:[%s1 + $0xf4] sm:$0xf]
  %v91 = vld [vmem:[%s1 + $0xf8] sm:$0xf]
  %v92 = vld [vmem:[%s1 + $0xfc] sm:$0xf]
  %v93 = vld [vmem:[%s1 + $0x100] sm:$0xf]
  %v94 = vld [vmem:[%s1 + $0x104] sm:$0xf]
  %v95 = vld [vmem:[%s1 + $0x108] sm:$0xf]
  %v96 = vld [vmem:[%s1 + $0x10c] sm:$0xf]
  %v97 = vld [vmem:[%s1 + $0x110] sm:$0xf]
  %v98 = vld [vmem:[%s1 + $0x114] sm:$0xf]
  %v99 = vld [vmem:[%s1 + $0x118] sm:$0xf]
  %v100 = vld [vmem:[%s1 + $0x11c] sm:$0xf]
  %v101 = vld [vmem:[%s1 + $0x120] sm:$0xf]
  %v102 = vld [vmem:[%s1 + $0x124] sm:$0xf]
  %v103 = vld [vmem:[%s1 + $0x128] sm:$0xf]
  %v104 = vld [vmem:[%s1 + $0x12c] sm:$0xf]
  %v105 = vld [vmem:[%s1 + $0x130] sm:$0xf]
  %v106 = vld [vmem:[%s1 + $0x134] sm:$0xf]
  %v107 = vld [vmem:[%s1 + $0x138] sm:$0xf]
  %v108 = vld [vmem:[%s1 + $0x13c] sm:$0xf]
  %v109 = vld [vmem:[%s1 + $0x140] sm:$0xf]
  %v110 = vld [vmem:[%s1 + $0x144] sm:$0xf]
  %v111 = vld [vmem:[%s1 + $0x148] sm:$0xf]
  %v112 = vld [vmem:[%s1 + $0x14c] sm:$0xf]
  %v113 = vld [vmem:[%s1 + $0x150] sm:$0xf]
  %v114 = vld [vmem:[%s1 + $0x154] sm:$0xf]
  %v115 = vld [vmem:[%s1 + $0x158] sm:$0xf]
  %v116 = vld [vmem:[%s1 + $0x15c] sm:$0xf]
  %v117 = vld [vmem:[%s1 + $0x160] sm:$0xf]
  %v118 = vld [vmem:[%s1 + $0x164] sm:$0xf]
  %v119 = vld [vmem:[%s1 + $0x168] sm:$0xf]
  %v120 = vld [vmem:[%s1 + $0x16c] sm:$0xf]
  %v121 = vld [vmem:[%s1 + $0x170] sm:$0xf]
  %v122 = vld [vmem:[%s1 + $0x174] sm:$0xf]
  %v123 = vld [vmem:[%s1 + $0x178] sm:$0xf]
  %v124 = vld [vmem:[%s1 + $0x17c] sm:$0xf]
  %v125 = vld [vmem:[%s1 + $0x180] sm:$0xf]
  %v126 = vld [vmem:[%s1 + $0x184] sm:$0xf]
  %v127 = vld [vmem:[%s1 + $0x188] sm:$0xf]
  %v128 = vld [vmem:[%s1 + $0x18c] sm:$0xf]
  %v129 = vld [vmem:[%s1 + $0x190] sm:$0xf]
  %v130 = vld [vmem:[%s1 + $0x194] sm:$0xf]
  %v131 = vld [vmem:[%s1 + $0x198] sm:$0xf]
  %v132 = vld [vmem:[%s1 + $0x19c] sm:$0xf]
  %v133 = vld [vmem:[%s1 + $0x1a0] sm:$0xf]
  %v134 = vld [vmem:[%s1 + $0x1a4] sm:$0xf]
  %v135 = vld [vmem:[%s1 + $0x1a8] sm:$0xf]
  %v136 = vld [vmem:[%s1 + $0x1ac] sm:$0xf]
  %v137 = vld [vmem:[%s1 + $0x1b0] sm:$0xf]
  %v138 = vld [vmem:[%s1 + $0x1b4] sm:$0xf]
  %v139 = vld [vmem:[%s1 + $0x1b8] sm:$0xf]
  %v140 = vld [vmem:[%s1 + $0x1bc] sm:$0xf]
  %v141 = vld [vmem:[%s1 + $0x1c0] sm:$0xf]
  %v142 = vld [vmem:[%s1 + $0x1c4] sm:$0xf]
  %v143 = vld [vmem:[%s1 + $0x1c8] sm:$0xf]
  %v144 = vld [vmem:[%s1 + $0x1cc] sm:$0xf]
  %v145 = vld [vmem:[%s1 + $0x1d0] sm:$0xf]
  %v146 = vld [vmem:[%s1 + $0x1d4] sm:$0xf]
  %v147 = vld [vmem:[%s1 + $0x1d8] sm:$0xf]
  %v148 = vld [vmem:[%s1 + $0x1dc] sm:$0xf]
  %v149 = vld [vmem:[%s1 + $0x1e0] sm:$0xf]
  %v150 = vld [vmem:[%s1 + $0x1e4] sm:$0xf]
  %v151 = vld [vmem:[%s1 + $0x1e8] sm:$0xf]
  %v152 = vld [vmem:[%s1 + $0x1ec] sm:$0xf]
  %v153 = vld [vmem:[%s1 + $0x1f0] sm:$0xf]
  %v154 = vld [vmem:[%s1 + $0x1f4] sm:$0xf]
  %v155 = vld [vmem:[%s1 + $0x1f8] sm:$0xf]
  %v156 = vld [vmem:[%s1 + $0x1fc] sm:$0xf]
  %v157 = vld [vmem:[%s1 + $0x200] sm:$0xf]
  %v158 = vld [vmem:[%s1 + $0x204] sm:$0xf]
  %v159 = vld [vmem:[%s1 + $0x208] sm:$0xf]
  %v160 = vld [vmem:[%s1 + $0x20c] sm:$0xf]
  %v161 = vld [vmem:[%s1 + $0x210] sm:$0xf]
  %v162 = vld [vmem:[%s1 + $0x214] sm:$0xf]
  %v163 = vld [vmem:[%s1 + $0x218] sm:$0xf]
  %v164 = vld [vmem:[%s1 + $0x21c] sm:$0xf]
  %v165 = vld [vmem:[%s1 + $0x220] sm:$0xf]
  %v166 = vld [vmem:[%s1 + $0x224] sm:$0xf]
  %v167 = vld [vmem:[%s1 + $0x228] sm:$0xf]
  %v168 = vld [vmem:[%s1 + $0x22c] sm:$0xf]
  %v169 = vld [vmem:[%s1 + $0x230] sm:$0xf]
  %v170 = vld [vmem:[%s1 + $0x234] sm:$0xf]
  %v171 = vld [vmem:[%s1 + $0x238] sm:$0xf]
  %v172 = vld [vmem:[%s1 + $0x23c] sm:$0xf]
  %v178 = vunpack.c.l.b16 %v24
  %v179 = vunpack.c.h.b16 %v24
  %v180 = vunpack.c.l.b16 %v25
  %v181 = vunpack.c.h.b16 %v25
  %v182 = vunpack.c.l.b16 %v26
  %v183 = vunpack.c.h.b16 %v26
  %v184 = vunpack.c.l.b16 %v27
  %v185 = vunpack.c.h.b16 %v27
  %v186 = vunpack.c.l.b16 %v28
  %v187 = vpack.c.b16 %v178, %v178
  %v188 = vpack.c.b16 %v179, %v179
  %v189 = vpack.c.b16 %v180, %v180
  %v190 = vpack.c.b16 %v181, %v181
  %v191 = vpack.c.b16 %v182, %v182
  %v192 = vpack.c.b16 %v183, %v183
  %v193 = vpack.c.b16 %v184, %v184
  %v194 = vpack.c.b16 %v185, %v185
  %v195 = vpack.c.b16 %v186, %v186
  %v349 = vunpack.c.l.b16 %v29
  %v350 = vunpack.c.l.b16 %v30
  %v351 = vunpack.c.l.b16 %v31
  %v352 = vunpack.c.l.b16 %v32
  %v353 = vunpack.c.l.b16 %v33
  %v354 = vunpack.c.l.b16 %v34
  %v355 = vunpack.c.l.b16 %v35
  %v356 = vunpack.c.l.b16 %v36
  %v357 = vunpack.c.l.b16 %v37
  %v358 = vunpack.c.l.b16 %v38
  %v359 = vunpack.c.l.b16 %v39
  %v360 = vunpack.c.l.b16 %v40
  %v361 = vunpack.c.l.b16 %v41
  %v362 = vunpack.c.l.b16 %v42
  %v363 = vunpack.c.l.b16 %v43
  %v364 = vunpack.c.l.b16 %v44
  %v365 = vunpack.c.l.b16 %v45
  %v366 = vunpack.c.l.b16 %v46
  %v367 = vunpack.c.l.b16 %v47
  %v368 = vunpack.c.l.b16 %v48
  %v369 = vunpack.c.l.b16 %v49
  %v370 = vunpack.c.l.b16 %v50
  %v371 = vunpack.c.l.b16 %v51
  %v372 = vunpack.c.l.b16 %v52
  %v373 = vunpack.c.l.b16 %v53
  %v374 = vunpack.c.l.b16 %v54
  %v375 = vunpack.c.l.b16 %v55
  %v376 = vunpack.c.l.b16 %v56
  %v377 = vunpack.c.l.b16 %v57
  %v378 = vunpack.c.l.b16 %v58
  %v379 = vunpack.c.l.b16 %v59
  %v380 = vunpack.c.l.b16 %v60
  %v381 = vunpack.c.l.b16 %v61
  %v382 = vunpack.c.l.b16 %v62
  %v383 = vunpack.c.l.b16 %v63
  %v384 = vunpack.c.l.b16 %v64
  %v385 = vunpack.c.l.b16 %v65
  %v386 = vunpack.c.l.b16 %v66
  %v387 = vunpack.c.l.b16 %v67
  %v388 = vunpack.c.l.b16 %v68
  %v389 = vunpack.c.l.b16 %v69
  %v390 = vunpack.c.l.b16 %v70
  %v391 = vunpack.c.l.b16 %v71
  %v392 = vunpack.c.l.b16 %v72
  %v393 = vunpack.c.l.b16 %v73
  %v394 = vunpack.c.l.b16 %v74
  %v395 = vunpack.c.l.b16 %v75
  %v396 = vunpack.c.l.b16 %v76
  %v397 = vunpack.c.l.b16 %v77
  %v398 = vunpack.c.l.b16 %v78
  %v399 = vunpack.c.l.b16 %v79
  %v400 = vunpack.c.l.b16 %v80
  %v401 = vunpack.c.l.b16 %v81
  %v402 = vunpack.c.l.b16 %v82
  %v403 = vunpack.c.l.b16 %v83
  %v404 = vunpack.c.l.b16 %v84
  %v405 = vunpack.c.l.b16 %v85
  %v406 = vunpack.c.l.b16 %v86
  %v407 = vunpack.c.l.b16 %v87
  %v408 = vunpack.c.l.b16 %v88
  %v409 = vunpack.c.l.b16 %v89
  %v410 = vunpack.c.l.b16 %v90
  %v411 = vunpack.c.l.b16 %v91
  %v412 = vunpack.c.l.b16 %v92
  %v413 = vunpack.c.l.b16 %v93
  %v414 = vunpack.c.l.b16 %v94
  %v415 = vunpack.c.l.b16 %v95
  %v416 = vunpack.c.l.b16 %v96
  %v417 = vunpack.c.l.b16 %v97
  %v418 = vunpack.c.l.b16 %v98
  %v419 = vunpack.c.l.b16 %v99
  %v420 = vunpack.c.l.b16 %v100
  %v421 = vunpack.c.l.b16 %v101
  %v422 = vunpack.c.l.b16 %v102
  %v423 = vunpack.c.l.b16 %v103
  %v424 = vunpack.c.l.b16 %v104
  %v425 = vunpack.c.l.b16 %v105
  %v426 = vunpack.c.l.b16 %v106
  %v427 = vunpack.c.l.b16 %v107
  %v428 = vunpack.c.l.b16 %v108
  %v429 = vunpack.c.l.b16 %v109
  %v430 = vunpack.c.l.b16 %v110
  %v431 = vunpack.c.l.b16 %v111
  %v432 = vunpack.c.l.b16 %v112
  %v433 = vunpack.c.l.b16 %v113
  %v434 = vunpack.c.l.b16 %v114
  %v435 = vunpack.c.l.b16 %v115
  %v436 = vunpack.c.l.b16 %v116
  %v437 = vunpack.c.l.b16 %v117
  %v438 = vunpack.c.l.b16 %v118
  %v439 = vunpack.c.l.b16 %v119
  %v440 = vunpack.c.l.b16 %v120
  %v441 = vunpack.c.l.b16 %v121
  %v442 = vunpack.c.l.b16 %v122
  %v443 = vunpack.c.l.b16 %v123
  %v444 = vunpack.c.l.b16 %v124
  %v445 = vunpack.c.l.b16 %v125
  %v446 = vunpack.c.l.b16 %v126
  %v447 = vunpack.c.l.b16 %v127
  %v448 = vunpack.c.l.b16 %v128
  %v449 = vunpack.c.l.b16 %v129
  %v450 = vunpack.c.l.b16 %v130
  %v451 = vunpack.c.l.b16 %v131
  %v452 = vunpack.c.l.b16 %v132
  %v453 = vunpack.c.l.b16 %v133
  %v454 = vunpack.c.l.b16 %v134
  %v455 = vunpack.c.l.b16 %v135
  %v456 = vunpack.c.l.b16 %v136
  %v457 = vunpack.c.l.b16 %v137
  %v458 = vunpack.c.l.b16 %v138
  %v459 = vunpack.c.l.b16 %v139
  %v460 = vunpack.c.l.b16 %v140
  %v461 = vunpack.c.l.b16 %v141
  %v462 = vunpack.c.l.b16 %v142
  %v463 = vunpack.c.l.b16 %v143
  %v464 = vunpack.c.l.b16 %v144
  %v465 = vunpack.c.l.b16 %v145
  %v466 = vunpack.c.l.b16 %v146
  %v467 = vunpack.c.l.b16 %v147
  %v468 = vunpack.c.l.b16 %v148
  %v469 = vunpack.c.l.b16 %v149
  %v470 = vunpack.c.l.b16 %v150
  %v471 = vunpack.c.l.b16 %v151
  %v472 = vunpack.c.l.b16 %v152
  %v473 = vunpack.c.l.b16 %v153
  %v474 = vunpack.c.l.b16 %v154
  %v475 = vunpack.c.l.b16 %v155
  %v476 = vunpack.c.l.b16 %v156
  %v477 = vunpack.c.l.b16 %v157
  %v478 = vunpack.c.l.b16 %v158
  %v479 = vunpack.c.l.b16 %v159
  %v480 = vunpack.c.l.b16 %v160
  %v481 = vunpack.c.l.b16 %v161
  %v482 = vunpack.c.l.b16 %v162
  %v483 = vunpack.c.l.b16 %v163
  %v484 = vunpack.c.l.b16 %v164
  %v485 = vunpack.c.l.b16 %v165
  %v486 = vunpack.c.l.b16 %v166
  %v487 = vunpack.c.l.b16 %v167
  %v488 = vunpack.c.l.b16 %v168
  %v489 = vunpack.c.l.b16 %v169
  %v490 = vunpack.c.l.b16 %v170
  %v491 = vunpack.c.l.b16 %v171
  %v492 = vunpack.c.l.b16 %v172
  %v493 = vpack.c.b16 %v350, %v349
  %v494 = vpack.c.b16 %v352, %v351
  %v495 = vpack.c.b16 %v354, %v353
  %v496 = vpack.c.b16 %v356, %v355
  %v497 = vpack.c.b16 %v358, %v357
  %v498 = vpack.c.b16 %v360, %v359
  %v499 = vpack.c.b16 %v362, %v361
  %v500 = vpack.c.b16 %v364, %v363
  %v501 = vpack.c.b16 %v366, %v365
  %v502 = vpack.c.b16 %v368, %v367
  %v503 = vpack.c.b16 %v370, %v369
  %v504 = vpack.c.b16 %v372, %v371
  %v505 = vpack.c.b16 %v374, %v373
  %v506 = vpack.c.b16 %v376, %v375
  %v507 = vpack.c.b16 %v378, %v377
  %v508 = vpack.c.b16 %v380, %v379
  %v509 = vpack.c.b16 %v382, %v381
  %v510 = vpack.c.b16 %v384, %v383
  %v511 = vpack.c.b16 %v386, %v385
  %v512 = vpack.c.b16 %v388, %v387
  %v513 = vpack.c.b16 %v390, %v389
  %v514 = vpack.c.b16 %v392, %v391
  %v515 = vpack.c.b16 %v394, %v393
  %v516 = vpack.c.b16 %v396, %v395
  %v517 = vpack.c.b16 %v398, %v397
  %v518 = vpack.c.b16 %v400, %v399
  %v519 = vpack.c.b16 %v402, %v401
  %v520 = vpack.c.b16 %v404, %v403
  %v521 = vpack.c.b16 %v406, %v405
  %v522 = vpack.c.b16 %v408, %v407
  %v523 = vpack.c.b16 %v410, %v409
  %v524 = vpack.c.b16 %v412, %v411
  %v525 = vpack.c.b16 %v414, %v413
  %v526 = vpack.c.b16 %v416, %v415
  %v527 = vpack.c.b16 %v418, %v417
  %v528 = vpack.c.b16 %v420, %v419
  %v529 = vpack.c.b16 %v422, %v421
  %v530 = vpack.c.b16 %v424, %v423
  %v531 = vpack.c.b16 %v426, %v425
  %v532 = vpack.c.b16 %v428, %v427
  %v533 = vpack.c.b16 %v430, %v429
  %v534 = vpack.c.b16 %v432, %v431
  %v535 = vpack.c.b16 %v434, %v433
  %v536 = vpack.c.b16 %v436, %v435
  %v537 = vpack.c.b16 %v438, %v437
  %v538 = vpack.c.b16 %v440, %v439
  %v539 = vpack.c.b16 %v442, %v441
  %v540 = vpack.c.b16 %v444, %v443
  %v541 = vpack.c.b16 %v446, %v445
  %v542 = vpack.c.b16 %v448, %v447
  %v543 = vpack.c.b16 %v450, %v449
  %v544 = vpack.c.b16 %v452, %v451
  %v545 = vpack.c.b16 %v454, %v453
  %v546 = vpack.c.b16 %v456, %v455
  %v547 = vpack.c.b16 %v458, %v457
  %v548 = vpack.c.b16 %v460, %v459
  %v549 = vpack.c.b16 %v462, %v461
  %v550 = vpack.c.b16 %v464, %v463
  %v551 = vpack.c.b16 %v466, %v465
  %v552 = vpack.c.b16 %v468, %v467
  %v553 = vpack.c.b16 %v470, %v469
  %v554 = vpack.c.b16 %v472, %v471
  %v555 = vpack.c.b16 %v474, %v473
  %v556 = vpack.c.b16 %v476, %v475
  %v557 = vpack.c.b16 %v478, %v477
  %v558 = vpack.c.b16 %v480, %v479
  %v559 = vpack.c.b16 %v482, %v481
  %v560 = vpack.c.b16 %v484, %v483
  %v561 = vpack.c.b16 %v486, %v485
  %v562 = vpack.c.b16 %v488, %v487
  %v563 = vpack.c.b16 %v490, %v489
  %v564 = vpack.c.b16 %v492, %v491
  %637 = vmatprep.subr.bf16.mxu0 0
  %638 = vmatpush1.bf16.msra.mxu0 %v500
  %639 = vmatprep.subr.bf16.mxu0 0
  %640 = vmatpush1.bf16.msra.mxu0 %v499
  %641 = vmatprep.subr.bf16.mxu0 0
  %642 = vmatpush1.bf16.msra.mxu0 %v498
  %643 = vmatprep.subr.bf16.mxu0 0
  %644 = vmatpush1.bf16.msra.mxu0 %v497
  %645 = vmatprep.subr.bf16.mxu0 0
  %646 = vmatpush1.bf16.msra.mxu0 %v496
  %647 = vmatprep.subr.bf16.mxu0 0
  %648 = vmatpush1.bf16.msra.mxu0 %v495
  %649 = vmatprep.subr.bf16.mxu0 0
  %650 = vmatpush1.bf16.msra.mxu0 %v494
  %651 = vmatprep.subr.bf16.mxu0 0
  %652 = vmatpush1.bf16.msra.mxu0 %v493
  %653 = vmatprep.subr.bf16.mxu0 0
  %654 = vmatpush2.bf16.msra.mxu0 %v508
  %655 = vmatprep.subr.bf16.mxu0 0
  %656 = vmatpush2.bf16.msra.mxu0 %v507
  %657 = vmatprep.subr.bf16.mxu0 0
  %658 = vmatpush2.bf16.msra.mxu0 %v506
  %659 = vmatprep.subr.bf16.mxu0 0
  %660 = vmatpush2.bf16.msra.mxu0 %v505
  %661 = vmatprep.subr.bf16.mxu0 0
  %662 = vmatpush2.bf16.msra.mxu0 %v504
  %663 = vmatprep.subr.bf16.mxu0 0
  %664 = vmatpush2.bf16.msra.mxu0 %v503
  %665 = vmatprep.subr.bf16.mxu0 0
  %666 = vmatpush2.bf16.msra.mxu0 %v502
  %667 = vmatprep.subr.bf16.mxu0 0
  %668 = vmatpush2.bf16.msra.mxu0 %v501
  %669 = vmatprep.mubr.bf16.mxu0 %v188
  %670 = vmatmul.mubr.bf16.gmra.mxu0 %v187
  %v671 = vpop.f32.mrf.mxu0
  %v672 = vadd.f32 0.0, %v671
  %v673 = vpop.f32.mrf.mxu0
  %v674 = vpop.f32.mrf.mxu0
  %v675 = vpop.f32.mrf.mxu0
  %676 = vdwg.mxu0
  %677 = vmatprep.subr.bf16.mxu0 0
  %678 = vmatpush1.bf16.msra.mxu0 %v516
  %679 = vmatprep.subr.bf16.mxu0 0
  %680 = vmatpush1.bf16.msra.mxu0 %v515
  %681 = vmatprep.subr.bf16.mxu0 0
  %682 = vmatpush1.bf16.msra.mxu0 %v514
  %683 = vmatprep.subr.bf16.mxu0 0
  %684 = vmatpush1.bf16.msra.mxu0 %v513
  %685 = vmatprep.subr.bf16.mxu0 0
  %686 = vmatpush1.bf16.msra.mxu0 %v512
  %687 = vmatprep.subr.bf16.mxu0 0
  %688 = vmatpush1.bf16.msra.mxu0 %v511
  %689 = vmatprep.subr.bf16.mxu0 0
  %690 = vmatpush1.bf16.msra.mxu0 %v510
  %691 = vmatprep.subr.bf16.mxu0 0
  %692 = vmatpush1.bf16.msra.mxu0 %v509
  %693 = vmatprep.subr.bf16.mxu0 0
  %694 = vmatpush2.bf16.msra.mxu0 %v524
  %695 = vmatprep.subr.bf16.mxu0 0
  %696 = vmatpush2.bf16.msra.mxu0 %v523
  %697 = vmatprep.subr.bf16.mxu0 0
  %698 = vmatpush2.bf16.msra.mxu0 %v522
  %699 = vmatprep.subr.bf16.mxu0 0
  %700 = vmatpush2.bf16.msra.mxu0 %v521
  %701 = vmatprep.subr.bf16.mxu0 0
  %702 = vmatpush2.bf16.msra.mxu0 %v520
  %703 = vmatprep.subr.bf16.mxu0 0
  %704 = vmatpush2.bf16.msra.mxu0 %v519
  %705 = vmatprep.subr.bf16.mxu0 0
  %706 = vmatpush2.bf16.msra.mxu0 %v518
  %707 = vmatprep.subr.bf16.mxu0 0
  %708 = vmatpush2.bf16.msra.mxu0 %v517
  %709 = vmatprep.mubr.bf16.mxu0 %v190
  %710 = vmatmul.mubr.bf16.gmra.mxu0 %v189
  %v711 = vpop.f32.mrf.mxu0
  %v712 = vadd.f32 %v672, %v711
  %v713 = vpop.f32.mrf.mxu0
  %v714 = vpop.f32.mrf.mxu0
  %v715 = vpop.f32.mrf.mxu0
  %716 = vdwg.mxu0
  %717 = vmatprep.subr.bf16.mxu0 0
  %718 = vmatpush1.bf16.msra.mxu0 %v532
  %719 = vmatprep.subr.bf16.mxu0 0
  %720 = vmatpush1.bf16.msra.mxu0 %v531
  %721 = vmatprep.subr.bf16.mxu0 0
  %722 = vmatpush1.bf16.msra.mxu0 %v530
  %723 = vmatprep.subr.bf16.mxu0 0
  %724 = vmatpush1.bf16.msra.mxu0 %v529
  %725 = vmatprep.subr.bf16.mxu0 0
  %726 = vmatpush1.bf16.msra.mxu0 %v528
  %727 = vmatprep.subr.bf16.mxu0 0
  %728 = vmatpush1.bf16.msra.mxu0 %v527
  %729 = vmatprep.subr.bf16.mxu0 0
  %730 = vmatpush1.bf16.msra.mxu0 %v526
  %731 = vmatprep.subr.bf16.mxu0 0
  %732 = vmatpush1.bf16.msra.mxu0 %v525
  %733 = vmatprep.subr.bf16.mxu0 0
  %734 = vmatpush2.bf16.msra.mxu0 %v540
  %735 = vmatprep.subr.bf16.mxu0 0
  %736 = vmatpush2.bf16.msra.mxu0 %v539
  %737 = vmatprep.subr.bf16.mxu0 0
  %738 = vmatpush2.bf16.msra.mxu0 %v538
  %739 = vmatprep.subr.bf16.mxu0 0
  %740 = vmatpush2.bf16.msra.mxu0 %v537
  %741 = vmatprep.subr.bf16.mxu0 0
  %742 = vmatpush2.bf16.msra.mxu0 %v536
  %743 = vmatprep.subr.bf16.mxu0 0
  %744 = vmatpush2.bf16.msra.mxu0 %v535
  %745 = vmatprep.subr.bf16.mxu0 0
  %746 = vmatpush2.bf16.msra.mxu0 %v534
  %747 = vmatprep.subr.bf16.mxu0 0
  %748 = vmatpush2.bf16.msra.mxu0 %v533
  %749 = vmatprep.mubr.bf16.mxu0 %v192
  %750 = vmatmul.mubr.bf16.gmra.mxu0 %v191
  %v751 = vpop.f32.mrf.mxu0
  %v752 = vadd.f32 %v712, %v751
  %v753 = vpop.f32.mrf.mxu0
  %v754 = vpop.f32.mrf.mxu0
  %v755 = vpop.f32.mrf.mxu0
  %756 = vdwg.mxu0
  %757 = vmatprep.subr.bf16.mxu0 0
  %758 = vmatpush1.bf16.msra.mxu0 %v548
  %759 = vmatprep.subr.bf16.mxu0 0
  %760 = vmatpush1.bf16.msra.mxu0 %v547
  %761 = vmatprep.subr.bf16.mxu0 0
  %762 = vmatpush1.bf16.msra.mxu0 %v546
  %763 = vmatprep.subr.bf16.mxu0 0
  %764 = vmatpush1.bf16.msra.mxu0 %v545
  %765 = vmatprep.subr.bf16.mxu0 0
  %766 = vmatpush1.bf16.msra.mxu0 %v544
  %767 = vmatprep.subr.bf16.mxu0 0
  %768 = vmatpush1.bf16.msra.mxu0 %v543
  %769 = vmatprep.subr.bf16.mxu0 0
  %770 = vmatpush1.bf16.msra.mxu0 %v542
  %771 = vmatprep.subr.bf16.mxu0 0
  %772 = vmatpush1.bf16.msra.mxu0 %v541
  %773 = vmatprep.subr.bf16.mxu0 0
  %774 = vmatpush2.bf16.msra.mxu0 %v556
  %775 = vmatprep.subr.bf16.mxu0 0
  %776 = vmatpush2.bf16.msra.mxu0 %v555
  %777 = vmatprep.subr.bf16.mxu0 0
  %778 = vmatpush2.bf16.msra.mxu0 %v554
  %779 = vmatprep.subr.bf16.mxu0 0
  %780 = vmatpush2.bf16.msra.mxu0 %v553
  %781 = vmatprep.subr.bf16.mxu0 0
  %782 = vmatpush2.bf16.msra.mxu0 %v552
  %783 = vmatprep.subr.bf16.mxu0 0
  %784 = vmatpush2.bf16.msra.mxu0 %v551
  %785 = vmatprep.subr.bf16.mxu0 0
  %786 = vmatpush2.bf16.msra.mxu0 %v550
  %787 = vmatprep.subr.bf16.mxu0 0
  %788 = vmatpush2.bf16.msra.mxu0 %v549
  %789 = vmatprep.mubr.bf16.mxu0 %v194
  %790 = vmatmul.mubr.bf16.gmra.mxu0 %v193
  %v791 = vpop.f32.mrf.mxu0
  %v792 = vadd.f32 %v752, %v791
  %v793 = vpop.f32.mrf.mxu0
  %v794 = vpop.f32.mrf.mxu0
  %v795 = vpop.f32.mrf.mxu0
  %796 = vdwg.mxu0
  %797 = vmatprep.subr.bf16.mxu0 0
  %798 = vmatpush1.bf16.msra.mxu0 %v564
  %799 = vmatprep.subr.bf16.mxu0 0
  %800 = vmatpush1.bf16.msra.mxu0 %v563
  %801 = vmatprep.subr.bf16.mxu0 0
  %802 = vmatpush1.bf16.msra.mxu0 %v562
  %803 = vmatprep.subr.bf16.mxu0 0
  %804 = vmatpush1.bf16.msra.mxu0 %v561
  %805 = vmatprep.subr.bf16.mxu0 0
  %806 = vmatpush1.bf16.msra.mxu0 %v560
  %807 = vmatprep.subr.bf16.mxu0 0
  %808 = vmatpush1.bf16.msra.mxu0 %v559
  %809 = vmatprep.subr.bf16.mxu0 0
  %810 = vmatpush1.bf16.msra.mxu0 %v558
  %811 = vmatprep.subr.bf16.mxu0 0
  %812 = vmatpush1.bf16.msra.mxu0 %v557
  %813 = vmatprep.subr.bf16.mxu0 0
  %814 = vmatpush2.bf16.msra.mxu0 0
  %815 = vmatprep.subr.bf16.mxu0 0
  %816 = vmatpush2.bf16.msra.mxu0 0
  %817 = vmatprep.subr.bf16.mxu0 0
  %818 = vmatpush2.bf16.msra.mxu0 0
  %819 = vmatprep.subr.bf16.mxu0 0
  %820 = vmatpush2.bf16.msra.mxu0 0
  %821 = vmatprep.subr.bf16.mxu0 0
  %822 = vmatpush2.bf16.msra.mxu0 0
  %823 = vmatprep.subr.bf16.mxu0 0
  %824 = vmatpush2.bf16.msra.mxu0 0
  %825 = vmatprep.subr.bf16.mxu0 0
  %826 = vmatpush2.bf16.msra.mxu0 0
  %827 = vmatprep.subr.bf16.mxu0 0
  %828 = vmatpush2.bf16.msra.mxu0 0
  %829 = vmatprep.mubr.bf16.mxu0 0
  %830 = vmatmul.mubr.bf16.gmra.mxu0 %v195
  %v831 = vpop.f32.mrf.mxu0
  %v832 = vadd.f32 %v792, %v831
  %v833 = vpop.f32.mrf.mxu0
  %v834 = vpop.f32.mrf.mxu0
  %v835 = vpop.f32.mrf.mxu0
  %836 = vdwg.mxu0
  %v837 = vadd.f32 %v23, %v832
  %838 = vst [vmem:[#allocation2] sm:$0xff] %v837
  // Predicated region
  $region22: #{_lambda_.80} parent=0 // pred_check
    %p839 = pneg %p18
  $region23: #{_lambda_.80} parent=0 // pred_check_branch
    %841 = sbr.rel (%p839) target = $region25
  $region24: #{_lambda_.80} parent=0 // pred_region
    %v842 = vld [vmem:[#allocation2] sm:$0xff]
    %v843 = vld [vmem:[%s2] sm:$0x1]
    %v845 = vlaneseq
    %v846 = vshrl.u32 %v845, 7
    %v847 = vsub.s32 0, %v846
    %v848 = vrot.slane %v843, %v847
    %v850 = vmul.f32 %v842, %v848
    %v851 = vld [vmem:[%s3] sm:$0x1]
    %v853 = vlaneseq
    %v854 = vshrl.u32 %v853, 7
    %v855 = vsub.s32 0, %v854
    %v856 = vrot.slane %v851, %v855
    %v858 = vadd.f32 %v850, %v856
    %v859 = vmax.f32 %v858, 0.0
    %v860 = vpack.c.bf16 %v859, %v859
    %861 = vst [vmem:[%s4] sm:$0xf] %v860
  $region25: #{_lambda_.80} parent=0 // pred_fallthru
    _
  // Predicated region
  $region26: #{_lambda_.80} parent=0 // pred_check
    _
  $region27: #{_lambda_.80} parent=0 // pred_check_branch
    %863 = sbr.rel (0) target = $region29
  $region28: #{_lambda_.80} parent=0 // pred_region
    _
  $region29: #{_lambda_.80} parent=0 // pred_fallthru
    _
  // Predicated region
  $region30: #{_lambda_.80} parent=0 // pred_check
    _
  $region31: #{_lambda_.80} parent=0 // pred_check_branch
    %865 = sbr.rel (0) target = $region33
  $region32: #{_lambda_.80} parent=0 // pred_region
    _
  $region33: #{_lambda_.80} parent=0 // pred_fallthru
    _

// kernel: _lambda_.101
$region0: #{_lambda_.101}
  #allocation0 [shape = 'u32[]', space=smem, size = 0x4, offset = 0x4, fixed_abs, tag = 'smem constant byte address 0x4 - core index']
  #allocation1 [shape = 'u32[144,128]{1,0:T(1,128)}', space=vmem, size = 0x12000, scoped, tag = 'internal scratch']
  #allocation2 [shape = 'f32[2,256]{1,0:T(2,128)}', space=vmem, size = 0x800, scoped, tag = 'scratch operand']
  %s0 = inlined_call_operand.vmem [shape: bf16[2,128], index: 0, kind: input, shape index: {}]
  %s1 = inlined_call_operand.vmem [shape: bf16[128,256], index: 1, kind: input, shape index: {}]
  %s2 = inlined_call_operand.vmem [shape: f32[1,256], index: 2, kind: input, shape index: {}]
  %s3 = inlined_call_operand.vmem [shape: f32[1,256], index: 3, kind: input, shape index: {}]
  %s4 = inlined_call_operand.vmem [shape: bf16[2,256], index: 4, kind: input, shape index: {}]
  %s5 = inlined_call_operand.vmem [shape: bf16[2,256], index: 5, kind: output, shape index: {}]
  %s6 = sld [smem:[#allocation0]]
  $region38: #{_lambda_.101} parent=0
    _
  %s8 = ssub.s32 1, %s6
  %s9 = scalar_select 0, %s8, %s6
  // Predicated region
  $region2: #{_lambda_.101} parent=0 // pred_check
    _
  $region3: #{_lambda_.101} parent=0 // pred_check_branch
    %11 = sbr.rel (0) target = $region5
  $region4: #{_lambda_.101} parent=0 // pred_region
    _
  $region5: #{_lambda_.101} parent=0 // pred_fallthru
    _
  // Predicated region
  $region6: #{_lambda_.101} parent=0 // pred_check
    _
  $region7: #{_lambda_.101} parent=0 // pred_check_branch
    %13 = sbr.rel (0) target = $region9
  $region8: #{_lambda_.101} parent=0 // pred_region
    _
  $region9: #{_lambda_.101} parent=0 // pred_fallthru
    _
  // Predicated region
  $region10: #{_lambda_.101} parent=0 // pred_check
    _
  $region11: #{_lambda_.101} parent=0 // pred_check_branch
    %15 = sbr.rel (0) target = $region13
  $region12: #{_lambda_.101} parent=0 // pred_region
    _
  $region13: #{_lambda_.101} parent=0 // pred_fallthru
    _
  // Predicated region
  $region14: #{_lambda_.101} parent=0 // pred_check
    _
  $region15: #{_lambda_.101} parent=0 // pred_check_branch
    %17 = sbr.rel (0) target = $region17
  $region16: #{_lambda_.101} parent=0 // pred_region
    _
  $region17: #{_lambda_.101} parent=0 // pred_fallthru
    _
  // Predicated region
  $region18: #{_lambda_.101} parent=0 // pred_check
    _
  $region19: #{_lambda_.101} parent=0 // pred_check_branch
    %19 = sbr.rel (0) target = $region21
  $region20: #{_lambda_.101} parent=0 // pred_region
    _
  $region21: #{_lambda_.101} parent=0 // pred_fallthru
    _
  %p21 = scmp.eq.s32.totalorder 0, 0
  // Predicated region
  $region22: #{_lambda_.101} parent=0 // pred_check
    %p22 = pneg %p21
  $region23: #{_lambda_.101} parent=0 // pred_check_branch
    %24 = sbr.rel (%p22) target = $region25
  $region24: #{_lambda_.101} parent=0 // pred_region
    %25 = vst [vmem:[#allocation2] sm:$0xf] 0.0
  $region25: #{_lambda_.101} parent=0 // pred_fallthru
    _
  %v26 = vld [vmem:[#allocation2] sm:$0xf]
  %v27 = vld [vmem:[%s0] sm:$0x1]
  %v28 = vld [vmem:[%s1] sm:$0xff]
  %v29 = vld [vmem:[%s1 + $0x8] sm:$0xff]
  %v30 = vld [vmem:[%s1 + $0x10] sm:$0xff]
  %v31 = vld [vmem:[%s1 + $0x18] sm:$0xff]
  %v32 = vld [vmem:[%s1 + $0x20] sm:$0xff]
  %v33 = vld [vmem:[%s1 + $0x28] sm:$0xff]
  %v34 = vld [vmem:[%s1 + $0x30] sm:$0xff]
  %v35 = vld [vmem:[%s1 + $0x38] sm:$0xff]
  %v36 = vld [vmem:[%s1 + $0x40] sm:$0xff]
  %v37 = vld [vmem:[%s1 + $0x48] sm:$0xff]
  %v38 = vld [vmem:[%s1 + $0x50] sm:$0xff]
  %v39 = vld [vmem:[%s1 + $0x58] sm:$0xff]
  %v40 = vld [vmem:[%s1 + $0x60] sm:$0xff]
  %v41 = vld [vmem:[%s1 + $0x68] sm:$0xff]
  %v42 = vld [vmem:[%s1 + $0x70] sm:$0xff]
  %v43 = vld [vmem:[%s1 + $0x78] sm:$0xff]
  %v60 = vunpack.c.l.b16 %v28
  %v61 = vunpack.c.h.b16 %v28
  %v62 = vunpack.c.l.b16 %v29
  %v63 = vunpack.c.h.b16 %v29
  %v64 = vunpack.c.l.b16 %v30
  %v65 = vunpack.c.h.b16 %v30
  %v66 = vunpack.c.l.b16 %v31
  %v67 = vunpack.c.h.b16 %v31
  %v68 = vunpack.c.l.b16 %v32
  %v69 = vunpack.c.h.b16 %v32
  %v70 = vunpack.c.l.b16 %v33
  %v71 = vunpack.c.h.b16 %v33
  %v72 = vunpack.c.l.b16 %v34
  %v73 = vunpack.c.h.b16 %v34
  %v74 = vunpack.c.l.b16 %v35
  %v75 = vunpack.c.h.b16 %v35
  %v76 = vunpack.c.l.b16 %v36
  %v77 = vunpack.c.h.b16 %v36
  %v78 = vunpack.c.l.b16 %v37
  %v79 = vunpack.c.h.b16 %v37
  %v80 = vunpack.c.l.b16 %v38
  %v81 = vunpack.c.h.b16 %v38
  %v82 = vunpack.c.l.b16 %v39
  %v83 = vunpack.c.h.b16 %v39
  %v84 = vunpack.c.l.b16 %v40
  %v85 = vunpack.c.h.b16 %v40
  %v86 = vunpack.c.l.b16 %v41
  %v87 = vunpack.c.h.b16 %v41
  %v88 = vunpack.c.l.b16 %v42
  %v89 = vunpack.c.h.b16 %v42
  %v90 = vunpack.c.l.b16 %v43
  %v91 = vunpack.c.h.b16 %v43
  %v92 = vpack.c.b16 %v62, %v60
  %v93 = vpack.c.b16 %v63, %v61
  %v94 = vpack.c.b16 %v66, %v64
  %v95 = vpack.c.b16 %v67, %v65
  %v96 = vpack.c.b16 %v70, %v68
  %v97 = vpack.c.b16 %v71, %v69
  %v98 = vpack.c.b16 %v74, %v72
  %v99 = vpack.c.b16 %v75, %v73
  %v100 = vpack.c.b16 %v78, %v76
  %v101 = vpack.c.b16 %v79, %v77
  %v102 = vpack.c.b16 %v82, %v80
  %v103 = vpack.c.b16 %v83, %v81
  %v104 = vpack.c.b16 %v86, %v84
  %v105 = vpack.c.b16 %v87, %v85
  %v106 = vpack.c.b16 %v90, %v88
  %v107 = vpack.c.b16 %v91, %v89
  %124 = vmatprep.subr.bf16.mxu0 %v107
  %125 = vmatpush1.bf16.msra.mxu0 %v106
  %126 = vmatprep.subr.bf16.mxu0 %v105
  %127 = vmatpush1.bf16.msra.mxu0 %v104
  %128 = vmatprep.subr.bf16.mxu0 %v103
  %129 = vmatpush1.bf16.msra.mxu0 %v102
  %130 = vmatprep.subr.bf16.mxu0 %v101
  %131 = vmatpush1.bf16.msra.mxu0 %v100
  %132 = vmatprep.subr.bf16.mxu0 %v99
  %133 = vmatpush1.bf16.msra.mxu0 %v98
  %134 = vmatprep.subr.bf16.mxu0 %v97
  %135 = vmatpush1.bf16.msra.mxu0 %v96
  %136 = vmatprep.subr.bf16.mxu0 %v95
  %137 = vmatpush1.bf16.msra.mxu0 %v94
  %138 = vmatprep.subr.bf16.mxu0 %v93
  %139 = vmatpush1.bf16.msra.mxu0 %v92
  %140 = vmatprep.subr.bf16.mxu0 0
  %141 = vmatpush2.bf16.msra.mxu0 0
  %142 = vmatprep.subr.bf16.mxu0 0
  %143 = vmatpush2.bf16.msra.mxu0 0
  %144 = vmatprep.subr.bf16.mxu0 0
  %145 = vmatpush2.bf16.msra.mxu0 0
  %146 = vmatprep.subr.bf16.mxu0 0
  %147 = vmatpush2.bf16.msra.mxu0 0
  %148 = vmatprep.subr.bf16.mxu0 0
  %149 = vmatpush2.bf16.msra.mxu0 0
  %150 = vmatprep.subr.bf16.mxu0 0
  %151 = vmatpush2.bf16.msra.mxu0 0
  %152 = vmatprep.subr.bf16.mxu0 0
  %153 = vmatpush2.bf16.msra.mxu0 0
  %154 = vmatprep.subr.bf16.mxu0 0
  %155 = vmatpush2.bf16.msra.mxu0 0
  %156 = vmatprep.mubr.bf16.mxu0 0
  %157 = vmatmul.mubr.bf16.gmra.mxu0 %v27
  %v158 = vpop.f32.mrf.mxu0
  %v159 = vadd.f32 0.0, %v158
  %v160 = vpop.f32.mrf.mxu0
  %v161 = vadd.f32 0.0, %v160
  %v162 = vpop.f32.mrf.mxu0
  %v163 = vpop.f32.mrf.mxu0
  %164 = vdwg.mxu0
  %v167 = vcombine.low %v159, %v161
  %v169 = vunpack.c.l.s4 1983009808
  %v170 = vunpack.c.0.s8 %v169
  %v171 = vlaneseq
  %v172 = vshrl.u32 %v171, 7
  %v173 = vsub.s32 %v170, %v172
  %v174 = vrot.slane %v167, %v173
  %v176 = vadd.f32 %v26, %v174
  %177 = vst [vmem:[#allocation2] sm:$0xf] %v176
  // Predicated region
  $region26: #{_lambda_.101} parent=0 // pred_check
    %p178 = pneg %p21
  $region27: #{_lambda_.101} parent=0 // pred_check_branch
    %180 = sbr.rel (%p178) target = $region29
  $region28: #{_lambda_.101} parent=0 // pred_region
    %v181 = vld [vmem:[#allocation2] sm:$0xf]
    %v182 = vld [vmem:[%s2] sm:$0x3]
    %v184 = vlaneseq
    %v185 = vshrl.u32 %v184, 7
    %v186 = vsub.s32 0, %v185
    %v187 = vrot.slane %v182, %v186
    %v188 = vlaneseq
    %v189 = vshrl.u32 %v188, 7
    %v190 = vsub.s32 1, %v189
    %v191 = vrot.slane %v182, %v190
    %v192 = vcombine.low %v187, %v191
    %v194 = vunpack.c.l.s4 1983009808
    %v195 = vunpack.c.0.s8 %v194
    %v196 = vlaneseq
    %v197 = vshrl.u32 %v196, 7
    %v198 = vsub.s32 %v195, %v197
    %v199 = vrot.slane %v192, %v198
    %v201 = vmul.f32 %v181, %v199
    %v202 = vld [vmem:[%s3] sm:$0x3]
    %v204 = vlaneseq
    %v205 = vshrl.u32 %v204, 7
    %v206 = vsub.s32 0, %v205
    %v207 = vrot.slane %v202, %v206
    %v208 = vlaneseq
    %v209 = vshrl.u32 %v208, 7
    %v210 = vsub.s32 1, %v209
    %v211 = vrot.slane %v202, %v210
    %v212 = vcombine.low %v207, %v211
    %v214 = vunpack.c.l.s4 1983009808
    %v215 = vunpack.c.0.s8 %v214
    %v216 = vlaneseq
    %v217 = vshrl.u32 %v216, 7
    %v218 = vsub.s32 %v215, %v217
    %v219 = vrot.slane %v212, %v218
    %v221 = vadd.f32 %v201, %v219
    %v222 = vld [vmem:[%s4] sm:$0x3]
    %v223 = vunpack.c.l.bf16 %v222
    %v224 = vadd.f32 %v221, %v223
    %v225 = vmax.f32 %v224, 0.0
    %v228 = vunpack.c.l.s4 1983009808
    %v229 = vunpack.c.0.s8 %v228
    %v230 = vlaneseq
    %v231 = vshrl.u32 %v230, 7
    %v232 = vsub.s32 %v229, %v231
    %v233 = vrot.slane %v225, %v232
    %v234 = vcombine.high %v233, %v233
    %v237 = vpack.c.bf16 %v233, %v233
    %v238 = vpack.c.bf16 %v234, %v234
    %v241 = vcombine.low %v237, %v238
    %v243 = vunpack.c.l.s4 1966171168
    %v244 = vunpack.c.0.s8 %v243
    %v245 = vlaneseq
    %v246 = vshrl.u32 %v245, 7
    %v247 = vsub.s32 %v244, %v246
    %v248 = vrot.slane %v241, %v247
    %v250 = vunpack.c.l.s4 1966171168
    %v251 = vunpack.c.0.s8 %v250
    %v252 = vlaneseq
    %v253 = vshrl.u32 %v252, 7
    %v254 = vsub.s32 %v251, %v253
    %v255 = vrot.slane %v248, %v254
    %257 = vst [vmem:[%s5] sm:$0x3] %v255
  $region29: #{_lambda_.101} parent=0 // pred_fallthru
    _
  // Predicated region
  $region30: #{_lambda_.101} parent=0 // pred_check
    _
  $region31: #{_lambda_.101} parent=0 // pred_check_branch
    %259 = sbr.rel (0) target = $region33
  $region32: #{_lambda_.101} parent=0 // pred_region
    _
  $region33: #{_lambda_.101} parent=0 // pred_fallthru
    _
  // Predicated region
  $region34: #{_lambda_.101} parent=0 // pred_check
    _
  $region35: #{_lambda_.101} parent=0 // pred_check_branch
    %261 = sbr.rel (0) target = $region37
  $region36: #{_lambda_.101} parent=0 // pred_region
    _
  $region37: #{_lambda_.101} parent=0 // pred_fallthru
    _

// kernel: _lambda_.102
$region0: #{_lambda_.102}
  #allocation0 [shape = 'u32[]', space=smem, size = 0x4, offset = 0x4, fixed_abs, tag = 'smem constant byte address 0x4 - core index']
  #allocation1 [shape = 'u32[144,128]{1,0:T(1,128)}', space=vmem, size = 0x12000, scoped, tag = 'internal scratch']
  #allocation2 [shape = 'f32[2,128]{1,0:T(2,128)}', space=vmem, size = 0x400, scoped, tag = 'scratch operand']
  %s0 = inlined_call_operand.vmem [shape: bf16[2,256], index: 0, kind: input, shape index: {}]
  %s1 = inlined_call_operand.vmem [shape: bf16[256,128], index: 1, kind: input, shape index: {}]
  %s2 = inlined_call_operand.vmem [shape: f32[1,128], index: 2, kind: input, shape index: {}]
  %s3 = inlined_call_operand.vmem [shape: f32[1,128], index: 3, kind: input, shape index: {}]
  %s4 = inlined_call_operand.vmem [shape: bf16[2,128], index: 4, kind: output, shape index: {}]
  %s5 = sld [smem:[#allocation0]]
  $region34: #{_lambda_.102} parent=0
    _
  %s7 = ssub.s32 1, %s5
  %s8 = scalar_select 0, %s7, %s5
  // Predicated region
  $region2: #{_lambda_.102} parent=0 // pred_check
    _
  $region3: #{_lambda_.102} parent=0 // pred_check_branch
    %10 = sbr.rel (0) target = $region5
  $region4: #{_lambda_.102} parent=0 // pred_region
    _
  $region5: #{_lambda_.102} parent=0 // pred_fallthru
    _
  // Predicated region
  $region6: #{_lambda_.102} parent=0 // pred_check
    _
  $region7: #{_lambda_.102} parent=0 // pred_check_branch
    %12 = sbr.rel (0) target = $region9
  $region8: #{_lambda_.102} parent=0 // pred_region
    _
  $region9: #{_lambda_.102} parent=0 // pred_fallthru
    _
  // Predicated region
  $region10: #{_lambda_.102} parent=0 // pred_check
    _
  $region11: #{_lambda_.102} parent=0 // pred_check_branch
    %14 = sbr.rel (0) target = $region13
  $region12: #{_lambda_.102} parent=0 // pred_region
    _
  $region13: #{_lambda_.102} parent=0 // pred_fallthru
    _
  // Predicated region
  $region14: #{_lambda_.102} parent=0 // pred_check
    _
  $region15: #{_lambda_.102} parent=0 // pred_check_branch
    %16 = sbr.rel (0) target = $region17
  $region16: #{_lambda_.102} parent=0 // pred_region
    _
  $region17: #{_lambda_.102} parent=0 // pred_fallthru
    _
  %p18 = scmp.eq.s32.totalorder 0, 0
  // Predicated region
  $region18: #{_lambda_.102} parent=0 // pred_check
    %p19 = pneg %p18
  $region19: #{_lambda_.102} parent=0 // pred_check_branch
    %21 = sbr.rel (%p19) target = $region21
  $region20: #{_lambda_.102} parent=0 // pred_region
    %22 = vst [vmem:[#allocation2] sm:$0x3] 0.0
  $region21: #{_lambda_.102} parent=0 // pred_fallthru
    _
  %v23 = vld [vmem:[#allocation2] sm:$0x3]
  %v24 = vld [vmem:[%s0] sm:$0x3]
  %v25 = vld [vmem:[%s1] sm:$0xf]
  %v26 = vld [vmem:[%s1 + $0x4] sm:$0xf]
  %v27 = vld [vmem:[%s1 + $0x8] sm:$0xf]
  %v28 = vld [vmem:[%s1 + $0xc] sm:$0xf]
  %v29 = vld [vmem:[%s1 + $0x10] sm:$0xf]
  %v30 = vld [vmem:[%s1 + $0x14] sm:$0xf]
  %v31 = vld [vmem:[%s1 + $0x18] sm:$0xf]
  %v32 = vld [vmem:[%s1 + $0x1c] sm:$0xf]
  %v33 = vld [vmem:[%s1 + $0x20] sm:$0xf]
  %v34 = vld [vmem:[%s1 + $0x24] sm:$0xf]
  %v35 = vld [vmem:[%s1 + $0x28] sm:$0xf]
  %v36 = vld [vmem:[%s1 + $0x2c] sm:$0xf]
  %v37 = vld [vmem:[%s1 + $0x30] sm:$0xf]
  %v38 = vld [vmem:[%s1 + $0x34] sm:$0xf]
  %v39 = vld [vmem:[%s1 + $0x38] sm:$0xf]
  %v40 = vld [vmem:[%s1 + $0x3c] sm:$0xf]
  %v41 = vld [vmem:[%s1 + $0x40] sm:$0xf]
  %v42 = vld [vmem:[%s1 + $0x44] sm:$0xf]
  %v43 = vld [vmem:[%s1 + $0x48] sm:$0xf]
  %v44 = vld [vmem:[%s1 + $0x4c] sm:$0xf]
  %v45 = vld [vmem:[%s1 + $0x50] sm:$0xf]
  %v46 = vld [vmem:[%s1 + $0x54] sm:$0xf]
  %v47 = vld [vmem:[%s1 + $0x58] sm:$0xf]
  %v48 = vld [vmem:[%s1 + $0x5c] sm:$0xf]
  %v49 = vld [vmem:[%s1 + $0x60] sm:$0xf]
  %v50 = vld [vmem:[%s1 + $0x64] sm:$0xf]
  %v51 = vld [vmem:[%s1 + $0x68] sm:$0xf]
  %v52 = vld [vmem:[%s1 + $0x6c] sm:$0xf]
  %v53 = vld [vmem:[%s1 + $0x70] sm:$0xf]
  %v54 = vld [vmem:[%s1 + $0x74] sm:$0xf]
  %v55 = vld [vmem:[%s1 + $0x78] sm:$0xf]
  %v56 = vld [vmem:[%s1 + $0x7c] sm:$0xf]
  %v59 = vunpack.c.l.s4 1966171168
  %v60 = vunpack.c.0.s8 %v59
  %v61 = vlaneseq
  %v62 = vshrl.u32 %v61, 7
  %v63 = vsub.s32 %v60, %v62
  %v64 = vrot.slane %v24, %v63
  %v65 = vcombine.high %v64, %v64
  %v67 = vunpack.c.l.s4 1966171168
  %v68 = vunpack.c.0.s8 %v67
  %v69 = vlaneseq
  %v70 = vshrl.u32 %v69, 7
  %v71 = vsub.s32 %v68, %v70
  %v72 = vrot.slane %v64, %v71
  %v74 = vunpack.c.l.s4 1966171168
  %v75 = vunpack.c.0.s8 %v74
  %v76 = vlaneseq
  %v77 = vshrl.u32 %v76, 7
  %v78 = vsub.s32 %v75, %v77
  %v79 = vrot.slane %v65, %v78
  %v114 = vunpack.c.l.b16 %v25
  %v115 = vunpack.c.l.b16 %v26
  %v116 = vunpack.c.l.b16 %v27
  %v117 = vunpack.c.l.b16 %v28
  %v118 = vunpack.c.l.b16 %v29
  %v119 = vunpack.c.l.b16 %v30
  %v120 = vunpack.c.l.b16 %v31
  %v121 = vunpack.c.l.b16 %v32
  %v122 = vunpack.c.l.b16 %v33
  %v123 = vunpack.c.l.b16 %v34
  %v124 = vunpack.c.l.b16 %v35
  %v125 = vunpack.c.l.b16 %v36
  %v126 = vunpack.c.l.b16 %v37
  %v127 = vunpack.c.l.b16 %v38
  %v128 = vunpack.c.l.b16 %v39
  %v129 = vunpack.c.l.b16 %v40
  %v130 = vunpack.c.l.b16 %v41
  %v131 = vunpack.c.l.b16 %v42
  %v132 = vunpack.c.l.b16 %v43
  %v133 = vunpack.c.l.b16 %v44
  %v134 = vunpack.c.l.b16 %v45
  %v135 = vunpack.c.l.b16 %v46
  %v136 = vunpack.c.l.b16 %v47
  %v137 = vunpack.c.l.b16 %v48
  %v138 = vunpack.c.l.b16 %v49
  %v139 = vunpack.c.l.b16 %v50
  %v140 = vunpack.c.l.b16 %v51
  %v141 = vunpack.c.l.b16 %v52
  %v142 = vunpack.c.l.b16 %v53
  %v143 = vunpack.c.l.b16 %v54
  %v144 = vunpack.c.l.b16 %v55
  %v145 = vunpack.c.l.b16 %v56
  %v146 = vpack.c.b16 %v115, %v114
  %v147 = vpack.c.b16 %v117, %v116
  %v148 = vpack.c.b16 %v119, %v118
  %v149 = vpack.c.b16 %v121, %v120
  %v150 = vpack.c.b16 %v123, %v122
  %v151 = vpack.c.b16 %v125, %v124
  %v152 = vpack.c.b16 %v127, %v126
  %v153 = vpack.c.b16 %v129, %v128
  %v154 = vpack.c.b16 %v131, %v130
  %v155 = vpack.c.b16 %v133, %v132
  %v156 = vpack.c.b16 %v135, %v134
  %v157 = vpack.c.b16 %v137, %v136
  %v158 = vpack.c.b16 %v139, %v138
  %v159 = vpack.c.b16 %v141, %v140
  %v160 = vpack.c.b16 %v143, %v142
  %v161 = vpack.c.b16 %v145, %v144
  %178 = vmatprep.subr.bf16.mxu0 0
  %179 = vmatpush1.bf16.msra.mxu0 %v153
  %180 = vmatprep.subr.bf16.mxu0 0
  %181 = vmatpush1.bf16.msra.mxu0 %v152
  %182 = vmatprep.subr.bf16.mxu0 0
  %183 = vmatpush1.bf16.msra.mxu0 %v151
  %184 = vmatprep.subr.bf16.mxu0 0
  %185 = vmatpush1.bf16.msra.mxu0 %v150
  %186 = vmatprep.subr.bf16.mxu0 0
  %187 = vmatpush1.bf16.msra.mxu0 %v149
  %188 = vmatprep.subr.bf16.mxu0 0
  %189 = vmatpush1.bf16.msra.mxu0 %v148
  %190 = vmatprep.subr.bf16.mxu0 0
  %191 = vmatpush1.bf16.msra.mxu0 %v147
  %192 = vmatprep.subr.bf16.mxu0 0
  %193 = vmatpush1.bf16.msra.mxu0 %v146
  %194 = vmatprep.subr.bf16.mxu0 0
  %195 = vmatpush2.bf16.msra.mxu0 %v161
  %196 = vmatprep.subr.bf16.mxu0 0
  %197 = vmatpush2.bf16.msra.mxu0 %v160
  %198 = vmatprep.subr.bf16.mxu0 0
  %199 = vmatpush2.bf16.msra.mxu0 %v159
  %200 = vmatprep.subr.bf16.mxu0 0
  %201 = vmatpush2.bf16.msra.mxu0 %v158
  %202 = vmatprep.subr.bf16.mxu0 0
  %203 = vmatpush2.bf16.msra.mxu0 %v157
  %204 = vmatprep.subr.bf16.mxu0 0
  %205 = vmatpush2.bf16.msra.mxu0 %v156
  %206 = vmatprep.subr.bf16.mxu0 0
  %207 = vmatpush2.bf16.msra.mxu0 %v155
  %208 = vmatprep.subr.bf16.mxu0 0
  %209 = vmatpush2.bf16.msra.mxu0 %v154
  %210 = vmatprep.mubr.bf16.mxu0 %v79
  %211 = vmatmul.mubr.bf16.gmra.mxu0 %v72
  %v212 = vpop.f32.mrf.mxu0
  %v213 = vadd.f32 0.0, %v212
  %v214 = vpop.f32.mrf.mxu0
  %v215 = vpop.f32.mrf.mxu0
  %v216 = vpop.f32.mrf.mxu0
  %217 = vdwg.mxu0
  %v218 = vadd.f32 %v23, %v213
  %219 = vst [vmem:[#allocation2] sm:$0x3] %v218
  // Predicated region
  $region22: #{_lambda_.102} parent=0 // pred_check
    %p220 = pneg %p18
  $region23: #{_lambda_.102} parent=0 // pred_check_branch
    %222 = sbr.rel (%p220) target = $region25
  $region24: #{_lambda_.102} parent=0 // pred_region
    %v223 = vld [vmem:[#allocation2] sm:$0x3]
    %v224 = vld [vmem:[%s2] sm:$0x1]
    %v226 = vlaneseq
    %v227 = vshrl.u32 %v226, 7
    %v228 = vsub.s32 0, %v227
    %v229 = vrot.slane %v224, %v228
    %v231 = vmul.f32 %v223, %v229
    %v232 = vld [vmem:[%s3] sm:$0x1]
    %v234 = vlaneseq
    %v235 = vshrl.u32 %v234, 7
    %v236 = vsub.s32 0, %v235
    %v237 = vrot.slane %v232, %v236
    %v239 = vadd.f32 %v231, %v237
    %v240 = vmax.f32 %v239, 0.0
    %v241 = vpack.c.bf16 %v240, %v240
    %242 = vst [vmem:[%s4] sm:$0x1] %v241
  $region25: #{_lambda_.102} parent=0 // pred_fallthru
    _
  // Predicated region
  $region26: #{_lambda_.102} parent=0 // pred_check
    _
  $region27: #{_lambda_.102} parent=0 // pred_check_branch
    %244 = sbr.rel (0) target = $region29
  $region28: #{_lambda_.102} parent=0 // pred_region
    _
  $region29: #{_lambda_.102} parent=0 // pred_fallthru
    _
  // Predicated region
  $region30: #{_lambda_.102} parent=0 // pred_check
    _
  $region31: #{_lambda_.102} parent=0 // pred_check_branch
    %246 = sbr.rel (0) target = $region33
  $region32: #{_lambda_.102} parent=0 // pred_region
    _
  $region33: #{_lambda_.102} parent=0 // pred_fallthru
    _

// kernel: _lambda_.100
$region0: #{_lambda_.100}
  #allocation0 [shape = 'u32[]', space=smem, size = 0x4, offset = 0x4, fixed_abs, tag = 'smem constant byte address 0x4 - core index']
  #allocation1 [shape = 'u32[144,128]{1,0:T(1,128)}', space=vmem, size = 0x12000, scoped, tag = 'internal scratch']
  #allocation2 [shape = 'f32[2,256]{1,0:T(2,128)}', space=vmem, size = 0x800, scoped, tag = 'scratch operand']
  %s0 = inlined_call_operand.vmem [shape: bf16[2,128], index: 0, kind: input, shape index: {}]
  %s1 = inlined_call_operand.vmem [shape: bf16[128,256], index: 1, kind: input, shape index: {}]
  %s2 = inlined_call_operand.vmem [shape: f32[1,256], index: 2, kind: input, shape index: {}]
  %s3 = inlined_call_operand.vmem [shape: f32[1,256], index: 3, kind: input, shape index: {}]
  %s4 = inlined_call_operand.vmem [shape: bf16[2,256], index: 4, kind: output, shape index: {}]
  %s5 = sld [smem:[#allocation0]]
  $region34: #{_lambda_.100} parent=0
    _
  %s7 = ssub.s32 1, %s5
  %s8 = scalar_select 0, %s7, %s5
  // Predicated region
  $region2: #{_lambda_.100} parent=0 // pred_check
    _
  $region3: #{_lambda_.100} parent=0 // pred_check_branch
    %10 = sbr.rel (0) target = $region5
  $region4: #{_lambda_.100} parent=0 // pred_region
    _
  $region5: #{_lambda_.100} parent=0 // pred_fallthru
    _
  // Predicated region
  $region6: #{_lambda_.100} parent=0 // pred_check
    _
  $region7: #{_lambda_.100} parent=0 // pred_check_branch
    %12 = sbr.rel (0) target = $region9
  $region8: #{_lambda_.100} parent=0 // pred_region
    _
  $region9: #{_lambda_.100} parent=0 // pred_fallthru
    _
  // Predicated region
  $region10: #{_lambda_.100} parent=0 // pred_check
    _
  $region11: #{_lambda_.100} parent=0 // pred_check_branch
    %14 = sbr.rel (0) target = $region13
  $region12: #{_lambda_.100} parent=0 // pred_region
    _
  $region13: #{_lambda_.100} parent=0 // pred_fallthru
    _
  // Predicated region
  $region14: #{_lambda_.100} parent=0 // pred_check
    _
  $region15: #{_lambda_.100} parent=0 // pred_check_branch
    %16 = sbr.rel (0) target = $region17
  $region16: #{_lambda_.100} parent=0 // pred_region
    _
  $region17: #{_lambda_.100} parent=0 // pred_fallthru
    _
  %p18 = scmp.eq.s32.totalorder 0, 0
  // Predicated region
  $region18: #{_lambda_.100} parent=0 // pred_check
    %p19 = pneg %p18
  $region19: #{_lambda_.100} parent=0 // pred_check_branch
    %21 = sbr.rel (%p19) target = $region21
  $region20: #{_lambda_.100} parent=0 // pred_region
    %22 = vst [vmem:[#allocation2] sm:$0xf] 0.0
  $region21: #{_lambda_.100} parent=0 // pred_fallthru
    _
  %v23 = vld [vmem:[#allocation2] sm:$0xf]
  %v24 = vld [vmem:[%s0] sm:$0x1]
  %v25 = vld [vmem:[%s1] sm:$0xff]
  %v26 = vld [vmem:[%s1 + $0x8] sm:$0xff]
  %v27 = vld [vmem:[%s1 + $0x10] sm:$0xff]
  %v28 = vld [vmem:[%s1 + $0x18] sm:$0xff]
  %v29 = vld [vmem:[%s1 + $0x20] sm:$0xff]
  %v30 = vld [vmem:[%s1 + $0x28] sm:$0xff]
  %v31 = vld [vmem:[%s1 + $0x30] sm:$0xff]
  %v32 = vld [vmem:[%s1 + $0x38] sm:$0xff]
  %v33 = vld [vmem:[%s1 + $0x40] sm:$0xff]
  %v34 = vld [vmem:[%s1 + $0x48] sm:$0xff]
  %v35 = vld [vmem:[%s1 + $0x50] sm:$0xff]
  %v36 = vld [vmem:[%s1 + $0x58] sm:$0xff]
  %v37 = vld [vmem:[%s1 + $0x60] sm:$0xff]
  %v38 = vld [vmem:[%s1 + $0x68] sm:$0xff]
  %v39 = vld [vmem:[%s1 + $0x70] sm:$0xff]
  %v40 = vld [vmem:[%s1 + $0x78] sm:$0xff]
  %v57 = vunpack.c.l.b16 %v25
  %v58 = vunpack.c.h.b16 %v25
  %v59 = vunpack.c.l.b16 %v26
  %v60 = vunpack.c.h.b16 %v26
  %v61 = vunpack.c.l.b16 %v27
  %v62 = vunpack.c.h.b16 %v27
  %v63 = vunpack.c.l.b16 %v28
  %v64 = vunpack.c.h.b16 %v28
  %v65 = vunpack.c.l.b16 %v29
  %v66 = vunpack.c.h.b16 %v29
  %v67 = vunpack.c.l.b16 %v30
  %v68 = vunpack.c.h.b16 %v30
  %v69 = vunpack.c.l.b16 %v31
  %v70 = vunpack.c.h.b16 %v31
  %v71 = vunpack.c.l.b16 %v32
  %v72 = vunpack.c.h.b16 %v32
  %v73 = vunpack.c.l.b16 %v33
  %v74 = vunpack.c.h.b16 %v33
  %v75 = vunpack.c.l.b16 %v34
  %v76 = vunpack.c.h.b16 %v34
  %v77 = vunpack.c.l.b16 %v35
  %v78 = vunpack.c.h.b16 %v35
  %v79 = vunpack.c.l.b16 %v36
  %v80 = vunpack.c.h.b16 %v36
  %v81 = vunpack.c.l.b16 %v37
  %v82 = vunpack.c.h.b16 %v37
  %v83 = vunpack.c.l.b16 %v38
  %v84 = vunpack.c.h.b16 %v38
  %v85 = vunpack.c.l.b16 %v39
  %v86 = vunpack.c.h.b16 %v39
  %v87 = vunpack.c.l.b16 %v40
  %v88 = vunpack.c.h.b16 %v40
  %v89 = vpack.c.b16 %v59, %v57
  %v90 = vpack.c.b16 %v60, %v58
  %v91 = vpack.c.b16 %v63, %v61
  %v92 = vpack.c.b16 %v64, %v62
  %v93 = vpack.c.b16 %v67, %v65
  %v94 = vpack.c.b16 %v68, %v66
  %v95 = vpack.c.b16 %v71, %v69
  %v96 = vpack.c.b16 %v72, %v70
  %v97 = vpack.c.b16 %v75, %v73
  %v98 = vpack.c.b16 %v76, %v74
  %v99 = vpack.c.b16 %v79, %v77
  %v100 = vpack.c.b16 %v80, %v78
  %v101 = vpack.c.b16 %v83, %v81
  %v102 = vpack.c.b16 %v84, %v82
  %v103 = vpack.c.b16 %v87, %v85
  %v104 = vpack.c.b16 %v88, %v86
  %121 = vmatprep.subr.bf16.mxu0 %v104
  %122 = vmatpush1.bf16.msra.mxu0 %v103
  %123 = vmatprep.subr.bf16.mxu0 %v102
  %124 = vmatpush1.bf16.msra.mxu0 %v101
  %125 = vmatprep.subr.bf16.mxu0 %v100
  %126 = vmatpush1.bf16.msra.mxu0 %v99
  %127 = vmatprep.subr.bf16.mxu0 %v98
  %128 = vmatpush1.bf16.msra.mxu0 %v97
  %129 = vmatprep.subr.bf16.mxu0 %v96
  %130 = vmatpush1.bf16.msra.mxu0 %v95
  %131 = vmatprep.subr.bf16.mxu0 %v94
  %132 = vmatpush1.bf16.msra.mxu0 %v93
  %133 = vmatprep.subr.bf16.mxu0 %v92
  %134 = vmatpush1.bf16.msra.mxu0 %v91
  %135 = vmatprep.subr.bf16.mxu0 %v90
  %136 = vmatpush1.bf16.msra.mxu0 %v89
  %137 = vmatprep.subr.bf16.mxu0 0
  %138 = vmatpush2.bf16.msra.mxu0 0
  %139 = vmatprep.subr.bf16.mxu0 0
  %140 = vmatpush2.bf16.msra.mxu0 0
  %141 = vmatprep.subr.bf16.mxu0 0
  %142 = vmatpush2.bf16.msra.mxu0 0
  %143 = vmatprep.subr.bf16.mxu0 0
  %144 = vmatpush2.bf16.msra.mxu0 0
  %145 = vmatprep.subr.bf16.mxu0 0
  %146 = vmatpush2.bf16.msra.mxu0 0
  %147 = vmatprep.subr.bf16.mxu0 0
  %148 = vmatpush2.bf16.msra.mxu0 0
  %149 = vmatprep.subr.bf16.mxu0 0
  %150 = vmatpush2.bf16.msra.mxu0 0
  %151 = vmatprep.subr.bf16.mxu0 0
  %152 = vmatpush2.bf16.msra.mxu0 0
  %153 = vmatprep.mubr.bf16.mxu0 0
  %154 = vmatmul.mubr.bf16.gmra.mxu0 %v24
  %v155 = vpop.f32.mrf.mxu0
  %v156 = vadd.f32 0.0, %v155
  %v157 = vpop.f32.mrf.mxu0
  %v158 = vadd.f32 0.0, %v157
  %v159 = vpop.f32.mrf.mxu0
  %v160 = vpop.f32.mrf.mxu0
  %161 = vdwg.mxu0
  %v164 = vcombine.low %v156, %v158
  %v166 = vunpack.c.l.s4 1983009808
  %v167 = vunpack.c.0.s8 %v166
  %v168 = vlaneseq
  %v169 = vshrl.u32 %v168, 7
  %v170 = vsub.s32 %v167, %v169
  %v171 = vrot.slane %v164, %v170
  %v173 = vadd.f32 %v23, %v171
  %174 = vst [vmem:[#allocation2] sm:$0xf] %v173
  // Predicated region
  $region22: #{_lambda_.100} parent=0 // pred_check
    %p175 = pneg %p18
  $region23: #{_lambda_.100} parent=0 // pred_check_branch
    %177 = sbr.rel (%p175) target = $region25
  $region24: #{_lambda_.100} parent=0 // pred_region
    %v178 = vld [vmem:[#allocation2] sm:$0xf]
    %v179 = vld [vmem:[%s2] sm:$0x3]
    %v181 = vlaneseq
    %v182 = vshrl.u32 %v181, 7
    %v183 = vsub.s32 0, %v182
    %v184 = vrot.slane %v179, %v183
    %v185 = vlaneseq
    %v186 = vshrl.u32 %v185, 7
    %v187 = vsub.s32 1, %v186
    %v188 = vrot.slane %v179, %v187
    %v189 = vcombine.low %v184, %v188
    %v191 = vunpack.c.l.s4 1983009808
    %v192 = vunpack.c.0.s8 %v191
    %v193 = vlaneseq
    %v194 = vshrl.u32 %v193, 7
    %v195 = vsub.s32 %v192, %v194
    %v196 = vrot.slane %v189, %v195
    %v198 = vmul.f32 %v178, %v196
    %v199 = vld [vmem:[%s3] sm:$0x3]
    %v201 = vlaneseq
    %v202 = vshrl.u32 %v201, 7
    %v203 = vsub.s32 0, %v202
    %v204 = vrot.slane %v199, %v203
    %v205 = vlaneseq
    %v206 = vshrl.u32 %v205, 7
    %v207 = vsub.s32 1, %v206
    %v208 = vrot.slane %v199, %v207
    %v209 = vcombine.low %v204, %v208
    %v211 = vunpack.c.l.s4 1983009808
    %v212 = vunpack.c.0.s8 %v211
    %v213 = vlaneseq
    %v214 = vshrl.u32 %v213, 7
    %v215 = vsub.s32 %v212, %v214
    %v216 = vrot.slane %v209, %v215
    %v218 = vadd.f32 %v198, %v216
    %v221 = vunpack.c.l.s4 1983009808
    %v222 = vunpack.c.0.s8 %v221
    %v223 = vlaneseq
    %v224 = vshrl.u32 %v223, 7
    %v225 = vsub.s32 %v222, %v224
    %v226 = vrot.slane %v218, %v225
    %v227 = vcombine.high %v226, %v226
    %v230 = vpack.c.bf16 %v226, %v226
    %v231 = vpack.c.bf16 %v227, %v227
    %v234 = vcombine.low %v230, %v231
    %v236 = vunpack.c.l.s4 1966171168
    %v237 = vunpack.c.0.s8 %v236
    %v238 = vlaneseq
    %v239 = vshrl.u32 %v238, 7
    %v240 = vsub.s32 %v237, %v239
    %v241 = vrot.slane %v234, %v240
    %v243 = vunpack.c.l.s4 1966171168
    %v244 = vunpack.c.0.s8 %v243
    %v245 = vlaneseq
    %v246 = vshrl.u32 %v245, 7
    %v247 = vsub.s32 %v244, %v246
    %v248 = vrot.slane %v241, %v247
    %250 = vst [vmem:[%s4] sm:$0x3] %v248
  $region25: #{_lambda_.100} parent=0 // pred_fallthru
    _
  // Predicated region
  $region26: #{_lambda_.100} parent=0 // pred_check
    _
  $region27: #{_lambda_.100} parent=0 // pred_check_branch
    %252 = sbr.rel (0) target = $region29
  $region28: #{_lambda_.100} parent=0 // pred_region
    _
  $region29: #{_lambda_.100} parent=0 // pred_fallthru
    _
  // Predicated region
  $region30: #{_lambda_.100} parent=0 // pred_check
    _
  $region31: #{_lambda_.100} parent=0 // pred_check_branch
    %254 = sbr.rel (0) target = $region33
  $region32: #{_lambda_.100} parent=0 // pred_region
    _
  $region33: #{_lambda_.100} parent=0 // pred_fallthru
    _

// kernel: _lambda_.99
$region0: #{_lambda_.99}
  #allocation0 [shape = 'u32[]', space=smem, size = 0x4, offset = 0x4, fixed_abs, tag = 'smem constant byte address 0x4 - core index']
  #allocation1 [shape = 'u32[144,128]{1,0:T(1,128)}', space=vmem, size = 0x12000, scoped, tag = 'internal scratch']
  #allocation2 [shape = 'f32[2,128]{1,0:T(2,128)}', space=vmem, size = 0x400, scoped, tag = 'scratch operand']
  %s0 = inlined_call_operand.vmem [shape: bf16[2,1152], index: 0, kind: input, shape index: {}]
  %s1 = inlined_call_operand.vmem [shape: bf16[1152,128], index: 1, kind: input, shape index: {}]
  %s2 = inlined_call_operand.vmem [shape: f32[1,128], index: 2, kind: input, shape index: {}]
  %s3 = inlined_call_operand.vmem [shape: f32[1,128], index: 3, kind: input, shape index: {}]
  %s4 = inlined_call_operand.vmem [shape: bf16[2,128], index: 4, kind: output, shape index: {}]
  %s5 = sld [smem:[#allocation0]]
  $region34: #{_lambda_.99} parent=0
    _
  %s7 = ssub.s32 1, %s5
  %s8 = scalar_select 0, %s7, %s5
  // Predicated region
  $region2: #{_lambda_.99} parent=0 // pred_check
    _
  $region3: #{_lambda_.99} parent=0 // pred_check_branch
    %10 = sbr.rel (0) target = $region5
  $region4: #{_lambda_.99} parent=0 // pred_region
    _
  $region5: #{_lambda_.99} parent=0 // pred_fallthru
    _
  // Predicated region
  $region6: #{_lambda_.99} parent=0 // pred_check
    _
  $region7: #{_lambda_.99} parent=0 // pred_check_branch
    %12 = sbr.rel (0) target = $region9
  $region8: #{_lambda_.99} parent=0 // pred_region
    _
  $region9: #{_lambda_.99} parent=0 // pred_fallthru
    _
  // Predicated region
  $region10: #{_lambda_.99} parent=0 // pred_check
    _
  $region11: #{_lambda_.99} parent=0 // pred_check_branch
    %14 = sbr.rel (0) target = $region13
  $region12: #{_lambda_.99} parent=0 // pred_region
    _
  $region13: #{_lambda_.99} parent=0 // pred_fallthru
    _
  // Predicated region
  $region14: #{_lambda_.99} parent=0 // pred_check
    _
  $region15: #{_lambda_.99} parent=0 // pred_check_branch
    %16 = sbr.rel (0) target = $region17
  $region16: #{_lambda_.99} parent=0 // pred_region
    _
  $region17: #{_lambda_.99} parent=0 // pred_fallthru
    _
  %p18 = scmp.eq.s32.totalorder 0, 0
  // Predicated region
  $region18: #{_lambda_.99} parent=0 // pred_check
    %p19 = pneg %p18
  $region19: #{_lambda_.99} parent=0 // pred_check_branch
    %21 = sbr.rel (%p19) target = $region21
  $region20: #{_lambda_.99} parent=0 // pred_region
    %22 = vst [vmem:[#allocation2] sm:$0x3] 0.0
  $region21: #{_lambda_.99} parent=0 // pred_fallthru
    _
  %v23 = vld [vmem:[#allocation2] sm:$0x3]
  %v24 = vld [vmem:[%s0] sm:$0xff]
  %v25 = vld [vmem:[%s0 + $0x8] sm:$0x1]
  %v26 = vld [vmem:[%s1] sm:$0xf]
  %v27 = vld [vmem:[%s1 + $0x4] sm:$0xf]
  %v28 = vld [vmem:[%s1 + $0x8] sm:$0xf]
  %v29 = vld [vmem:[%s1 + $0xc] sm:$0xf]
  %v30 = vld [vmem:[%s1 + $0x10] sm:$0xf]
  %v31 = vld [vmem:[%s1 + $0x14] sm:$0xf]
  %v32 = vld [vmem:[%s1 + $0x18] sm:$0xf]
  %v33 = vld [vmem:[%s1 + $0x1c] sm:$0xf]
  %v34 = vld [vmem:[%s1 + $0x20] sm:$0xf]
  %v35 = vld [vmem:[%s1 + $0x24] sm:$0xf]
  %v36 = vld [vmem:[%s1 + $0x28] sm:$0xf]
  %v37 = vld [vmem:[%s1 + $0x2c] sm:$0xf]
  %v38 = vld [vmem:[%s1 + $0x30] sm:$0xf]
  %v39 = vld [vmem:[%s1 + $0x34] sm:$0xf]
  %v40 = vld [vmem:[%s1 + $0x38] sm:$0xf]
  %v41 = vld [vmem:[%s1 + $0x3c] sm:$0xf]
  %v42 = vld [vmem:[%s1 + $0x40] sm:$0xf]
  %v43 = vld [vmem:[%s1 + $0x44] sm:$0xf]
  %v44 = vld [vmem:[%s1 + $0x48] sm:$0xf]
  %v45 = vld [vmem:[%s1 + $0x4c] sm:$0xf]
  %v46 = vld [vmem:[%s1 + $0x50] sm:$0xf]
  %v47 = vld [vmem:[%s1 + $0x54] sm:$0xf]
  %v48 = vld [vmem:[%s1 + $0x58] sm:$0xf]
  %v49 = vld [vmem:[%s1 + $0x5c] sm:$0xf]
  %v50 = vld [vmem:[%s1 + $0x60] sm:$0xf]
  %v51 = vld [vmem:[%s1 + $0x64] sm:$0xf]
  %v52 = vld [vmem:[%s1 + $0x68] sm:$0xf]
  %v53 = vld [vmem:[%s1 + $0x6c] sm:$0xf]
  %v54 = vld [vmem:[%s1 + $0x70] sm:$0xf]
  %v55 = vld [vmem:[%s1 + $0x74] sm:$0xf]
  %v56 = vld [vmem:[%s1 + $0x78] sm:$0xf]
  %v57 = vld [vmem:[%s1 + $0x7c] sm:$0xf]
  %v58 = vld [vmem:[%s1 + $0x80] sm:$0xf]
  %v59 = vld [vmem:[%s1 + $0x84] sm:$0xf]
  %v60 = vld [vmem:[%s1 + $0x88] sm:$0xf]
  %v61 = vld [vmem:[%s1 + $0x8c] sm:$0xf]
  %v62 = vld [vmem:[%s1 + $0x90] sm:$0xf]
  %v63 = vld [vmem:[%s1 + $0x94] sm:$0xf]
  %v64 = vld [vmem:[%s1 + $0x98] sm:$0xf]
  %v65 = vld [vmem:[%s1 + $0x9c] sm:$0xf]
  %v66 = vld [vmem:[%s1 + $0xa0] sm:$0xf]
  %v67 = vld [vmem:[%s1 + $0xa4] sm:$0xf]
  %v68 = vld [vmem:[%s1 + $0xa8] sm:$0xf]
  %v69 = vld [vmem:[%s1 + $0xac] sm:$0xf]
  %v70 = vld [vmem:[%s1 + $0xb0] sm:$0xf]
  %v71 = vld [vmem:[%s1 + $0xb4] sm:$0xf]
  %v72 = vld [vmem:[%s1 + $0xb8] sm:$0xf]
  %v73 = vld [vmem:[%s1 + $0xbc] sm:$0xf]
  %v74 = vld [vmem:[%s1 + $0xc0] sm:$0xf]
  %v75 = vld [vmem:[%s1 + $0xc4] sm:$0xf]
  %v76 = vld [vmem:[%s1 + $0xc8] sm:$0xf]
  %v77 = vld [vmem:[%s1 + $0xcc] sm:$0xf]
  %v78 = vld [vmem:[%s1 + $0xd0] sm:$0xf]
  %v79 = vld [vmem:[%s1 + $0xd4] sm:$0xf]
  %v80 = vld [vmem:[%s1 + $0xd8] sm:$0xf]
  %v81 = vld [vmem:[%s1 + $0xdc] sm:$0xf]
  %v82 = vld [vmem:[%s1 + $0xe0] sm:$0xf]
  %v83 = vld [vmem:[%s1 + $0xe4] sm:$0xf]
  %v84 = vld [vmem:[%s1 + $0xe8] sm:$0xf]
  %v85 = vld [vmem:[%s1 + $0xec] sm:$0xf]
  %v86 = vld [vmem:[%s1 + $0xf0] sm:$0xf]
  %v87 = vld [vmem:[%s1 + $0xf4] sm:$0xf]
  %v88 = vld [vmem:[%s1 + $0xf8] sm:$0xf]
  %v89 = vld [vmem:[%s1 + $0xfc] sm:$0xf]
  %v90 = vld [vmem:[%s1 + $0x100] sm:$0xf]
  %v91 = vld [vmem:[%s1 + $0x104] sm:$0xf]
  %v92 = vld [vmem:[%s1 + $0x108] sm:$0xf]
  %v93 = vld [vmem:[%s1 + $0x10c] sm:$0xf]
  %v94 = vld [vmem:[%s1 + $0x110] sm:$0xf]
  %v95 = vld [vmem:[%s1 + $0x114] sm:$0xf]
  %v96 = vld [vmem:[%s1 + $0x118] sm:$0xf]
  %v97 = vld [vmem:[%s1 + $0x11c] sm:$0xf]
  %v98 = vld [vmem:[%s1 + $0x120] sm:$0xf]
  %v99 = vld [vmem:[%s1 + $0x124] sm:$0xf]
  %v100 = vld [vmem:[%s1 + $0x128] sm:$0xf]
  %v101 = vld [vmem:[%s1 + $0x12c] sm:$0xf]
  %v102 = vld [vmem:[%s1 + $0x130] sm:$0xf]
  %v103 = vld [vmem:[%s1 + $0x134] sm:$0xf]
  %v104 = vld [vmem:[%s1 + $0x138] sm:$0xf]
  %v105 = vld [vmem:[%s1 + $0x13c] sm:$0xf]
  %v106 = vld [vmem:[%s1 + $0x140] sm:$0xf]
  %v107 = vld [vmem:[%s1 + $0x144] sm:$0xf]
  %v108 = vld [vmem:[%s1 + $0x148] sm:$0xf]
  %v109 = vld [vmem:[%s1 + $0x14c] sm:$0xf]
  %v110 = vld [vmem:[%s1 + $0x150] sm:$0xf]
  %v111 = vld [vmem:[%s1 + $0x154] sm:$0xf]
  %v112 = vld [vmem:[%s1 + $0x158] sm:$0xf]
  %v113 = vld [vmem:[%s1 + $0x15c] sm:$0xf]
  %v114 = vld [vmem:[%s1 + $0x160] sm:$0xf]
  %v115 = vld [vmem:[%s1 + $0x164] sm:$0xf]
  %v116 = vld [vmem:[%s1 + $0x168] sm:$0xf]
  %v117 = vld [vmem:[%s1 + $0x16c] sm:$0xf]
  %v118 = vld [vmem:[%s1 + $0x170] sm:$0xf]
  %v119 = vld [vmem:[%s1 + $0x174] sm:$0xf]
  %v120 = vld [vmem:[%s1 + $0x178] sm:$0xf]
  %v121 = vld [vmem:[%s1 + $0x17c] sm:$0xf]
  %v122 = vld [vmem:[%s1 + $0x180] sm:$0xf]
  %v123 = vld [vmem:[%s1 + $0x184] sm:$0xf]
  %v124 = vld [vmem:[%s1 + $0x188] sm:$0xf]
  %v125 = vld [vmem:[%s1 + $0x18c] sm:$0xf]
  %v126 = vld [vmem:[%s1 + $0x190] sm:$0xf]
  %v127 = vld [vmem:[%s1 + $0x194] sm:$0xf]
  %v128 = vld [vmem:[%s1 + $0x198] sm:$0xf]
  %v129 = vld [vmem:[%s1 + $0x19c] sm:$0xf]
  %v130 = vld [vmem:[%s1 + $0x1a0] sm:$0xf]
  %v131 = vld [vmem:[%s1 + $0x1a4] sm:$0xf]
  %v132 = vld [vmem:[%s1 + $0x1a8] sm:$0xf]
  %v133 = vld [vmem:[%s1 + $0x1ac] sm:$0xf]
  %v134 = vld [vmem:[%s1 + $0x1b0] sm:$0xf]
  %v135 = vld [vmem:[%s1 + $0x1b4] sm:$0xf]
  %v136 = vld [vmem:[%s1 + $0x1b8] sm:$0xf]
  %v137 = vld [vmem:[%s1 + $0x1bc] sm:$0xf]
  %v138 = vld [vmem:[%s1 + $0x1c0] sm:$0xf]
  %v139 = vld [vmem:[%s1 + $0x1c4] sm:$0xf]
  %v140 = vld [vmem:[%s1 + $0x1c8] sm:$0xf]
  %v141 = vld [vmem:[%s1 + $0x1cc] sm:$0xf]
  %v142 = vld [vmem:[%s1 + $0x1d0] sm:$0xf]
  %v143 = vld [vmem:[%s1 + $0x1d4] sm:$0xf]
  %v144 = vld [vmem:[%s1 + $0x1d8] sm:$0xf]
  %v145 = vld [vmem:[%s1 + $0x1dc] sm:$0xf]
  %v146 = vld [vmem:[%s1 + $0x1e0] sm:$0xf]
  %v147 = vld [vmem:[%s1 + $0x1e4] sm:$0xf]
  %v148 = vld [vmem:[%s1 + $0x1e8] sm:$0xf]
  %v149 = vld [vmem:[%s1 + $0x1ec] sm:$0xf]
  %v150 = vld [vmem:[%s1 + $0x1f0] sm:$0xf]
  %v151 = vld [vmem:[%s1 + $0x1f4] sm:$0xf]
  %v152 = vld [vmem:[%s1 + $0x1f8] sm:$0xf]
  %v153 = vld [vmem:[%s1 + $0x1fc] sm:$0xf]
  %v154 = vld [vmem:[%s1 + $0x200] sm:$0xf]
  %v155 = vld [vmem:[%s1 + $0x204] sm:$0xf]
  %v156 = vld [vmem:[%s1 + $0x208] sm:$0xf]
  %v157 = vld [vmem:[%s1 + $0x20c] sm:$0xf]
  %v158 = vld [vmem:[%s1 + $0x210] sm:$0xf]
  %v159 = vld [vmem:[%s1 + $0x214] sm:$0xf]
  %v160 = vld [vmem:[%s1 + $0x218] sm:$0xf]
  %v161 = vld [vmem:[%s1 + $0x21c] sm:$0xf]
  %v162 = vld [vmem:[%s1 + $0x220] sm:$0xf]
  %v163 = vld [vmem:[%s1 + $0x224] sm:$0xf]
  %v164 = vld [vmem:[%s1 + $0x228] sm:$0xf]
  %v165 = vld [vmem:[%s1 + $0x22c] sm:$0xf]
  %v166 = vld [vmem:[%s1 + $0x230] sm:$0xf]
  %v167 = vld [vmem:[%s1 + $0x234] sm:$0xf]
  %v168 = vld [vmem:[%s1 + $0x238] sm:$0xf]
  %v169 = vld [vmem:[%s1 + $0x23c] sm:$0xf]
  %v172 = vcombine.high %v24, %v24
  %v174 = vunpack.c.l.s4 1966171168
  %v175 = vunpack.c.0.s8 %v174
  %v176 = vlaneseq
  %v177 = vshrl.u32 %v176, 7
  %v178 = vsub.s32 %v175, %v177
  %v179 = vrot.slane %v24, %v178
  %v181 = vunpack.c.l.s4 1966171168
  %v182 = vunpack.c.0.s8 %v181
  %v183 = vlaneseq
  %v184 = vshrl.u32 %v183, 7
  %v185 = vsub.s32 %v182, %v184
  %v186 = vrot.slane %v172, %v185
  %v187 = vcombine.high %v179, %v179
  %v188 = vcombine.high %v186, %v186
  %v190 = vunpack.c.l.s4 1966171168
  %v191 = vunpack.c.0.s8 %v190
  %v192 = vlaneseq
  %v193 = vshrl.u32 %v192, 7
  %v194 = vsub.s32 %v191, %v193
  %v195 = vrot.slane %v179, %v194
  %v197 = vunpack.c.l.s4 1966171168
  %v198 = vunpack.c.0.s8 %v197
  %v199 = vlaneseq
  %v200 = vshrl.u32 %v199, 7
  %v201 = vsub.s32 %v198, %v200
  %v202 = vrot.slane %v186, %v201
  %v204 = vunpack.c.l.s4 1966171168
  %v205 = vunpack.c.0.s8 %v204
  %v206 = vlaneseq
  %v207 = vshrl.u32 %v206, 7
  %v208 = vsub.s32 %v205, %v207
  %v209 = vrot.slane %v187, %v208
  %v211 = vunpack.c.l.s4 1966171168
  %v212 = vunpack.c.0.s8 %v211
  %v213 = vlaneseq
  %v214 = vshrl.u32 %v213, 7
  %v215 = vsub.s32 %v212, %v214
  %v216 = vrot.slane %v188, %v215
  %v217 = vcombine.high %v195, %v195
  %v218 = vcombine.high %v202, %v202
  %v219 = vcombine.high %v209, %v209
  %v220 = vcombine.high %v216, %v216
  %v222 = vunpack.c.l.s4 1966171168
  %v223 = vunpack.c.0.s8 %v222
  %v224 = vlaneseq
  %v225 = vshrl.u32 %v224, 7
  %v226 = vsub.s32 %v223, %v225
  %v227 = vrot.slane %v25, %v226
  %v229 = vunpack.c.l.s4 1966171168
  %v230 = vunpack.c.0.s8 %v229
  %v231 = vlaneseq
  %v232 = vshrl.u32 %v231, 7
  %v233 = vsub.s32 %v230, %v232
  %v234 = vrot.slane %v227, %v233
  %v388 = vunpack.c.l.b16 %v26
  %v389 = vunpack.c.l.b16 %v27
  %v390 = vunpack.c.l.b16 %v28
  %v391 = vunpack.c.l.b16 %v29
  %v392 = vunpack.c.l.b16 %v30
  %v393 = vunpack.c.l.b16 %v31
  %v394 = vunpack.c.l.b16 %v32
  %v395 = vunpack.c.l.b16 %v33
  %v396 = vunpack.c.l.b16 %v34
  %v397 = vunpack.c.l.b16 %v35
  %v398 = vunpack.c.l.b16 %v36
  %v399 = vunpack.c.l.b16 %v37
  %v400 = vunpack.c.l.b16 %v38
  %v401 = vunpack.c.l.b16 %v39
  %v402 = vunpack.c.l.b16 %v40
  %v403 = vunpack.c.l.b16 %v41
  %v404 = vunpack.c.l.b16 %v42
  %v405 = vunpack.c.l.b16 %v43
  %v406 = vunpack.c.l.b16 %v44
  %v407 = vunpack.c.l.b16 %v45
  %v408 = vunpack.c.l.b16 %v46
  %v409 = vunpack.c.l.b16 %v47
  %v410 = vunpack.c.l.b16 %v48
  %v411 = vunpack.c.l.b16 %v49
  %v412 = vunpack.c.l.b16 %v50
  %v413 = vunpack.c.l.b16 %v51
  %v414 = vunpack.c.l.b16 %v52
  %v415 = vunpack.c.l.b16 %v53
  %v416 = vunpack.c.l.b16 %v54
  %v417 = vunpack.c.l.b16 %v55
  %v418 = vunpack.c.l.b16 %v56
  %v419 = vunpack.c.l.b16 %v57
  %v420 = vunpack.c.l.b16 %v58
  %v421 = vunpack.c.l.b16 %v59
  %v422 = vunpack.c.l.b16 %v60
  %v423 = vunpack.c.l.b16 %v61
  %v424 = vunpack.c.l.b16 %v62
  %v425 = vunpack.c.l.b16 %v63
  %v426 = vunpack.c.l.b16 %v64
  %v427 = vunpack.c.l.b16 %v65
  %v428 = vunpack.c.l.b16 %v66
  %v429 = vunpack.c.l.b16 %v67
  %v430 = vunpack.c.l.b16 %v68
  %v431 = vunpack.c.l.b16 %v69
  %v432 = vunpack.c.l.b16 %v70
  %v433 = vunpack.c.l.b16 %v71
  %v434 = vunpack.c.l.b16 %v72
  %v435 = vunpack.c.l.b16 %v73
  %v436 = vunpack.c.l.b16 %v74
  %v437 = vunpack.c.l.b16 %v75
  %v438 = vunpack.c.l.b16 %v76
  %v439 = vunpack.c.l.b16 %v77
  %v440 = vunpack.c.l.b16 %v78
  %v441 = vunpack.c.l.b16 %v79
  %v442 = vunpack.c.l.b16 %v80
  %v443 = vunpack.c.l.b16 %v81
  %v444 = vunpack.c.l.b16 %v82
  %v445 = vunpack.c.l.b16 %v83
  %v446 = vunpack.c.l.b16 %v84
  %v447 = vunpack.c.l.b16 %v85
  %v448 = vunpack.c.l.b16 %v86
  %v449 = vunpack.c.l.b16 %v87
  %v450 = vunpack.c.l.b16 %v88
  %v451 = vunpack.c.l.b16 %v89
  %v452 = vunpack.c.l.b16 %v90
  %v453 = vunpack.c.l.b16 %v91
  %v454 = vunpack.c.l.b16 %v92
  %v455 = vunpack.c.l.b16 %v93
  %v456 = vunpack.c.l.b16 %v94
  %v457 = vunpack.c.l.b16 %v95
  %v458 = vunpack.c.l.b16 %v96
  %v459 = vunpack.c.l.b16 %v97
  %v460 = vunpack.c.l.b16 %v98
  %v461 = vunpack.c.l.b16 %v99
  %v462 = vunpack.c.l.b16 %v100
  %v463 = vunpack.c.l.b16 %v101
  %v464 = vunpack.c.l.b16 %v102
  %v465 = vunpack.c.l.b16 %v103
  %v466 = vunpack.c.l.b16 %v104
  %v467 = vunpack.c.l.b16 %v105
  %v468 = vunpack.c.l.b16 %v106
  %v469 = vunpack.c.l.b16 %v107
  %v470 = vunpack.c.l.b16 %v108
  %v471 = vunpack.c.l.b16 %v109
  %v472 = vunpack.c.l.b16 %v110
  %v473 = vunpack.c.l.b16 %v111
  %v474 = vunpack.c.l.b16 %v112
  %v475 = vunpack.c.l.b16 %v113
  %v476 = vunpack.c.l.b16 %v114
  %v477 = vunpack.c.l.b16 %v115
  %v478 = vunpack.c.l.b16 %v116
  %v479 = vunpack.c.l.b16 %v117
  %v480 = vunpack.c.l.b16 %v118
  %v481 = vunpack.c.l.b16 %v119
  %v482 = vunpack.c.l.b16 %v120
  %v483 = vunpack.c.l.b16 %v121
  %v484 = vunpack.c.l.b16 %v122
  %v485 = vunpack.c.l.b16 %v123
  %v486 = vunpack.c.l.b16 %v124
  %v487 = vunpack.c.l.b16 %v125
  %v488 = vunpack.c.l.b16 %v126
  %v489 = vunpack.c.l.b16 %v127
  %v490 = vunpack.c.l.b16 %v128
  %v491 = vunpack.c.l.b16 %v129
  %v492 = vunpack.c.l.b16 %v130
  %v493 = vunpack.c.l.b16 %v131
  %v494 = vunpack.c.l.b16 %v132
  %v495 = vunpack.c.l.b16 %v133
  %v496 = vunpack.c.l.b16 %v134
  %v497 = vunpack.c.l.b16 %v135
  %v498 = vunpack.c.l.b16 %v136
  %v499 = vunpack.c.l.b16 %v137
  %v500 = vunpack.c.l.b16 %v138
  %v501 = vunpack.c.l.b16 %v139
  %v502 = vunpack.c.l.b16 %v140
  %v503 = vunpack.c.l.b16 %v141
  %v504 = vunpack.c.l.b16 %v142
  %v505 = vunpack.c.l.b16 %v143
  %v506 = vunpack.c.l.b16 %v144
  %v507 = vunpack.c.l.b16 %v145
  %v508 = vunpack.c.l.b16 %v146
  %v509 = vunpack.c.l.b16 %v147
  %v510 = vunpack.c.l.b16 %v148
  %v511 = vunpack.c.l.b16 %v149
  %v512 = vunpack.c.l.b16 %v150
  %v513 = vunpack.c.l.b16 %v151
  %v514 = vunpack.c.l.b16 %v152
  %v515 = vunpack.c.l.b16 %v153
  %v516 = vunpack.c.l.b16 %v154
  %v517 = vunpack.c.l.b16 %v155
  %v518 = vunpack.c.l.b16 %v156
  %v519 = vunpack.c.l.b16 %v157
  %v520 = vunpack.c.l.b16 %v158
  %v521 = vunpack.c.l.b16 %v159
  %v522 = vunpack.c.l.b16 %v160
  %v523 = vunpack.c.l.b16 %v161
  %v524 = vunpack.c.l.b16 %v162
  %v525 = vunpack.c.l.b16 %v163
  %v526 = vunpack.c.l.b16 %v164
  %v527 = vunpack.c.l.b16 %v165
  %v528 = vunpack.c.l.b16 %v166
  %v529 = vunpack.c.l.b16 %v167
  %v530 = vunpack.c.l.b16 %v168
  %v531 = vunpack.c.l.b16 %v169
  %v532 = vpack.c.b16 %v389, %v388
  %v533 = vpack.c.b16 %v391, %v390
  %v534 = vpack.c.b16 %v393, %v392
  %v535 = vpack.c.b16 %v395, %v394
  %v536 = vpack.c.b16 %v397, %v396
  %v537 = vpack.c.b16 %v399, %v398
  %v538 = vpack.c.b16 %v401, %v400
  %v539 = vpack.c.b16 %v403, %v402
  %v540 = vpack.c.b16 %v405, %v404
  %v541 = vpack.c.b16 %v407, %v406
  %v542 = vpack.c.b16 %v409, %v408
  %v543 = vpack.c.b16 %v411, %v410
  %v544 = vpack.c.b16 %v413, %v412
  %v545 = vpack.c.b16 %v415, %v414
  %v546 = vpack.c.b16 %v417, %v416
  %v547 = vpack.c.b16 %v419, %v418
  %v548 = vpack.c.b16 %v421, %v420
  %v549 = vpack.c.b16 %v423, %v422
  %v550 = vpack.c.b16 %v425, %v424
  %v551 = vpack.c.b16 %v427, %v426
  %v552 = vpack.c.b16 %v429, %v428
  %v553 = vpack.c.b16 %v431, %v430
  %v554 = vpack.c.b16 %v433, %v432
  %v555 = vpack.c.b16 %v435, %v434
  %v556 = vpack.c.b16 %v437, %v436
  %v557 = vpack.c.b16 %v439, %v438
  %v558 = vpack.c.b16 %v441, %v440
  %v559 = vpack.c.b16 %v443, %v442
  %v560 = vpack.c.b16 %v445, %v444
  %v561 = vpack.c.b16 %v447, %v446
  %v562 = vpack.c.b16 %v449, %v448
  %v563 = vpack.c.b16 %v451, %v450
  %v564 = vpack.c.b16 %v453, %v452
  %v565 = vpack.c.b16 %v455, %v454
  %v566 = vpack.c.b16 %v457, %v456
  %v567 = vpack.c.b16 %v459, %v458
  %v568 = vpack.c.b16 %v461, %v460
  %v569 = vpack.c.b16 %v463, %v462
  %v570 = vpack.c.b16 %v465, %v464
  %v571 = vpack.c.b16 %v467, %v466
  %v572 = vpack.c.b16 %v469, %v468
  %v573 = vpack.c.b16 %v471, %v470
  %v574 = vpack.c.b16 %v473, %v472
  %v575 = vpack.c.b16 %v475, %v474
  %v576 = vpack.c.b16 %v477, %v476
  %v577 = vpack.c.b16 %v479, %v478
  %v578 = vpack.c.b16 %v481, %v480
  %v579 = vpack.c.b16 %v483, %v482
  %v580 = vpack.c.b16 %v485, %v484
  %v581 = vpack.c.b16 %v487, %v486
  %v582 = vpack.c.b16 %v489, %v488
  %v583 = vpack.c.b16 %v491, %v490
  %v584 = vpack.c.b16 %v493, %v492
  %v585 = vpack.c.b16 %v495, %v494
  %v586 = vpack.c.b16 %v497, %v496
  %v587 = vpack.c.b16 %v499, %v498
  %v588 = vpack.c.b16 %v501, %v500
  %v589 = vpack.c.b16 %v503, %v502
  %v590 = vpack.c.b16 %v505, %v504
  %v591 = vpack.c.b16 %v507, %v506
  %v592 = vpack.c.b16 %v509, %v508
  %v593 = vpack.c.b16 %v511, %v510
  %v594 = vpack.c.b16 %v513, %v512
  %v595 = vpack.c.b16 %v515, %v514
  %v596 = vpack.c.b16 %v517, %v516
  %v597 = vpack.c.b16 %v519, %v518
  %v598 = vpack.c.b16 %v521, %v520
  %v599 = vpack.c.b16 %v523, %v522
  %v600 = vpack.c.b16 %v525, %v524
  %v601 = vpack.c.b16 %v527, %v526
  %v602 = vpack.c.b16 %v529, %v528
  %v603 = vpack.c.b16 %v531, %v530
  %676 = vmatprep.subr.bf16.mxu0 0
  %677 = vmatpush1.bf16.msra.mxu0 %v539
  %678 = vmatprep.subr.bf16.mxu0 0
  %679 = vmatpush1.bf16.msra.mxu0 %v538
  %680 = vmatprep.subr.bf16.mxu0 0
  %681 = vmatpush1.bf16.msra.mxu0 %v537
  %682 = vmatprep.subr.bf16.mxu0 0
  %683 = vmatpush1.bf16.msra.mxu0 %v536
  %684 = vmatprep.subr.bf16.mxu0 0
  %685 = vmatpush1.bf16.msra.mxu0 %v535
  %686 = vmatprep.subr.bf16.mxu0 0
  %687 = vmatpush1.bf16.msra.mxu0 %v534
  %688 = vmatprep.subr.bf16.mxu0 0
  %689 = vmatpush1.bf16.msra.mxu0 %v533
  %690 = vmatprep.subr.bf16.mxu0 0
  %691 = vmatpush1.bf16.msra.mxu0 %v532
  %692 = vmatprep.subr.bf16.mxu0 0
  %693 = vmatpush2.bf16.msra.mxu0 %v547
  %694 = vmatprep.subr.bf16.mxu0 0
  %695 = vmatpush2.bf16.msra.mxu0 %v546
  %696 = vmatprep.subr.bf16.mxu0 0
  %697 = vmatpush2.bf16.msra.mxu0 %v545
  %698 = vmatprep.subr.bf16.mxu0 0
  %699 = vmatpush2.bf16.msra.mxu0 %v544
  %700 = vmatprep.subr.bf16.mxu0 0
  %701 = vmatpush2.bf16.msra.mxu0 %v543
  %702 = vmatprep.subr.bf16.mxu0 0
  %703 = vmatpush2.bf16.msra.mxu0 %v542
  %704 = vmatprep.subr.bf16.mxu0 0
  %705 = vmatpush2.bf16.msra.mxu0 %v541
  %706 = vmatprep.subr.bf16.mxu0 0
  %707 = vmatpush2.bf16.msra.mxu0 %v540
  %708 = vmatprep.mubr.bf16.mxu0 %v209
  %709 = vmatmul.mubr.bf16.gmra.mxu0 %v195
  %v710 = vpop.f32.mrf.mxu0
  %v711 = vadd.f32 0.0, %v710
  %v712 = vpop.f32.mrf.mxu0
  %v713 = vpop.f32.mrf.mxu0
  %v714 = vpop.f32.mrf.mxu0
  %715 = vdwg.mxu0
  %716 = vmatprep.subr.bf16.mxu0 0
  %717 = vmatpush1.bf16.msra.mxu0 %v555
  %718 = vmatprep.subr.bf16.mxu0 0
  %719 = vmatpush1.bf16.msra.mxu0 %v554
  %720 = vmatprep.subr.bf16.mxu0 0
  %721 = vmatpush1.bf16.msra.mxu0 %v553
  %722 = vmatprep.subr.bf16.mxu0 0
  %723 = vmatpush1.bf16.msra.mxu0 %v552
  %724 = vmatprep.subr.bf16.mxu0 0
  %725 = vmatpush1.bf16.msra.mxu0 %v551
  %726 = vmatprep.subr.bf16.mxu0 0
  %727 = vmatpush1.bf16.msra.mxu0 %v550
  %728 = vmatprep.subr.bf16.mxu0 0
  %729 = vmatpush1.bf16.msra.mxu0 %v549
  %730 = vmatprep.subr.bf16.mxu0 0
  %731 = vmatpush1.bf16.msra.mxu0 %v548
  %732 = vmatprep.subr.bf16.mxu0 0
  %733 = vmatpush2.bf16.msra.mxu0 %v563
  %734 = vmatprep.subr.bf16.mxu0 0
  %735 = vmatpush2.bf16.msra.mxu0 %v562
  %736 = vmatprep.subr.bf16.mxu0 0
  %737 = vmatpush2.bf16.msra.mxu0 %v561
  %738 = vmatprep.subr.bf16.mxu0 0
  %739 = vmatpush2.bf16.msra.mxu0 %v560
  %740 = vmatprep.subr.bf16.mxu0 0
  %741 = vmatpush2.bf16.msra.mxu0 %v559
  %742 = vmatprep.subr.bf16.mxu0 0
  %743 = vmatpush2.bf16.msra.mxu0 %v558
  %744 = vmatprep.subr.bf16.mxu0 0
  %745 = vmatpush2.bf16.msra.mxu0 %v557
  %746 = vmatprep.subr.bf16.mxu0 0
  %747 = vmatpush2.bf16.msra.mxu0 %v556
  %748 = vmatprep.mubr.bf16.mxu0 %v219
  %749 = vmatmul.mubr.bf16.gmra.mxu0 %v217
  %v750 = vpop.f32.mrf.mxu0
  %v751 = vadd.f32 %v711, %v750
  %v752 = vpop.f32.mrf.mxu0
  %v753 = vpop.f32.mrf.mxu0
  %v754 = vpop.f32.mrf.mxu0
  %755 = vdwg.mxu0
  %756 = vmatprep.subr.bf16.mxu0 0
  %757 = vmatpush1.bf16.msra.mxu0 %v571
  %758 = vmatprep.subr.bf16.mxu0 0
  %759 = vmatpush1.bf16.msra.mxu0 %v570
  %760 = vmatprep.subr.bf16.mxu0 0
  %761 = vmatpush1.bf16.msra.mxu0 %v569
  %762 = vmatprep.subr.bf16.mxu0 0
  %763 = vmatpush1.bf16.msra.mxu0 %v568
  %764 = vmatprep.subr.bf16.mxu0 0
  %765 = vmatpush1.bf16.msra.mxu0 %v567
  %766 = vmatprep.subr.bf16.mxu0 0
  %767 = vmatpush1.bf16.msra.mxu0 %v566
  %768 = vmatprep.subr.bf16.mxu0 0
  %769 = vmatpush1.bf16.msra.mxu0 %v565
  %770 = vmatprep.subr.bf16.mxu0 0
  %771 = vmatpush1.bf16.msra.mxu0 %v564
  %772 = vmatprep.subr.bf16.mxu0 0
  %773 = vmatpush2.bf16.msra.mxu0 %v579
  %774 = vmatprep.subr.bf16.mxu0 0
  %775 = vmatpush2.bf16.msra.mxu0 %v578
  %776 = vmatprep.subr.bf16.mxu0 0
  %777 = vmatpush2.bf16.msra.mxu0 %v577
  %778 = vmatprep.subr.bf16.mxu0 0
  %779 = vmatpush2.bf16.msra.mxu0 %v576
  %780 = vmatprep.subr.bf16.mxu0 0
  %781 = vmatpush2.bf16.msra.mxu0 %v575
  %782 = vmatprep.subr.bf16.mxu0 0
  %783 = vmatpush2.bf16.msra.mxu0 %v574
  %784 = vmatprep.subr.bf16.mxu0 0
  %785 = vmatpush2.bf16.msra.mxu0 %v573
  %786 = vmatprep.subr.bf16.mxu0 0
  %787 = vmatpush2.bf16.msra.mxu0 %v572
  %788 = vmatprep.mubr.bf16.mxu0 %v216
  %789 = vmatmul.mubr.bf16.gmra.mxu0 %v202
  %v790 = vpop.f32.mrf.mxu0
  %v791 = vadd.f32 %v751, %v790
  %v792 = vpop.f32.mrf.mxu0
  %v793 = vpop.f32.mrf.mxu0
  %v794 = vpop.f32.mrf.mxu0
  %795 = vdwg.mxu0
  %796 = vmatprep.subr.bf16.mxu0 0
  %797 = vmatpush1.bf16.msra.mxu0 %v587
  %798 = vmatprep.subr.bf16.mxu0 0
  %799 = vmatpush1.bf16.msra.mxu0 %v586
  %800 = vmatprep.subr.bf16.mxu0 0
  %801 = vmatpush1.bf16.msra.mxu0 %v585
  %802 = vmatprep.subr.bf16.mxu0 0
  %803 = vmatpush1.bf16.msra.mxu0 %v584
  %804 = vmatprep.subr.bf16.mxu0 0
  %805 = vmatpush1.bf16.msra.mxu0 %v583
  %806 = vmatprep.subr.bf16.mxu0 0
  %807 = vmatpush1.bf16.msra.mxu0 %v582
  %808 = vmatprep.subr.bf16.mxu0 0
  %809 = vmatpush1.bf16.msra.mxu0 %v581
  %810 = vmatprep.subr.bf16.mxu0 0
  %811 = vmatpush1.bf16.msra.mxu0 %v580
  %812 = vmatprep.subr.bf16.mxu0 0
  %813 = vmatpush2.bf16.msra.mxu0 %v595
  %814 = vmatprep.subr.bf16.mxu0 0
  %815 = vmatpush2.bf16.msra.mxu0 %v594
  %816 = vmatprep.subr.bf16.mxu0 0
  %817 = vmatpush2.bf16.msra.mxu0 %v593
  %818 = vmatprep.subr.bf16.mxu0 0
  %819 = vmatpush2.bf16.msra.mxu0 %v592
  %820 = vmatprep.subr.bf16.mxu0 0
  %821 = vmatpush2.bf16.msra.mxu0 %v591
  %822 = vmatprep.subr.bf16.mxu0 0
  %823 = vmatpush2.bf16.msra.mxu0 %v590
  %824 = vmatprep.subr.bf16.mxu0 0
  %825 = vmatpush2.bf16.msra.mxu0 %v589
  %826 = vmatprep.subr.bf16.mxu0 0
  %827 = vmatpush2.bf16.msra.mxu0 %v588
  %828 = vmatprep.mubr.bf16.mxu0 %v220
  %829 = vmatmul.mubr.bf16.gmra.mxu0 %v218
  %v830 = vpop.f32.mrf.mxu0
  %v831 = vadd.f32 %v791, %v830
  %v832 = vpop.f32.mrf.mxu0
  %v833 = vpop.f32.mrf.mxu0
  %v834 = vpop.f32.mrf.mxu0
  %835 = vdwg.mxu0
  %836 = vmatprep.subr.bf16.mxu0 0
  %837 = vmatpush1.bf16.msra.mxu0 %v603
  %838 = vmatprep.subr.bf16.mxu0 0
  %839 = vmatpush1.bf16.msra.mxu0 %v602
  %840 = vmatprep.subr.bf16.mxu0 0
  %841 = vmatpush1.bf16.msra.mxu0 %v601
  %842 = vmatprep.subr.bf16.mxu0 0
  %843 = vmatpush1.bf16.msra.mxu0 %v600
  %844 = vmatprep.subr.bf16.mxu0 0
  %845 = vmatpush1.bf16.msra.mxu0 %v599
  %846 = vmatprep.subr.bf16.mxu0 0
  %847 = vmatpush1.bf16.msra.mxu0 %v598
  %848 = vmatprep.subr.bf16.mxu0 0
  %849 = vmatpush1.bf16.msra.mxu0 %v597
  %850 = vmatprep.subr.bf16.mxu0 0
  %851 = vmatpush1.bf16.msra.mxu0 %v596
  %852 = vmatprep.subr.bf16.mxu0 0
  %853 = vmatpush2.bf16.msra.mxu0 0
  %854 = vmatprep.subr.bf16.mxu0 0
  %855 = vmatpush2.bf16.msra.mxu0 0
  %856 = vmatprep.subr.bf16.mxu0 0
  %857 = vmatpush2.bf16.msra.mxu0 0
  %858 = vmatprep.subr.bf16.mxu0 0
  %859 = vmatpush2.bf16.msra.mxu0 0
  %860 = vmatprep.subr.bf16.mxu0 0
  %861 = vmatpush2.bf16.msra.mxu0 0
  %862 = vmatprep.subr.bf16.mxu0 0
  %863 = vmatpush2.bf16.msra.mxu0 0
  %864 = vmatprep.subr.bf16.mxu0 0
  %865 = vmatpush2.bf16.msra.mxu0 0
  %866 = vmatprep.subr.bf16.mxu0 0
  %867 = vmatpush2.bf16.msra.mxu0 0
  %868 = vmatprep.mubr.bf16.mxu0 0
  %869 = vmatmul.mubr.bf16.gmra.mxu0 %v234
  %v870 = vpop.f32.mrf.mxu0
  %v871 = vadd.f32 %v831, %v870
  %v872 = vpop.f32.mrf.mxu0
  %v873 = vpop.f32.mrf.mxu0
  %v874 = vpop.f32.mrf.mxu0
  %875 = vdwg.mxu0
  %v876 = vadd.f32 %v23, %v871
  %877 = vst [vmem:[#allocation2] sm:$0x3] %v876
  // Predicated region
  $region22: #{_lambda_.99} parent=0 // pred_check
    %p878 = pneg %p18
  $region23: #{_lambda_.99} parent=0 // pred_check_branch
    %880 = sbr.rel (%p878) target = $region25
  $region24: #{_lambda_.99} parent=0 // pred_region
    %v881 = vld [vmem:[#allocation2] sm:$0x3]
    %v882 = vld [vmem:[%s2] sm:$0x1]
    %v884 = vlaneseq
    %v885 = vshrl.u32 %v884, 7
    %v886 = vsub.s32 0, %v885
    %v887 = vrot.slane %v882, %v886
    %v889 = vmul.f32 %v881, %v887
    %v890 = vld [vmem:[%s3] sm:$0x1]
    %v892 = vlaneseq
    %v893 = vshrl.u32 %v892, 7
    %v894 = vsub.s32 0, %v893
    %v895 = vrot.slane %v890, %v894
    %v897 = vadd.f32 %v889, %v895
    %v898 = vmax.f32 %v897, 0.0
    %v899 = vpack.c.bf16 %v898, %v898
    %900 = vst [vmem:[%s4] sm:$0x1] %v899
  $region25: #{_lambda_.99} parent=0 // pred_fallthru
    _
  // Predicated region
  $region26: #{_lambda_.99} parent=0 // pred_check
    _
  $region27: #{_lambda_.99} parent=0 // pred_check_branch
    %902 = sbr.rel (0) target = $region29
  $region28: #{_lambda_.99} parent=0 // pred_region
    _
  $region29: #{_lambda_.99} parent=0 // pred_fallthru
    _
  // Predicated region
  $region30: #{_lambda_.99} parent=0 // pred_check
    _
  $region31: #{_lambda_.99} parent=0 // pred_check_branch
    %904 = sbr.rel (0) target = $region33
  $region32: #{_lambda_.99} parent=0 // pred_region
    _
  $region33: #{_lambda_.99} parent=0 // pred_fallthru
    _

// kernel: _lambda_.108
$region0: #{_lambda_.108}
  #allocation0 [shape = 'u32[]', space=smem, size = 0x4, offset = 0x4, fixed_abs, tag = 'smem constant byte address 0x4 - core index']
  #allocation1 [shape = 'u32[144,128]{1,0:T(1,128)}', space=vmem, size = 0x12000, scoped, tag = 'internal scratch']
  %s0 = inlined_call_operand.vmem [shape: bf16[2,1,256], index: 0, kind: input, shape index: {}]
  %s1 = inlined_call_operand.vmem [shape: f32[2,1,256], index: 1, kind: output, shape index: {}]
  %s2 = sld [smem:[#allocation0]]
  $region37: #{_lambda_.108} parent=0
    _
  %s4 = ssub.s32 1, %s2
  %s5 = scalar_select 0, %s4, %s2
  loop: start=0, step=1, limit=4
  $region2: #{_lambda_.108} parent=0 // loop_pre_header
    _
  $region3: #{_lambda_.108} parent=0 // loop_header
    %s7 = sphi 0, %s11
    %p8 = scmp.ge.s32.totalorder %s7, 4
    %s17 = sphi 0, %s19
    %s20 = sphi 0, %s17
    %s21 = sphi 0, %s20
    %s37 = sphi 0, %s21
    %s43 = sphi 0, %s45
    %s46 = sphi 0, %s43
    %s47 = sphi 0, %s46
    %s63 = sphi 0, %s47
  $region4: #{_lambda_.108} parent=0 // loop_header_branch
    %10 = sbr.rel (%p8) target = $region8
  $region5: #{_lambda_.108} parent=0 // loop_body
    %s12 = ssub.s32 %s7, 1
    %s13 = ssub.s32 %s7, 2
    %s14 = sadd.s32 %s7, 1
    %s15 = ssub.s32 %s7, %s14
    %p16 = scmp.eq.s32.totalorder %s15, 0
    %s18 = sadd.s32 %s17, 1
    %s19 = scalar_select %p16, %s17, %s18
    %p22 = pneg %p16
    %p23 = scmp.eq.s32.totalorder %s7, 1
    %p24 = por %p22, %p23
    %p25 = scmp.ne.s32.totalorder %s17, %s20
    %p26 = scmp.eq.s32.totalorder %s7, 0
    %p27 = por %p25, %p26
    %p28 = scmp.ne.s32.totalorder %s17, %s20
    %p29 = scmp.eq.s32.totalorder %s12, 1
    %p30 = por %p28, %p29
    %p31 = scmp.ne.s32.totalorder %s20, %s21
    %p32 = scmp.eq.s32.totalorder %s12, 0
    %p33 = por %p31, %p32
    %p34 = scmp.ne.s32.totalorder %s20, %s21
    %p35 = scmp.eq.s32.totalorder %s13, 1
    %p36 = por %p34, %p35
    %p38 = scmp.ne.s32.totalorder %s21, %s37
    %p39 = scmp.eq.s32.totalorder %s13, 0
    %p40 = por %p38, %p39
    %s41 = ssub.s32 %s7, %s14
    %p42 = scmp.eq.s32.totalorder %s41, 0
    %s44 = sadd.s32 %s43, 1
    %s45 = scalar_select %p42, %s43, %s44
    %p48 = pneg %p42
    %p49 = scmp.eq.s32.totalorder %s7, 1
    %p50 = por %p48, %p49
    %p51 = scmp.ne.s32.totalorder %s43, %s46
    %p52 = scmp.eq.s32.totalorder %s7, 0
    %p53 = por %p51, %p52
    %p54 = scmp.ne.s32.totalorder %s43, %s46
    %p55 = scmp.eq.s32.totalorder %s12, 1
    %p56 = por %p54, %p55
    %p57 = scmp.ne.s32.totalorder %s46, %s47
    %p58 = scmp.eq.s32.totalorder %s12, 0
    %p59 = por %p57, %p58
    %p60 = scmp.ne.s32.totalorder %s46, %s47
    %p61 = scmp.eq.s32.totalorder %s13, 1
    %p62 = por %p60, %p61
    %p64 = scmp.ne.s32.totalorder %s47, %s63
    %p65 = scmp.eq.s32.totalorder %s13, 0
    %p66 = por %p64, %p65
    %p67 = scmp.le.s32.totalorder 1, %s7
    %p68 = scmp.lt.s32.totalorder %s7, 3
    %p69 = pnand %p67, %p68
    %p70 = pneg %p69
    // Predicated region
    $region9: #{_lambda_.108} parent=5 // pred_check
      _
    $region10: #{_lambda_.108} parent=5 // pred_check_branch
      %72 = sbr.rel (%p69) target = $region12
    $region11: #{_lambda_.108} parent=5 // pred_region
      %s73 = ssub.s32 %s7, 1
    $region12: #{_lambda_.108} parent=5 // pred_fallthru
      _
    %p74 = scmp.lt.s32.totalorder %s7, 2
    // Predicated region
    $region13: #{_lambda_.108} parent=5 // pred_check
      %p75 = pneg %p74
    $region14: #{_lambda_.108} parent=5 // pred_check_branch
      %77 = sbr.rel (%p75) target = $region16
    $region15: #{_lambda_.108} parent=5 // pred_region
      // Predicated region
      $region17: #{_lambda_.108} parent=15 // pred_check
        %p78 = pneg %p27
      $region18: #{_lambda_.108} parent=15 // pred_check_branch
        %80 = sbr.rel (%p78) target = $region20
      $region19: #{_lambda_.108} parent=15 // pred_region
        %p81 = scmp.lt.s32.totalorder %s7, 1
        %s82 = scalar_select %p81, %s7, 1
        %s83 = smul.addr %s82, 2
        %s84 = scalar_lea.vmem %s0, %s83
      $region20: #{_lambda_.108} parent=15 // pred_fallthru
        _
    $region16: #{_lambda_.108} parent=5 // pred_fallthru
      _
    %p85 = scmp.le.s32.totalorder 1, %s7
    %p86 = scmp.lt.s32.totalorder %s7, 3
    %p87 = pnand %p85, %p86
    %p88 = pneg %p87
    // Predicated region
    $region21: #{_lambda_.108} parent=5 // pred_check
      _
    $region22: #{_lambda_.108} parent=5 // pred_check_branch
      %90 = sbr.rel (%p87) target = $region24
    $region23: #{_lambda_.108} parent=5 // pred_region
      %s91 = ssub.s32 %s7, 1
      %p92 = scmp.lt.s32.totalorder %s12, 1
      %s93 = scalar_select %p92, %s12, 1
      %s94 = smul.addr %s93, 2
      %s95 = scalar_lea.vmem %s0, %s94
      %p96 = pneg %p33
      %p97 = pneg %p30
      %p98 = pneg %p59
      %p99 = pneg %p56
      %p100 = scmp.lt.s32.totalorder %s12, 1
      %s101 = scalar_select %p100, %s12, 1
      %s102 = smul.addr %s101, 2
      %s103 = scalar_lea.vmem %s1, %s102
      %p104 = scmp.lt.s32.totalorder %s12, 1
      %s105 = scalar_select %p104, %s12, 1
      %s106 = smul.addr %s105, 2
      %s107 = scalar_lea.vmem %s0, %s106
      %p108 = scmp.lt.s32.totalorder %s12, 1
      %s109 = scalar_select %p108, %s12, 1
      %s110 = smul.addr %s109, 2
      %s111 = scalar_lea.vmem %s1, %s110
      %v112 = vld [vmem:[%s107] sm:$0x3]
      %v113 = vunpack.c.l.bf16 %v112
      %v114 = vadd.f32 %v113, 0.0
      %v117 = vunpack.c.l.s4 1966171168
      %v118 = vunpack.c.0.s8 %v117
      %v119 = vlaneseq
      %v120 = vshrl.u32 %v119, 7
      %v121 = vsub.s32 %v118, %v120
      %v122 = vrot.slane %v114, %v121
      %v124 = vlaneseq
      %vm125 = vcmp.ge.s32.totalorder %v124, 0
      %vm126 = vcmp.lt.s32.totalorder %v124, 256
      %vm127 = vmand %vm125, %vm126
      %128 = vst.msk [vmem:[%s111] sm:$0x3] %vm127, %v122
      %p129 = scmp.lt.s32.totalorder %s12, 1
      %s130 = scalar_select %p129, %s12, 1
      %s131 = smul.addr %s130, 2
      %s132 = scalar_lea.vmem %s1, %s131
      // Predicated region
      $region25: #{_lambda_.108} parent=23 // pred_check
        %p133 = pneg %p56
      $region26: #{_lambda_.108} parent=23 // pred_check_branch
        %135 = sbr.rel (%p133) target = $region28
      $region27: #{_lambda_.108} parent=23 // pred_region
        _
      $region28: #{_lambda_.108} parent=23 // pred_fallthru
        _
    $region24: #{_lambda_.108} parent=5 // pred_fallthru
      _
    %p136 = scmp.le.s32.totalorder 2, %s7
    // Predicated region
    $region29: #{_lambda_.108} parent=5 // pred_check
      %p137 = pneg %p136
    $region30: #{_lambda_.108} parent=5 // pred_check_branch
      %139 = sbr.rel (%p137) target = $region32
    $region31: #{_lambda_.108} parent=5 // pred_region
      %s140 = ssub.s32 %s7, 2
      // Predicated region
      $region33: #{_lambda_.108} parent=31 // pred_check
        %p141 = pneg %p62
      $region34: #{_lambda_.108} parent=31 // pred_check_branch
        %143 = sbr.rel (%p141) target = $region36
      $region35: #{_lambda_.108} parent=31 // pred_region
        %p144 = scmp.lt.s32.totalorder %s13, 1
        %s145 = scalar_select %p144, %s13, 1
        %s146 = smul.addr %s145, 2
        %s147 = scalar_lea.vmem %s1, %s146
      $region36: #{_lambda_.108} parent=31 // pred_fallthru
        _
    $region32: #{_lambda_.108} parent=5 // pred_fallthru
      _
  $region6: #{_lambda_.108} parent=0 // loop_footer
    %s11 = sadd.s32 1, %s7
  $region7: #{_lambda_.108} parent=0 // loop_footer_branch
    %6 = sbr.rel target = $region3
  $region8: #{_lambda_.108} parent=0 // loop_exit
    _

// kernel: _lambda_.109
$region0: #{_lambda_.109}
  #allocation0 [shape = 'u32[]', space=smem, size = 0x4, offset = 0x4, fixed_abs, tag = 'smem constant byte address 0x4 - core index']
  #allocation1 [shape = 'u32[144,128]{1,0:T(1,128)}', space=vmem, size = 0x12000, scoped, tag = 'internal scratch']
  #allocation2 [shape = 'f32[2,256]{1,0:T(2,128)}', space=vmem, size = 0x800, scoped, tag = 'scratch operand']
  %s0 = inlined_call_operand.vmem [shape: bf16[2,256], index: 0, kind: input, shape index: {}]
  %s1 = inlined_call_operand.vmem [shape: bf16[256,1024], index: 1, kind: input, shape index: {}]
  %s2 = inlined_call_operand.vmem [shape: f32[1,1024], index: 2, kind: input, shape index: {}]
  %s3 = inlined_call_operand.vmem [shape: f32[1,1024], index: 3, kind: input, shape index: {}]
  %s4 = inlined_call_operand.hbm [shape: f32[2,1024], index: 4, kind: output, shape index: {}]
  %s5 = sld [smem:[#allocation0]]
  $region95: #{_lambda_.109} parent=0
    _
  %s7 = ssub.s32 1, %s5
  %s8 = scalar_select 0, %s7, %s5
  $region1: #{_lambda_.109} parent=0
    #allocation3 [shape = 'u8[262144]{0}', space=vmem, size = 0x40000, scoped, tag = 'input window, operand 1']
    #allocation4 [shape = 'u8[4096]{0}', space=vmem, size = 0x1000, scoped, tag = 'output window, operand 0']
    #allocation5 [shape = 's32[2]{0}', space=sflag, size = 0x8, scoped, tag = 'scoped memory for _lambda_.109']
    %9 = vsyncpa [#allocation5], 0
    %s10 = scalar_lea.sflag [#allocation5], 1
    %11 = vsyncpa %s10, 0
    loop: start=0, step=1, limit=6
    $region2: #{_lambda_.109} parent=1 // loop_pre_header
      _
    $region3: #{_lambda_.109} parent=1 // loop_header
      %s13 = sphi 0, %s17
      %p14 = scmp.ge.s32.totalorder %s13, 6
      %s20 = sphi 0, %s39
      %s21 = sphi 0, %s35
      %s22 = sphi 0, %s31
      %s23 = sphi 0, %s20
      %s24 = sphi 0, %s21
      %s25 = sphi 0, %s22
      %s26 = sphi 0, %s23
      %s27 = sphi 0, %s24
      %s28 = sphi 0, %s25
      %s44 = sphi 0, %s46
      %s47 = sphi 0, %s44
      %s48 = sphi 0, %s47
      %s64 = sphi 0, %s48
      %s72 = sphi 0, %s74
      %s75 = sphi 0, %s72
      %s76 = sphi 0, %s75
      %s92 = sphi 0, %s76
      %s98 = sphi 0, %s100
      %s101 = sphi 0, %s98
      %s102 = sphi 0, %s101
      %s118 = sphi 0, %s102
      %s124 = sphi 0, %s126
      %s127 = sphi 0, %s124
      %s128 = sphi 0, %s127
      %s144 = sphi 0, %s128
      %s152 = sphi 0, %s154
      %s155 = sphi 0, %s152
      %s156 = sphi 0, %s155
      %s172 = sphi 0, %s156
    $region4: #{_lambda_.109} parent=1 // loop_header_branch
      %16 = sbr.rel (%p14) target = $region8
    $region5: #{_lambda_.109} parent=1 // loop_body
      %s18 = ssub.s32 %s13, 1
      %s19 = ssub.s32 %s13, 2
      %s29 = sadd.s32 1, %s22
      %p30 = scmp.ge.s32.totalorder %s29, 1
      %s31 = scalar_select %p30, 0, %s29
      %s32 = sadd.s32 1, %s21
      %s33 = scalar_select %p30, %s32, %s21
      %p34 = scmp.ge.s32.totalorder %s33, 4
      %s35 = scalar_select %p34, 0, %s33
      %s36 = sadd.s32 1, %s20
      %s37 = scalar_select %p34, %s36, %s20
      %p38 = scmp.ge.s32.totalorder %s37, 1
      %s39 = scalar_select %p38, 0, %s37
      %s40 = ssub.s32 %s20, %s39
      %s41 = ssub.s32 %s22, %s31
      %s42 = sor.u32 %s40, %s41
      %p43 = scmp.eq.s32.totalorder %s42, 0
      %s45 = sadd.s32 %s44, 1
      %s46 = scalar_select %p43, %s44, %s45
      %p49 = pneg %p43
      %p50 = scmp.eq.s32.totalorder %s13, 3
      %p51 = por %p49, %p50
      %p52 = scmp.ne.s32.totalorder %s44, %s47
      %p53 = scmp.eq.s32.totalorder %s13, 0
      %p54 = por %p52, %p53
      %p55 = scmp.ne.s32.totalorder %s44, %s47
      %p56 = scmp.eq.s32.totalorder %s18, 3
      %p57 = por %p55, %p56
      %p58 = scmp.ne.s32.totalorder %s47, %s48
      %p59 = scmp.eq.s32.totalorder %s18, 0
      %p60 = por %p58, %p59
      %p61 = scmp.ne.s32.totalorder %s47, %s48
      %p62 = scmp.eq.s32.totalorder %s19, 3
      %p63 = por %p61, %p62
      %p65 = scmp.ne.s32.totalorder %s48, %s64
      %p66 = scmp.eq.s32.totalorder %s19, 0
      %p67 = por %p65, %p66
      %s68 = ssub.s32 %s22, %s31
      %s69 = ssub.s32 %s21, %s35
      %s70 = sor.u32 %s68, %s69
      %p71 = scmp.eq.s32.totalorder %s70, 0
      %s73 = sadd.s32 %s72, 1
      %s74 = scalar_select %p71, %s72, %s73
      %p77 = pneg %p71
      %p78 = scmp.eq.s32.totalorder %s13, 3
      %p79 = por %p77, %p78
      %p80 = scmp.ne.s32.totalorder %s72, %s75
      %p81 = scmp.eq.s32.totalorder %s13, 0
      %p82 = por %p80, %p81
      %p83 = scmp.ne.s32.totalorder %s72, %s75
      %p84 = scmp.eq.s32.totalorder %s18, 3
      %p85 = por %p83, %p84
      %p86 = scmp.ne.s32.totalorder %s75, %s76
      %p87 = scmp.eq.s32.totalorder %s18, 0
      %p88 = por %p86, %p87
      %p89 = scmp.ne.s32.totalorder %s75, %s76
      %p90 = scmp.eq.s32.totalorder %s19, 3
      %p91 = por %p89, %p90
      %p93 = scmp.ne.s32.totalorder %s76, %s92
      %p94 = scmp.eq.s32.totalorder %s19, 0
      %p95 = por %p93, %p94
      %s96 = ssub.s32 %s21, %s35
      %p97 = scmp.eq.s32.totalorder %s96, 0
      %s99 = sadd.s32 %s98, 1
      %s100 = scalar_select %p97, %s98, %s99
      %p103 = pneg %p97
      %p104 = scmp.eq.s32.totalorder %s13, 3
      %p105 = por %p103, %p104
      %p106 = scmp.ne.s32.totalorder %s98, %s101
      %p107 = scmp.eq.s32.totalorder %s13, 0
      %p108 = por %p106, %p107
      %p109 = scmp.ne.s32.totalorder %s98, %s101
      %p110 = scmp.eq.s32.totalorder %s18, 3
      %p111 = por %p109, %p110
      %p112 = scmp.ne.s32.totalorder %s101, %s102
      %p113 = scmp.eq.s32.totalorder %s18, 0
      %p114 = por %p112, %p113
      %p115 = scmp.ne.s32.totalorder %s101, %s102
      %p116 = scmp.eq.s32.totalorder %s19, 3
      %p117 = por %p115, %p116
      %p119 = scmp.ne.s32.totalorder %s102, %s118
      %p120 = scmp.eq.s32.totalorder %s19, 0
      %p121 = por %p119, %p120
      %s122 = ssub.s32 %s21, %s35
      %p123 = scmp.eq.s32.totalorder %s122, 0
      %s125 = sadd.s32 %s124, 1
      %s126 = scalar_select %p123, %s124, %s125
      %p129 = pneg %p123
      %p130 = scmp.eq.s32.totalorder %s13, 3
      %p131 = por %p129, %p130
      %p132 = scmp.ne.s32.totalorder %s124, %s127
      %p133 = scmp.eq.s32.totalorder %s13, 0
      %p134 = por %p132, %p133
      %p135 = scmp.ne.s32.totalorder %s124, %s127
      %p136 = scmp.eq.s32.totalorder %s18, 3
      %p137 = por %p135, %p136
      %p138 = scmp.ne.s32.totalorder %s127, %s128
      %p139 = scmp.eq.s32.totalorder %s18, 0
      %p140 = por %p138, %p139
      %p141 = scmp.ne.s32.totalorder %s127, %s128
      %p142 = scmp.eq.s32.totalorder %s19, 3
      %p143 = por %p141, %p142
      %p145 = scmp.ne.s32.totalorder %s128, %s144
      %p146 = scmp.eq.s32.totalorder %s19, 0
      %p147 = por %p145, %p146
      %s148 = ssub.s32 %s20, %s39
      %s149 = ssub.s32 %s21, %s35
      %s150 = sor.u32 %s148, %s149
      %p151 = scmp.eq.s32.totalorder %s150, 0
      %s153 = sadd.s32 %s152, 1
      %s154 = scalar_select %p151, %s152, %s153
      %p157 = pneg %p151
      %p158 = scmp.eq.s32.totalorder %s13, 3
      %p159 = por %p157, %p158
      %p160 = scmp.ne.s32.totalorder %s152, %s155
      %p161 = scmp.eq.s32.totalorder %s13, 0
      %p162 = por %p160, %p161
      %p163 = scmp.ne.s32.totalorder %s152, %s155
      %p164 = scmp.eq.s32.totalorder %s18, 3
      %p165 = por %p163, %p164
      %p166 = scmp.ne.s32.totalorder %s155, %s156
      %p167 = scmp.eq.s32.totalorder %s18, 0
      %p168 = por %p166, %p167
      %p169 = scmp.ne.s32.totalorder %s155, %s156
      %p170 = scmp.eq.s32.totalorder %s19, 3
      %p171 = por %p169, %p170
      %p173 = scmp.ne.s32.totalorder %s156, %s172
      %p174 = scmp.eq.s32.totalorder %s19, 0
      %p175 = por %p173, %p174
      %p176 = scmp.le.s32.totalorder 1, %s13
      %p177 = scmp.lt.s32.totalorder %s13, 5
      %p178 = pnand %p176, %p177
      %p179 = pneg %p178
      // Predicated region
      $region9: #{_lambda_.109} parent=5 // pred_check
        _
      $region10: #{_lambda_.109} parent=5 // pred_check_branch
        %181 = sbr.rel (%p178) target = $region12
      $region11: #{_lambda_.109} parent=5 // pred_region
        %s182 = ssub.s32 %s13, 1
        // Predicated region
        $region13: #{_lambda_.109} parent=11 // pred_check
          %p183 = pneg %p60
        $region14: #{_lambda_.109} parent=11 // pred_check_branch
          %185 = sbr.rel (%p183) target = $region16
        $region15: #{_lambda_.109} parent=11 // pred_region
          %s186 = smul.u32 2, %s25
          %p187 = scmp.lt.s32.totalorder %s23, 0
          %s188 = scalar_select %p187, %s23, 0
          %p189 = scmp.lt.s32.totalorder %s186, 1
          %s190 = scalar_select %p189, %s186, 1
          %s191 = smul.addr %s188, 2
          %s192 = sadd.s32 %s190, %s191
          %s193 = scalar_lea.vmem %s0, %s192
          %s194 = smul.u32 2, %s25
        $region16: #{_lambda_.109} parent=11 // pred_fallthru
          _
      $region12: #{_lambda_.109} parent=5 // pred_fallthru
        _
      %p195 = scmp.lt.s32.totalorder %s13, 4
      // Predicated region
      $region17: #{_lambda_.109} parent=5 // pred_check
        %p196 = pneg %p195
      $region18: #{_lambda_.109} parent=5 // pred_check_branch
        %198 = sbr.rel (%p196) target = $region20
      $region19: #{_lambda_.109} parent=5 // pred_region
        // Predicated region
        $region21: #{_lambda_.109} parent=19 // pred_check
          %p199 = pneg %p82
        $region22: #{_lambda_.109} parent=19 // pred_check_branch
          %201 = sbr.rel (%p199) target = $region24
        $region23: #{_lambda_.109} parent=19 // pred_region
          %s202 = sand.u32 %s72, 1
          %s203 = sand.u32 %s72, 1
          %s204 = smul.addr %s203, 256
          %s205 = scalar_lea.vmem [#allocation3], %s204
          %s206 = smul.u32 32, %s22
          %s207 = smul.u32 2, %s21
          %s208 = smul.addr %s206, 8
          %s209 = sadd.s32 %s207, %s208
          %s210 = smul.addr %s209, 4
          %s211 = scalar_lea.vmem %s1, %s210
          // Predicated region
          $region25: #{_lambda_.109} parent=23 // pred_check
            _
          $region26: #{_lambda_.109} parent=23 // pred_check_branch
            %213 = sbr.rel (0) target = $region28
          $region27: #{_lambda_.109} parent=23 // pred_region
            // Predicated region
            $region29: #{_lambda_.109} parent=27 // pred_check
              _
            $region30: #{_lambda_.109} parent=27 // pred_check_branch
              %215 = sbr.rel (0) target = $region32
            $region31: #{_lambda_.109} parent=27 // pred_region
              // Predicated region
              $region44: #{_lambda_.109} parent=31 // pred_check
                _
              $region45: #{_lambda_.109} parent=31 // pred_check_branch
                %293 = sbr.rel (0) target = $region47
              $region46: #{_lambda_.109} parent=31 // pred_region
                loop: start=0, step=1, limit=1
                $region48: #{_lambda_.109} parent=46 // loop_pre_header
                  _
                $region49: #{_lambda_.109} parent=46 // loop_header
                  %s295 = sphi 0, %s299
                  %p296 = scmp.ge.s32.totalorder %s295, 1
                  %s300 = sphi %s211, %s211
                  %s301 = sphi %s205, %s205
                $region50: #{_lambda_.109} parent=46 // loop_header_branch
                  %298 = sbr.rel (%p296) target = $region54
                $region51: #{_lambda_.109} parent=46 // loop_body
                  %v302 = vld [vmem:[%s300] sm:$0xff]
                  %303 = vst [vmem:[%s301] sm:$0xff] %v302
                  %v304 = vld [vmem:[%s300 + $0x20] sm:$0xff]
                  %305 = vst [vmem:[%s301 + $0x8] sm:$0xff] %v304
                  %v306 = vld [vmem:[%s300 + $0x40] sm:$0xff]
                  %307 = vst [vmem:[%s301 + $0x10] sm:$0xff] %v306
                  %v308 = vld [vmem:[%s300 + $0x60] sm:$0xff]
                  %309 = vst [vmem:[%s301 + $0x18] sm:$0xff] %v308
                  %v310 = vld [vmem:[%s300 + $0x80] sm:$0xff]
                  %311 = vst [vmem:[%s301 + $0x20] sm:$0xff] %v310
                  %v312 = vld [vmem:[%s300 + $0xa0] sm:$0xff]
                  %313 = vst [vmem:[%s301 + $0x28] sm:$0xff] %v312
                  %v314 = vld [vmem:[%s300 + $0xc0] sm:$0xff]
                  %315 = vst [vmem:[%s301 + $0x30] sm:$0xff] %v314
                  %v316 = vld [vmem:[%s300 + $0xe0] sm:$0xff]
                  %317 = vst [vmem:[%s301 + $0x38] sm:$0xff] %v316
                  %v318 = vld [vmem:[%s300 + $0x100] sm:$0xff]
                  %319 = vst [vmem:[%s301 + $0x40] sm:$0xff] %v318
                  %v320 = vld [vmem:[%s300 + $0x120] sm:$0xff]
                  %321 = vst [vmem:[%s301 + $0x48] sm:$0xff] %v320
                  %v322 = vld [vmem:[%s300 + $0x140] sm:$0xff]
                  %323 = vst [vmem:[%s301 + $0x50] sm:$0xff] %v322
                  %v324 = vld [vmem:[%s300 + $0x160] sm:$0xff]
                  %325 = vst [vmem:[%s301 + $0x58] sm:$0xff] %v324
                  %v326 = vld [vmem:[%s300 + $0x180] sm:$0xff]
                  %327 = vst [vmem:[%s301 + $0x60] sm:$0xff] %v326
                  %v328 = vld [vmem:[%s300 + $0x1a0] sm:$0xff]
                  %329 = vst [vmem:[%s301 + $0x68] sm:$0xff] %v328
                  %v330 = vld [vmem:[%s300 + $0x1c0] sm:$0xff]
                  %331 = vst [vmem:[%s301 + $0x70] sm:$0xff] %v330
                  %v332 = vld [vmem:[%s300 + $0x1e0] sm:$0xff]
                  %333 = vst [vmem:[%s301 + $0x78] sm:$0xff] %v332
                  %v334 = vld [vmem:[%s300 + $0x200] sm:$0xff]
                  %335 = vst [vmem:[%s301 + $0x80] sm:$0xff] %v334
                  %v336 = vld [vmem:[%s300 + $0x220] sm:$0xff]
                  %337 = vst [vmem:[%s301 + $0x88] sm:$0xff] %v336
                  %v338 = vld [vmem:[%s300 + $0x240] sm:$0xff]
                  %339 = vst [vmem:[%s301 + $0x90] sm:$0xff] %v338
                  %v340 = vld [vmem:[%s300 + $0x260] sm:$0xff]
                  %341 = vst [vmem:[%s301 + $0x98] sm:$0xff] %v340
                  %v342 = vld [vmem:[%s300 + $0x280] sm:$0xff]
                  %343 = vst [vmem:[%s301 + $0xa0] sm:$0xff] %v342
                  %v344 = vld [vmem:[%s300 + $0x2a0] sm:$0xff]
                  %345 = vst [vmem:[%s301 + $0xa8] sm:$0xff] %v344
                  %v346 = vld [vmem:[%s300 + $0x2c0] sm:$0xff]
                  %347 = vst [vmem:[%s301 + $0xb0] sm:$0xff] %v346
                  %v348 = vld [vmem:[%s300 + $0x2e0] sm:$0xff]
                  %349 = vst [vmem:[%s301 + $0xb8] sm:$0xff] %v348
                  %v350 = vld [vmem:[%s300 + $0x300] sm:$0xff]
                  %351 = vst [vmem:[%s301 + $0xc0] sm:$0xff] %v350
                  %v352 = vld [vmem:[%s300 + $0x320] sm:$0xff]
                  %353 = vst [vmem:[%s301 + $0xc8] sm:$0xff] %v352
                  %v354 = vld [vmem:[%s300 + $0x340] sm:$0xff]
                  %355 = vst [vmem:[%s301 + $0xd0] sm:$0xff] %v354
                  %v356 = vld [vmem:[%s300 + $0x360] sm:$0xff]
                  %357 = vst [vmem:[%s301 + $0xd8] sm:$0xff] %v356
                  %v358 = vld [vmem:[%s300 + $0x380] sm:$0xff]
                  %359 = vst [vmem:[%s301 + $0xe0] sm:$0xff] %v358
                  %v360 = vld [vmem:[%s300 + $0x3a0] sm:$0xff]
                  %361 = vst [vmem:[%s301 + $0xe8] sm:$0xff] %v360
                  %v362 = vld [vmem:[%s300 + $0x3c0] sm:$0xff]
                  %363 = vst [vmem:[%s301 + $0xf0] sm:$0xff] %v362
                  %v364 = vld [vmem:[%s300 + $0x3e0] sm:$0xff]
                  %365 = vst [vmem:[%s301 + $0xf8] sm:$0xff] %v364
                $region52: #{_lambda_.109} parent=46 // loop_footer
                  %s299 = sadd.s32 1, %s295
                $region53: #{_lambda_.109} parent=46 // loop_footer_branch
                  %294 = sbr.rel target = $region49
                $region54: #{_lambda_.109} parent=46 // loop_exit
                  _
              $region47: #{_lambda_.109} parent=31 // pred_fallthru
                _
              // Predicated region
              $region55: #{_lambda_.109} parent=31 // pred_check
                _
              $region56: #{_lambda_.109} parent=31 // pred_check_branch
                %367 = sbr.rel target = $region58
              $region57: #{_lambda_.109} parent=31 // pred_region
                _
              $region58: #{_lambda_.109} parent=31 // pred_fallthru
                _
            $region32: #{_lambda_.109} parent=27 // pred_fallthru
              _
            // Predicated region
            $region33: #{_lambda_.109} parent=27 // pred_check
              _
            $region34: #{_lambda_.109} parent=27 // pred_check_branch
              %217 = sbr.rel target = $region36
            $region35: #{_lambda_.109} parent=27 // pred_region
              %s219 = ssub.s32 256, 1
              loop: start=0, step=1, limit=1
              $region37: #{_lambda_.109} parent=35 // loop_pre_header
                _
              $region38: #{_lambda_.109} parent=35 // loop_header
                %s221 = sphi 0, %s225
                %p222 = scmp.ge.s32.totalorder %s221, 1
                %s226 = sphi %s211, %s211
                %s227 = sphi %s205, %s205
              $region39: #{_lambda_.109} parent=35 // loop_header_branch
                %224 = sbr.rel (%p222) target = $region43
              $region40: #{_lambda_.109} parent=35 // loop_body
                %v228 = vld [vmem:[%s226] sm:%s219]
                %229 = vst [vmem:[%s227] sm:%s219] %v228
                %v230 = vld [vmem:[%s226 + $0x20] sm:%s219]
                %231 = vst [vmem:[%s227 + $0x8] sm:%s219] %v230
                %v232 = vld [vmem:[%s226 + $0x40] sm:%s219]
                %233 = vst [vmem:[%s227 + $0x10] sm:%s219] %v232
                %v234 = vld [vmem:[%s226 + $0x60] sm:%s219]
                %235 = vst [vmem:[%s227 + $0x18] sm:%s219] %v234
                %v236 = vld [vmem:[%s226 + $0x80] sm:%s219]
                %237 = vst [vmem:[%s227 + $0x20] sm:%s219] %v236
                %v238 = vld [vmem:[%s226 + $0xa0] sm:%s219]
                %239 = vst [vmem:[%s227 + $0x28] sm:%s219] %v238
                %v240 = vld [vmem:[%s226 + $0xc0] sm:%s219]
                %241 = vst [vmem:[%s227 + $0x30] sm:%s219] %v240
                %v242 = vld [vmem:[%s226 + $0xe0] sm:%s219]
                %243 = vst [vmem:[%s227 + $0x38] sm:%s219] %v242
                %v244 = vld [vmem:[%s226 + $0x100] sm:%s219]
                %245 = vst [vmem:[%s227 + $0x40] sm:%s219] %v244
                %v246 = vld [vmem:[%s226 + $0x120] sm:%s219]
                %247 = vst [vmem:[%s227 + $0x48] sm:%s219] %v246
                %v248 = vld [vmem:[%s226 + $0x140] sm:%s219]
                %249 = vst [vmem:[%s227 + $0x50] sm:%s219] %v248
                %v250 = vld [vmem:[%s226 + $0x160] sm:%s219]
                %251 = vst [vmem:[%s227 + $0x58] sm:%s219] %v250
                %v252 = vld [vmem:[%s226 + $0x180] sm:%s219]
                %253 = vst [vmem:[%s227 + $0x60] sm:%s219] %v252
                %v254 = vld [vmem:[%s226 + $0x1a0] sm:%s219]
                %255 = vst [vmem:[%s227 + $0x68] sm:%s219] %v254
                %v256 = vld [vmem:[%s226 + $0x1c0] sm:%s219]
                %257 = vst [vmem:[%s227 + $0x70] sm:%s219] %v256
                %v258 = vld [vmem:[%s226 + $0x1e0] sm:%s219]
                %259 = vst [vmem:[%s227 + $0x78] sm:%s219] %v258
                %v260 = vld [vmem:[%s226 + $0x200] sm:%s219]
                %261 = vst [vmem:[%s227 + $0x80] sm:%s219] %v260
                %v262 = vld [vmem:[%s226 + $0x220] sm:%s219]
                %263 = vst [vmem:[%s227 + $0x88] sm:%s219] %v262
                %v264 = vld [vmem:[%s226 + $0x240] sm:%s219]
                %265 = vst [vmem:[%s227 + $0x90] sm:%s219] %v264
                %v266 = vld [vmem:[%s226 + $0x260] sm:%s219]
                %267 = vst [vmem:[%s227 + $0x98] sm:%s219] %v266
                %v268 = vld [vmem:[%s226 + $0x280] sm:%s219]
                %269 = vst [vmem:[%s227 + $0xa0] sm:%s219] %v268
                %v270 = vld [vmem:[%s226 + $0x2a0] sm:%s219]
                %271 = vst [vmem:[%s227 + $0xa8] sm:%s219] %v270
                %v272 = vld [vmem:[%s226 + $0x2c0] sm:%s219]
                %273 = vst [vmem:[%s227 + $0xb0] sm:%s219] %v272
                %v274 = vld [vmem:[%s226 + $0x2e0] sm:%s219]
                %275 = vst [vmem:[%s227 + $0xb8] sm:%s219] %v274
                %v276 = vld [vmem:[%s226 + $0x300] sm:%s219]
                %277 = vst [vmem:[%s227 + $0xc0] sm:%s219] %v276
                %v278 = vld [vmem:[%s226 + $0x320] sm:%s219]
                %279 = vst [vmem:[%s227 + $0xc8] sm:%s219] %v278
                %v280 = vld [vmem:[%s226 + $0x340] sm:%s219]
                %281 = vst [vmem:[%s227 + $0xd0] sm:%s219] %v280
                %v282 = vld [vmem:[%s226 + $0x360] sm:%s219]
                %283 = vst [vmem:[%s227 + $0xd8] sm:%s219] %v282
                %v284 = vld [vmem:[%s226 + $0x380] sm:%s219]
                %285 = vst [vmem:[%s227 + $0xe0] sm:%s219] %v284
                %v286 = vld [vmem:[%s226 + $0x3a0] sm:%s219]
                %287 = vst [vmem:[%s227 + $0xe8] sm:%s219] %v286
                %v288 = vld [vmem:[%s226 + $0x3c0] sm:%s219]
                %289 = vst [vmem:[%s227 + $0xf0] sm:%s219] %v288
                %v290 = vld [vmem:[%s226 + $0x3e0] sm:%s219]
                %291 = vst [vmem:[%s227 + $0xf8] sm:%s219] %v290
              $region41: #{_lambda_.109} parent=35 // loop_footer
                %s225 = sadd.s32 1, %s221
              $region42: #{_lambda_.109} parent=35 // loop_footer_branch
                %220 = sbr.rel target = $region38
              $region43: #{_lambda_.109} parent=35 // loop_exit
                _
            $region36: #{_lambda_.109} parent=27 // pred_fallthru
              _
          $region28: #{_lambda_.109} parent=23 // pred_fallthru
            _
          %368 = vnop
        $region24: #{_lambda_.109} parent=19 // pred_fallthru
          _
        // Predicated region
        $region59: #{_lambda_.109} parent=19 // pred_check
          %p369 = pneg %p108
        $region60: #{_lambda_.109} parent=19 // pred_check_branch
          %371 = sbr.rel (%p369) target = $region62
        $region61: #{_lambda_.109} parent=19 // pred_region
          %s372 = smul.u32 2, %s21
          %p373 = scmp.lt.s32.totalorder %s372, 7
          %s374 = scalar_select %p373, %s372, 7
          %s375 = scalar_lea.vmem %s2, %s374
          %s376 = smul.u32 2, %s21
        $region62: #{_lambda_.109} parent=19 // pred_fallthru
          _
        // Predicated region
        $region63: #{_lambda_.109} parent=19 // pred_check
          %p377 = pneg %p134
        $region64: #{_lambda_.109} parent=19 // pred_check_branch
          %379 = sbr.rel (%p377) target = $region66
        $region65: #{_lambda_.109} parent=19 // pred_region
          %s380 = smul.u32 2, %s21
          %p381 = scmp.lt.s32.totalorder %s380, 7
          %s382 = scalar_select %p381, %s380, 7
          %s383 = scalar_lea.vmem %s3, %s382
          %s384 = smul.u32 2, %s21
        $region66: #{_lambda_.109} parent=19 // pred_fallthru
          _
      $region20: #{_lambda_.109} parent=5 // pred_fallthru
        _
      %p385 = scmp.le.s32.totalorder 1, %s13
      %p386 = scmp.lt.s32.totalorder %s13, 5
      %p387 = pnand %p385, %p386
      %p388 = pneg %p387
      // Predicated region
      $region67: #{_lambda_.109} parent=5 // pred_check
        _
      $region68: #{_lambda_.109} parent=5 // pred_check_branch
        %390 = sbr.rel (%p387) target = $region70
      $region69: #{_lambda_.109} parent=5 // pred_region
        %s391 = ssub.s32 %s13, 1
        %s392 = sand.u32 %s75, 1
        %s393 = sand.u32 %s75, 1
        %s394 = smul.addr %s393, 256
        %s395 = scalar_lea.vmem [#allocation3], %s394
        // Predicated region
        $region71: #{_lambda_.109} parent=69 // pred_check
          %p396 = pneg %p88
        $region72: #{_lambda_.109} parent=69 // pred_check_branch
          %398 = sbr.rel (%p396) target = $region74
        $region73: #{_lambda_.109} parent=69 // pred_region
          _
        $region74: #{_lambda_.109} parent=69 // pred_fallthru
          _
        %s399 = smul.u32 2, %s25
        %p400 = scmp.lt.s32.totalorder %s23, 0
        %s401 = scalar_select %p400, %s23, 0
        %p402 = scmp.lt.s32.totalorder %s399, 1
        %s403 = scalar_select %p402, %s399, 1
        %s404 = smul.addr %s401, 2
        %s405 = sadd.s32 %s403, %s404
        %s406 = scalar_lea.vmem %s0, %s405
        %p407 = pneg %p60
        %p408 = pneg %p57
        %s409 = sand.u32 %s75, 1
        %s410 = sand.u32 %s75, 1
        %s411 = smul.addr %s410, 256
        %s412 = scalar_lea.vmem [#allocation3], %s411
        %p413 = pneg %p88
        %p414 = pneg %p85
        %s415 = smul.u32 2, %s24
        %p416 = scmp.lt.s32.totalorder %s415, 7
        %s417 = scalar_select %p416, %s415, 7
        %s418 = scalar_lea.vmem %s2, %s417
        %p419 = pneg %p114
        %p420 = pneg %p111
        %s421 = smul.u32 2, %s24
        %p422 = scmp.lt.s32.totalorder %s421, 7
        %s423 = scalar_select %p422, %s421, 7
        %s424 = scalar_lea.vmem %s3, %s423
        %p425 = pneg %p140
        %p426 = pneg %p137
        %p427 = pneg %p168
        %p428 = pneg %p165
        %s429 = sand.u32 %s155, 1
        %s430 = scalar_lea.sflag [#allocation5], %s429
        %s431 = sand.u32 %s155, 1
        %s432 = smul.addr %s431, 4
        %s433 = scalar_lea.vmem [#allocation4], %s432
        %s434 = smul.u32 2, %s25
        %p435 = scmp.lt.s32.totalorder %s23, 0
        %s436 = scalar_select %p435, %s23, 0
        %p437 = scmp.lt.s32.totalorder %s434, 1
        %s438 = scalar_select %p437, %s434, 1
        %s439 = smul.addr %s436, 2
        %s440 = sadd.s32 %s438, %s439
        %s441 = scalar_lea.vmem %s0, %s440
        %s442 = smul.u32 2, %s25
        %s443 = smul.u32 32, %s25
        %s444 = smul.u32 2, %s24
        %s445 = smul.u32 2, %s24
        %p446 = scmp.lt.s32.totalorder %s445, 7
        %s447 = scalar_select %p446, %s445, 7
        %s448 = scalar_lea.vmem %s2, %s447
        %s449 = smul.u32 2, %s24
        %s450 = smul.u32 2, %s24
        %p451 = scmp.lt.s32.totalorder %s450, 7
        %s452 = scalar_select %p451, %s450, 7
        %s453 = scalar_lea.vmem %s3, %s452
        %s454 = smul.u32 2, %s24
        %s455 = smul.u32 2, %s24
        %p456 = scmp.eq.s32.totalorder %s25, 0
        // Predicated region
        $region75: #{_lambda_.109} parent=69 // pred_check
          %p457 = pneg %p456
        $region76: #{_lambda_.109} parent=69 // pred_check_branch
          %459 = sbr.rel (%p457) target = $region78
        $region77: #{_lambda_.109} parent=69 // pred_region
          %460 = vst [vmem:[#allocation2] sm:$0xf] 0.0
        $region78: #{_lambda_.109} parent=69 // pred_fallthru
          _
        %v461 = vld [vmem:[#allocation2] sm:$0xf]
        %v462 = vld [vmem:[%s441] sm:$0x3]
        %v463 = vld [vmem:[%s395] sm:$0xff]
        %v464 = vld [vmem:[%s395 + $0x8] sm:$0xff]
        %v465 = vld [vmem:[%s395 + $0x10] sm:$0xff]
        %v466 = vld [vmem:[%s395 + $0x18] sm:$0xff]
        %v467 = vld [vmem:[%s395 + $0x20] sm:$0xff]
        %v468 = vld [vmem:[%s395 + $0x28] sm:$0xff]
        %v469 = vld [vmem:[%s395 + $0x30] sm:$0xff]
        %v470 = vld [vmem:[%s395 + $0x38] sm:$0xff]
        %v471 = vld [vmem:[%s395 + $0x40] sm:$0xff]
        %v472 = vld [vmem:[%s395 + $0x48] sm:$0xff]
        %v473 = vld [vmem:[%s395 + $0x50] sm:$0xff]
        %v474 = vld [vmem:[%s395 + $0x58] sm:$0xff]
        %v475 = vld [vmem:[%s395 + $0x60] sm:$0xff]
        %v476 = vld [vmem:[%s395 + $0x68] sm:$0xff]
        %v477 = vld [vmem:[%s395 + $0x70] sm:$0xff]
        %v478 = vld [vmem:[%s395 + $0x78] sm:$0xff]
        %v479 = vld [vmem:[%s395 + $0x80] sm:$0xff]
        %v480 = vld [vmem:[%s395 + $0x88] sm:$0xff]
        %v481 = vld [vmem:[%s395 + $0x90] sm:$0xff]
        %v482 = vld [vmem:[%s395 + $0x98] sm:$0xff]
        %v483 = vld [vmem:[%s395 + $0xa0] sm:$0xff]
        %v484 = vld [vmem:[%s395 + $0xa8] sm:$0xff]
        %v485 = vld [vmem:[%s395 + $0xb0] sm:$0xff]
        %v486 = vld [vmem:[%s395 + $0xb8] sm:$0xff]
        %v487 = vld [vmem:[%s395 + $0xc0] sm:$0xff]
        %v488 = vld [vmem:[%s395 + $0xc8] sm:$0xff]
        %v489 = vld [vmem:[%s395 + $0xd0] sm:$0xff]
        %v490 = vld [vmem:[%s395 + $0xd8] sm:$0xff]
        %v491 = vld [vmem:[%s395 + $0xe0] sm:$0xff]
        %v492 = vld [vmem:[%s395 + $0xe8] sm:$0xff]
        %v493 = vld [vmem:[%s395 + $0xf0] sm:$0xff]
        %v494 = vld [vmem:[%s395 + $0xf8] sm:$0xff]
        %v497 = vunpack.c.l.s4 1966171168
        %v498 = vunpack.c.0.s8 %v497
        %v499 = vlaneseq
        %v500 = vshrl.u32 %v499, 7
        %v501 = vsub.s32 %v498, %v500
        %v502 = vrot.slane %v462, %v501
        %v503 = vcombine.high %v502, %v502
        %v505 = vunpack.c.l.s4 1966171168
        %v506 = vunpack.c.0.s8 %v505
        %v507 = vlaneseq
        %v508 = vshrl.u32 %v507, 7
        %v509 = vsub.s32 %v506, %v508
        %v510 = vrot.slane %v502, %v509
        %v512 = vunpack.c.l.s4 1966171168
        %v513 = vunpack.c.0.s8 %v512
        %v514 = vlaneseq
        %v515 = vshrl.u32 %v514, 7
        %v516 = vsub.s32 %v513, %v515
        %v517 = vrot.slane %v503, %v516
        %v552 = vunpack.c.l.b16 %v463
        %v553 = vunpack.c.h.b16 %v463
        %v554 = vunpack.c.l.b16 %v464
        %v555 = vunpack.c.h.b16 %v464
        %v556 = vunpack.c.l.b16 %v465
        %v557 = vunpack.c.h.b16 %v465
        %v558 = vunpack.c.l.b16 %v466
        %v559 = vunpack.c.h.b16 %v466
        %v560 = vunpack.c.l.b16 %v467
        %v561 = vunpack.c.h.b16 %v467
        %v562 = vunpack.c.l.b16 %v468
        %v563 = vunpack.c.h.b16 %v468
        %v564 = vunpack.c.l.b16 %v469
        %v565 = vunpack.c.h.b16 %v469
        %v566 = vunpack.c.l.b16 %v470
        %v567 = vunpack.c.h.b16 %v470
        %v568 = vunpack.c.l.b16 %v471
        %v569 = vunpack.c.h.b16 %v471
        %v570 = vunpack.c.l.b16 %v472
        %v571 = vunpack.c.h.b16 %v472
        %v572 = vunpack.c.l.b16 %v473
        %v573 = vunpack.c.h.b16 %v473
        %v574 = vunpack.c.l.b16 %v474
        %v575 = vunpack.c.h.b16 %v474
        %v576 = vunpack.c.l.b16 %v475
        %v577 = vunpack.c.h.b16 %v475
        %v578 = vunpack.c.l.b16 %v476
        %v579 = vunpack.c.h.b16 %v476
        %v580 = vunpack.c.l.b16 %v477
        %v581 = vunpack.c.h.b16 %v477
        %v582 = vunpack.c.l.b16 %v478
        %v583 = vunpack.c.h.b16 %v478
        %v584 = vunpack.c.l.b16 %v479
        %v585 = vunpack.c.h.b16 %v479
        %v586 = vunpack.c.l.b16 %v480
        %v587 = vunpack.c.h.b16 %v480
        %v588 = vunpack.c.l.b16 %v481
        %v589 = vunpack.c.h.b16 %v481
        %v590 = vunpack.c.l.b16 %v482
        %v591 = vunpack.c.h.b16 %v482
        %v592 = vunpack.c.l.b16 %v483
        %v593 = vunpack.c.h.b16 %v483
        %v594 = vunpack.c.l.b16 %v484
        %v595 = vunpack.c.h.b16 %v484
        %v596 = vunpack.c.l.b16 %v485
        %v597 = vunpack.c.h.b16 %v485
        %v598 = vunpack.c.l.b16 %v486
        %v599 = vunpack.c.h.b16 %v486
        %v600 = vunpack.c.l.b16 %v487
        %v601 = vunpack.c.h.b16 %v487
        %v602 = vunpack.c.l.b16 %v488
        %v603 = vunpack.c.h.b16 %v488
        %v604 = vunpack.c.l.b16 %v489
        %v605 = vunpack.c.h.b16 %v489
        %v606 = vunpack.c.l.b16 %v490
        %v607 = vunpack.c.h.b16 %v490
        %v608 = vunpack.c.l.b16 %v491
        %v609 = vunpack.c.h.b16 %v491
        %v610 = vunpack.c.l.b16 %v492
        %v611 = vunpack.c.h.b16 %v492
        %v612 = vunpack.c.l.b16 %v493
        %v613 = vunpack.c.h.b16 %v493
        %v614 = vunpack.c.l.b16 %v494
        %v615 = vunpack.c.h.b16 %v494
        %v616 = vpack.c.b16 %v554, %v552
        %v617 = vpack.c.b16 %v555, %v553
        %v618 = vpack.c.b16 %v558, %v556
        %v619 = vpack.c.b16 %v559, %v557
        %v620 = vpack.c.b16 %v562, %v560
        %v621 = vpack.c.b16 %v563, %v561
        %v622 = vpack.c.b16 %v566, %v564
        %v623 = vpack.c.b16 %v567, %v565
        %v624 = vpack.c.b16 %v570, %v568
        %v625 = vpack.c.b16 %v571, %v569
        %v626 = vpack.c.b16 %v574, %v572
        %v627 = vpack.c.b16 %v575, %v573
        %v628 = vpack.c.b16 %v578, %v576
        %v629 = vpack.c.b16 %v579, %v577
        %v630 = vpack.c.b16 %v582, %v580
        %v631 = vpack.c.b16 %v583, %v581
        %v632 = vpack.c.b16 %v586, %v584
        %v633 = vpack.c.b16 %v587, %v585
        %v634 = vpack.c.b16 %v590, %v588
        %v635 = vpack.c.b16 %v591, %v589
        %v636 = vpack.c.b16 %v594, %v592
        %v637 = vpack.c.b16 %v595, %v593
        %v638 = vpack.c.b16 %v598, %v596
        %v639 = vpack.c.b16 %v599, %v597
        %v640 = vpack.c.b16 %v602, %v600
        %v641 = vpack.c.b16 %v603, %v601
        %v642 = vpack.c.b16 %v606, %v604
        %v643 = vpack.c.b16 %v607, %v605
        %v644 = vpack.c.b16 %v610, %v608
        %v645 = vpack.c.b16 %v611, %v609
        %v646 = vpack.c.b16 %v614, %v612
        %v647 = vpack.c.b16 %v615, %v613
        %680 = vmatprep.subr.bf16.mxu0 %v631
        %681 = vmatpush1.bf16.msra.mxu0 %v630
        %682 = vmatprep.subr.bf16.mxu0 %v629
        %683 = vmatpush1.bf16.msra.mxu0 %v628
        %684 = vmatprep.subr.bf16.mxu0 %v627
        %685 = vmatpush1.bf16.msra.mxu0 %v626
        %686 = vmatprep.subr.bf16.mxu0 %v625
        %687 = vmatpush1.bf16.msra.mxu0 %v624
        %688 = vmatprep.subr.bf16.mxu0 %v623
        %689 = vmatpush1.bf16.msra.mxu0 %v622
        %690 = vmatprep.subr.bf16.mxu0 %v621
        %691 = vmatpush1.bf16.msra.mxu0 %v620
        %692 = vmatprep.subr.bf16.mxu0 %v619
        %693 = vmatpush1.bf16.msra.mxu0 %v618
        %694 = vmatprep.subr.bf16.mxu0 %v617
        %695 = vmatpush1.bf16.msra.mxu0 %v616
        %696 = vmatprep.subr.bf16.mxu0 %v647
        %697 = vmatpush2.bf16.msra.mxu0 %v646
        %698 = vmatprep.subr.bf16.mxu0 %v645
        %699 = vmatpush2.bf16.msra.mxu0 %v644
        %700 = vmatprep.subr.bf16.mxu0 %v643
        %701 = vmatpush2.bf16.msra.mxu0 %v642
        %702 = vmatprep.subr.bf16.mxu0 %v641
        %703 = vmatpush2.bf16.msra.mxu0 %v640
        %704 = vmatprep.subr.bf16.mxu0 %v639
        %705 = vmatpush2.bf16.msra.mxu0 %v638
        %706 = vmatprep.subr.bf16.mxu0 %v637
        %707 = vmatpush2.bf16.msra.mxu0 %v636
        %708 = vmatprep.subr.bf16.mxu0 %v635
        %709 = vmatpush2.bf16.msra.mxu0 %v634
        %710 = vmatprep.subr.bf16.mxu0 %v633
        %711 = vmatpush2.bf16.msra.mxu0 %v632
        %712 = vmatprep.mubr.bf16.mxu0 %v517
        %713 = vmatmul.mubr.bf16.gmra.mxu0 %v510
        %v714 = vpop.f32.mrf.mxu0
        %v715 = vadd.f32 0.0, %v714
        %v716 = vpop.f32.mrf.mxu0
        %v717 = vadd.f32 0.0, %v716
        %v718 = vpop.f32.mrf.mxu0
        %v719 = vpop.f32.mrf.mxu0
        %720 = vdwg.mxu0
        %v723 = vcombine.low %v715, %v717
        %v725 = vunpack.c.l.s4 1983009808
        %v726 = vunpack.c.0.s8 %v725
        %v727 = vlaneseq
        %v728 = vshrl.u32 %v727, 7
        %v729 = vsub.s32 %v726, %v728
        %v730 = vrot.slane %v723, %v729
        %v732 = vadd.f32 %v461, %v730
        %733 = vst [vmem:[#allocation2] sm:$0xf] %v732
        // Predicated region
        $region79: #{_lambda_.109} parent=69 // pred_check
          %p734 = pneg %p456
        $region80: #{_lambda_.109} parent=69 // pred_check_branch
          %736 = sbr.rel (%p734) target = $region82
        $region81: #{_lambda_.109} parent=69 // pred_region
          %v737 = vld [vmem:[#allocation2] sm:$0xf]
          %v738 = vld [vmem:[%s448] sm:$0x3]
          %v740 = vlaneseq
          %v741 = vshrl.u32 %v740, 7
          %v742 = vsub.s32 0, %v741
          %v743 = vrot.slane %v738, %v742
          %v744 = vlaneseq
          %v745 = vshrl.u32 %v744, 7
          %v746 = vsub.s32 1, %v745
          %v747 = vrot.slane %v738, %v746
          %v748 = vcombine.low %v743, %v747
          %v750 = vunpack.c.l.s4 1983009808
          %v751 = vunpack.c.0.s8 %v750
          %v752 = vlaneseq
          %v753 = vshrl.u32 %v752, 7
          %v754 = vsub.s32 %v751, %v753
          %v755 = vrot.slane %v748, %v754
          %v757 = vmul.f32 %v737, %v755
          %v758 = vld [vmem:[%s453] sm:$0x3]
          %v760 = vlaneseq
          %v761 = vshrl.u32 %v760, 7
          %v762 = vsub.s32 0, %v761
          %v763 = vrot.slane %v758, %v762
          %v764 = vlaneseq
          %v765 = vshrl.u32 %v764, 7
          %v766 = vsub.s32 1, %v765
          %v767 = vrot.slane %v758, %v766
          %v768 = vcombine.low %v763, %v767
          %v770 = vunpack.c.l.s4 1983009808
          %v771 = vunpack.c.0.s8 %v770
          %v772 = vlaneseq
          %v773 = vshrl.u32 %v772, 7
          %v774 = vsub.s32 %v771, %v773
          %v775 = vrot.slane %v768, %v774
          %v777 = vadd.f32 %v757, %v775
          %778 = vst [vmem:[%s433] sm:$0xf] %v777
        $region82: #{_lambda_.109} parent=69 // pred_fallthru
          _
        %s779 = sand.u32 %s155, 1
        %s780 = scalar_lea.sflag [#allocation5], %s779
        %s781 = sand.u32 %s155, 1
        %s782 = smul.addr %s781, 4
        %s783 = scalar_lea.vmem [#allocation4], %s782
        // Predicated region
        $region83: #{_lambda_.109} parent=69 // pred_check
          %p784 = pneg %p165
        $region84: #{_lambda_.109} parent=69 // pred_check_branch
          %786 = sbr.rel (%p784) target = $region86
        $region85: #{_lambda_.109} parent=69 // pred_region
          %s787 = smul.u32 2, %s24
          %s789 = ssub.s32 64, 64
          %790 = vsyncadd %s780, %s789
          %s791 = smul.addr %s23, 8
          %s792 = sadd.s32 %s787, %s791
          %s793 = smul.addr %s792, 32
          %s794 = scalar_lea.hbm %s4, %s793
          %s796 = sshll.u32 %s783, 4
          %s797 = int_to_ptr.vmem [resolvable:$true] %s796
          %799 = dma.vmem_to_hbm [thread:$0]  %s797, 64, %s794, %s780
        $region86: #{_lambda_.109} parent=69 // pred_fallthru
          _
      $region70: #{_lambda_.109} parent=5 // pred_fallthru
        _
      %p800 = scmp.le.s32.totalorder 2, %s13
      // Predicated region
      $region87: #{_lambda_.109} parent=5 // pred_check
        %p801 = pneg %p800
      $region88: #{_lambda_.109} parent=5 // pred_check_branch
        %803 = sbr.rel (%p801) target = $region90
      $region89: #{_lambda_.109} parent=5 // pred_region
        %s804 = ssub.s32 %s13, 2
        // Predicated region
        $region91: #{_lambda_.109} parent=89 // pred_check
          %p805 = pneg %p171
        $region92: #{_lambda_.109} parent=89 // pred_check_branch
          %807 = sbr.rel (%p805) target = $region94
        $region93: #{_lambda_.109} parent=89 // pred_region
          %s808 = sand.u32 %s156, 1
          %s809 = scalar_lea.sflag [#allocation5], %s808
          %s810 = sand.u32 %s156, 1
          %s811 = smul.addr %s810, 4
          %s812 = scalar_lea.vmem [#allocation4], %s811
          %813 = dma.done %s809, 64
        $region94: #{_lambda_.109} parent=89 // pred_fallthru
          _
      $region90: #{_lambda_.109} parent=5 // pred_fallthru
        _
    $region6: #{_lambda_.109} parent=1 // loop_footer
      %s17 = sadd.s32 1, %s13
    $region7: #{_lambda_.109} parent=1 // loop_footer_branch
      %12 = sbr.rel target = $region3
    $region8: #{_lambda_.109} parent=1 // loop_exit
      _
    %814 = vsyncpa [#allocation5], 1
    %s815 = scalar_lea.sflag [#allocation5], 1
    %816 = vsyncpa %s815, 1

</llo_original>
